<compile_context>
chip_gen: v7x
topology: tpu7x:2x2x1
jax: 0.10.0
libtpu: 0.0.40
codegen_flags: <defaults>
</compile_context>

<pallas_src>
import math

import numpy as np
import jax
import jax.numpy as jnp
from jax.experimental import pallas as pl
from jax.experimental.pallas import tpu as pltpu

EPS = 1e-5                      # BatchNorm3d default eps
MM_DTYPE = jnp.bfloat16         # MXU operand dtype (accumulation is fp32)
LANE = 128


def _round_up(x, m):
    return ((x + m - 1) // m) * m


# ------------------------------ Pallas kernels ------------------------------

def _conv_matmul_kernel(x_ref, w_ref, o_ref):
    """One conv as a single channel-major MXU matmul: o = W @ X.

    x_ref: (Kp, M)   im2col'd activation, K = kd*kh*kw*Cin zero-padded to a
                     128 multiple, M = Do*Ho*Wo (256 here), bf16.
    w_ref: (Cout, Kp) folded weights, bf16.
    o_ref: (Cout, M)  fp32 -- lane-dense store (M is a 128 multiple)."""
    o_ref[...] = jnp.dot(w_ref[...], x_ref[...],
                         preferred_element_type=jnp.float32)


def _bn_relu_maxpool_kernel(x_ref, mask_ref, scale_ref, shift_ref, o_ref):
    """relu(scale*x + shift) followed by separable 3x3x3 / stride-1 max pool.

    x_ref:    (Dp, Hp, Wp, C) zero-padded raw conv output, fp32.
    mask_ref: (Dp, Hp, Wp, 1) 1 on the interior, 0 on the pad ring -- the pad
              then acts like -inf for the pool (post-ReLU values are >= 0),
              exactly for any BN gamma/beta (no neutral-pad-value tricks).
    o_ref:    (Do, Ho, Wo, C) fp32."""
    Dp, Hp, Wp, _ = x_ref.shape
    Do, Ho, Wo = Dp - 2, Hp - 2, Wp - 2
    sc = scale_ref[...]                                   # (1, C) -- bound once
    sh = shift_ref[...]
    a = jnp.maximum(x_ref[...] * sc + sh, 0.0) * mask_ref[...]
    mw = jnp.maximum(jnp.maximum(a[:, :, 0:Wo], a[:, :, 1:Wo + 1]), a[:, :, 2:Wo + 2])
    mh = jnp.maximum(jnp.maximum(mw[:, 0:Ho], mw[:, 1:Ho + 1]), mw[:, 2:Ho + 2])
    md = jnp.maximum(jnp.maximum(mh[0:Do], mh[1:Do + 1]), mh[2:Do + 2])
    o_ref[...] = md.astype(o_ref.dtype)


def _head_kernel(y_ref, id_ref, scale_ref, shift_ref, aup_ref, w_ref, b_ref, o_ref):
    """BN2 affine + residual + ReLU + trilinear x2 (H,W) + 1x1x1 conv + bias
    + sigmoid, all channel-major so every matmul output is lane-dense.

    y_ref/id_ref: (C, M)   fp32 conv2 output / residual, M = Do*Ho*Wo.
    aup_ref:      (M, M2)  bf16 block-diagonal (per D slice) bilinear upsample
                           matrix, M2 = Do*(2Ho)*(2Wo).
    w_ref:        (Co, C)  bf16 1x1x1 conv weight;  b_ref: (Co, 1) fp32 bias.
    o_ref:        (Co, M2) fp32 (reshapes straight to NCDHW in the wrapper)."""
    z = jnp.maximum(y_ref[...] * scale_ref[...] + shift_ref[...] + id_ref[...], 0.0)
    up = jnp.dot(z.astype(MM_DTYPE), aup_ref[...],
                 preferred_element_type=jnp.float32)              # (C, M2)
    # 1x1x1 conv: contracting dim is only C (=8); keep the proven fp32 path --
    # its FLOPs are negligible next to the upsample matmul above.
    out = jnp.dot(w_ref[...].astype(jnp.float32), up,
                  preferred_element_type=jnp.float32)             # (Co, M2)
    o_ref[...] = jax.nn.sigmoid(out + b_ref[...])


# ------------------------------ call wrappers --------------------------------

def _conv_matmul(xcol, w):
    """y[n] = W @ X[n] for every batch element.  grid=(N,) 'parallel'."""
    N, Kp, M = xcol.shape
    Cout = w.shape[0]
    return pl.pallas_call(
        _conv_matmul_kernel,
        out_shape=jax.ShapeDtypeStruct((N, Cout, M), jnp.float32),
        grid=(N,),
        in_specs=[pl.BlockSpec((None, Kp, M), lambda n: (n, 0, 0)),
                  pl.BlockSpec((Cout, Kp), lambda n: (0, 0))],
        out_specs=pl.BlockSpec((None, Cout, M), lambda n: (n, 0, 0)),
        compiler_params=pltpu.CompilerParams(dimension_semantics=("parallel",)),
    )(xcol, w)


def _bn_relu_maxpool(y0p, mask, scale, shift):
    N, Dp, Hp, Wp, C = y0p.shape
    Do, Ho, Wo = Dp - 2, Hp - 2, Wp - 2
    return pl.pallas_call(
        _bn_relu_maxpool_kernel,
        out_shape=jax.ShapeDtypeStruct((N, Do, Ho, Wo, C), jnp.float32),
        grid=(N,),
        in_specs=[pl.BlockSpec((None, Dp, Hp, Wp, C), lambda n: (n, 0, 0, 0, 0)),
                  pl.BlockSpec((Dp, Hp, Wp, 1), lambda n: (0, 0, 0, 0)),
                  pl.BlockSpec((1, C), lambda n: (0, 0)),
                  pl.BlockSpec((1, C), lambda n: (0, 0))],
        out_specs=pl.BlockSpec((None, Do, Ho, Wo, C), lambda n: (n, 0, 0, 0, 0)),
        compiler_params=pltpu.CompilerParams(dimension_semantics=("parallel",)),
    )(y0p, mask, scale.reshape(1, C).astype(jnp.float32),
      shift.reshape(1, C).astype(jnp.float32))


def _head(y2, x_id, scale, shift, a_bd, w2, b2):
    N, C, M = y2.shape
    Co = w2.shape[0]
    M2 = a_bd.shape[1]
    return pl.pallas_call(
        _head_kernel,
        out_shape=jax.ShapeDtypeStruct((N, Co, M2), jnp.float32),
        grid=(N,),
        in_specs=[pl.BlockSpec((None, C, M), lambda n: (n, 0, 0)),
                  pl.BlockSpec((None, C, M), lambda n: (n, 0, 0)),
                  pl.BlockSpec((C, 1), lambda n: (0, 0)),
                  pl.BlockSpec((C, 1), lambda n: (0, 0)),
                  pl.BlockSpec((M, M2), lambda n: (0, 0)),
                  pl.BlockSpec((Co, C), lambda n: (0, 0)),
                  pl.BlockSpec((Co, 1), lambda n: (0, 0))],
        out_specs=pl.BlockSpec((None, Co, M2), lambda n: (n, 0, 0)),
        compiler_params=pltpu.CompilerParams(dimension_semantics=("parallel",)),
    )(y2, x_id, scale.reshape(C, 1).astype(jnp.float32),
      shift.reshape(C, 1).astype(jnp.float32), a_bd, w2,
      b2.reshape(Co, 1).astype(jnp.float32))


# ------------------------------ JAX glue (layout / tiny scalar math) ---------

def _im2col_cm(x, kd, kh, kw, stride, pad, k_pad):
    """NDHWC activation -> channel-major matmul operand (N, Kp, M), bf16.

    Folds ALL kd*kh*kw taps (and the stride) into the K axis so the conv
    kernel is a single well-filled MXU matmul, and zero-pads K to a 128
    multiple for aligned, unmasked loads / full K passes.  The 27-37x HBM
    blow-up is a few hundred KB at these sizes."""
    sd, sh, sw = stride
    pd, ph, pw = pad
    xp = jnp.pad(x.astype(MM_DTYPE),
                 ((0, 0), (pd, pd), (ph, ph), (pw, pw), (0, 0)))
    N, Dp, Hp, Wp, C = xp.shape
    Do = (Dp - kd) // sd + 1
    Ho = (Hp - kh) // sh + 1
    Wo = (Wp - kw) // sw + 1
    taps = []
    for dz in range(kd):
        for dy in range(kh):
            for dx in range(kw):
                taps.append(xp[:, dz:dz + (Do - 1) * sd + 1:sd,
                                  dy:dy + (Ho - 1) * sh + 1:sh,
                                  dx:dx + (Wo - 1) * sw + 1:sw, :])
    col = jnp.stack(taps, axis=1)                        # (N, taps, Do, Ho, Wo, C)
    col = jnp.transpose(col, (0, 1, 5, 2, 3, 4))         # (N, taps, C, Do, Ho, Wo)
    col = col.reshape(N, kd * kh * kw * C, Do * Ho * Wo)
    k = kd * kh * kw * C
    if k_pad > k:
        col = jnp.pad(col, ((0, 0), (0, k_pad - k), (0, 0)))
    return col, (Do, Ho, Wo)


def _bn_scale_shift(y, gamma, beta):
    """Training-mode BatchNorm3d (per-batch mean, biased variance) folded into
    a per-channel affine.  Computed in the XLA wrapper from the fp32 conv
    output (review item: no in-kernel partial-stat stores)."""
    mean = jnp.mean(y, axis=(0, 2))
    var = jnp.mean(jnp.square(y - mean[None, :, None]), axis=(0, 2))
    scale = gamma * jax.lax.rsqrt(var + EPS)
    shift = beta - mean * scale
    return scale, shift


def _interp_matrix(in_size, out_size):
    """1-D linear interpolation matrix, align_corners=True (numpy, trace time)."""
    i = np.arange(out_size, dtype=np.float64)
    src = np.zeros(out_size) if out_size == 1 else i * (in_size - 1) / (out_size - 1)
    lo = np.clip(np.floor(src).astype(np.int64), 0, in_size - 1)
    hi = np.minimum(lo + 1, in_size - 1)
    frac = (src - lo).astype(np.float32)
    A = np.zeros((out_size, in_size), np.float32)
    A[np.arange(out_size), lo] += 1.0 - frac
    A[np.arange(out_size), hi] += frac
    return A


def _upsample_matrix(Do, Ho, Wo):
    """Right-multiply matrix for the (1,2,2) trilinear align_corners=True
    upsample in channel-major layout: up = z @ A with z of shape (C, Do*Ho*Wo)."""
    A_hw = np.kron(_interp_matrix(Ho, 2 * Ho), _interp_matrix(Wo, 2 * Wo))  # (4HoWo, HoWo)
    A_bd = np.kron(np.eye(Do, dtype=np.float32), A_hw.T)  # (Do*Ho*Wo, Do*4HoWo)
    return jnp.asarray(A_bd, dtype=MM_DTYPE)


def _interior_mask(Dp, Hp, Wp):
    m = np.zeros((Dp, Hp, Wp, 1), np.float32)
    m[1:-1, 1:-1, 1:-1, :] = 1.0
    return jnp.asarray(m)


# --------------------------------- forward -----------------------------------

def resnet_forward(x_ncdhw, params):
    x = jnp.transpose(x_ncdhw, (0, 2, 3, 4, 1)).astype(jnp.float32)   # NDHWC
    N = x.shape[0]
    C0 = params["bn1_g"].shape[0]

    # ---- stem: conv1 (3,7,7) s(1,2,2) p(1,3,3), no bias -> one matmul / batch
    xcol, (Do, Ho, Wo) = _im2col_cm(x, 3, 7, 7, (1, 2, 2), (1, 3, 3),
                                    params["conv1_w"].shape[1])
    y0 = _conv_matmul(xcol, params["conv1_w"])            # (N, C0, M) fp32
    s0, b0 = _bn_scale_shift(y0, params["bn1_g"], params["bn1_b"])
    M = Do * Ho * Wo

    # ---- BN1 affine + ReLU + MaxPool3d(3, stride=1, padding=1), fused kernel
    y0s = jnp.transpose(y0.reshape(N, C0, Do, Ho, Wo), (0, 2, 3, 4, 1))
    y0p = jnp.pad(y0s, ((0, 0), (1, 1), (1, 1), (1, 1), (0, 0)))
    mask = _interior_mask(Do + 2, Ho + 2, Wo + 2)
    x1 = _bn_relu_maxpool(y0p, mask, s0, b0)              # (N, Do, Ho, Wo, C0)

    # ---- layer1 (BasicBlock x n_blocks, stride 1, no downsample)
    xb = x1
    y2 = s2 = b2 = None
    n_blocks = len(params["layer1"])
    for bi, bp in enumerate(params["layer1"]):
        kp_b = bp["conv1_w"].shape[1]
        c1, _ = _im2col_cm(xb, 3, 3, 3, (1, 1, 1), (1, 1, 1), kp_b)
        y1 = _conv_matmul(c1, bp["conv1_w"])              # (N, C0, M) fp32
        s1, b1 = _bn_scale_shift(y1, bp["bn1_g"], bp["bn1_b"])
        # BN1 affine + ReLU applied ONCE to the compact (4 K-element) fp32
        # activation; XLA fuses it with the conv2 im2col layout prep.  (Review:
        # never apply the affine to the 27x-expanded halo inside the kernel.)
        a1 = jnp.maximum(y1 * s1[None, :, None] + b1[None, :, None], 0.0)
        a1s = jnp.transpose(a1.reshape(N, C0, Do, Ho, Wo), (0, 2, 3, 4, 1))
        c2, _ = _im2col_cm(a1s, 3, 3, 3, (1, 1, 1), (1, 1, 1), kp_b)
        y2 = _conv_matmul(c2, bp["conv2_w"])              # (N, C0, M) fp32
        s2, b2 = _bn_scale_shift(y2, bp["bn2_g"], bp["bn2_b"])
        if bi + 1 < n_blocks:                             # inter-block residual
            xid = jnp.transpose(xb, (0, 4, 1, 2, 3)).reshape(N, C0, M)
            z = jnp.maximum(y2 * s2[None, :, None] + b2[None, :, None] + xid, 0.0)
            xb = jnp.transpose(z.reshape(N, C0, Do, Ho, Wo), (0, 2, 3, 4, 1))

    # ---- head: BN2 + residual + ReLU + trilinear (1,2,2) align_corners=True
    #            + 1x1x1 conv + bias + sigmoid
    x_id = jnp.transpose(xb, (0, 4, 1, 2, 3)).reshape(N, C0, M)
    a_bd = _upsample_matrix(Do, Ho, Wo)
    out = _head(y2, x_id, s2, b2, a_bd, params["conv2_w"], params["conv2_b"])
    Co = params["conv2_w"].shape[0]
    # channel-major output reshapes straight back to NCDHW (no final transpose)
    return out.reshape(N, Co, Do, 2 * Ho, 2 * Wo)


# ------------------------- deterministic parameters ---------------------------

def _conv_w_to_mat(w, k_pad):
    """PyTorch Conv3d weight (Cout, Cin, kd, kh, kw) -> (Cout, Kp) bf16 with K
    ordered (kd, kh, kw, Cin) to match _im2col_cm, zero-padded to Kp lanes."""
    Cout, Cin, kd, kh, kw = w.shape
    wm = jnp.transpose(w, (0, 2, 3, 4, 1)).reshape(Cout, kd * kh * kw * Cin)
    if k_pad > wm.shape[1]:
        wm = jnp.pad(wm, ((0, 0), (0, k_pad - wm.shape[1])))
    return wm.astype(MM_DTYPE)


def init_params(key, n_input_channels=20, inplanes=8, n_blocks=1):
    keys = jax.random.split(key, 2 + 2 * n_blocks)

    def conv_w(k, cout, cin, kd, kh, kw):
        fan_in = cin * kd * kh * kw
        std = math.sqrt(2.0 / fan_in)
        return jax.random.normal(k, (cout, cin, kd, kh, kw), jnp.float32) * std

    kp_stem = _round_up(3 * 7 * 7 * n_input_channels, LANE)
    kp_blk = _round_up(3 * 3 * 3 * inplanes, LANE)
    w_head = conv_w(keys[1], 20, inplanes, 1, 1, 1)
    params = {
        "conv1_w": _conv_w_to_mat(
            conv_w(keys[0], inplanes, n_input_channels, 3, 7, 7), kp_stem),
        "bn1_g": jnp.ones((inplanes,), jnp.float32),
        "bn1_b": jnp.zeros((inplanes,), jnp.float32),
        "conv2_w": w_head[:, :, 0, 0, 0].astype(MM_DTYPE),      # (20, inplanes)
        "conv2_b": jnp.zeros((20,), jnp.float32),
        "layer1": [],
    }
    for b in range(n_blocks):
        k1, k2 = keys[2 + 2 * b], keys[3 + 2 * b]
        params["layer1"].append({
            "conv1_w": _conv_w_to_mat(conv_w(k1, inplanes, inplanes, 3, 3, 3), kp_blk),
            "bn1_g": jnp.ones((inplanes,), jnp.float32),
            "bn1_b": jnp.zeros((inplanes,), jnp.float32),
            "conv2_w": _conv_w_to_mat(conv_w(k2, inplanes, inplanes, 3, 3, 3), kp_blk),
            "bn2_g": jnp.ones((inplanes,), jnp.float32),
            "bn2_b": jnp.zeros((inplanes,), jnp.float32),
        })
    return params


if __name__ == "__main__":
    key = jax.random.PRNGKey(0)
    pkey, xkey = jax.random.split(key)
    # ResNet(block=BasicBlock, layers=[1], block_inplanes=8, n_input_channels=20)
    params = init_params(pkey, n_input_channels=20, inplanes=8, n_blocks=1)
    x = jax.random.normal(xkey, (2, 20, 4, 16, 16), jnp.float32)      # NCDHW
    out = jax.jit(resnet_forward)(x, params)
    out = jax.block_until_ready(out)
    assert out.shape == (2, 20, 4, 16, 16), out.shape
    assert bool(jnp.all((out >= 0.0) & (out <= 1.0)))
    print("KERNEL_OK")
</pallas_src>

<mosaic_0001>
module attributes {stable_mosaic.version = 11 : i64} {
  func.func @_conv_matmul_kernel(%arg0: i32, %arg1: memref<1x2944x256xbf16, #tpu.memory_space<vmem>>, %arg2: memref<8x2944xbf16, #tpu.memory_space<vmem>>, %arg3: memref<1x8x256xf32, #tpu.memory_space<vmem>>) attributes {dimension_semantics = [#tpu.dimension_semantics<parallel>], iteration_bounds = array<i64: 2>, scalar_prefetch = 0 : i64, scratch_operands = 0 : i64, tpu.core_type = #tpu.core_type<tc>, window_params = [{transform_indices = @transform_0, window_bounds = array<i64: 1, 2944, 256>}, {pipeline_mode = #tpu.pipeline_mode<synchronous>, transform_indices = @transform_1, window_bounds = array<i64: 8, 2944>}, {transform_indices = @transform_2, window_bounds = array<i64: 1, 8, 256>}]} {
    %c0 = arith.constant 0 : index
    %c0_0 = arith.constant 0 : index
    %0 = vector.load %arg2[%c0, %c0_0] : memref<8x2944xbf16, #tpu.memory_space<vmem>>, vector<8x2944xbf16>
    %c0_1 = arith.constant 0 : index
    %c0_2 = arith.constant 0 : index
    %c0_3 = arith.constant 0 : index
    %1 = vector.load %arg1[%c0_1, %c0_2, %c0_3] : memref<1x2944x256xbf16, #tpu.memory_space<vmem>>, vector<1x2944x256xbf16>
    %2 = vector.shape_cast %1 : vector<1x2944x256xbf16> to vector<2944x256xbf16>
    %cst = arith.constant dense<0.000000e+00> : vector<8x256xf32>
    %3 = tpu.matmul %0, %2, %cst {dimension_numbers = #tpu.dot_dimension_numbers<[1], [0], [0], [1], [0, 0, 1, 1], [], []>} : vector<8x2944xbf16>, vector<2944x256xbf16>, vector<8x256xf32> -> vector<8x256xf32>
    %c0_4 = arith.constant 0 : index
    %c0_5 = arith.constant 0 : index
    %c0_6 = arith.constant 0 : index
    %4 = vector.load %arg3[%c0_4, %c0_5, %c0_6] : memref<1x8x256xf32, #tpu.memory_space<vmem>>, vector<1x8x256xf32>
    %5 = vector.shape_cast %4 : vector<1x8x256xf32> to vector<8x256xf32>
    %6 = vector.shape_cast %3 : vector<8x256xf32> to vector<1x8x256xf32>
    tpu.vector_store %arg3[%c0_4, %c0_5, %c0_6], %6 {strides = array<i32>} : memref<1x8x256xf32, #tpu.memory_space<vmem>>, vector<1x8x256xf32>,
    return
  }
  func.func @transform_0(%arg0: i32) -> (i32, i32, i32) {
    %c0_i32 = arith.constant 0 : i32
    %c0_i32_0 = arith.constant 0 : i32
    %c0_i32_1 = arith.constant 0 : i32
    return %arg0, %c0_i32, %c0_i32_0 : i32, i32, i32
  }
  func.func @transform_1(%arg0: i32) -> (i32, i32) {
    %c0_i32 = arith.constant 0 : i32
    %c0_i32_0 = arith.constant 0 : i32
    %c0_i32_1 = arith.constant 0 : i32
    return %c0_i32, %c0_i32_0 : i32, i32
  }
  func.func @transform_2(%arg0: i32) -> (i32, i32, i32) {
    %c0_i32 = arith.constant 0 : i32
    %c0_i32_0 = arith.constant 0 : i32
    %c0_i32_1 = arith.constant 0 : i32
    return %arg0, %c0_i32, %c0_i32_0 : i32, i32, i32
  }
}

module attributes {stable_mosaic.version = 11 : i64} {
  func.func @_bn_relu_maxpool_kernel(%arg0: i32, %arg1: memref<1x6x10x10x8xf32, #tpu.memory_space<vmem>>, %arg2: memref<6x10x10x1xf32, #tpu.memory_space<vmem>>, %arg3: memref<1x8xf32, #tpu.memory_space<vmem>>, %arg4: memref<1x8xf32, #tpu.memory_space<vmem>>, %arg5: memref<1x4x8x8x8xf32, #tpu.memory_space<vmem>>) attributes {dimension_semantics = [#tpu.dimension_semantics<parallel>], iteration_bounds = array<i64: 2>, scalar_prefetch = 0 : i64, scratch_operands = 0 : i64, tpu.core_type = #tpu.core_type<tc>, window_params = [{transform_indices = @transform_0, window_bounds = array<i64: 1, 6, 10, 10, 8>}, {pipeline_mode = #tpu.pipeline_mode<synchronous>, transform_indices = @transform_1, window_bounds = array<i64: 6, 10, 10, 1>}, {pipeline_mode = #tpu.pipeline_mode<synchronous>, transform_indices = @transform_2, window_bounds = array<i64: 1, 8>}, {pipeline_mode = #tpu.pipeline_mode<synchronous>, transform_indices = @transform_3, window_bounds = array<i64: 1, 8>}, {transform_indices = @transform_4, window_bounds = array<i64: 1, 4, 8, 8, 8>}]} {
    %c0 = arith.constant 0 : index
    %c0_0 = arith.constant 0 : index
    %0 = vector.load %arg3[%c0, %c0_0] : memref<1x8xf32, #tpu.memory_space<vmem>>, vector<1x8xf32>
    %c0_1 = arith.constant 0 : index
    %c0_2 = arith.constant 0 : index
    %1 = vector.load %arg4[%c0_1, %c0_2] : memref<1x8xf32, #tpu.memory_space<vmem>>, vector<1x8xf32>
    %c0_3 = arith.constant 0 : index
    %c0_4 = arith.constant 0 : index
    %c0_5 = arith.constant 0 : index
    %c0_6 = arith.constant 0 : index
    %c0_7 = arith.constant 0 : index
    %2 = vector.load %arg1[%c0_3, %c0_4, %c0_5, %c0_6, %c0_7] : memref<1x6x10x10x8xf32, #tpu.memory_space<vmem>>, vector<1x6x10x10x8xf32>
    %3 = vector.shape_cast %2 : vector<1x6x10x10x8xf32> to vector<6x10x10x8xf32>
    %4 = vector.shape_cast %0 : vector<1x8xf32> to vector<1x1x1x8xf32>
    %5 = vector.broadcast %4 : vector<1x1x1x8xf32> to vector<6x10x10x8xf32>
    %6 = arith.mulf %3, %5 : vector<6x10x10x8xf32>
    %7 = vector.shape_cast %1 : vector<1x8xf32> to vector<1x1x1x8xf32>
    %8 = vector.broadcast %7 : vector<1x1x1x8xf32> to vector<6x10x10x8xf32>
    %9 = arith.addf %6, %8 : vector<6x10x10x8xf32>
    %cst = arith.constant 0.000000e+00 : f32
    %10 = vector.broadcast %cst : f32 to vector<6x10x10x8xf32>
    %11 = arith.maximumf %9, %10 : vector<6x10x10x8xf32>
    %c0_8 = arith.constant 0 : index
    %c0_9 = arith.constant 0 : index
    %c0_10 = arith.constant 0 : index
    %c0_11 = arith.constant 0 : index
    %12 = vector.load %arg2[%c0_8, %c0_9, %c0_10, %c0_11] : memref<6x10x10x1xf32, #tpu.memory_space<vmem>>, vector<6x10x10x1xf32>
    %13 = vector.broadcast %12 : vector<6x10x10x1xf32> to vector<6x10x10x8xf32>
    %14 = arith.mulf %11, %13 : vector<6x10x10x8xf32>
    %15 = vector.extract_strided_slice %14 {offsets = [0, 0, 0, 0], sizes = [6, 10, 8, 8], strides = [1, 1, 1, 1]} : vector<6x10x10x8xf32> to vector<6x10x8x8xf32>
    %16 = vector.extract_strided_slice %14 {offsets = [0, 0, 1, 0], sizes = [6, 10, 8, 8], strides = [1, 1, 1, 1]} : vector<6x10x10x8xf32> to vector<6x10x8x8xf32>
    %17 = arith.maximumf %15, %16 : vector<6x10x8x8xf32>
    %18 = vector.extract_strided_slice %14 {offsets = [0, 0, 2, 0], sizes = [6, 10, 8, 8], strides = [1, 1, 1, 1]} : vector<6x10x10x8xf32> to vector<6x10x8x8xf32>
    %19 = arith.maximumf %17, %18 : vector<6x10x8x8xf32>
    %20 = vector.extract_strided_slice %19 {offsets = [0, 0, 0, 0], sizes = [6, 8, 8, 8], strides = [1, 1, 1, 1]} : vector<6x10x8x8xf32> to vector<6x8x8x8xf32>
    %21 = vector.extract_strided_slice %19 {offsets = [0, 1, 0, 0], sizes = [6, 8, 8, 8], strides = [1, 1, 1, 1]} : vector<6x10x8x8xf32> to vector<6x8x8x8xf32>
    %22 = arith.maximumf %20, %21 : vector<6x8x8x8xf32>
    %23 = vector.extract_strided_slice %19 {offsets = [0, 2, 0, 0], sizes = [6, 8, 8, 8], strides = [1, 1, 1, 1]} : vector<6x10x8x8xf32> to vector<6x8x8x8xf32>
    %24 = arith.maximumf %22, %23 : vector<6x8x8x8xf32>
    %25 = vector.extract_strided_slice %24 {offsets = [0, 0, 0, 0], sizes = [4, 8, 8, 8], strides = [1, 1, 1, 1]} : vector<6x8x8x8xf32> to vector<4x8x8x8xf32>
    %26 = vector.extract_strided_slice %24 {offsets = [1, 0, 0, 0], sizes = [4, 8, 8, 8], strides = [1, 1, 1, 1]} : vector<6x8x8x8xf32> to vector<4x8x8x8xf32>
    %27 = arith.maximumf %25, %26 : vector<4x8x8x8xf32>
    %28 = vector.extract_strided_slice %24 {offsets = [2, 0, 0, 0], sizes = [4, 8, 8, 8], strides = [1, 1, 1, 1]} : vector<6x8x8x8xf32> to vector<4x8x8x8xf32>
    %29 = arith.maximumf %27, %28 : vector<4x8x8x8xf32>
    %c0_12 = arith.constant 0 : index
    %c0_13 = arith.constant 0 : index
    %c0_14 = arith.constant 0 : index
    %c0_15 = arith.constant 0 : index
    %c0_16 = arith.constant 0 : index
    %30 = vector.load %arg5[%c0_12, %c0_13, %c0_14, %c0_15, %c0_16] : memref<1x4x8x8x8xf32, #tpu.memory_space<vmem>>, vector<1x4x8x8x8xf32>
    %31 = vector.shape_cast %30 : vector<1x4x8x8x8xf32> to vector<4x8x8x8xf32>
    %32 = vector.shape_cast %29 : vector<4x8x8x8xf32> to vector<1x4x8x8x8xf32>
    tpu.vector_store %arg5[%c0_12, %c0_13, %c0_14, %c0_15, %c0_16], %32 {strides = array<i32>} : memref<1x4x8x8x8xf32, #tpu.memory_space<vmem>>, vector<1x4x8x8x8xf32>,
    return
  }
  func.func @transform_0(%arg0: i32) -> (i32, i32, i32, i32, i32) {
    %c0_i32 = arith.constant 0 : i32
    %c0_i32_0 = arith.constant 0 : i32
    %c0_i32_1 = arith.constant 0 : i32
    %c0_i32_2 = arith.constant 0 : i32
    %c0_i32_3 = arith.constant 0 : i32
    return %arg0, %c0_i32, %c0_i32_0, %c0_i32_1, %c0_i32_2 : i32, i32, i32, i32, i32
  }
  func.func @transform_1(%arg0: i32) -> (i32, i32, i32, i32) {
    %c0_i32 = arith.constant 0 : i32
    %c0_i32_0 = arith.constant 0 : i32
    %c0_i32_1 = arith.constant 0 : i32
    %c0_i32_2 = arith.constant 0 : i32
    %c0_i32_3 = arith.constant 0 : i32
    return %c0_i32, %c0_i32_0, %c0_i32_1, %c0_i32_2 : i32, i32, i32, i32
  }
  func.func @transform_2(%arg0: i32) -> (i32, i32) {
    %c0_i32 = arith.constant 0 : i32
    %c0_i32_0 = arith.constant 0 : i32
    %c0_i32_1 = arith.constant 0 : i32
    return %c0_i32, %c0_i32_0 : i32, i32
  }
  func.func @transform_3(%arg0: i32) -> (i32, i32) {
    %c0_i32 = arith.constant 0 : i32
    %c0_i32_0 = arith.constant 0 : i32
    %c0_i32_1 = arith.constant 0 : i32
    return %c0_i32, %c0_i32_0 : i32, i32
  }
  func.func @transform_4(%arg0: i32) -> (i32, i32, i32, i32, i32) {
    %c0_i32 = arith.constant 0 : i32
    %c0_i32_0 = arith.constant 0 : i32
    %c0_i32_1 = arith.constant 0 : i32
    %c0_i32_2 = arith.constant 0 : i32
    %c0_i32_3 = arith.constant 0 : i32
    return %arg0, %c0_i32, %c0_i32_0, %c0_i32_1, %c0_i32_2 : i32, i32, i32, i32, i32
  }
}

module attributes {stable_mosaic.version = 11 : i64} {
  func.func @_conv_matmul_kernel(%arg0: i32, %arg1: memref<1x256x256xbf16, #tpu.memory_space<vmem>>, %arg2: memref<8x256xbf16, #tpu.memory_space<vmem>>, %arg3: memref<1x8x256xf32, #tpu.memory_space<vmem>>) attributes {dimension_semantics = [#tpu.dimension_semantics<parallel>], iteration_bounds = array<i64: 2>, scalar_prefetch = 0 : i64, scratch_operands = 0 : i64, tpu.core_type = #tpu.core_type<tc>, window_params = [{transform_indices = @transform_0, window_bounds = array<i64: 1, 256, 256>}, {pipeline_mode = #tpu.pipeline_mode<synchronous>, transform_indices = @transform_1, window_bounds = array<i64: 8, 256>}, {transform_indices = @transform_2, window_bounds = array<i64: 1, 8, 256>}]} {
    %c0 = arith.constant 0 : index
    %c0_0 = arith.constant 0 : index
    %0 = vector.load %arg2[%c0, %c0_0] : memref<8x256xbf16, #tpu.memory_space<vmem>>, vector<8x256xbf16>
    %c0_1 = arith.constant 0 : index
    %c0_2 = arith.constant 0 : index
    %c0_3 = arith.constant 0 : index
    %1 = vector.load %arg1[%c0_1, %c0_2, %c0_3] : memref<1x256x256xbf16, #tpu.memory_space<vmem>>, vector<1x256x256xbf16>
    %2 = vector.shape_cast %1 : vector<1x256x256xbf16> to vector<256x256xbf16>
    %cst = arith.constant dense<0.000000e+00> : vector<8x256xf32>
    %3 = tpu.matmul %0, %2, %cst {dimension_numbers = #tpu.dot_dimension_numbers<[1], [0], [0], [1], [0, 0, 1, 1], [], []>} : vector<8x256xbf16>, vector<256x256xbf16>, vector<8x256xf32> -> vector<8x256xf32>
    %c0_4 = arith.constant 0 : index
    %c0_5 = arith.constant 0 : index
    %c0_6 = arith.constant 0 : index
    %4 = vector.load %arg3[%c0_4, %c0_5, %c0_6] : memref<1x8x256xf32, #tpu.memory_space<vmem>>, vector<1x8x256xf32>
    %5 = vector.shape_cast %4 : vector<1x8x256xf32> to vector<8x256xf32>
    %6 = vector.shape_cast %3 : vector<8x256xf32> to vector<1x8x256xf32>
    tpu.vector_store %arg3[%c0_4, %c0_5, %c0_6], %6 {strides = array<i32>} : memref<1x8x256xf32, #tpu.memory_space<vmem>>, vector<1x8x256xf32>,
    return
  }
  func.func @transform_0(%arg0: i32) -> (i32, i32, i32) {
    %c0_i32 = arith.constant 0 : i32
    %c0_i32_0 = arith.constant 0 : i32
    %c0_i32_1 = arith.constant 0 : i32
    return %arg0, %c0_i32, %c0_i32_0 : i32, i32, i32
  }
  func.func @transform_1(%arg0: i32) -> (i32, i32) {
    %c0_i32 = arith.constant 0 : i32
    %c0_i32_0 = arith.constant 0 : i32
    %c0_i32_1 = arith.constant 0 : i32
    return %c0_i32, %c0_i32_0 : i32, i32
  }
  func.func @transform_2(%arg0: i32) -> (i32, i32, i32) {
    %c0_i32 = arith.constant 0 : i32
    %c0_i32_0 = arith.constant 0 : i32
    %c0_i32_1 = arith.constant 0 : i32
    return %arg0, %c0_i32, %c0_i32_0 : i32, i32, i32
  }
}

module attributes {stable_mosaic.version = 11 : i64} {
  func.func @_head_kernel(%arg0: i32, %arg1: memref<1x8x256xf32, #tpu.memory_space<vmem>>, %arg2: memref<1x8x256xf32, #tpu.memory_space<vmem>>, %arg3: memref<8x1xf32, #tpu.memory_space<vmem>>, %arg4: memref<8x1xf32, #tpu.memory_space<vmem>>, %arg5: memref<256x1024xbf16, #tpu.memory_space<vmem>>, %arg6: memref<20x8xbf16, #tpu.memory_space<vmem>>, %arg7: memref<20x1xf32, #tpu.memory_space<vmem>>, %arg8: memref<1x20x1024xf32, #tpu.memory_space<vmem>>) attributes {dimension_semantics = [#tpu.dimension_semantics<parallel>], iteration_bounds = array<i64: 2>, scalar_prefetch = 0 : i64, scratch_operands = 0 : i64, tpu.core_type = #tpu.core_type<tc>, window_params = [{transform_indices = @transform_0, window_bounds = array<i64: 1, 8, 256>}, {transform_indices = @transform_1, window_bounds = array<i64: 1, 8, 256>}, {pipeline_mode = #tpu.pipeline_mode<synchronous>, transform_indices = @transform_2, window_bounds = array<i64: 8, 1>}, {pipeline_mode = #tpu.pipeline_mode<synchronous>, transform_indices = @transform_3, window_bounds = array<i64: 8, 1>}, {pipeline_mode = #tpu.pipeline_mode<synchronous>, transform_indices = @transform_4, window_bounds = array<i64: 256, 1024>}, {pipeline_mode = #tpu.pipeline_mode<synchronous>, transform_indices = @transform_5, window_bounds = array<i64: 20, 8>}, {pipeline_mode = #tpu.pipeline_mode<synchronous>, transform_indices = @transform_6, window_bounds = array<i64: 20, 1>}, {transform_indices = @transform_7, window_bounds = array<i64: 1, 20, 1024>}]} {
    %c0 = arith.constant 0 : index
    %c0_0 = arith.constant 0 : index
    %c0_1 = arith.constant 0 : index
    %0 = vector.load %arg1[%c0, %c0_0, %c0_1] : memref<1x8x256xf32, #tpu.memory_space<vmem>>, vector<1x8x256xf32>
    %1 = vector.shape_cast %0 : vector<1x8x256xf32> to vector<8x256xf32>
    %c0_2 = arith.constant 0 : index
    %c0_3 = arith.constant 0 : index
    %2 = vector.load %arg3[%c0_2, %c0_3] : memref<8x1xf32, #tpu.memory_space<vmem>>, vector<8x1xf32>
    %3 = vector.broadcast %2 : vector<8x1xf32> to vector<8x256xf32>
    %4 = arith.mulf %1, %3 : vector<8x256xf32>
    %c0_4 = arith.constant 0 : index
    %c0_5 = arith.constant 0 : index
    %5 = vector.load %arg4[%c0_4, %c0_5] : memref<8x1xf32, #tpu.memory_space<vmem>>, vector<8x1xf32>
    %6 = vector.broadcast %5 : vector<8x1xf32> to vector<8x256xf32>
    %7 = arith.addf %4, %6 : vector<8x256xf32>
    %c0_6 = arith.constant 0 : index
    %c0_7 = arith.constant 0 : index
    %c0_8 = arith.constant 0 : index
    %8 = vector.load %arg2[%c0_6, %c0_7, %c0_8] : memref<1x8x256xf32, #tpu.memory_space<vmem>>, vector<1x8x256xf32>
    %9 = vector.shape_cast %8 : vector<1x8x256xf32> to vector<8x256xf32>
    %10 = arith.addf %7, %9 : vector<8x256xf32>
    %cst = arith.constant 0.000000e+00 : f32
    %11 = vector.broadcast %cst : f32 to vector<8x256xf32>
    %12 = arith.maximumf %10, %11 : vector<8x256xf32>
    %13 = arith.truncf %12 : vector<8x256xf32> to vector<8x256xbf16>
    %c0_9 = arith.constant 0 : index
    %c0_10 = arith.constant 0 : index
    %14 = vector.load %arg5[%c0_9, %c0_10] : memref<256x1024xbf16, #tpu.memory_space<vmem>>, vector<256x1024xbf16>
    %cst_11 = arith.constant dense<0.000000e+00> : vector<8x1024xf32>
    %15 = tpu.matmul %13, %14, %cst_11 {dimension_numbers = #tpu.dot_dimension_numbers<[1], [0], [0], [1], [0, 0, 1, 1], [], []>} : vector<8x256xbf16>, vector<256x1024xbf16>, vector<8x1024xf32> -> vector<8x1024xf32>
    %c0_12 = arith.constant 0 : index
    %c0_13 = arith.constant 0 : index
    %16 = vector.load %arg6[%c0_12, %c0_13] : memref<20x8xbf16, #tpu.memory_space<vmem>>, vector<20x8xbf16>
    %17 = arith.extf %16 : vector<20x8xbf16> to vector<20x8xf32>
    %cst_14 = arith.constant dense<0.000000e+00> : vector<20x1024xf32>
    %18 = tpu.matmul %17, %15, %cst_14 {dimension_numbers = #tpu.dot_dimension_numbers<[1], [0], [0], [1], [0, 0, 1, 1], [], []>} : vector<20x8xf32>, vector<8x1024xf32>, vector<20x1024xf32> -> vector<20x1024xf32>
    %c0_15 = arith.constant 0 : index
    %c0_16 = arith.constant 0 : index
    %19 = vector.load %arg7[%c0_15, %c0_16] : memref<20x1xf32, #tpu.memory_space<vmem>>, vector<20x1xf32>
    %20 = vector.broadcast %19 : vector<20x1xf32> to vector<20x1024xf32>
    %21 = arith.addf %18, %20 : vector<20x1024xf32>
    %22 = arith.negf %21 : vector<20x1024xf32>
    %23 = math.exp %22 : vector<20x1024xf32>
    %cst_17 = arith.constant 1.000000e+00 : f32
    %24 = vector.broadcast %cst_17 : f32 to vector<20x1024xf32>
    %25 = arith.addf %24, %23 : vector<20x1024xf32>
    %26 = arith.divf %24, %25 : vector<20x1024xf32>
    %c0_18 = arith.constant 0 : index
    %c0_19 = arith.constant 0 : index
    %c0_20 = arith.constant 0 : index
    %27 = vector.load %arg8[%c0_18, %c0_19, %c0_20] : memref<1x20x1024xf32, #tpu.memory_space<vmem>>, vector<1x20x1024xf32>
    %28 = vector.shape_cast %27 : vector<1x20x1024xf32> to vector<20x1024xf32>
    %29 = vector.shape_cast %26 : vector<20x1024xf32> to vector<1x20x1024xf32>
    tpu.vector_store %arg8[%c0_18, %c0_19, %c0_20], %29 {strides = array<i32>} : memref<1x20x1024xf32, #tpu.memory_space<vmem>>, vector<1x20x1024xf32>,
    return
  }
  func.func @transform_0(%arg0: i32) -> (i32, i32, i32) {
    %c0_i32 = arith.constant 0 : i32
    %c0_i32_0 = arith.constant 0 : i32
    %c0_i32_1 = arith.constant 0 : i32
    return %arg0, %c0_i32, %c0_i32_0 : i32, i32, i32
  }
  func.func @transform_1(%arg0: i32) -> (i32, i32, i32) {
    %c0_i32 = arith.constant 0 : i32
    %c0_i32_0 = arith.constant 0 : i32
    %c0_i32_1 = arith.constant 0 : i32
    return %arg0, %c0_i32, %c0_i32_0 : i32, i32, i32
  }
  func.func @transform_2(%arg0: i32) -> (i32, i32) {
    %c0_i32 = arith.constant 0 : i32
    %c0_i32_0 = arith.constant 0 : i32
    %c0_i32_1 = arith.constant 0 : i32
    return %c0_i32, %c0_i32_0 : i32, i32
  }
  func.func @transform_3(%arg0: i32) -> (i32, i32) {
    %c0_i32 = arith.constant 0 : i32
    %c0_i32_0 = arith.constant 0 : i32
    %c0_i32_1 = arith.constant 0 : i32
    return %c0_i32, %c0_i32_0 : i32, i32
  }
  func.func @transform_4(%arg0: i32) -> (i32, i32) {
    %c0_i32 = arith.constant 0 : i32
    %c0_i32_0 = arith.constant 0 : i32
    %c0_i32_1 = arith.constant 0 : i32
    return %c0_i32, %c0_i32_0 : i32, i32
  }
  func.func @transform_5(%arg0: i32) -> (i32, i32) {
    %c0_i32 = arith.constant 0 : i32
    %c0_i32_0 = arith.constant 0 : i32
    %c0_i32_1 = arith.constant 0 : i32
    return %c0_i32, %c0_i32_0 : i32, i32
  }
  func.func @transform_6(%arg0: i32) -> (i32, i32) {
    %c0_i32 = arith.constant 0 : i32
    %c0_i32_0 = arith.constant 0 : i32
    %c0_i32_1 = arith.constant 0 : i32
    return %c0_i32, %c0_i32_0 : i32, i32
  }
  func.func @transform_7(%arg0: i32) -> (i32, i32, i32) {
    %c0_i32 = arith.constant 0 : i32
    %c0_i32_0 = arith.constant 0 : i32
    %c0_i32_1 = arith.constant 0 : i32
    return %arg0, %c0_i32, %c0_i32_0 : i32, i32, i32
  }
}

</mosaic_0001>

<llo_original>
// kernel: resnet_forward.5
$region0: #{resnet_forward.5}
  #allocation0 [shape = 'u32[]', space=smem, size = 0x4, offset = 0x4, fixed_abs, tag = 'smem constant byte address 0x4 - core index']
  #allocation1 [shape = 'u32[144,128]{1,0:T(1,128)}', space=vmem, size = 0x12000, scoped, tag = 'internal scratch']
  %s0 = inlined_call_operand.vmem [shape: bf16[2,2944,256], index: 0, kind: input, shape index: {}]
  %s1 = inlined_call_operand.vmem [shape: bf16[8,2944], index: 1, kind: input, shape index: {}]
  %s2 = inlined_call_operand.vmem [shape: f32[2,8,256], index: 2, kind: output, shape index: {}]
  %s3 = sld [smem:[#allocation0]]
  $region41: #{resnet_forward.5} parent=0
    _
  %s5 = ssub.s32 1, %s3
  %s6 = scalar_select 0, %s5, %s3
  loop: start=0, step=1, limit=4
  $region2: #{resnet_forward.5} parent=0 // loop_pre_header
    _
  $region3: #{resnet_forward.5} parent=0 // loop_header
    %s8 = sphi 0, %s12
    %p9 = scmp.ge.s32.totalorder %s8, 4
    %s18 = sphi 0, %s20
    %s21 = sphi 0, %s18
    %s22 = sphi 0, %s21
    %s38 = sphi 0, %s22
    %s42 = sphi 0, %s42
    %s44 = sphi 0, %s42
    %s45 = sphi 0, %s44
    %s59 = sphi 0, %s45
    %s65 = sphi 0, %s67
    %s68 = sphi 0, %s65
    %s69 = sphi 0, %s68
    %s85 = sphi 0, %s69
  $region4: #{resnet_forward.5} parent=0 // loop_header_branch
    %11 = sbr.rel (%p9) target = $region8
  $region5: #{resnet_forward.5} parent=0 // loop_body
    %s13 = ssub.s32 %s8, 1
    %s14 = ssub.s32 %s8, 2
    %s15 = sadd.s32 %s8, 1
    %s16 = ssub.s32 %s8, %s15
    %p17 = scmp.eq.s32.totalorder %s16, 0
    %s19 = sadd.s32 %s18, 1
    %s20 = scalar_select %p17, %s18, %s19
    %p23 = pneg %p17
    %p24 = scmp.eq.s32.totalorder %s8, 1
    %p25 = por %p23, %p24
    %p26 = scmp.ne.s32.totalorder %s18, %s21
    %p27 = scmp.eq.s32.totalorder %s8, 0
    %p28 = por %p26, %p27
    %p29 = scmp.ne.s32.totalorder %s18, %s21
    %p30 = scmp.eq.s32.totalorder %s13, 1
    %p31 = por %p29, %p30
    %p32 = scmp.ne.s32.totalorder %s21, %s22
    %p33 = scmp.eq.s32.totalorder %s13, 0
    %p34 = por %p32, %p33
    %p35 = scmp.ne.s32.totalorder %s21, %s22
    %p36 = scmp.eq.s32.totalorder %s14, 1
    %p37 = por %p35, %p36
    %p39 = scmp.ne.s32.totalorder %s22, %s38
    %p40 = scmp.eq.s32.totalorder %s14, 0
    %p41 = por %p39, %p40
    %s43 = sadd.s32 %s42, 1
    %p46 = scmp.eq.s32.totalorder %s8, 1
    %p47 = scmp.ne.s32.totalorder %s42, %s44
    %p48 = scmp.eq.s32.totalorder %s8, 0
    %p49 = por %p47, %p48
    %p50 = scmp.ne.s32.totalorder %s42, %s44
    %p51 = scmp.eq.s32.totalorder %s13, 1
    %p52 = por %p50, %p51
    %p53 = scmp.ne.s32.totalorder %s44, %s45
    %p54 = scmp.eq.s32.totalorder %s13, 0
    %p55 = por %p53, %p54
    %p56 = scmp.ne.s32.totalorder %s44, %s45
    %p57 = scmp.eq.s32.totalorder %s14, 1
    %p58 = por %p56, %p57
    %p60 = scmp.ne.s32.totalorder %s45, %s59
    %p61 = scmp.eq.s32.totalorder %s14, 0
    %p62 = por %p60, %p61
    %s63 = ssub.s32 %s8, %s15
    %p64 = scmp.eq.s32.totalorder %s63, 0
    %s66 = sadd.s32 %s65, 1
    %s67 = scalar_select %p64, %s65, %s66
    %p70 = pneg %p64
    %p71 = scmp.eq.s32.totalorder %s8, 1
    %p72 = por %p70, %p71
    %p73 = scmp.ne.s32.totalorder %s65, %s68
    %p74 = scmp.eq.s32.totalorder %s8, 0
    %p75 = por %p73, %p74
    %p76 = scmp.ne.s32.totalorder %s65, %s68
    %p77 = scmp.eq.s32.totalorder %s13, 1
    %p78 = por %p76, %p77
    %p79 = scmp.ne.s32.totalorder %s68, %s69
    %p80 = scmp.eq.s32.totalorder %s13, 0
    %p81 = por %p79, %p80
    %p82 = scmp.ne.s32.totalorder %s68, %s69
    %p83 = scmp.eq.s32.totalorder %s14, 1
    %p84 = por %p82, %p83
    %p86 = scmp.ne.s32.totalorder %s69, %s85
    %p87 = scmp.eq.s32.totalorder %s14, 0
    %p88 = por %p86, %p87
    %p89 = scmp.le.s32.totalorder 1, %s8
    %p90 = scmp.lt.s32.totalorder %s8, 3
    %p91 = pnand %p89, %p90
    %p92 = pneg %p91
    // Predicated region
    $region9: #{resnet_forward.5} parent=5 // pred_check
      _
    $region10: #{resnet_forward.5} parent=5 // pred_check_branch
      %94 = sbr.rel (%p91) target = $region12
    $region11: #{resnet_forward.5} parent=5 // pred_region
      %s95 = ssub.s32 %s8, 1
      // Predicated region
      $region13: #{resnet_forward.5} parent=11 // pred_check
        %p96 = pneg %p55
      $region14: #{resnet_forward.5} parent=11 // pred_check_branch
        %98 = sbr.rel (%p96) target = $region16
      $region15: #{resnet_forward.5} parent=11 // pred_region
        _
      $region16: #{resnet_forward.5} parent=11 // pred_fallthru
        _
    $region12: #{resnet_forward.5} parent=5 // pred_fallthru
      _
    %p99 = scmp.lt.s32.totalorder %s8, 2
    // Predicated region
    $region17: #{resnet_forward.5} parent=5 // pred_check
      %p100 = pneg %p99
    $region18: #{resnet_forward.5} parent=5 // pred_check_branch
      %102 = sbr.rel (%p100) target = $region20
    $region19: #{resnet_forward.5} parent=5 // pred_region
      // Predicated region
      $region21: #{resnet_forward.5} parent=19 // pred_check
        %p103 = pneg %p28
      $region22: #{resnet_forward.5} parent=19 // pred_check_branch
        %105 = sbr.rel (%p103) target = $region24
      $region23: #{resnet_forward.5} parent=19 // pred_region
        %p106 = scmp.lt.s32.totalorder %s8, 1
        %s107 = scalar_select %p106, %s8, 1
        %s108 = smul.addr %s107, 736
        %s109 = smul.addr %s108, 4
        %s110 = scalar_lea.vmem %s0, %s109
      $region24: #{resnet_forward.5} parent=19 // pred_fallthru
        _
    $region20: #{resnet_forward.5} parent=5 // pred_fallthru
      _
    %p111 = scmp.le.s32.totalorder 1, %s8
    %p112 = scmp.lt.s32.totalorder %s8, 3
    %p113 = pnand %p111, %p112
    %p114 = pneg %p113
    // Predicated region
    $region25: #{resnet_forward.5} parent=5 // pred_check
      _
    $region26: #{resnet_forward.5} parent=5 // pred_check_branch
      %116 = sbr.rel (%p113) target = $region28
    $region27: #{resnet_forward.5} parent=5 // pred_region
      %s117 = ssub.s32 %s8, 1
      %p118 = scmp.lt.s32.totalorder %s13, 1
      %s119 = scalar_select %p118, %s13, 1
      %s120 = smul.addr %s119, 736
      %s121 = smul.addr %s120, 4
      %s122 = scalar_lea.vmem %s0, %s121
      %p123 = pneg %p34
      %p124 = pneg %p31
      %p125 = pneg %p55
      %p126 = pneg %p52
      %p127 = pneg %p81
      %p128 = pneg %p78
      %p129 = scmp.lt.s32.totalorder %s13, 1
      %s130 = scalar_select %p129, %s13, 1
      %s131 = smul.addr %s130, 2
      %s132 = smul.addr %s131, 8
      %s133 = scalar_lea.vmem %s2, %s132
      %p134 = scmp.lt.s32.totalorder %s13, 1
      %s135 = scalar_select %p134, %s13, 1
      %s136 = smul.addr %s135, 736
      %s137 = smul.addr %s136, 4
      %s138 = scalar_lea.vmem %s0, %s137
      %p139 = scmp.lt.s32.totalorder %s13, 1
      %s140 = scalar_select %p139, %s13, 1
      %s141 = smul.addr %s140, 2
      %s142 = smul.addr %s141, 8
      %s143 = scalar_lea.vmem %s2, %s142
      %v145 = vld [vmem:[%s1] sm:$0xff]
      %v146 = vld [vmem:[%s1 + $0x8] sm:$0xff]
      %v147 = vld [vmem:[%s1 + $0x10] sm:$0xff]
      %v148 = vld [vmem:[%s1 + $0x18] sm:$0xff]
      %v149 = vld [vmem:[%s1 + $0x20] sm:$0xff]
      %v150 = vld [vmem:[%s1 + $0x28] sm:$0xff]
      %v151 = vld [vmem:[%s1 + $0x30] sm:$0xff]
      %v152 = vld [vmem:[%s1 + $0x38] sm:$0xff]
      %v153 = vld [vmem:[%s1 + $0x40] sm:$0xff]
      %v154 = vld [vmem:[%s1 + $0x48] sm:$0xff]
      %v155 = vld [vmem:[%s1 + $0x50] sm:$0xff]
      %v156 = vld [vmem:[%s1 + $0x58] sm:$0xf]
      %v157 = vld [vmem:[%s138] sm:$0xff]
      %v158 = vld [vmem:[%s138 + $0x8] sm:$0xff]
      %v159 = vld [vmem:[%s138 + $0x10] sm:$0xff]
      %v160 = vld [vmem:[%s138 + $0x18] sm:$0xff]
      %v161 = vld [vmem:[%s138 + $0x20] sm:$0xff]
      %v162 = vld [vmem:[%s138 + $0x28] sm:$0xff]
      %v163 = vld [vmem:[%s138 + $0x30] sm:$0xff]
      %v164 = vld [vmem:[%s138 + $0x38] sm:$0xff]
      %v165 = vld [vmem:[%s138 + $0x40] sm:$0xff]
      %v166 = vld [vmem:[%s138 + $0x48] sm:$0xff]
      %v167 = vld [vmem:[%s138 + $0x50] sm:$0xff]
      %v168 = vld [vmem:[%s138 + $0x58] sm:$0xff]
      %v169 = vld [vmem:[%s138 + $0x60] sm:$0xff]
      %v170 = vld [vmem:[%s138 + $0x68] sm:$0xff]
      %v171 = vld [vmem:[%s138 + $0x70] sm:$0xff]
      %v172 = vld [vmem:[%s138 + $0x78] sm:$0xff]
      %v173 = vld [vmem:[%s138 + $0x80] sm:$0xff]
      %v174 = vld [vmem:[%s138 + $0x88] sm:$0xff]
      %v175 = vld [vmem:[%s138 + $0x90] sm:$0xff]
      %v176 = vld [vmem:[%s138 + $0x98] sm:$0xff]
      %v177 = vld [vmem:[%s138 + $0xa0] sm:$0xff]
      %v178 = vld [vmem:[%s138 + $0xa8] sm:$0xff]
      %v179 = vld [vmem:[%s138 + $0xb0] sm:$0xff]
      %v180 = vld [vmem:[%s138 + $0xb8] sm:$0xff]
      %v181 = vld [vmem:[%s138 + $0xc0] sm:$0xff]
      %v182 = vld [vmem:[%s138 + $0xc8] sm:$0xff]
      %v183 = vld [vmem:[%s138 + $0xd0] sm:$0xff]
      %v184 = vld [vmem:[%s138 + $0xd8] sm:$0xff]
      %v185 = vld [vmem:[%s138 + $0xe0] sm:$0xff]
      %v186 = vld [vmem:[%s138 + $0xe8] sm:$0xff]
      %v187 = vld [vmem:[%s138 + $0xf0] sm:$0xff]
      %v188 = vld [vmem:[%s138 + $0xf8] sm:$0xff]
      %v189 = vld [vmem:[%s138 + $0x100] sm:$0xff]
      %v190 = vld [vmem:[%s138 + $0x108] sm:$0xff]
      %v191 = vld [vmem:[%s138 + $0x110] sm:$0xff]
      %v192 = vld [vmem:[%s138 + $0x118] sm:$0xff]
      %v193 = vld [vmem:[%s138 + $0x120] sm:$0xff]
      %v194 = vld [vmem:[%s138 + $0x128] sm:$0xff]
      %v195 = vld [vmem:[%s138 + $0x130] sm:$0xff]
      %v196 = vld [vmem:[%s138 + $0x138] sm:$0xff]
      %v197 = vld [vmem:[%s138 + $0x140] sm:$0xff]
      %v198 = vld [vmem:[%s138 + $0x148] sm:$0xff]
      %v199 = vld [vmem:[%s138 + $0x150] sm:$0xff]
      %v200 = vld [vmem:[%s138 + $0x158] sm:$0xff]
      %v201 = vld [vmem:[%s138 + $0x160] sm:$0xff]
      %v202 = vld [vmem:[%s138 + $0x168] sm:$0xff]
      %v203 = vld [vmem:[%s138 + $0x170] sm:$0xff]
      %v204 = vld [vmem:[%s138 + $0x178] sm:$0xff]
      %v205 = vld [vmem:[%s138 + $0x180] sm:$0xff]
      %v206 = vld [vmem:[%s138 + $0x188] sm:$0xff]
      %v207 = vld [vmem:[%s138 + $0x190] sm:$0xff]
      %v208 = vld [vmem:[%s138 + $0x198] sm:$0xff]
      %v209 = vld [vmem:[%s138 + $0x1a0] sm:$0xff]
      %v210 = vld [vmem:[%s138 + $0x1a8] sm:$0xff]
      %v211 = vld [vmem:[%s138 + $0x1b0] sm:$0xff]
      %v212 = vld [vmem:[%s138 + $0x1b8] sm:$0xff]
      %v213 = vld [vmem:[%s138 + $0x1c0] sm:$0xff]
      %v214 = vld [vmem:[%s138 + $0x1c8] sm:$0xff]
      %v215 = vld [vmem:[%s138 + $0x1d0] sm:$0xff]
      %v216 = vld [vmem:[%s138 + $0x1d8] sm:$0xff]
      %v217 = vld [vmem:[%s138 + $0x1e0] sm:$0xff]
      %v218 = vld [vmem:[%s138 + $0x1e8] sm:$0xff]
      %v219 = vld [vmem:[%s138 + $0x1f0] sm:$0xff]
      %v220 = vld [vmem:[%s138 + $0x1f8] sm:$0xff]
      %v221 = vld [vmem:[%s138 + $0x200] sm:$0xff]
      %v222 = vld [vmem:[%s138 + $0x208] sm:$0xff]
      %v223 = vld [vmem:[%s138 + $0x210] sm:$0xff]
      %v224 = vld [vmem:[%s138 + $0x218] sm:$0xff]
      %v225 = vld [vmem:[%s138 + $0x220] sm:$0xff]
      %v226 = vld [vmem:[%s138 + $0x228] sm:$0xff]
      %v227 = vld [vmem:[%s138 + $0x230] sm:$0xff]
      %v228 = vld [vmem:[%s138 + $0x238] sm:$0xff]
      %v229 = vld [vmem:[%s138 + $0x240] sm:$0xff]
      %v230 = vld [vmem:[%s138 + $0x248] sm:$0xff]
      %v231 = vld [vmem:[%s138 + $0x250] sm:$0xff]
      %v232 = vld [vmem:[%s138 + $0x258] sm:$0xff]
      %v233 = vld [vmem:[%s138 + $0x260] sm:$0xff]
      %v234 = vld [vmem:[%s138 + $0x268] sm:$0xff]
      %v235 = vld [vmem:[%s138 + $0x270] sm:$0xff]
      %v236 = vld [vmem:[%s138 + $0x278] sm:$0xff]
      %v237 = vld [vmem:[%s138 + $0x280] sm:$0xff]
      %v238 = vld [vmem:[%s138 + $0x288] sm:$0xff]
      %v239 = vld [vmem:[%s138 + $0x290] sm:$0xff]
      %v240 = vld [vmem:[%s138 + $0x298] sm:$0xff]
      %v241 = vld [vmem:[%s138 + $0x2a0] sm:$0xff]
      %v242 = vld [vmem:[%s138 + $0x2a8] sm:$0xff]
      %v243 = vld [vmem:[%s138 + $0x2b0] sm:$0xff]
      %v244 = vld [vmem:[%s138 + $0x2b8] sm:$0xff]
      %v245 = vld [vmem:[%s138 + $0x2c0] sm:$0xff]
      %v246 = vld [vmem:[%s138 + $0x2c8] sm:$0xff]
      %v247 = vld [vmem:[%s138 + $0x2d0] sm:$0xff]
      %v248 = vld [vmem:[%s138 + $0x2d8] sm:$0xff]
      %v249 = vld [vmem:[%s138 + $0x2e0] sm:$0xff]
      %v250 = vld [vmem:[%s138 + $0x2e8] sm:$0xff]
      %v251 = vld [vmem:[%s138 + $0x2f0] sm:$0xff]
      %v252 = vld [vmem:[%s138 + $0x2f8] sm:$0xff]
      %v253 = vld [vmem:[%s138 + $0x300] sm:$0xff]
      %v254 = vld [vmem:[%s138 + $0x308] sm:$0xff]
      %v255 = vld [vmem:[%s138 + $0x310] sm:$0xff]
      %v256 = vld [vmem:[%s138 + $0x318] sm:$0xff]
      %v257 = vld [vmem:[%s138 + $0x320] sm:$0xff]
      %v258 = vld [vmem:[%s138 + $0x328] sm:$0xff]
      %v259 = vld [vmem:[%s138 + $0x330] sm:$0xff]
      %v260 = vld [vmem:[%s138 + $0x338] sm:$0xff]
      %v261 = vld [vmem:[%s138 + $0x340] sm:$0xff]
      %v262 = vld [vmem:[%s138 + $0x348] sm:$0xff]
      %v263 = vld [vmem:[%s138 + $0x350] sm:$0xff]
      %v264 = vld [vmem:[%s138 + $0x358] sm:$0xff]
      %v265 = vld [vmem:[%s138 + $0x360] sm:$0xff]
      %v266 = vld [vmem:[%s138 + $0x368] sm:$0xff]
      %v267 = vld [vmem:[%s138 + $0x370] sm:$0xff]
      %v268 = vld [vmem:[%s138 + $0x378] sm:$0xff]
      %v269 = vld [vmem:[%s138 + $0x380] sm:$0xff]
      %v270 = vld [vmem:[%s138 + $0x388] sm:$0xff]
      %v271 = vld [vmem:[%s138 + $0x390] sm:$0xff]
      %v272 = vld [vmem:[%s138 + $0x398] sm:$0xff]
      %v273 = vld [vmem:[%s138 + $0x3a0] sm:$0xff]
      %v274 = vld [vmem:[%s138 + $0x3a8] sm:$0xff]
      %v275 = vld [vmem:[%s138 + $0x3b0] sm:$0xff]
      %v276 = vld [vmem:[%s138 + $0x3b8] sm:$0xff]
      %v277 = vld [vmem:[%s138 + $0x3c0] sm:$0xff]
      %v278 = vld [vmem:[%s138 + $0x3c8] sm:$0xff]
      %v279 = vld [vmem:[%s138 + $0x3d0] sm:$0xff]
      %v280 = vld [vmem:[%s138 + $0x3d8] sm:$0xff]
      %v281 = vld [vmem:[%s138 + $0x3e0] sm:$0xff]
      %v282 = vld [vmem:[%s138 + $0x3e8] sm:$0xff]
      %v283 = vld [vmem:[%s138 + $0x3f0] sm:$0xff]
      %v284 = vld [vmem:[%s138 + $0x3f8] sm:$0xff]
      %v285 = vld [vmem:[%s138 + $0x400] sm:$0xff]
      %v286 = vld [vmem:[%s138 + $0x408] sm:$0xff]
      %v287 = vld [vmem:[%s138 + $0x410] sm:$0xff]
      %v288 = vld [vmem:[%s138 + $0x418] sm:$0xff]
      %v289 = vld [vmem:[%s138 + $0x420] sm:$0xff]
      %v290 = vld [vmem:[%s138 + $0x428] sm:$0xff]
      %v291 = vld [vmem:[%s138 + $0x430] sm:$0xff]
      %v292 = vld [vmem:[%s138 + $0x438] sm:$0xff]
      %v293 = vld [vmem:[%s138 + $0x440] sm:$0xff]
      %v294 = vld [vmem:[%s138 + $0x448] sm:$0xff]
      %v295 = vld [vmem:[%s138 + $0x450] sm:$0xff]
      %v296 = vld [vmem:[%s138 + $0x458] sm:$0xff]
      %v297 = vld [vmem:[%s138 + $0x460] sm:$0xff]
      %v298 = vld [vmem:[%s138 + $0x468] sm:$0xff]
      %v299 = vld [vmem:[%s138 + $0x470] sm:$0xff]
      %v300 = vld [vmem:[%s138 + $0x478] sm:$0xff]
      %v301 = vld [vmem:[%s138 + $0x480] sm:$0xff]
      %v302 = vld [vmem:[%s138 + $0x488] sm:$0xff]
      %v303 = vld [vmem:[%s138 + $0x490] sm:$0xff]
      %v304 = vld [vmem:[%s138 + $0x498] sm:$0xff]
      %v305 = vld [vmem:[%s138 + $0x4a0] sm:$0xff]
      %v306 = vld [vmem:[%s138 + $0x4a8] sm:$0xff]
      %v307 = vld [vmem:[%s138 + $0x4b0] sm:$0xff]
      %v308 = vld [vmem:[%s138 + $0x4b8] sm:$0xff]
      %v309 = vld [vmem:[%s138 + $0x4c0] sm:$0xff]
      %v310 = vld [vmem:[%s138 + $0x4c8] sm:$0xff]
      %v311 = vld [vmem:[%s138 + $0x4d0] sm:$0xff]
      %v312 = vld [vmem:[%s138 + $0x4d8] sm:$0xff]
      %v313 = vld [vmem:[%s138 + $0x4e0] sm:$0xff]
      %v314 = vld [vmem:[%s138 + $0x4e8] sm:$0xff]
      %v315 = vld [vmem:[%s138 + $0x4f0] sm:$0xff]
      %v316 = vld [vmem:[%s138 + $0x4f8] sm:$0xff]
      %v317 = vld [vmem:[%s138 + $0x500] sm:$0xff]
      %v318 = vld [vmem:[%s138 + $0x508] sm:$0xff]
      %v319 = vld [vmem:[%s138 + $0x510] sm:$0xff]
      %v320 = vld [vmem:[%s138 + $0x518] sm:$0xff]
      %v321 = vld [vmem:[%s138 + $0x520] sm:$0xff]
      %v322 = vld [vmem:[%s138 + $0x528] sm:$0xff]
      %v323 = vld [vmem:[%s138 + $0x530] sm:$0xff]
      %v324 = vld [vmem:[%s138 + $0x538] sm:$0xff]
      %v325 = vld [vmem:[%s138 + $0x540] sm:$0xff]
      %v326 = vld [vmem:[%s138 + $0x548] sm:$0xff]
      %v327 = vld [vmem:[%s138 + $0x550] sm:$0xff]
      %v328 = vld [vmem:[%s138 + $0x558] sm:$0xff]
      %v329 = vld [vmem:[%s138 + $0x560] sm:$0xff]
      %v330 = vld [vmem:[%s138 + $0x568] sm:$0xff]
      %v331 = vld [vmem:[%s138 + $0x570] sm:$0xff]
      %v332 = vld [vmem:[%s138 + $0x578] sm:$0xff]
      %v333 = vld [vmem:[%s138 + $0x580] sm:$0xff]
      %v334 = vld [vmem:[%s138 + $0x588] sm:$0xff]
      %v335 = vld [vmem:[%s138 + $0x590] sm:$0xff]
      %v336 = vld [vmem:[%s138 + $0x598] sm:$0xff]
      %v337 = vld [vmem:[%s138 + $0x5a0] sm:$0xff]
      %v338 = vld [vmem:[%s138 + $0x5a8] sm:$0xff]
      %v339 = vld [vmem:[%s138 + $0x5b0] sm:$0xff]
      %v340 = vld [vmem:[%s138 + $0x5b8] sm:$0xff]
      %v341 = vld [vmem:[%s138 + $0x5c0] sm:$0xff]
      %v342 = vld [vmem:[%s138 + $0x5c8] sm:$0xff]
      %v343 = vld [vmem:[%s138 + $0x5d0] sm:$0xff]
      %v344 = vld [vmem:[%s138 + $0x5d8] sm:$0xff]
      %v345 = vld [vmem:[%s138 + $0x5e0] sm:$0xff]
      %v346 = vld [vmem:[%s138 + $0x5e8] sm:$0xff]
      %v347 = vld [vmem:[%s138 + $0x5f0] sm:$0xff]
      %v348 = vld [vmem:[%s138 + $0x5f8] sm:$0xff]
      %v349 = vld [vmem:[%s138 + $0x600] sm:$0xff]
      %v350 = vld [vmem:[%s138 + $0x608] sm:$0xff]
      %v351 = vld [vmem:[%s138 + $0x610] sm:$0xff]
      %v352 = vld [vmem:[%s138 + $0x618] sm:$0xff]
      %v353 = vld [vmem:[%s138 + $0x620] sm:$0xff]
      %v354 = vld [vmem:[%s138 + $0x628] sm:$0xff]
      %v355 = vld [vmem:[%s138 + $0x630] sm:$0xff]
      %v356 = vld [vmem:[%s138 + $0x638] sm:$0xff]
      %v357 = vld [vmem:[%s138 + $0x640] sm:$0xff]
      %v358 = vld [vmem:[%s138 + $0x648] sm:$0xff]
      %v359 = vld [vmem:[%s138 + $0x650] sm:$0xff]
      %v360 = vld [vmem:[%s138 + $0x658] sm:$0xff]
      %v361 = vld [vmem:[%s138 + $0x660] sm:$0xff]
      %v362 = vld [vmem:[%s138 + $0x668] sm:$0xff]
      %v363 = vld [vmem:[%s138 + $0x670] sm:$0xff]
      %v364 = vld [vmem:[%s138 + $0x678] sm:$0xff]
      %v365 = vld [vmem:[%s138 + $0x680] sm:$0xff]
      %v366 = vld [vmem:[%s138 + $0x688] sm:$0xff]
      %v367 = vld [vmem:[%s138 + $0x690] sm:$0xff]
      %v368 = vld [vmem:[%s138 + $0x698] sm:$0xff]
      %v369 = vld [vmem:[%s138 + $0x6a0] sm:$0xff]
      %v370 = vld [vmem:[%s138 + $0x6a8] sm:$0xff]
      %v371 = vld [vmem:[%s138 + $0x6b0] sm:$0xff]
      %v372 = vld [vmem:[%s138 + $0x6b8] sm:$0xff]
      %v373 = vld [vmem:[%s138 + $0x6c0] sm:$0xff]
      %v374 = vld [vmem:[%s138 + $0x6c8] sm:$0xff]
      %v375 = vld [vmem:[%s138 + $0x6d0] sm:$0xff]
      %v376 = vld [vmem:[%s138 + $0x6d8] sm:$0xff]
      %v377 = vld [vmem:[%s138 + $0x6e0] sm:$0xff]
      %v378 = vld [vmem:[%s138 + $0x6e8] sm:$0xff]
      %v379 = vld [vmem:[%s138 + $0x6f0] sm:$0xff]
      %v380 = vld [vmem:[%s138 + $0x6f8] sm:$0xff]
      %v381 = vld [vmem:[%s138 + $0x700] sm:$0xff]
      %v382 = vld [vmem:[%s138 + $0x708] sm:$0xff]
      %v383 = vld [vmem:[%s138 + $0x710] sm:$0xff]
      %v384 = vld [vmem:[%s138 + $0x718] sm:$0xff]
      %v385 = vld [vmem:[%s138 + $0x720] sm:$0xff]
      %v386 = vld [vmem:[%s138 + $0x728] sm:$0xff]
      %v387 = vld [vmem:[%s138 + $0x730] sm:$0xff]
      %v388 = vld [vmem:[%s138 + $0x738] sm:$0xff]
      %v389 = vld [vmem:[%s138 + $0x740] sm:$0xff]
      %v390 = vld [vmem:[%s138 + $0x748] sm:$0xff]
      %v391 = vld [vmem:[%s138 + $0x750] sm:$0xff]
      %v392 = vld [vmem:[%s138 + $0x758] sm:$0xff]
      %v393 = vld [vmem:[%s138 + $0x760] sm:$0xff]
      %v394 = vld [vmem:[%s138 + $0x768] sm:$0xff]
      %v395 = vld [vmem:[%s138 + $0x770] sm:$0xff]
      %v396 = vld [vmem:[%s138 + $0x778] sm:$0xff]
      %v397 = vld [vmem:[%s138 + $0x780] sm:$0xff]
      %v398 = vld [vmem:[%s138 + $0x788] sm:$0xff]
      %v399 = vld [vmem:[%s138 + $0x790] sm:$0xff]
      %v400 = vld [vmem:[%s138 + $0x798] sm:$0xff]
      %v401 = vld [vmem:[%s138 + $0x7a0] sm:$0xff]
      %v402 = vld [vmem:[%s138 + $0x7a8] sm:$0xff]
      %v403 = vld [vmem:[%s138 + $0x7b0] sm:$0xff]
      %v404 = vld [vmem:[%s138 + $0x7b8] sm:$0xff]
      %v405 = vld [vmem:[%s138 + $0x7c0] sm:$0xff]
      %v406 = vld [vmem:[%s138 + $0x7c8] sm:$0xff]
      %v407 = vld [vmem:[%s138 + $0x7d0] sm:$0xff]
      %v408 = vld [vmem:[%s138 + $0x7d8] sm:$0xff]
      %v409 = vld [vmem:[%s138 + $0x7e0] sm:$0xff]
      %v410 = vld [vmem:[%s138 + $0x7e8] sm:$0xff]
      %v411 = vld [vmem:[%s138 + $0x7f0] sm:$0xff]
      %v412 = vld [vmem:[%s138 + $0x7f8] sm:$0xff]
      %v413 = vld [vmem:[%s138 + $0x800] sm:$0xff]
      %v414 = vld [vmem:[%s138 + $0x808] sm:$0xff]
      %v415 = vld [vmem:[%s138 + $0x810] sm:$0xff]
      %v416 = vld [vmem:[%s138 + $0x818] sm:$0xff]
      %v417 = vld [vmem:[%s138 + $0x820] sm:$0xff]
      %v418 = vld [vmem:[%s138 + $0x828] sm:$0xff]
      %v419 = vld [vmem:[%s138 + $0x830] sm:$0xff]
      %v420 = vld [vmem:[%s138 + $0x838] sm:$0xff]
      %v421 = vld [vmem:[%s138 + $0x840] sm:$0xff]
      %v422 = vld [vmem:[%s138 + $0x848] sm:$0xff]
      %v423 = vld [vmem:[%s138 + $0x850] sm:$0xff]
      %v424 = vld [vmem:[%s138 + $0x858] sm:$0xff]
      %v425 = vld [vmem:[%s138 + $0x860] sm:$0xff]
      %v426 = vld [vmem:[%s138 + $0x868] sm:$0xff]
      %v427 = vld [vmem:[%s138 + $0x870] sm:$0xff]
      %v428 = vld [vmem:[%s138 + $0x878] sm:$0xff]
      %v429 = vld [vmem:[%s138 + $0x880] sm:$0xff]
      %v430 = vld [vmem:[%s138 + $0x888] sm:$0xff]
      %v431 = vld [vmem:[%s138 + $0x890] sm:$0xff]
      %v432 = vld [vmem:[%s138 + $0x898] sm:$0xff]
      %v433 = vld [vmem:[%s138 + $0x8a0] sm:$0xff]
      %v434 = vld [vmem:[%s138 + $0x8a8] sm:$0xff]
      %v435 = vld [vmem:[%s138 + $0x8b0] sm:$0xff]
      %v436 = vld [vmem:[%s138 + $0x8b8] sm:$0xff]
      %v437 = vld [vmem:[%s138 + $0x8c0] sm:$0xff]
      %v438 = vld [vmem:[%s138 + $0x8c8] sm:$0xff]
      %v439 = vld [vmem:[%s138 + $0x8d0] sm:$0xff]
      %v440 = vld [vmem:[%s138 + $0x8d8] sm:$0xff]
      %v441 = vld [vmem:[%s138 + $0x8e0] sm:$0xff]
      %v442 = vld [vmem:[%s138 + $0x8e8] sm:$0xff]
      %v443 = vld [vmem:[%s138 + $0x8f0] sm:$0xff]
      %v444 = vld [vmem:[%s138 + $0x8f8] sm:$0xff]
      %v445 = vld [vmem:[%s138 + $0x900] sm:$0xff]
      %v446 = vld [vmem:[%s138 + $0x908] sm:$0xff]
      %v447 = vld [vmem:[%s138 + $0x910] sm:$0xff]
      %v448 = vld [vmem:[%s138 + $0x918] sm:$0xff]
      %v449 = vld [vmem:[%s138 + $0x920] sm:$0xff]
      %v450 = vld [vmem:[%s138 + $0x928] sm:$0xff]
      %v451 = vld [vmem:[%s138 + $0x930] sm:$0xff]
      %v452 = vld [vmem:[%s138 + $0x938] sm:$0xff]
      %v453 = vld [vmem:[%s138 + $0x940] sm:$0xff]
      %v454 = vld [vmem:[%s138 + $0x948] sm:$0xff]
      %v455 = vld [vmem:[%s138 + $0x950] sm:$0xff]
      %v456 = vld [vmem:[%s138 + $0x958] sm:$0xff]
      %v457 = vld [vmem:[%s138 + $0x960] sm:$0xff]
      %v458 = vld [vmem:[%s138 + $0x968] sm:$0xff]
      %v459 = vld [vmem:[%s138 + $0x970] sm:$0xff]
      %v460 = vld [vmem:[%s138 + $0x978] sm:$0xff]
      %v461 = vld [vmem:[%s138 + $0x980] sm:$0xff]
      %v462 = vld [vmem:[%s138 + $0x988] sm:$0xff]
      %v463 = vld [vmem:[%s138 + $0x990] sm:$0xff]
      %v464 = vld [vmem:[%s138 + $0x998] sm:$0xff]
      %v465 = vld [vmem:[%s138 + $0x9a0] sm:$0xff]
      %v466 = vld [vmem:[%s138 + $0x9a8] sm:$0xff]
      %v467 = vld [vmem:[%s138 + $0x9b0] sm:$0xff]
      %v468 = vld [vmem:[%s138 + $0x9b8] sm:$0xff]
      %v469 = vld [vmem:[%s138 + $0x9c0] sm:$0xff]
      %v470 = vld [vmem:[%s138 + $0x9c8] sm:$0xff]
      %v471 = vld [vmem:[%s138 + $0x9d0] sm:$0xff]
      %v472 = vld [vmem:[%s138 + $0x9d8] sm:$0xff]
      %v473 = vld [vmem:[%s138 + $0x9e0] sm:$0xff]
      %v474 = vld [vmem:[%s138 + $0x9e8] sm:$0xff]
      %v475 = vld [vmem:[%s138 + $0x9f0] sm:$0xff]
      %v476 = vld [vmem:[%s138 + $0x9f8] sm:$0xff]
      %v477 = vld [vmem:[%s138 + $0xa00] sm:$0xff]
      %v478 = vld [vmem:[%s138 + $0xa08] sm:$0xff]
      %v479 = vld [vmem:[%s138 + $0xa10] sm:$0xff]
      %v480 = vld [vmem:[%s138 + $0xa18] sm:$0xff]
      %v481 = vld [vmem:[%s138 + $0xa20] sm:$0xff]
      %v482 = vld [vmem:[%s138 + $0xa28] sm:$0xff]
      %v483 = vld [vmem:[%s138 + $0xa30] sm:$0xff]
      %v484 = vld [vmem:[%s138 + $0xa38] sm:$0xff]
      %v485 = vld [vmem:[%s138 + $0xa40] sm:$0xff]
      %v486 = vld [vmem:[%s138 + $0xa48] sm:$0xff]
      %v487 = vld [vmem:[%s138 + $0xa50] sm:$0xff]
      %v488 = vld [vmem:[%s138 + $0xa58] sm:$0xff]
      %v489 = vld [vmem:[%s138 + $0xa60] sm:$0xff]
      %v490 = vld [vmem:[%s138 + $0xa68] sm:$0xff]
      %v491 = vld [vmem:[%s138 + $0xa70] sm:$0xff]
      %v492 = vld [vmem:[%s138 + $0xa78] sm:$0xff]
      %v493 = vld [vmem:[%s138 + $0xa80] sm:$0xff]
      %v494 = vld [vmem:[%s138 + $0xa88] sm:$0xff]
      %v495 = vld [vmem:[%s138 + $0xa90] sm:$0xff]
      %v496 = vld [vmem:[%s138 + $0xa98] sm:$0xff]
      %v497 = vld [vmem:[%s138 + $0xaa0] sm:$0xff]
      %v498 = vld [vmem:[%s138 + $0xaa8] sm:$0xff]
      %v499 = vld [vmem:[%s138 + $0xab0] sm:$0xff]
      %v500 = vld [vmem:[%s138 + $0xab8] sm:$0xff]
      %v501 = vld [vmem:[%s138 + $0xac0] sm:$0xff]
      %v502 = vld [vmem:[%s138 + $0xac8] sm:$0xff]
      %v503 = vld [vmem:[%s138 + $0xad0] sm:$0xff]
      %v504 = vld [vmem:[%s138 + $0xad8] sm:$0xff]
      %v505 = vld [vmem:[%s138 + $0xae0] sm:$0xff]
      %v506 = vld [vmem:[%s138 + $0xae8] sm:$0xff]
      %v507 = vld [vmem:[%s138 + $0xaf0] sm:$0xff]
      %v508 = vld [vmem:[%s138 + $0xaf8] sm:$0xff]
      %v509 = vld [vmem:[%s138 + $0xb00] sm:$0xff]
      %v510 = vld [vmem:[%s138 + $0xb08] sm:$0xff]
      %v511 = vld [vmem:[%s138 + $0xb10] sm:$0xff]
      %v512 = vld [vmem:[%s138 + $0xb18] sm:$0xff]
      %v513 = vld [vmem:[%s138 + $0xb20] sm:$0xff]
      %v514 = vld [vmem:[%s138 + $0xb28] sm:$0xff]
      %v515 = vld [vmem:[%s138 + $0xb30] sm:$0xff]
      %v516 = vld [vmem:[%s138 + $0xb38] sm:$0xff]
      %v517 = vld [vmem:[%s138 + $0xb40] sm:$0xff]
      %v518 = vld [vmem:[%s138 + $0xb48] sm:$0xff]
      %v519 = vld [vmem:[%s138 + $0xb50] sm:$0xff]
      %v520 = vld [vmem:[%s138 + $0xb58] sm:$0xff]
      %v521 = vld [vmem:[%s138 + $0xb60] sm:$0xff]
      %v522 = vld [vmem:[%s138 + $0xb68] sm:$0xff]
      %v523 = vld [vmem:[%s138 + $0xb70] sm:$0xff]
      %v524 = vld [vmem:[%s138 + $0xb78] sm:$0xff]
      %v537 = vunpack.c.l.b16 %v145
      %v538 = vunpack.c.h.b16 %v145
      %v539 = vunpack.c.l.b16 %v146
      %v540 = vunpack.c.h.b16 %v146
      %v541 = vunpack.c.l.b16 %v147
      %v542 = vunpack.c.h.b16 %v147
      %v543 = vunpack.c.l.b16 %v148
      %v544 = vunpack.c.h.b16 %v148
      %v545 = vunpack.c.l.b16 %v149
      %v546 = vunpack.c.h.b16 %v149
      %v547 = vunpack.c.l.b16 %v150
      %v548 = vunpack.c.h.b16 %v150
      %v549 = vunpack.c.l.b16 %v151
      %v550 = vunpack.c.h.b16 %v151
      %v551 = vunpack.c.l.b16 %v152
      %v552 = vunpack.c.h.b16 %v152
      %v553 = vunpack.c.l.b16 %v153
      %v554 = vunpack.c.h.b16 %v153
      %v555 = vunpack.c.l.b16 %v154
      %v556 = vunpack.c.h.b16 %v154
      %v557 = vunpack.c.l.b16 %v155
      %v558 = vunpack.c.h.b16 %v155
      %v559 = vunpack.c.l.b16 %v156
      %v560 = vpack.c.b16 %v537, %v537
      %v561 = vpack.c.b16 %v538, %v538
      %v562 = vpack.c.b16 %v539, %v539
      %v563 = vpack.c.b16 %v540, %v540
      %v564 = vpack.c.b16 %v541, %v541
      %v565 = vpack.c.b16 %v542, %v542
      %v566 = vpack.c.b16 %v543, %v543
      %v567 = vpack.c.b16 %v544, %v544
      %v568 = vpack.c.b16 %v545, %v545
      %v569 = vpack.c.b16 %v546, %v546
      %v570 = vpack.c.b16 %v547, %v547
      %v571 = vpack.c.b16 %v548, %v548
      %v572 = vpack.c.b16 %v549, %v549
      %v573 = vpack.c.b16 %v550, %v550
      %v574 = vpack.c.b16 %v551, %v551
      %v575 = vpack.c.b16 %v552, %v552
      %v576 = vpack.c.b16 %v553, %v553
      %v577 = vpack.c.b16 %v554, %v554
      %v578 = vpack.c.b16 %v555, %v555
      %v579 = vpack.c.b16 %v556, %v556
      %v580 = vpack.c.b16 %v557, %v557
      %v581 = vpack.c.b16 %v558, %v558
      %v582 = vpack.c.b16 %v559, %v559
      %v974 = vunpack.c.l.b16 %v157
      %v975 = vunpack.c.h.b16 %v157
      %v976 = vunpack.c.l.b16 %v158
      %v977 = vunpack.c.h.b16 %v158
      %v978 = vunpack.c.l.b16 %v159
      %v979 = vunpack.c.h.b16 %v159
      %v980 = vunpack.c.l.b16 %v160
      %v981 = vunpack.c.h.b16 %v160
      %v982 = vunpack.c.l.b16 %v161
      %v983 = vunpack.c.h.b16 %v161
      %v984 = vunpack.c.l.b16 %v162
      %v985 = vunpack.c.h.b16 %v162
      %v986 = vunpack.c.l.b16 %v163
      %v987 = vunpack.c.h.b16 %v163
      %v988 = vunpack.c.l.b16 %v164
      %v989 = vunpack.c.h.b16 %v164
      %v990 = vunpack.c.l.b16 %v165
      %v991 = vunpack.c.h.b16 %v165
      %v992 = vunpack.c.l.b16 %v166
      %v993 = vunpack.c.h.b16 %v166
      %v994 = vunpack.c.l.b16 %v167
      %v995 = vunpack.c.h.b16 %v167
      %v996 = vunpack.c.l.b16 %v168
      %v997 = vunpack.c.h.b16 %v168
      %v998 = vunpack.c.l.b16 %v169
      %v999 = vunpack.c.h.b16 %v169
      %v1000 = vunpack.c.l.b16 %v170
      %v1001 = vunpack.c.h.b16 %v170
      %v1002 = vunpack.c.l.b16 %v171
      %v1003 = vunpack.c.h.b16 %v171
      %v1004 = vunpack.c.l.b16 %v172
      %v1005 = vunpack.c.h.b16 %v172
      %v1006 = vunpack.c.l.b16 %v173
      %v1007 = vunpack.c.h.b16 %v173
      %v1008 = vunpack.c.l.b16 %v174
      %v1009 = vunpack.c.h.b16 %v174
      %v1010 = vunpack.c.l.b16 %v175
      %v1011 = vunpack.c.h.b16 %v175
      %v1012 = vunpack.c.l.b16 %v176
      %v1013 = vunpack.c.h.b16 %v176
      %v1014 = vunpack.c.l.b16 %v177
      %v1015 = vunpack.c.h.b16 %v177
      %v1016 = vunpack.c.l.b16 %v178
      %v1017 = vunpack.c.h.b16 %v178
      %v1018 = vunpack.c.l.b16 %v179
      %v1019 = vunpack.c.h.b16 %v179
      %v1020 = vunpack.c.l.b16 %v180
      %v1021 = vunpack.c.h.b16 %v180
      %v1022 = vunpack.c.l.b16 %v181
      %v1023 = vunpack.c.h.b16 %v181
      %v1024 = vunpack.c.l.b16 %v182
      %v1025 = vunpack.c.h.b16 %v182
      %v1026 = vunpack.c.l.b16 %v183
      %v1027 = vunpack.c.h.b16 %v183
      %v1028 = vunpack.c.l.b16 %v184
      %v1029 = vunpack.c.h.b16 %v184
      %v1030 = vunpack.c.l.b16 %v185
      %v1031 = vunpack.c.h.b16 %v185
      %v1032 = vunpack.c.l.b16 %v186
      %v1033 = vunpack.c.h.b16 %v186
      %v1034 = vunpack.c.l.b16 %v187
      %v1035 = vunpack.c.h.b16 %v187
      %v1036 = vunpack.c.l.b16 %v188
      %v1037 = vunpack.c.h.b16 %v188
      %v1038 = vunpack.c.l.b16 %v189
      %v1039 = vunpack.c.h.b16 %v189
      %v1040 = vunpack.c.l.b16 %v190
      %v1041 = vunpack.c.h.b16 %v190
      %v1042 = vunpack.c.l.b16 %v191
      %v1043 = vunpack.c.h.b16 %v191
      %v1044 = vunpack.c.l.b16 %v192
      %v1045 = vunpack.c.h.b16 %v192
      %v1046 = vunpack.c.l.b16 %v193
      %v1047 = vunpack.c.h.b16 %v193
      %v1048 = vunpack.c.l.b16 %v194
      %v1049 = vunpack.c.h.b16 %v194
      %v1050 = vunpack.c.l.b16 %v195
      %v1051 = vunpack.c.h.b16 %v195
      %v1052 = vunpack.c.l.b16 %v196
      %v1053 = vunpack.c.h.b16 %v196
      %v1054 = vunpack.c.l.b16 %v197
      %v1055 = vunpack.c.h.b16 %v197
      %v1056 = vunpack.c.l.b16 %v198
      %v1057 = vunpack.c.h.b16 %v198
      %v1058 = vunpack.c.l.b16 %v199
      %v1059 = vunpack.c.h.b16 %v199
      %v1060 = vunpack.c.l.b16 %v200
      %v1061 = vunpack.c.h.b16 %v200
      %v1062 = vunpack.c.l.b16 %v201
      %v1063 = vunpack.c.h.b16 %v201
      %v1064 = vunpack.c.l.b16 %v202
      %v1065 = vunpack.c.h.b16 %v202
      %v1066 = vunpack.c.l.b16 %v203
      %v1067 = vunpack.c.h.b16 %v203
      %v1068 = vunpack.c.l.b16 %v204
      %v1069 = vunpack.c.h.b16 %v204
      %v1070 = vunpack.c.l.b16 %v205
      %v1071 = vunpack.c.h.b16 %v205
      %v1072 = vunpack.c.l.b16 %v206
      %v1073 = vunpack.c.h.b16 %v206
      %v1074 = vunpack.c.l.b16 %v207
      %v1075 = vunpack.c.h.b16 %v207
      %v1076 = vunpack.c.l.b16 %v208
      %v1077 = vunpack.c.h.b16 %v208
      %v1078 = vunpack.c.l.b16 %v209
      %v1079 = vunpack.c.h.b16 %v209
      %v1080 = vunpack.c.l.b16 %v210
      %v1081 = vunpack.c.h.b16 %v210
      %v1082 = vunpack.c.l.b16 %v211
      %v1083 = vunpack.c.h.b16 %v211
      %v1084 = vunpack.c.l.b16 %v212
      %v1085 = vunpack.c.h.b16 %v212
      %v1086 = vunpack.c.l.b16 %v213
      %v1087 = vunpack.c.h.b16 %v213
      %v1088 = vunpack.c.l.b16 %v214
      %v1089 = vunpack.c.h.b16 %v214
      %v1090 = vunpack.c.l.b16 %v215
      %v1091 = vunpack.c.h.b16 %v215
      %v1092 = vunpack.c.l.b16 %v216
      %v1093 = vunpack.c.h.b16 %v216
      %v1094 = vunpack.c.l.b16 %v217
      %v1095 = vunpack.c.h.b16 %v217
      %v1096 = vunpack.c.l.b16 %v218
      %v1097 = vunpack.c.h.b16 %v218
      %v1098 = vunpack.c.l.b16 %v219
      %v1099 = vunpack.c.h.b16 %v219
      %v1100 = vunpack.c.l.b16 %v220
      %v1101 = vunpack.c.h.b16 %v220
      %v1102 = vunpack.c.l.b16 %v221
      %v1103 = vunpack.c.h.b16 %v221
      %v1104 = vunpack.c.l.b16 %v222
      %v1105 = vunpack.c.h.b16 %v222
      %v1106 = vunpack.c.l.b16 %v223
      %v1107 = vunpack.c.h.b16 %v223
      %v1108 = vunpack.c.l.b16 %v224
      %v1109 = vunpack.c.h.b16 %v224
      %v1110 = vunpack.c.l.b16 %v225
      %v1111 = vunpack.c.h.b16 %v225
      %v1112 = vunpack.c.l.b16 %v226
      %v1113 = vunpack.c.h.b16 %v226
      %v1114 = vunpack.c.l.b16 %v227
      %v1115 = vunpack.c.h.b16 %v227
      %v1116 = vunpack.c.l.b16 %v228
      %v1117 = vunpack.c.h.b16 %v228
      %v1118 = vunpack.c.l.b16 %v229
      %v1119 = vunpack.c.h.b16 %v229
      %v1120 = vunpack.c.l.b16 %v230
      %v1121 = vunpack.c.h.b16 %v230
      %v1122 = vunpack.c.l.b16 %v231
      %v1123 = vunpack.c.h.b16 %v231
      %v1124 = vunpack.c.l.b16 %v232
      %v1125 = vunpack.c.h.b16 %v232
      %v1126 = vunpack.c.l.b16 %v233
      %v1127 = vunpack.c.h.b16 %v233
      %v1128 = vunpack.c.l.b16 %v234
      %v1129 = vunpack.c.h.b16 %v234
      %v1130 = vunpack.c.l.b16 %v235
      %v1131 = vunpack.c.h.b16 %v235
      %v1132 = vunpack.c.l.b16 %v236
      %v1133 = vunpack.c.h.b16 %v236
      %v1134 = vunpack.c.l.b16 %v237
      %v1135 = vunpack.c.h.b16 %v237
      %v1136 = vunpack.c.l.b16 %v238
      %v1137 = vunpack.c.h.b16 %v238
      %v1138 = vunpack.c.l.b16 %v239
      %v1139 = vunpack.c.h.b16 %v239
      %v1140 = vunpack.c.l.b16 %v240
      %v1141 = vunpack.c.h.b16 %v240
      %v1142 = vunpack.c.l.b16 %v241
      %v1143 = vunpack.c.h.b16 %v241
      %v1144 = vunpack.c.l.b16 %v242
      %v1145 = vunpack.c.h.b16 %v242
      %v1146 = vunpack.c.l.b16 %v243
      %v1147 = vunpack.c.h.b16 %v243
      %v1148 = vunpack.c.l.b16 %v244
      %v1149 = vunpack.c.h.b16 %v244
      %v1150 = vunpack.c.l.b16 %v245
      %v1151 = vunpack.c.h.b16 %v245
      %v1152 = vunpack.c.l.b16 %v246
      %v1153 = vunpack.c.h.b16 %v246
      %v1154 = vunpack.c.l.b16 %v247
      %v1155 = vunpack.c.h.b16 %v247
      %v1156 = vunpack.c.l.b16 %v248
      %v1157 = vunpack.c.h.b16 %v248
      %v1158 = vunpack.c.l.b16 %v249
      %v1159 = vunpack.c.h.b16 %v249
      %v1160 = vunpack.c.l.b16 %v250
      %v1161 = vunpack.c.h.b16 %v250
      %v1162 = vunpack.c.l.b16 %v251
      %v1163 = vunpack.c.h.b16 %v251
      %v1164 = vunpack.c.l.b16 %v252
      %v1165 = vunpack.c.h.b16 %v252
      %v1166 = vunpack.c.l.b16 %v253
      %v1167 = vunpack.c.h.b16 %v253
      %v1168 = vunpack.c.l.b16 %v254
      %v1169 = vunpack.c.h.b16 %v254
      %v1170 = vunpack.c.l.b16 %v255
      %v1171 = vunpack.c.h.b16 %v255
      %v1172 = vunpack.c.l.b16 %v256
      %v1173 = vunpack.c.h.b16 %v256
      %v1174 = vunpack.c.l.b16 %v257
      %v1175 = vunpack.c.h.b16 %v257
      %v1176 = vunpack.c.l.b16 %v258
      %v1177 = vunpack.c.h.b16 %v258
      %v1178 = vunpack.c.l.b16 %v259
      %v1179 = vunpack.c.h.b16 %v259
      %v1180 = vunpack.c.l.b16 %v260
      %v1181 = vunpack.c.h.b16 %v260
      %v1182 = vunpack.c.l.b16 %v261
      %v1183 = vunpack.c.h.b16 %v261
      %v1184 = vunpack.c.l.b16 %v262
      %v1185 = vunpack.c.h.b16 %v262
      %v1186 = vunpack.c.l.b16 %v263
      %v1187 = vunpack.c.h.b16 %v263
      %v1188 = vunpack.c.l.b16 %v264
      %v1189 = vunpack.c.h.b16 %v264
      %v1190 = vunpack.c.l.b16 %v265
      %v1191 = vunpack.c.h.b16 %v265
      %v1192 = vunpack.c.l.b16 %v266
      %v1193 = vunpack.c.h.b16 %v266
      %v1194 = vunpack.c.l.b16 %v267
      %v1195 = vunpack.c.h.b16 %v267
      %v1196 = vunpack.c.l.b16 %v268
      %v1197 = vunpack.c.h.b16 %v268
      %v1198 = vunpack.c.l.b16 %v269
      %v1199 = vunpack.c.h.b16 %v269
      %v1200 = vunpack.c.l.b16 %v270
      %v1201 = vunpack.c.h.b16 %v270
      %v1202 = vunpack.c.l.b16 %v271
      %v1203 = vunpack.c.h.b16 %v271
      %v1204 = vunpack.c.l.b16 %v272
      %v1205 = vunpack.c.h.b16 %v272
      %v1206 = vunpack.c.l.b16 %v273
      %v1207 = vunpack.c.h.b16 %v273
      %v1208 = vunpack.c.l.b16 %v274
      %v1209 = vunpack.c.h.b16 %v274
      %v1210 = vunpack.c.l.b16 %v275
      %v1211 = vunpack.c.h.b16 %v275
      %v1212 = vunpack.c.l.b16 %v276
      %v1213 = vunpack.c.h.b16 %v276
      %v1214 = vunpack.c.l.b16 %v277
      %v1215 = vunpack.c.h.b16 %v277
      %v1216 = vunpack.c.l.b16 %v278
      %v1217 = vunpack.c.h.b16 %v278
      %v1218 = vunpack.c.l.b16 %v279
      %v1219 = vunpack.c.h.b16 %v279
      %v1220 = vunpack.c.l.b16 %v280
      %v1221 = vunpack.c.h.b16 %v280
      %v1222 = vunpack.c.l.b16 %v281
      %v1223 = vunpack.c.h.b16 %v281
      %v1224 = vunpack.c.l.b16 %v282
      %v1225 = vunpack.c.h.b16 %v282
      %v1226 = vunpack.c.l.b16 %v283
      %v1227 = vunpack.c.h.b16 %v283
      %v1228 = vunpack.c.l.b16 %v284
      %v1229 = vunpack.c.h.b16 %v284
      %v1230 = vunpack.c.l.b16 %v285
      %v1231 = vunpack.c.h.b16 %v285
      %v1232 = vunpack.c.l.b16 %v286
      %v1233 = vunpack.c.h.b16 %v286
      %v1234 = vunpack.c.l.b16 %v287
      %v1235 = vunpack.c.h.b16 %v287
      %v1236 = vunpack.c.l.b16 %v288
      %v1237 = vunpack.c.h.b16 %v288
      %v1238 = vunpack.c.l.b16 %v289
      %v1239 = vunpack.c.h.b16 %v289
      %v1240 = vunpack.c.l.b16 %v290
      %v1241 = vunpack.c.h.b16 %v290
      %v1242 = vunpack.c.l.b16 %v291
      %v1243 = vunpack.c.h.b16 %v291
      %v1244 = vunpack.c.l.b16 %v292
      %v1245 = vunpack.c.h.b16 %v292
      %v1246 = vunpack.c.l.b16 %v293
      %v1247 = vunpack.c.h.b16 %v293
      %v1248 = vunpack.c.l.b16 %v294
      %v1249 = vunpack.c.h.b16 %v294
      %v1250 = vunpack.c.l.b16 %v295
      %v1251 = vunpack.c.h.b16 %v295
      %v1252 = vunpack.c.l.b16 %v296
      %v1253 = vunpack.c.h.b16 %v296
      %v1254 = vunpack.c.l.b16 %v297
      %v1255 = vunpack.c.h.b16 %v297
      %v1256 = vunpack.c.l.b16 %v298
      %v1257 = vunpack.c.h.b16 %v298
      %v1258 = vunpack.c.l.b16 %v299
      %v1259 = vunpack.c.h.b16 %v299
      %v1260 = vunpack.c.l.b16 %v300
      %v1261 = vunpack.c.h.b16 %v300
      %v1262 = vunpack.c.l.b16 %v301
      %v1263 = vunpack.c.h.b16 %v301
      %v1264 = vunpack.c.l.b16 %v302
      %v1265 = vunpack.c.h.b16 %v302
      %v1266 = vunpack.c.l.b16 %v303
      %v1267 = vunpack.c.h.b16 %v303
      %v1268 = vunpack.c.l.b16 %v304
      %v1269 = vunpack.c.h.b16 %v304
      %v1270 = vunpack.c.l.b16 %v305
      %v1271 = vunpack.c.h.b16 %v305
      %v1272 = vunpack.c.l.b16 %v306
      %v1273 = vunpack.c.h.b16 %v306
      %v1274 = vunpack.c.l.b16 %v307
      %v1275 = vunpack.c.h.b16 %v307
      %v1276 = vunpack.c.l.b16 %v308
      %v1277 = vunpack.c.h.b16 %v308
      %v1278 = vunpack.c.l.b16 %v309
      %v1279 = vunpack.c.h.b16 %v309
      %v1280 = vunpack.c.l.b16 %v310
      %v1281 = vunpack.c.h.b16 %v310
      %v1282 = vunpack.c.l.b16 %v311
      %v1283 = vunpack.c.h.b16 %v311
      %v1284 = vunpack.c.l.b16 %v312
      %v1285 = vunpack.c.h.b16 %v312
      %v1286 = vunpack.c.l.b16 %v313
      %v1287 = vunpack.c.h.b16 %v313
      %v1288 = vunpack.c.l.b16 %v314
      %v1289 = vunpack.c.h.b16 %v314
      %v1290 = vunpack.c.l.b16 %v315
      %v1291 = vunpack.c.h.b16 %v315
      %v1292 = vunpack.c.l.b16 %v316
      %v1293 = vunpack.c.h.b16 %v316
      %v1294 = vunpack.c.l.b16 %v317
      %v1295 = vunpack.c.h.b16 %v317
      %v1296 = vunpack.c.l.b16 %v318
      %v1297 = vunpack.c.h.b16 %v318
      %v1298 = vunpack.c.l.b16 %v319
      %v1299 = vunpack.c.h.b16 %v319
      %v1300 = vunpack.c.l.b16 %v320
      %v1301 = vunpack.c.h.b16 %v320
      %v1302 = vunpack.c.l.b16 %v321
      %v1303 = vunpack.c.h.b16 %v321
      %v1304 = vunpack.c.l.b16 %v322
      %v1305 = vunpack.c.h.b16 %v322
      %v1306 = vunpack.c.l.b16 %v323
      %v1307 = vunpack.c.h.b16 %v323
      %v1308 = vunpack.c.l.b16 %v324
      %v1309 = vunpack.c.h.b16 %v324
      %v1310 = vunpack.c.l.b16 %v325
      %v1311 = vunpack.c.h.b16 %v325
      %v1312 = vunpack.c.l.b16 %v326
      %v1313 = vunpack.c.h.b16 %v326
      %v1314 = vunpack.c.l.b16 %v327
      %v1315 = vunpack.c.h.b16 %v327
      %v1316 = vunpack.c.l.b16 %v328
      %v1317 = vunpack.c.h.b16 %v328
      %v1318 = vunpack.c.l.b16 %v329
      %v1319 = vunpack.c.h.b16 %v329
      %v1320 = vunpack.c.l.b16 %v330
      %v1321 = vunpack.c.h.b16 %v330
      %v1322 = vunpack.c.l.b16 %v331
      %v1323 = vunpack.c.h.b16 %v331
      %v1324 = vunpack.c.l.b16 %v332
      %v1325 = vunpack.c.h.b16 %v332
      %v1326 = vunpack.c.l.b16 %v333
      %v1327 = vunpack.c.h.b16 %v333
      %v1328 = vunpack.c.l.b16 %v334
      %v1329 = vunpack.c.h.b16 %v334
      %v1330 = vunpack.c.l.b16 %v335
      %v1331 = vunpack.c.h.b16 %v335
      %v1332 = vunpack.c.l.b16 %v336
      %v1333 = vunpack.c.h.b16 %v336
      %v1334 = vunpack.c.l.b16 %v337
      %v1335 = vunpack.c.h.b16 %v337
      %v1336 = vunpack.c.l.b16 %v338
      %v1337 = vunpack.c.h.b16 %v338
      %v1338 = vunpack.c.l.b16 %v339
      %v1339 = vunpack.c.h.b16 %v339
      %v1340 = vunpack.c.l.b16 %v340
      %v1341 = vunpack.c.h.b16 %v340
      %v1342 = vunpack.c.l.b16 %v341
      %v1343 = vunpack.c.h.b16 %v341
      %v1344 = vunpack.c.l.b16 %v342
      %v1345 = vunpack.c.h.b16 %v342
      %v1346 = vunpack.c.l.b16 %v343
      %v1347 = vunpack.c.h.b16 %v343
      %v1348 = vunpack.c.l.b16 %v344
      %v1349 = vunpack.c.h.b16 %v344
      %v1350 = vunpack.c.l.b16 %v345
      %v1351 = vunpack.c.h.b16 %v345
      %v1352 = vunpack.c.l.b16 %v346
      %v1353 = vunpack.c.h.b16 %v346
      %v1354 = vunpack.c.l.b16 %v347
      %v1355 = vunpack.c.h.b16 %v347
      %v1356 = vunpack.c.l.b16 %v348
      %v1357 = vunpack.c.h.b16 %v348
      %v1358 = vunpack.c.l.b16 %v349
      %v1359 = vunpack.c.h.b16 %v349
      %v1360 = vunpack.c.l.b16 %v350
      %v1361 = vunpack.c.h.b16 %v350
      %v1362 = vunpack.c.l.b16 %v351
      %v1363 = vunpack.c.h.b16 %v351
      %v1364 = vunpack.c.l.b16 %v352
      %v1365 = vunpack.c.h.b16 %v352
      %v1366 = vunpack.c.l.b16 %v353
      %v1367 = vunpack.c.h.b16 %v353
      %v1368 = vunpack.c.l.b16 %v354
      %v1369 = vunpack.c.h.b16 %v354
      %v1370 = vunpack.c.l.b16 %v355
      %v1371 = vunpack.c.h.b16 %v355
      %v1372 = vunpack.c.l.b16 %v356
      %v1373 = vunpack.c.h.b16 %v356
      %v1374 = vunpack.c.l.b16 %v357
      %v1375 = vunpack.c.h.b16 %v357
      %v1376 = vunpack.c.l.b16 %v358
      %v1377 = vunpack.c.h.b16 %v358
      %v1378 = vunpack.c.l.b16 %v359
      %v1379 = vunpack.c.h.b16 %v359
      %v1380 = vunpack.c.l.b16 %v360
      %v1381 = vunpack.c.h.b16 %v360
      %v1382 = vunpack.c.l.b16 %v361
      %v1383 = vunpack.c.h.b16 %v361
      %v1384 = vunpack.c.l.b16 %v362
      %v1385 = vunpack.c.h.b16 %v362
      %v1386 = vunpack.c.l.b16 %v363
      %v1387 = vunpack.c.h.b16 %v363
      %v1388 = vunpack.c.l.b16 %v364
      %v1389 = vunpack.c.h.b16 %v364
      %v1390 = vunpack.c.l.b16 %v365
      %v1391 = vunpack.c.h.b16 %v365
      %v1392 = vunpack.c.l.b16 %v366
      %v1393 = vunpack.c.h.b16 %v366
      %v1394 = vunpack.c.l.b16 %v367
      %v1395 = vunpack.c.h.b16 %v367
      %v1396 = vunpack.c.l.b16 %v368
      %v1397 = vunpack.c.h.b16 %v368
      %v1398 = vunpack.c.l.b16 %v369
      %v1399 = vunpack.c.h.b16 %v369
      %v1400 = vunpack.c.l.b16 %v370
      %v1401 = vunpack.c.h.b16 %v370
      %v1402 = vunpack.c.l.b16 %v371
      %v1403 = vunpack.c.h.b16 %v371
      %v1404 = vunpack.c.l.b16 %v372
      %v1405 = vunpack.c.h.b16 %v372
      %v1406 = vunpack.c.l.b16 %v373
      %v1407 = vunpack.c.h.b16 %v373
      %v1408 = vunpack.c.l.b16 %v374
      %v1409 = vunpack.c.h.b16 %v374
      %v1410 = vunpack.c.l.b16 %v375
      %v1411 = vunpack.c.h.b16 %v375
      %v1412 = vunpack.c.l.b16 %v376
      %v1413 = vunpack.c.h.b16 %v376
      %v1414 = vunpack.c.l.b16 %v377
      %v1415 = vunpack.c.h.b16 %v377
      %v1416 = vunpack.c.l.b16 %v378
      %v1417 = vunpack.c.h.b16 %v378
      %v1418 = vunpack.c.l.b16 %v379
      %v1419 = vunpack.c.h.b16 %v379
      %v1420 = vunpack.c.l.b16 %v380
      %v1421 = vunpack.c.h.b16 %v380
      %v1422 = vunpack.c.l.b16 %v381
      %v1423 = vunpack.c.h.b16 %v381
      %v1424 = vunpack.c.l.b16 %v382
      %v1425 = vunpack.c.h.b16 %v382
      %v1426 = vunpack.c.l.b16 %v383
      %v1427 = vunpack.c.h.b16 %v383
      %v1428 = vunpack.c.l.b16 %v384
      %v1429 = vunpack.c.h.b16 %v384
      %v1430 = vunpack.c.l.b16 %v385
      %v1431 = vunpack.c.h.b16 %v385
      %v1432 = vunpack.c.l.b16 %v386
      %v1433 = vunpack.c.h.b16 %v386
      %v1434 = vunpack.c.l.b16 %v387
      %v1435 = vunpack.c.h.b16 %v387
      %v1436 = vunpack.c.l.b16 %v388
      %v1437 = vunpack.c.h.b16 %v388
      %v1438 = vunpack.c.l.b16 %v389
      %v1439 = vunpack.c.h.b16 %v389
      %v1440 = vunpack.c.l.b16 %v390
      %v1441 = vunpack.c.h.b16 %v390
      %v1442 = vunpack.c.l.b16 %v391
      %v1443 = vunpack.c.h.b16 %v391
      %v1444 = vunpack.c.l.b16 %v392
      %v1445 = vunpack.c.h.b16 %v392
      %v1446 = vunpack.c.l.b16 %v393
      %v1447 = vunpack.c.h.b16 %v393
      %v1448 = vunpack.c.l.b16 %v394
      %v1449 = vunpack.c.h.b16 %v394
      %v1450 = vunpack.c.l.b16 %v395
      %v1451 = vunpack.c.h.b16 %v395
      %v1452 = vunpack.c.l.b16 %v396
      %v1453 = vunpack.c.h.b16 %v396
      %v1454 = vunpack.c.l.b16 %v397
      %v1455 = vunpack.c.h.b16 %v397
      %v1456 = vunpack.c.l.b16 %v398
      %v1457 = vunpack.c.h.b16 %v398
      %v1458 = vunpack.c.l.b16 %v399
      %v1459 = vunpack.c.h.b16 %v399
      %v1460 = vunpack.c.l.b16 %v400
      %v1461 = vunpack.c.h.b16 %v400
      %v1462 = vunpack.c.l.b16 %v401
      %v1463 = vunpack.c.h.b16 %v401
      %v1464 = vunpack.c.l.b16 %v402
      %v1465 = vunpack.c.h.b16 %v402
      %v1466 = vunpack.c.l.b16 %v403
      %v1467 = vunpack.c.h.b16 %v403
      %v1468 = vunpack.c.l.b16 %v404
      %v1469 = vunpack.c.h.b16 %v404
      %v1470 = vunpack.c.l.b16 %v405
      %v1471 = vunpack.c.h.b16 %v405
      %v1472 = vunpack.c.l.b16 %v406
      %v1473 = vunpack.c.h.b16 %v406
      %v1474 = vunpack.c.l.b16 %v407
      %v1475 = vunpack.c.h.b16 %v407
      %v1476 = vunpack.c.l.b16 %v408
      %v1477 = vunpack.c.h.b16 %v408
      %v1478 = vunpack.c.l.b16 %v409
      %v1479 = vunpack.c.h.b16 %v409
      %v1480 = vunpack.c.l.b16 %v410
      %v1481 = vunpack.c.h.b16 %v410
      %v1482 = vunpack.c.l.b16 %v411
      %v1483 = vunpack.c.h.b16 %v411
      %v1484 = vunpack.c.l.b16 %v412
      %v1485 = vunpack.c.h.b16 %v412
      %v1486 = vunpack.c.l.b16 %v413
      %v1487 = vunpack.c.h.b16 %v413
      %v1488 = vunpack.c.l.b16 %v414
      %v1489 = vunpack.c.h.b16 %v414
      %v1490 = vunpack.c.l.b16 %v415
      %v1491 = vunpack.c.h.b16 %v415
      %v1492 = vunpack.c.l.b16 %v416
      %v1493 = vunpack.c.h.b16 %v416
      %v1494 = vunpack.c.l.b16 %v417
      %v1495 = vunpack.c.h.b16 %v417
      %v1496 = vunpack.c.l.b16 %v418
      %v1497 = vunpack.c.h.b16 %v418
      %v1498 = vunpack.c.l.b16 %v419
      %v1499 = vunpack.c.h.b16 %v419
      %v1500 = vunpack.c.l.b16 %v420
      %v1501 = vunpack.c.h.b16 %v420
      %v1502 = vunpack.c.l.b16 %v421
      %v1503 = vunpack.c.h.b16 %v421
      %v1504 = vunpack.c.l.b16 %v422
      %v1505 = vunpack.c.h.b16 %v422
      %v1506 = vunpack.c.l.b16 %v423
      %v1507 = vunpack.c.h.b16 %v423
      %v1508 = vunpack.c.l.b16 %v424
      %v1509 = vunpack.c.h.b16 %v424
      %v1510 = vunpack.c.l.b16 %v425
      %v1511 = vunpack.c.h.b16 %v425
      %v1512 = vunpack.c.l.b16 %v426
      %v1513 = vunpack.c.h.b16 %v426
      %v1514 = vunpack.c.l.b16 %v427
      %v1515 = vunpack.c.h.b16 %v427
      %v1516 = vunpack.c.l.b16 %v428
      %v1517 = vunpack.c.h.b16 %v428
      %v1518 = vunpack.c.l.b16 %v429
      %v1519 = vunpack.c.h.b16 %v429
      %v1520 = vunpack.c.l.b16 %v430
      %v1521 = vunpack.c.h.b16 %v430
      %v1522 = vunpack.c.l.b16 %v431
      %v1523 = vunpack.c.h.b16 %v431
      %v1524 = vunpack.c.l.b16 %v432
      %v1525 = vunpack.c.h.b16 %v432
      %v1526 = vunpack.c.l.b16 %v433
      %v1527 = vunpack.c.h.b16 %v433
      %v1528 = vunpack.c.l.b16 %v434
      %v1529 = vunpack.c.h.b16 %v434
      %v1530 = vunpack.c.l.b16 %v435
      %v1531 = vunpack.c.h.b16 %v435
      %v1532 = vunpack.c.l.b16 %v436
      %v1533 = vunpack.c.h.b16 %v436
      %v1534 = vunpack.c.l.b16 %v437
      %v1535 = vunpack.c.h.b16 %v437
      %v1536 = vunpack.c.l.b16 %v438
      %v1537 = vunpack.c.h.b16 %v438
      %v1538 = vunpack.c.l.b16 %v439
      %v1539 = vunpack.c.h.b16 %v439
      %v1540 = vunpack.c.l.b16 %v440
      %v1541 = vunpack.c.h.b16 %v440
      %v1542 = vunpack.c.l.b16 %v441
      %v1543 = vunpack.c.h.b16 %v441
      %v1544 = vunpack.c.l.b16 %v442
      %v1545 = vunpack.c.h.b16 %v442
      %v1546 = vunpack.c.l.b16 %v443
      %v1547 = vunpack.c.h.b16 %v443
      %v1548 = vunpack.c.l.b16 %v444
      %v1549 = vunpack.c.h.b16 %v444
      %v1550 = vunpack.c.l.b16 %v445
      %v1551 = vunpack.c.h.b16 %v445
      %v1552 = vunpack.c.l.b16 %v446
      %v1553 = vunpack.c.h.b16 %v446
      %v1554 = vunpack.c.l.b16 %v447
      %v1555 = vunpack.c.h.b16 %v447
      %v1556 = vunpack.c.l.b16 %v448
      %v1557 = vunpack.c.h.b16 %v448
      %v1558 = vunpack.c.l.b16 %v449
      %v1559 = vunpack.c.h.b16 %v449
      %v1560 = vunpack.c.l.b16 %v450
      %v1561 = vunpack.c.h.b16 %v450
      %v1562 = vunpack.c.l.b16 %v451
      %v1563 = vunpack.c.h.b16 %v451
      %v1564 = vunpack.c.l.b16 %v452
      %v1565 = vunpack.c.h.b16 %v452
      %v1566 = vunpack.c.l.b16 %v453
      %v1567 = vunpack.c.h.b16 %v453
      %v1568 = vunpack.c.l.b16 %v454
      %v1569 = vunpack.c.h.b16 %v454
      %v1570 = vunpack.c.l.b16 %v455
      %v1571 = vunpack.c.h.b16 %v455
      %v1572 = vunpack.c.l.b16 %v456
      %v1573 = vunpack.c.h.b16 %v456
      %v1574 = vunpack.c.l.b16 %v457
      %v1575 = vunpack.c.h.b16 %v457
      %v1576 = vunpack.c.l.b16 %v458
      %v1577 = vunpack.c.h.b16 %v458
      %v1578 = vunpack.c.l.b16 %v459
      %v1579 = vunpack.c.h.b16 %v459
      %v1580 = vunpack.c.l.b16 %v460
      %v1581 = vunpack.c.h.b16 %v460
      %v1582 = vunpack.c.l.b16 %v461
      %v1583 = vunpack.c.h.b16 %v461
      %v1584 = vunpack.c.l.b16 %v462
      %v1585 = vunpack.c.h.b16 %v462
      %v1586 = vunpack.c.l.b16 %v463
      %v1587 = vunpack.c.h.b16 %v463
      %v1588 = vunpack.c.l.b16 %v464
      %v1589 = vunpack.c.h.b16 %v464
      %v1590 = vunpack.c.l.b16 %v465
      %v1591 = vunpack.c.h.b16 %v465
      %v1592 = vunpack.c.l.b16 %v466
      %v1593 = vunpack.c.h.b16 %v466
      %v1594 = vunpack.c.l.b16 %v467
      %v1595 = vunpack.c.h.b16 %v467
      %v1596 = vunpack.c.l.b16 %v468
      %v1597 = vunpack.c.h.b16 %v468
      %v1598 = vunpack.c.l.b16 %v469
      %v1599 = vunpack.c.h.b16 %v469
      %v1600 = vunpack.c.l.b16 %v470
      %v1601 = vunpack.c.h.b16 %v470
      %v1602 = vunpack.c.l.b16 %v471
      %v1603 = vunpack.c.h.b16 %v471
      %v1604 = vunpack.c.l.b16 %v472
      %v1605 = vunpack.c.h.b16 %v472
      %v1606 = vunpack.c.l.b16 %v473
      %v1607 = vunpack.c.h.b16 %v473
      %v1608 = vunpack.c.l.b16 %v474
      %v1609 = vunpack.c.h.b16 %v474
      %v1610 = vunpack.c.l.b16 %v475
      %v1611 = vunpack.c.h.b16 %v475
      %v1612 = vunpack.c.l.b16 %v476
      %v1613 = vunpack.c.h.b16 %v476
      %v1614 = vunpack.c.l.b16 %v477
      %v1615 = vunpack.c.h.b16 %v477
      %v1616 = vunpack.c.l.b16 %v478
      %v1617 = vunpack.c.h.b16 %v478
      %v1618 = vunpack.c.l.b16 %v479
      %v1619 = vunpack.c.h.b16 %v479
      %v1620 = vunpack.c.l.b16 %v480
      %v1621 = vunpack.c.h.b16 %v480
      %v1622 = vunpack.c.l.b16 %v481
      %v1623 = vunpack.c.h.b16 %v481
      %v1624 = vunpack.c.l.b16 %v482
      %v1625 = vunpack.c.h.b16 %v482
      %v1626 = vunpack.c.l.b16 %v483
      %v1627 = vunpack.c.h.b16 %v483
      %v1628 = vunpack.c.l.b16 %v484
      %v1629 = vunpack.c.h.b16 %v484
      %v1630 = vunpack.c.l.b16 %v485
      %v1631 = vunpack.c.h.b16 %v485
      %v1632 = vunpack.c.l.b16 %v486
      %v1633 = vunpack.c.h.b16 %v486
      %v1634 = vunpack.c.l.b16 %v487
      %v1635 = vunpack.c.h.b16 %v487
      %v1636 = vunpack.c.l.b16 %v488
      %v1637 = vunpack.c.h.b16 %v488
      %v1638 = vunpack.c.l.b16 %v489
      %v1639 = vunpack.c.h.b16 %v489
      %v1640 = vunpack.c.l.b16 %v490
      %v1641 = vunpack.c.h.b16 %v490
      %v1642 = vunpack.c.l.b16 %v491
      %v1643 = vunpack.c.h.b16 %v491
      %v1644 = vunpack.c.l.b16 %v492
      %v1645 = vunpack.c.h.b16 %v492
      %v1646 = vunpack.c.l.b16 %v493
      %v1647 = vunpack.c.h.b16 %v493
      %v1648 = vunpack.c.l.b16 %v494
      %v1649 = vunpack.c.h.b16 %v494
      %v1650 = vunpack.c.l.b16 %v495
      %v1651 = vunpack.c.h.b16 %v495
      %v1652 = vunpack.c.l.b16 %v496
      %v1653 = vunpack.c.h.b16 %v496
      %v1654 = vunpack.c.l.b16 %v497
      %v1655 = vunpack.c.h.b16 %v497
      %v1656 = vunpack.c.l.b16 %v498
      %v1657 = vunpack.c.h.b16 %v498
      %v1658 = vunpack.c.l.b16 %v499
      %v1659 = vunpack.c.h.b16 %v499
      %v1660 = vunpack.c.l.b16 %v500
      %v1661 = vunpack.c.h.b16 %v500
      %v1662 = vunpack.c.l.b16 %v501
      %v1663 = vunpack.c.h.b16 %v501
      %v1664 = vunpack.c.l.b16 %v502
      %v1665 = vunpack.c.h.b16 %v502
      %v1666 = vunpack.c.l.b16 %v503
      %v1667 = vunpack.c.h.b16 %v503
      %v1668 = vunpack.c.l.b16 %v504
      %v1669 = vunpack.c.h.b16 %v504
      %v1670 = vunpack.c.l.b16 %v505
      %v1671 = vunpack.c.h.b16 %v505
      %v1672 = vunpack.c.l.b16 %v506
      %v1673 = vunpack.c.h.b16 %v506
      %v1674 = vunpack.c.l.b16 %v507
      %v1675 = vunpack.c.h.b16 %v507
      %v1676 = vunpack.c.l.b16 %v508
      %v1677 = vunpack.c.h.b16 %v508
      %v1678 = vunpack.c.l.b16 %v509
      %v1679 = vunpack.c.h.b16 %v509
      %v1680 = vunpack.c.l.b16 %v510
      %v1681 = vunpack.c.h.b16 %v510
      %v1682 = vunpack.c.l.b16 %v511
      %v1683 = vunpack.c.h.b16 %v511
      %v1684 = vunpack.c.l.b16 %v512
      %v1685 = vunpack.c.h.b16 %v512
      %v1686 = vunpack.c.l.b16 %v513
      %v1687 = vunpack.c.h.b16 %v513
      %v1688 = vunpack.c.l.b16 %v514
      %v1689 = vunpack.c.h.b16 %v514
      %v1690 = vunpack.c.l.b16 %v515
      %v1691 = vunpack.c.h.b16 %v515
      %v1692 = vunpack.c.l.b16 %v516
      %v1693 = vunpack.c.h.b16 %v516
      %v1694 = vunpack.c.l.b16 %v517
      %v1695 = vunpack.c.h.b16 %v517
      %v1696 = vunpack.c.l.b16 %v518
      %v1697 = vunpack.c.h.b16 %v518
      %v1698 = vunpack.c.l.b16 %v519
      %v1699 = vunpack.c.h.b16 %v519
      %v1700 = vunpack.c.l.b16 %v520
      %v1701 = vunpack.c.h.b16 %v520
      %v1702 = vunpack.c.l.b16 %v521
      %v1703 = vunpack.c.h.b16 %v521
      %v1704 = vunpack.c.l.b16 %v522
      %v1705 = vunpack.c.h.b16 %v522
      %v1706 = vunpack.c.l.b16 %v523
      %v1707 = vunpack.c.h.b16 %v523
      %v1708 = vunpack.c.l.b16 %v524
      %v1709 = vunpack.c.h.b16 %v524
      %v1710 = vpack.c.b16 %v976, %v974
      %v1711 = vpack.c.b16 %v977, %v975
      %v1712 = vpack.c.b16 %v980, %v978
      %v1713 = vpack.c.b16 %v981, %v979
      %v1714 = vpack.c.b16 %v984, %v982
      %v1715 = vpack.c.b16 %v985, %v983
      %v1716 = vpack.c.b16 %v988, %v986
      %v1717 = vpack.c.b16 %v989, %v987
      %v1718 = vpack.c.b16 %v992, %v990
      %v1719 = vpack.c.b16 %v993, %v991
      %v1720 = vpack.c.b16 %v996, %v994
      %v1721 = vpack.c.b16 %v997, %v995
      %v1722 = vpack.c.b16 %v1000, %v998
      %v1723 = vpack.c.b16 %v1001, %v999
      %v1724 = vpack.c.b16 %v1004, %v1002
      %v1725 = vpack.c.b16 %v1005, %v1003
      %v1726 = vpack.c.b16 %v1008, %v1006
      %v1727 = vpack.c.b16 %v1009, %v1007
      %v1728 = vpack.c.b16 %v1012, %v1010
      %v1729 = vpack.c.b16 %v1013, %v1011
      %v1730 = vpack.c.b16 %v1016, %v1014
      %v1731 = vpack.c.b16 %v1017, %v1015
      %v1732 = vpack.c.b16 %v1020, %v1018
      %v1733 = vpack.c.b16 %v1021, %v1019
      %v1734 = vpack.c.b16 %v1024, %v1022
      %v1735 = vpack.c.b16 %v1025, %v1023
      %v1736 = vpack.c.b16 %v1028, %v1026
      %v1737 = vpack.c.b16 %v1029, %v1027
      %v1738 = vpack.c.b16 %v1032, %v1030
      %v1739 = vpack.c.b16 %v1033, %v1031
      %v1740 = vpack.c.b16 %v1036, %v1034
      %v1741 = vpack.c.b16 %v1037, %v1035
      %v1742 = vpack.c.b16 %v1040, %v1038
      %v1743 = vpack.c.b16 %v1041, %v1039
      %v1744 = vpack.c.b16 %v1044, %v1042
      %v1745 = vpack.c.b16 %v1045, %v1043
      %v1746 = vpack.c.b16 %v1048, %v1046
      %v1747 = vpack.c.b16 %v1049, %v1047
      %v1748 = vpack.c.b16 %v1052, %v1050
      %v1749 = vpack.c.b16 %v1053, %v1051
      %v1750 = vpack.c.b16 %v1056, %v1054
      %v1751 = vpack.c.b16 %v1057, %v1055
      %v1752 = vpack.c.b16 %v1060, %v1058
      %v1753 = vpack.c.b16 %v1061, %v1059
      %v1754 = vpack.c.b16 %v1064, %v1062
      %v1755 = vpack.c.b16 %v1065, %v1063
      %v1756 = vpack.c.b16 %v1068, %v1066
      %v1757 = vpack.c.b16 %v1069, %v1067
      %v1758 = vpack.c.b16 %v1072, %v1070
      %v1759 = vpack.c.b16 %v1073, %v1071
      %v1760 = vpack.c.b16 %v1076, %v1074
      %v1761 = vpack.c.b16 %v1077, %v1075
      %v1762 = vpack.c.b16 %v1080, %v1078
      %v1763 = vpack.c.b16 %v1081, %v1079
      %v1764 = vpack.c.b16 %v1084, %v1082
      %v1765 = vpack.c.b16 %v1085, %v1083
      %v1766 = vpack.c.b16 %v1088, %v1086
      %v1767 = vpack.c.b16 %v1089, %v1087
      %v1768 = vpack.c.b16 %v1092, %v1090
      %v1769 = vpack.c.b16 %v1093, %v1091
      %v1770 = vpack.c.b16 %v1096, %v1094
      %v1771 = vpack.c.b16 %v1097, %v1095
      %v1772 = vpack.c.b16 %v1100, %v1098
      %v1773 = vpack.c.b16 %v1101, %v1099
      %v1774 = vpack.c.b16 %v1104, %v1102
      %v1775 = vpack.c.b16 %v1105, %v1103
      %v1776 = vpack.c.b16 %v1108, %v1106
      %v1777 = vpack.c.b16 %v1109, %v1107
      %v1778 = vpack.c.b16 %v1112, %v1110
      %v1779 = vpack.c.b16 %v1113, %v1111
      %v1780 = vpack.c.b16 %v1116, %v1114
      %v1781 = vpack.c.b16 %v1117, %v1115
      %v1782 = vpack.c.b16 %v1120, %v1118
      %v1783 = vpack.c.b16 %v1121, %v1119
      %v1784 = vpack.c.b16 %v1124, %v1122
      %v1785 = vpack.c.b16 %v1125, %v1123
      %v1786 = vpack.c.b16 %v1128, %v1126
      %v1787 = vpack.c.b16 %v1129, %v1127
      %v1788 = vpack.c.b16 %v1132, %v1130
      %v1789 = vpack.c.b16 %v1133, %v1131
      %v1790 = vpack.c.b16 %v1136, %v1134
      %v1791 = vpack.c.b16 %v1137, %v1135
      %v1792 = vpack.c.b16 %v1140, %v1138
      %v1793 = vpack.c.b16 %v1141, %v1139
      %v1794 = vpack.c.b16 %v1144, %v1142
      %v1795 = vpack.c.b16 %v1145, %v1143
      %v1796 = vpack.c.b16 %v1148, %v1146
      %v1797 = vpack.c.b16 %v1149, %v1147
      %v1798 = vpack.c.b16 %v1152, %v1150
      %v1799 = vpack.c.b16 %v1153, %v1151
      %v1800 = vpack.c.b16 %v1156, %v1154
      %v1801 = vpack.c.b16 %v1157, %v1155
      %v1802 = vpack.c.b16 %v1160, %v1158
      %v1803 = vpack.c.b16 %v1161, %v1159
      %v1804 = vpack.c.b16 %v1164, %v1162
      %v1805 = vpack.c.b16 %v1165, %v1163
      %v1806 = vpack.c.b16 %v1168, %v1166
      %v1807 = vpack.c.b16 %v1169, %v1167
      %v1808 = vpack.c.b16 %v1172, %v1170
      %v1809 = vpack.c.b16 %v1173, %v1171
      %v1810 = vpack.c.b16 %v1176, %v1174
      %v1811 = vpack.c.b16 %v1177, %v1175
      %v1812 = vpack.c.b16 %v1180, %v1178
      %v1813 = vpack.c.b16 %v1181, %v1179
      %v1814 = vpack.c.b16 %v1184, %v1182
      %v1815 = vpack.c.b16 %v1185, %v1183
      %v1816 = vpack.c.b16 %v1188, %v1186
      %v1817 = vpack.c.b16 %v1189, %v1187
      %v1818 = vpack.c.b16 %v1192, %v1190
      %v1819 = vpack.c.b16 %v1193, %v1191
      %v1820 = vpack.c.b16 %v1196, %v1194
      %v1821 = vpack.c.b16 %v1197, %v1195
      %v1822 = vpack.c.b16 %v1200, %v1198
      %v1823 = vpack.c.b16 %v1201, %v1199
      %v1824 = vpack.c.b16 %v1204, %v1202
      %v1825 = vpack.c.b16 %v1205, %v1203
      %v1826 = vpack.c.b16 %v1208, %v1206
      %v1827 = vpack.c.b16 %v1209, %v1207
      %v1828 = vpack.c.b16 %v1212, %v1210
      %v1829 = vpack.c.b16 %v1213, %v1211
      %v1830 = vpack.c.b16 %v1216, %v1214
      %v1831 = vpack.c.b16 %v1217, %v1215
      %v1832 = vpack.c.b16 %v1220, %v1218
      %v1833 = vpack.c.b16 %v1221, %v1219
      %v1834 = vpack.c.b16 %v1224, %v1222
      %v1835 = vpack.c.b16 %v1225, %v1223
      %v1836 = vpack.c.b16 %v1228, %v1226
      %v1837 = vpack.c.b16 %v1229, %v1227
      %v1838 = vpack.c.b16 %v1232, %v1230
      %v1839 = vpack.c.b16 %v1233, %v1231
      %v1840 = vpack.c.b16 %v1236, %v1234
      %v1841 = vpack.c.b16 %v1237, %v1235
      %v1842 = vpack.c.b16 %v1240, %v1238
      %v1843 = vpack.c.b16 %v1241, %v1239
      %v1844 = vpack.c.b16 %v1244, %v1242
      %v1845 = vpack.c.b16 %v1245, %v1243
      %v1846 = vpack.c.b16 %v1248, %v1246
      %v1847 = vpack.c.b16 %v1249, %v1247
      %v1848 = vpack.c.b16 %v1252, %v1250
      %v1849 = vpack.c.b16 %v1253, %v1251
      %v1850 = vpack.c.b16 %v1256, %v1254
      %v1851 = vpack.c.b16 %v1257, %v1255
      %v1852 = vpack.c.b16 %v1260, %v1258
      %v1853 = vpack.c.b16 %v1261, %v1259
      %v1854 = vpack.c.b16 %v1264, %v1262
      %v1855 = vpack.c.b16 %v1265, %v1263
      %v1856 = vpack.c.b16 %v1268, %v1266
      %v1857 = vpack.c.b16 %v1269, %v1267
      %v1858 = vpack.c.b16 %v1272, %v1270
      %v1859 = vpack.c.b16 %v1273, %v1271
      %v1860 = vpack.c.b16 %v1276, %v1274
      %v1861 = vpack.c.b16 %v1277, %v1275
      %v1862 = vpack.c.b16 %v1280, %v1278
      %v1863 = vpack.c.b16 %v1281, %v1279
      %v1864 = vpack.c.b16 %v1284, %v1282
      %v1865 = vpack.c.b16 %v1285, %v1283
      %v1866 = vpack.c.b16 %v1288, %v1286
      %v1867 = vpack.c.b16 %v1289, %v1287
      %v1868 = vpack.c.b16 %v1292, %v1290
      %v1869 = vpack.c.b16 %v1293, %v1291
      %v1870 = vpack.c.b16 %v1296, %v1294
      %v1871 = vpack.c.b16 %v1297, %v1295
      %v1872 = vpack.c.b16 %v1300, %v1298
      %v1873 = vpack.c.b16 %v1301, %v1299
      %v1874 = vpack.c.b16 %v1304, %v1302
      %v1875 = vpack.c.b16 %v1305, %v1303
      %v1876 = vpack.c.b16 %v1308, %v1306
      %v1877 = vpack.c.b16 %v1309, %v1307
      %v1878 = vpack.c.b16 %v1312, %v1310
      %v1879 = vpack.c.b16 %v1313, %v1311
      %v1880 = vpack.c.b16 %v1316, %v1314
      %v1881 = vpack.c.b16 %v1317, %v1315
      %v1882 = vpack.c.b16 %v1320, %v1318
      %v1883 = vpack.c.b16 %v1321, %v1319
      %v1884 = vpack.c.b16 %v1324, %v1322
      %v1885 = vpack.c.b16 %v1325, %v1323
      %v1886 = vpack.c.b16 %v1328, %v1326
      %v1887 = vpack.c.b16 %v1329, %v1327
      %v1888 = vpack.c.b16 %v1332, %v1330
      %v1889 = vpack.c.b16 %v1333, %v1331
      %v1890 = vpack.c.b16 %v1336, %v1334
      %v1891 = vpack.c.b16 %v1337, %v1335
      %v1892 = vpack.c.b16 %v1340, %v1338
      %v1893 = vpack.c.b16 %v1341, %v1339
      %v1894 = vpack.c.b16 %v1344, %v1342
      %v1895 = vpack.c.b16 %v1345, %v1343
      %v1896 = vpack.c.b16 %v1348, %v1346
      %v1897 = vpack.c.b16 %v1349, %v1347
      %v1898 = vpack.c.b16 %v1352, %v1350
      %v1899 = vpack.c.b16 %v1353, %v1351
      %v1900 = vpack.c.b16 %v1356, %v1354
      %v1901 = vpack.c.b16 %v1357, %v1355
      %v1902 = vpack.c.b16 %v1360, %v1358
      %v1903 = vpack.c.b16 %v1361, %v1359
      %v1904 = vpack.c.b16 %v1364, %v1362
      %v1905 = vpack.c.b16 %v1365, %v1363
      %v1906 = vpack.c.b16 %v1368, %v1366
      %v1907 = vpack.c.b16 %v1369, %v1367
      %v1908 = vpack.c.b16 %v1372, %v1370
      %v1909 = vpack.c.b16 %v1373, %v1371
      %v1910 = vpack.c.b16 %v1376, %v1374
      %v1911 = vpack.c.b16 %v1377, %v1375
      %v1912 = vpack.c.b16 %v1380, %v1378
      %v1913 = vpack.c.b16 %v1381, %v1379
      %v1914 = vpack.c.b16 %v1384, %v1382
      %v1915 = vpack.c.b16 %v1385, %v1383
      %v1916 = vpack.c.b16 %v1388, %v1386
      %v1917 = vpack.c.b16 %v1389, %v1387
      %v1918 = vpack.c.b16 %v1392, %v1390
      %v1919 = vpack.c.b16 %v1393, %v1391
      %v1920 = vpack.c.b16 %v1396, %v1394
      %v1921 = vpack.c.b16 %v1397, %v1395
      %v1922 = vpack.c.b16 %v1400, %v1398
      %v1923 = vpack.c.b16 %v1401, %v1399
      %v1924 = vpack.c.b16 %v1404, %v1402
      %v1925 = vpack.c.b16 %v1405, %v1403
      %v1926 = vpack.c.b16 %v1408, %v1406
      %v1927 = vpack.c.b16 %v1409, %v1407
      %v1928 = vpack.c.b16 %v1412, %v1410
      %v1929 = vpack.c.b16 %v1413, %v1411
      %v1930 = vpack.c.b16 %v1416, %v1414
      %v1931 = vpack.c.b16 %v1417, %v1415
      %v1932 = vpack.c.b16 %v1420, %v1418
      %v1933 = vpack.c.b16 %v1421, %v1419
      %v1934 = vpack.c.b16 %v1424, %v1422
      %v1935 = vpack.c.b16 %v1425, %v1423
      %v1936 = vpack.c.b16 %v1428, %v1426
      %v1937 = vpack.c.b16 %v1429, %v1427
      %v1938 = vpack.c.b16 %v1432, %v1430
      %v1939 = vpack.c.b16 %v1433, %v1431
      %v1940 = vpack.c.b16 %v1436, %v1434
      %v1941 = vpack.c.b16 %v1437, %v1435
      %v1942 = vpack.c.b16 %v1440, %v1438
      %v1943 = vpack.c.b16 %v1441, %v1439
      %v1944 = vpack.c.b16 %v1444, %v1442
      %v1945 = vpack.c.b16 %v1445, %v1443
      %v1946 = vpack.c.b16 %v1448, %v1446
      %v1947 = vpack.c.b16 %v1449, %v1447
      %v1948 = vpack.c.b16 %v1452, %v1450
      %v1949 = vpack.c.b16 %v1453, %v1451
      %v1950 = vpack.c.b16 %v1456, %v1454
      %v1951 = vpack.c.b16 %v1457, %v1455
      %v1952 = vpack.c.b16 %v1460, %v1458
      %v1953 = vpack.c.b16 %v1461, %v1459
      %v1954 = vpack.c.b16 %v1464, %v1462
      %v1955 = vpack.c.b16 %v1465, %v1463
      %v1956 = vpack.c.b16 %v1468, %v1466
      %v1957 = vpack.c.b16 %v1469, %v1467
      %v1958 = vpack.c.b16 %v1472, %v1470
      %v1959 = vpack.c.b16 %v1473, %v1471
      %v1960 = vpack.c.b16 %v1476, %v1474
      %v1961 = vpack.c.b16 %v1477, %v1475
      %v1962 = vpack.c.b16 %v1480, %v1478
      %v1963 = vpack.c.b16 %v1481, %v1479
      %v1964 = vpack.c.b16 %v1484, %v1482
      %v1965 = vpack.c.b16 %v1485, %v1483
      %v1966 = vpack.c.b16 %v1488, %v1486
      %v1967 = vpack.c.b16 %v1489, %v1487
      %v1968 = vpack.c.b16 %v1492, %v1490
      %v1969 = vpack.c.b16 %v1493, %v1491
      %v1970 = vpack.c.b16 %v1496, %v1494
      %v1971 = vpack.c.b16 %v1497, %v1495
      %v1972 = vpack.c.b16 %v1500, %v1498
      %v1973 = vpack.c.b16 %v1501, %v1499
      %v1974 = vpack.c.b16 %v1504, %v1502
      %v1975 = vpack.c.b16 %v1505, %v1503
      %v1976 = vpack.c.b16 %v1508, %v1506
      %v1977 = vpack.c.b16 %v1509, %v1507
      %v1978 = vpack.c.b16 %v1512, %v1510
      %v1979 = vpack.c.b16 %v1513, %v1511
      %v1980 = vpack.c.b16 %v1516, %v1514
      %v1981 = vpack.c.b16 %v1517, %v1515
      %v1982 = vpack.c.b16 %v1520, %v1518
      %v1983 = vpack.c.b16 %v1521, %v1519
      %v1984 = vpack.c.b16 %v1524, %v1522
      %v1985 = vpack.c.b16 %v1525, %v1523
      %v1986 = vpack.c.b16 %v1528, %v1526
      %v1987 = vpack.c.b16 %v1529, %v1527
      %v1988 = vpack.c.b16 %v1532, %v1530
      %v1989 = vpack.c.b16 %v1533, %v1531
      %v1990 = vpack.c.b16 %v1536, %v1534
      %v1991 = vpack.c.b16 %v1537, %v1535
      %v1992 = vpack.c.b16 %v1540, %v1538
      %v1993 = vpack.c.b16 %v1541, %v1539
      %v1994 = vpack.c.b16 %v1544, %v1542
      %v1995 = vpack.c.b16 %v1545, %v1543
      %v1996 = vpack.c.b16 %v1548, %v1546
      %v1997 = vpack.c.b16 %v1549, %v1547
      %v1998 = vpack.c.b16 %v1552, %v1550
      %v1999 = vpack.c.b16 %v1553, %v1551
      %v2000 = vpack.c.b16 %v1556, %v1554
      %v2001 = vpack.c.b16 %v1557, %v1555
      %v2002 = vpack.c.b16 %v1560, %v1558
      %v2003 = vpack.c.b16 %v1561, %v1559
      %v2004 = vpack.c.b16 %v1564, %v1562
      %v2005 = vpack.c.b16 %v1565, %v1563
      %v2006 = vpack.c.b16 %v1568, %v1566
      %v2007 = vpack.c.b16 %v1569, %v1567
      %v2008 = vpack.c.b16 %v1572, %v1570
      %v2009 = vpack.c.b16 %v1573, %v1571
      %v2010 = vpack.c.b16 %v1576, %v1574
      %v2011 = vpack.c.b16 %v1577, %v1575
      %v2012 = vpack.c.b16 %v1580, %v1578
      %v2013 = vpack.c.b16 %v1581, %v1579
      %v2014 = vpack.c.b16 %v1584, %v1582
      %v2015 = vpack.c.b16 %v1585, %v1583
      %v2016 = vpack.c.b16 %v1588, %v1586
      %v2017 = vpack.c.b16 %v1589, %v1587
      %v2018 = vpack.c.b16 %v1592, %v1590
      %v2019 = vpack.c.b16 %v1593, %v1591
      %v2020 = vpack.c.b16 %v1596, %v1594
      %v2021 = vpack.c.b16 %v1597, %v1595
      %v2022 = vpack.c.b16 %v1600, %v1598
      %v2023 = vpack.c.b16 %v1601, %v1599
      %v2024 = vpack.c.b16 %v1604, %v1602
      %v2025 = vpack.c.b16 %v1605, %v1603
      %v2026 = vpack.c.b16 %v1608, %v1606
      %v2027 = vpack.c.b16 %v1609, %v1607
      %v2028 = vpack.c.b16 %v1612, %v1610
      %v2029 = vpack.c.b16 %v1613, %v1611
      %v2030 = vpack.c.b16 %v1616, %v1614
      %v2031 = vpack.c.b16 %v1617, %v1615
      %v2032 = vpack.c.b16 %v1620, %v1618
      %v2033 = vpack.c.b16 %v1621, %v1619
      %v2034 = vpack.c.b16 %v1624, %v1622
      %v2035 = vpack.c.b16 %v1625, %v1623
      %v2036 = vpack.c.b16 %v1628, %v1626
      %v2037 = vpack.c.b16 %v1629, %v1627
      %v2038 = vpack.c.b16 %v1632, %v1630
      %v2039 = vpack.c.b16 %v1633, %v1631
      %v2040 = vpack.c.b16 %v1636, %v1634
      %v2041 = vpack.c.b16 %v1637, %v1635
      %v2042 = vpack.c.b16 %v1640, %v1638
      %v2043 = vpack.c.b16 %v1641, %v1639
      %v2044 = vpack.c.b16 %v1644, %v1642
      %v2045 = vpack.c.b16 %v1645, %v1643
      %v2046 = vpack.c.b16 %v1648, %v1646
      %v2047 = vpack.c.b16 %v1649, %v1647
      %v2048 = vpack.c.b16 %v1652, %v1650
      %v2049 = vpack.c.b16 %v1653, %v1651
      %v2050 = vpack.c.b16 %v1656, %v1654
      %v2051 = vpack.c.b16 %v1657, %v1655
      %v2052 = vpack.c.b16 %v1660, %v1658
      %v2053 = vpack.c.b16 %v1661, %v1659
      %v2054 = vpack.c.b16 %v1664, %v1662
      %v2055 = vpack.c.b16 %v1665, %v1663
      %v2056 = vpack.c.b16 %v1668, %v1666
      %v2057 = vpack.c.b16 %v1669, %v1667
      %v2058 = vpack.c.b16 %v1672, %v1670
      %v2059 = vpack.c.b16 %v1673, %v1671
      %v2060 = vpack.c.b16 %v1676, %v1674
      %v2061 = vpack.c.b16 %v1677, %v1675
      %v2062 = vpack.c.b16 %v1680, %v1678
      %v2063 = vpack.c.b16 %v1681, %v1679
      %v2064 = vpack.c.b16 %v1684, %v1682
      %v2065 = vpack.c.b16 %v1685, %v1683
      %v2066 = vpack.c.b16 %v1688, %v1686
      %v2067 = vpack.c.b16 %v1689, %v1687
      %v2068 = vpack.c.b16 %v1692, %v1690
      %v2069 = vpack.c.b16 %v1693, %v1691
      %v2070 = vpack.c.b16 %v1696, %v1694
      %v2071 = vpack.c.b16 %v1697, %v1695
      %v2072 = vpack.c.b16 %v1700, %v1698
      %v2073 = vpack.c.b16 %v1701, %v1699
      %v2074 = vpack.c.b16 %v1704, %v1702
      %v2075 = vpack.c.b16 %v1705, %v1703
      %v2076 = vpack.c.b16 %v1708, %v1706
      %v2077 = vpack.c.b16 %v1709, %v1707
      %2446 = vmatprep.subr.bf16.mxu0 %v1711
      %2447 = vmatpush1.bf16.msra.mxu0 %v1710
      %2448 = vmatprep.subr.bf16.mxu0 %v1713
      %2449 = vmatpush1.bf16.msra.mxu0 %v1712
      %2450 = vmatprep.subr.bf16.mxu0 %v1715
      %2451 = vmatpush1.bf16.msra.mxu0 %v1714
      %2452 = vmatprep.subr.bf16.mxu0 %v1717
      %2453 = vmatpush1.bf16.msra.mxu0 %v1716
      %2454 = vmatprep.subr.bf16.mxu0 %v1719
      %2455 = vmatpush1.bf16.msra.mxu0 %v1718
      %2456 = vmatprep.subr.bf16.mxu0 %v1721
      %2457 = vmatpush1.bf16.msra.mxu0 %v1720
      %2458 = vmatprep.subr.bf16.mxu0 %v1723
      %2459 = vmatpush1.bf16.msra.mxu0 %v1722
      %2460 = vmatprep.subr.bf16.mxu0 %v1725
      %2461 = vmatpush1.bf16.msra.mxu0 %v1724
      %2462 = vmatprep.subr.bf16.mxu0 %v1727
      %2463 = vmatpush1.bf16.msra.mxu0 %v1726
      %2464 = vmatprep.subr.bf16.mxu0 %v1729
      %2465 = vmatpush1.bf16.msra.mxu0 %v1728
      %2466 = vmatprep.subr.bf16.mxu0 %v1731
      %2467 = vmatpush1.bf16.msra.mxu0 %v1730
      %2468 = vmatprep.subr.bf16.mxu0 %v1733
      %2469 = vmatpush1.bf16.msra.mxu0 %v1732
      %2470 = vmatprep.subr.bf16.mxu0 %v1735
      %2471 = vmatpush1.bf16.msra.mxu0 %v1734
      %2472 = vmatprep.subr.bf16.mxu0 %v1737
      %2473 = vmatpush1.bf16.msra.mxu0 %v1736
      %2474 = vmatprep.subr.bf16.mxu0 %v1739
      %2475 = vmatpush1.bf16.msra.mxu0 %v1738
      %2476 = vmatprep.subr.bf16.mxu0 %v1741
      %2477 = vmatpush1.bf16.msra.mxu0 %v1740
      %2478 = vmatprep.mubr.bf16.mxu0 %v561
      %2479 = vmatmul.mubr.bf16.gmra.mrb[0].mxu0 %v560
      %v2480 = vpop.f32.mrb[0].mxu0
      %v2481 = vadd.f32 0.0, %v2480
      %v2482 = vpop.f32.mrb[0].mxu0
      %v2483 = vadd.f32 0.0, %v2482
      %v2484 = vpop.f32.mrb[0].mxu0
      %v2485 = vpop.f32.mrb[0].mxu0
      %2486 = vdwg.mxu0
      %2487 = vmatprep.subr.bf16.mxu0 %v1743
      %2488 = vmatpush1.bf16.msra.mxu0 %v1742
      %2489 = vmatprep.subr.bf16.mxu0 %v1745
      %2490 = vmatpush1.bf16.msra.mxu0 %v1744
      %2491 = vmatprep.subr.bf16.mxu0 %v1747
      %2492 = vmatpush1.bf16.msra.mxu0 %v1746
      %2493 = vmatprep.subr.bf16.mxu0 %v1749
      %2494 = vmatpush1.bf16.msra.mxu0 %v1748
      %2495 = vmatprep.subr.bf16.mxu0 %v1751
      %2496 = vmatpush1.bf16.msra.mxu0 %v1750
      %2497 = vmatprep.subr.bf16.mxu0 %v1753
      %2498 = vmatpush1.bf16.msra.mxu0 %v1752
      %2499 = vmatprep.subr.bf16.mxu0 %v1755
      %2500 = vmatpush1.bf16.msra.mxu0 %v1754
      %2501 = vmatprep.subr.bf16.mxu0 %v1757
      %2502 = vmatpush1.bf16.msra.mxu0 %v1756
      %2503 = vmatprep.subr.bf16.mxu0 %v1759
      %2504 = vmatpush1.bf16.msra.mxu0 %v1758
      %2505 = vmatprep.subr.bf16.mxu0 %v1761
      %2506 = vmatpush1.bf16.msra.mxu0 %v1760
      %2507 = vmatprep.subr.bf16.mxu0 %v1763
      %2508 = vmatpush1.bf16.msra.mxu0 %v1762
      %2509 = vmatprep.subr.bf16.mxu0 %v1765
      %2510 = vmatpush1.bf16.msra.mxu0 %v1764
      %2511 = vmatprep.subr.bf16.mxu0 %v1767
      %2512 = vmatpush1.bf16.msra.mxu0 %v1766
      %2513 = vmatprep.subr.bf16.mxu0 %v1769
      %2514 = vmatpush1.bf16.msra.mxu0 %v1768
      %2515 = vmatprep.subr.bf16.mxu0 %v1771
      %2516 = vmatpush1.bf16.msra.mxu0 %v1770
      %2517 = vmatprep.subr.bf16.mxu0 %v1773
      %2518 = vmatpush1.bf16.msra.mxu0 %v1772
      %2519 = vmatprep.mubr.bf16.mxu0 %v563
      %2520 = vmatmul.mubr.bf16.gmra.mrb[0].mxu0 %v562
      %v2521 = vpop.f32.mrb[0].mxu0
      %v2522 = vadd.f32 %v2481, %v2521
      %v2523 = vpop.f32.mrb[0].mxu0
      %v2524 = vadd.f32 %v2483, %v2523
      %v2525 = vpop.f32.mrb[0].mxu0
      %v2526 = vpop.f32.mrb[0].mxu0
      %2527 = vdwg.mxu0
      %2528 = vmatprep.subr.bf16.mxu0 %v1775
      %2529 = vmatpush1.bf16.msra.mxu0 %v1774
      %2530 = vmatprep.subr.bf16.mxu0 %v1777
      %2531 = vmatpush1.bf16.msra.mxu0 %v1776
      %2532 = vmatprep.subr.bf16.mxu0 %v1779
      %2533 = vmatpush1.bf16.msra.mxu0 %v1778
      %2534 = vmatprep.subr.bf16.mxu0 %v1781
      %2535 = vmatpush1.bf16.msra.mxu0 %v1780
      %2536 = vmatprep.subr.bf16.mxu0 %v1783
      %2537 = vmatpush1.bf16.msra.mxu0 %v1782
      %2538 = vmatprep.subr.bf16.mxu0 %v1785
      %2539 = vmatpush1.bf16.msra.mxu0 %v1784
      %2540 = vmatprep.subr.bf16.mxu0 %v1787
      %2541 = vmatpush1.bf16.msra.mxu0 %v1786
      %2542 = vmatprep.subr.bf16.mxu0 %v1789
      %2543 = vmatpush1.bf16.msra.mxu0 %v1788
      %2544 = vmatprep.subr.bf16.mxu0 %v1791
      %2545 = vmatpush1.bf16.msra.mxu0 %v1790
      %2546 = vmatprep.subr.bf16.mxu0 %v1793
      %2547 = vmatpush1.bf16.msra.mxu0 %v1792
      %2548 = vmatprep.subr.bf16.mxu0 %v1795
      %2549 = vmatpush1.bf16.msra.mxu0 %v1794
      %2550 = vmatprep.subr.bf16.mxu0 %v1797
      %2551 = vmatpush1.bf16.msra.mxu0 %v1796
      %2552 = vmatprep.subr.bf16.mxu0 %v1799
      %2553 = vmatpush1.bf16.msra.mxu0 %v1798
      %2554 = vmatprep.subr.bf16.mxu0 %v1801
      %2555 = vmatpush1.bf16.msra.mxu0 %v1800
      %2556 = vmatprep.subr.bf16.mxu0 %v1803
      %2557 = vmatpush1.bf16.msra.mxu0 %v1802
      %2558 = vmatprep.subr.bf16.mxu0 %v1805
      %2559 = vmatpush1.bf16.msra.mxu0 %v1804
      %2560 = vmatprep.mubr.bf16.mxu0 %v565
      %2561 = vmatmul.mubr.bf16.gmra.mrb[0].mxu0 %v564
      %v2562 = vpop.f32.mrb[0].mxu0
      %v2563 = vadd.f32 %v2522, %v2562
      %v2564 = vpop.f32.mrb[0].mxu0
      %v2565 = vadd.f32 %v2524, %v2564
      %v2566 = vpop.f32.mrb[0].mxu0
      %v2567 = vpop.f32.mrb[0].mxu0
      %2568 = vdwg.mxu0
      %2569 = vmatprep.subr.bf16.mxu0 %v1807
      %2570 = vmatpush1.bf16.msra.mxu0 %v1806
      %2571 = vmatprep.subr.bf16.mxu0 %v1809
      %2572 = vmatpush1.bf16.msra.mxu0 %v1808
      %2573 = vmatprep.subr.bf16.mxu0 %v1811
      %2574 = vmatpush1.bf16.msra.mxu0 %v1810
      %2575 = vmatprep.subr.bf16.mxu0 %v1813
      %2576 = vmatpush1.bf16.msra.mxu0 %v1812
      %2577 = vmatprep.subr.bf16.mxu0 %v1815
      %2578 = vmatpush1.bf16.msra.mxu0 %v1814
      %2579 = vmatprep.subr.bf16.mxu0 %v1817
      %2580 = vmatpush1.bf16.msra.mxu0 %v1816
      %2581 = vmatprep.subr.bf16.mxu0 %v1819
      %2582 = vmatpush1.bf16.msra.mxu0 %v1818
      %2583 = vmatprep.subr.bf16.mxu0 %v1821
      %2584 = vmatpush1.bf16.msra.mxu0 %v1820
      %2585 = vmatprep.subr.bf16.mxu0 %v1823
      %2586 = vmatpush1.bf16.msra.mxu0 %v1822
      %2587 = vmatprep.subr.bf16.mxu0 %v1825
      %2588 = vmatpush1.bf16.msra.mxu0 %v1824
      %2589 = vmatprep.subr.bf16.mxu0 %v1827
      %2590 = vmatpush1.bf16.msra.mxu0 %v1826
      %2591 = vmatprep.subr.bf16.mxu0 %v1829
      %2592 = vmatpush1.bf16.msra.mxu0 %v1828
      %2593 = vmatprep.subr.bf16.mxu0 %v1831
      %2594 = vmatpush1.bf16.msra.mxu0 %v1830
      %2595 = vmatprep.subr.bf16.mxu0 %v1833
      %2596 = vmatpush1.bf16.msra.mxu0 %v1832
      %2597 = vmatprep.subr.bf16.mxu0 %v1835
      %2598 = vmatpush1.bf16.msra.mxu0 %v1834
      %2599 = vmatprep.subr.bf16.mxu0 %v1837
      %2600 = vmatpush1.bf16.msra.mxu0 %v1836
      %2601 = vmatprep.mubr.bf16.mxu0 %v567
      %2602 = vmatmul.mubr.bf16.gmra.mrb[0].mxu0 %v566
      %v2603 = vpop.f32.mrb[0].mxu0
      %v2604 = vadd.f32 %v2563, %v2603
      %v2605 = vpop.f32.mrb[0].mxu0
      %v2606 = vadd.f32 %v2565, %v2605
      %v2607 = vpop.f32.mrb[0].mxu0
      %v2608 = vpop.f32.mrb[0].mxu0
      %2609 = vdwg.mxu0
      %2610 = vmatprep.subr.bf16.mxu0 %v1839
      %2611 = vmatpush1.bf16.msra.mxu0 %v1838
      %2612 = vmatprep.subr.bf16.mxu0 %v1841
      %2613 = vmatpush1.bf16.msra.mxu0 %v1840
      %2614 = vmatprep.subr.bf16.mxu0 %v1843
      %2615 = vmatpush1.bf16.msra.mxu0 %v1842
      %2616 = vmatprep.subr.bf16.mxu0 %v1845
      %2617 = vmatpush1.bf16.msra.mxu0 %v1844
      %2618 = vmatprep.subr.bf16.mxu0 %v1847
      %2619 = vmatpush1.bf16.msra.mxu0 %v1846
      %2620 = vmatprep.subr.bf16.mxu0 %v1849
      %2621 = vmatpush1.bf16.msra.mxu0 %v1848
      %2622 = vmatprep.subr.bf16.mxu0 %v1851
      %2623 = vmatpush1.bf16.msra.mxu0 %v1850
      %2624 = vmatprep.subr.bf16.mxu0 %v1853
      %2625 = vmatpush1.bf16.msra.mxu0 %v1852
      %2626 = vmatprep.subr.bf16.mxu0 %v1855
      %2627 = vmatpush1.bf16.msra.mxu0 %v1854
      %2628 = vmatprep.subr.bf16.mxu0 %v1857
      %2629 = vmatpush1.bf16.msra.mxu0 %v1856
      %2630 = vmatprep.subr.bf16.mxu0 %v1859
      %2631 = vmatpush1.bf16.msra.mxu0 %v1858
      %2632 = vmatprep.subr.bf16.mxu0 %v1861
      %2633 = vmatpush1.bf16.msra.mxu0 %v1860
      %2634 = vmatprep.subr.bf16.mxu0 %v1863
      %2635 = vmatpush1.bf16.msra.mxu0 %v1862
      %2636 = vmatprep.subr.bf16.mxu0 %v1865
      %2637 = vmatpush1.bf16.msra.mxu0 %v1864
      %2638 = vmatprep.subr.bf16.mxu0 %v1867
      %2639 = vmatpush1.bf16.msra.mxu0 %v1866
      %2640 = vmatprep.subr.bf16.mxu0 %v1869
      %2641 = vmatpush1.bf16.msra.mxu0 %v1868
      %2642 = vmatprep.mubr.bf16.mxu0 %v569
      %2643 = vmatmul.mubr.bf16.gmra.mrb[0].mxu0 %v568
      %v2644 = vpop.f32.mrb[0].mxu0
      %v2645 = vadd.f32 %v2604, %v2644
      %v2646 = vpop.f32.mrb[0].mxu0
      %v2647 = vadd.f32 %v2606, %v2646
      %v2648 = vpop.f32.mrb[0].mxu0
      %v2649 = vpop.f32.mrb[0].mxu0
      %2650 = vdwg.mxu0
      %2651 = vmatprep.subr.bf16.mxu0 %v1871
      %2652 = vmatpush1.bf16.msra.mxu0 %v1870
      %2653 = vmatprep.subr.bf16.mxu0 %v1873
      %2654 = vmatpush1.bf16.msra.mxu0 %v1872
      %2655 = vmatprep.subr.bf16.mxu0 %v1875
      %2656 = vmatpush1.bf16.msra.mxu0 %v1874
      %2657 = vmatprep.subr.bf16.mxu0 %v1877
      %2658 = vmatpush1.bf16.msra.mxu0 %v1876
      %2659 = vmatprep.subr.bf16.mxu0 %v1879
      %2660 = vmatpush1.bf16.msra.mxu0 %v1878
      %2661 = vmatprep.subr.bf16.mxu0 %v1881
      %2662 = vmatpush1.bf16.msra.mxu0 %v1880
      %2663 = vmatprep.subr.bf16.mxu0 %v1883
      %2664 = vmatpush1.bf16.msra.mxu0 %v1882
      %2665 = vmatprep.subr.bf16.mxu0 %v1885
      %2666 = vmatpush1.bf16.msra.mxu0 %v1884
      %2667 = vmatprep.subr.bf16.mxu0 %v1887
      %2668 = vmatpush1.bf16.msra.mxu0 %v1886
      %2669 = vmatprep.subr.bf16.mxu0 %v1889
      %2670 = vmatpush1.bf16.msra.mxu0 %v1888
      %2671 = vmatprep.subr.bf16.mxu0 %v1891
      %2672 = vmatpush1.bf16.msra.mxu0 %v1890
      %2673 = vmatprep.subr.bf16.mxu0 %v1893
      %2674 = vmatpush1.bf16.msra.mxu0 %v1892
      %2675 = vmatprep.subr.bf16.mxu0 %v1895
      %2676 = vmatpush1.bf16.msra.mxu0 %v1894
      %2677 = vmatprep.subr.bf16.mxu0 %v1897
      %2678 = vmatpush1.bf16.msra.mxu0 %v1896
      %2679 = vmatprep.subr.bf16.mxu0 %v1899
      %2680 = vmatpush1.bf16.msra.mxu0 %v1898
      %2681 = vmatprep.subr.bf16.mxu0 %v1901
      %2682 = vmatpush1.bf16.msra.mxu0 %v1900
      %2683 = vmatprep.mubr.bf16.mxu0 %v571
      %2684 = vmatmul.mubr.bf16.gmra.mrb[0].mxu0 %v570
      %v2685 = vpop.f32.mrb[0].mxu0
      %v2686 = vadd.f32 %v2645, %v2685
      %v2687 = vpop.f32.mrb[0].mxu0
      %v2688 = vadd.f32 %v2647, %v2687
      %v2689 = vpop.f32.mrb[0].mxu0
      %v2690 = vpop.f32.mrb[0].mxu0
      %2691 = vdwg.mxu0
      %2692 = vmatprep.subr.bf16.mxu0 %v1903
      %2693 = vmatpush1.bf16.msra.mxu0 %v1902
      %2694 = vmatprep.subr.bf16.mxu0 %v1905
      %2695 = vmatpush1.bf16.msra.mxu0 %v1904
      %2696 = vmatprep.subr.bf16.mxu0 %v1907
      %2697 = vmatpush1.bf16.msra.mxu0 %v1906
      %2698 = vmatprep.subr.bf16.mxu0 %v1909
      %2699 = vmatpush1.bf16.msra.mxu0 %v1908
      %2700 = vmatprep.subr.bf16.mxu0 %v1911
      %2701 = vmatpush1.bf16.msra.mxu0 %v1910
      %2702 = vmatprep.subr.bf16.mxu0 %v1913
      %2703 = vmatpush1.bf16.msra.mxu0 %v1912
      %2704 = vmatprep.subr.bf16.mxu0 %v1915
      %2705 = vmatpush1.bf16.msra.mxu0 %v1914
      %2706 = vmatprep.subr.bf16.mxu0 %v1917
      %2707 = vmatpush1.bf16.msra.mxu0 %v1916
      %2708 = vmatprep.subr.bf16.mxu0 %v1919
      %2709 = vmatpush1.bf16.msra.mxu0 %v1918
      %2710 = vmatprep.subr.bf16.mxu0 %v1921
      %2711 = vmatpush1.bf16.msra.mxu0 %v1920
      %2712 = vmatprep.subr.bf16.mxu0 %v1923
      %2713 = vmatpush1.bf16.msra.mxu0 %v1922
      %2714 = vmatprep.subr.bf16.mxu0 %v1925
      %2715 = vmatpush1.bf16.msra.mxu0 %v1924
      %2716 = vmatprep.subr.bf16.mxu0 %v1927
      %2717 = vmatpush1.bf16.msra.mxu0 %v1926
      %2718 = vmatprep.subr.bf16.mxu0 %v1929
      %2719 = vmatpush1.bf16.msra.mxu0 %v1928
      %2720 = vmatprep.subr.bf16.mxu0 %v1931
      %2721 = vmatpush1.bf16.msra.mxu0 %v1930
      %2722 = vmatprep.subr.bf16.mxu0 %v1933
      %2723 = vmatpush1.bf16.msra.mxu0 %v1932
      %2724 = vmatprep.mubr.bf16.mxu0 %v573
      %2725 = vmatmul.mubr.bf16.gmra.mrb[0].mxu0 %v572
      %v2726 = vpop.f32.mrb[0].mxu0
      %v2727 = vadd.f32 %v2686, %v2726
      %v2728 = vpop.f32.mrb[0].mxu0
      %v2729 = vadd.f32 %v2688, %v2728
      %v2730 = vpop.f32.mrb[0].mxu0
      %v2731 = vpop.f32.mrb[0].mxu0
      %2732 = vdwg.mxu0
      %2733 = vmatprep.subr.bf16.mxu0 %v1935
      %2734 = vmatpush1.bf16.msra.mxu0 %v1934
      %2735 = vmatprep.subr.bf16.mxu0 %v1937
      %2736 = vmatpush1.bf16.msra.mxu0 %v1936
      %2737 = vmatprep.subr.bf16.mxu0 %v1939
      %2738 = vmatpush1.bf16.msra.mxu0 %v1938
      %2739 = vmatprep.subr.bf16.mxu0 %v1941
      %2740 = vmatpush1.bf16.msra.mxu0 %v1940
      %2741 = vmatprep.subr.bf16.mxu0 %v1943
      %2742 = vmatpush1.bf16.msra.mxu0 %v1942
      %2743 = vmatprep.subr.bf16.mxu0 %v1945
      %2744 = vmatpush1.bf16.msra.mxu0 %v1944
      %2745 = vmatprep.subr.bf16.mxu0 %v1947
      %2746 = vmatpush1.bf16.msra.mxu0 %v1946
      %2747 = vmatprep.subr.bf16.mxu0 %v1949
      %2748 = vmatpush1.bf16.msra.mxu0 %v1948
      %2749 = vmatprep.subr.bf16.mxu0 %v1951
      %2750 = vmatpush1.bf16.msra.mxu0 %v1950
      %2751 = vmatprep.subr.bf16.mxu0 %v1953
      %2752 = vmatpush1.bf16.msra.mxu0 %v1952
      %2753 = vmatprep.subr.bf16.mxu0 %v1955
      %2754 = vmatpush1.bf16.msra.mxu0 %v1954
      %2755 = vmatprep.subr.bf16.mxu0 %v1957
      %2756 = vmatpush1.bf16.msra.mxu0 %v1956
      %2757 = vmatprep.subr.bf16.mxu0 %v1959
      %2758 = vmatpush1.bf16.msra.mxu0 %v1958
      %2759 = vmatprep.subr.bf16.mxu0 %v1961
      %2760 = vmatpush1.bf16.msra.mxu0 %v1960
      %2761 = vmatprep.subr.bf16.mxu0 %v1963
      %2762 = vmatpush1.bf16.msra.mxu0 %v1962
      %2763 = vmatprep.subr.bf16.mxu0 %v1965
      %2764 = vmatpush1.bf16.msra.mxu0 %v1964
      %2765 = vmatprep.mubr.bf16.mxu0 %v575
      %2766 = vmatmul.mubr.bf16.gmra.mrb[0].mxu0 %v574
      %v2767 = vpop.f32.mrb[0].mxu0
      %v2768 = vadd.f32 %v2727, %v2767
      %v2769 = vpop.f32.mrb[0].mxu0
      %v2770 = vadd.f32 %v2729, %v2769
      %v2771 = vpop.f32.mrb[0].mxu0
      %v2772 = vpop.f32.mrb[0].mxu0
      %2773 = vdwg.mxu0
      %2774 = vmatprep.subr.bf16.mxu0 %v1967
      %2775 = vmatpush1.bf16.msra.mxu0 %v1966
      %2776 = vmatprep.subr.bf16.mxu0 %v1969
      %2777 = vmatpush1.bf16.msra.mxu0 %v1968
      %2778 = vmatprep.subr.bf16.mxu0 %v1971
      %2779 = vmatpush1.bf16.msra.mxu0 %v1970
      %2780 = vmatprep.subr.bf16.mxu0 %v1973
      %2781 = vmatpush1.bf16.msra.mxu0 %v1972
      %2782 = vmatprep.subr.bf16.mxu0 %v1975
      %2783 = vmatpush1.bf16.msra.mxu0 %v1974
      %2784 = vmatprep.subr.bf16.mxu0 %v1977
      %2785 = vmatpush1.bf16.msra.mxu0 %v1976
      %2786 = vmatprep.subr.bf16.mxu0 %v1979
      %2787 = vmatpush1.bf16.msra.mxu0 %v1978
      %2788 = vmatprep.subr.bf16.mxu0 %v1981
      %2789 = vmatpush1.bf16.msra.mxu0 %v1980
      %2790 = vmatprep.subr.bf16.mxu0 %v1983
      %2791 = vmatpush1.bf16.msra.mxu0 %v1982
      %2792 = vmatprep.subr.bf16.mxu0 %v1985
      %2793 = vmatpush1.bf16.msra.mxu0 %v1984
      %2794 = vmatprep.subr.bf16.mxu0 %v1987
      %2795 = vmatpush1.bf16.msra.mxu0 %v1986
      %2796 = vmatprep.subr.bf16.mxu0 %v1989
      %2797 = vmatpush1.bf16.msra.mxu0 %v1988
      %2798 = vmatprep.subr.bf16.mxu0 %v1991
      %2799 = vmatpush1.bf16.msra.mxu0 %v1990
      %2800 = vmatprep.subr.bf16.mxu0 %v1993
      %2801 = vmatpush1.bf16.msra.mxu0 %v1992
      %2802 = vmatprep.subr.bf16.mxu0 %v1995
      %2803 = vmatpush1.bf16.msra.mxu0 %v1994
      %2804 = vmatprep.subr.bf16.mxu0 %v1997
      %2805 = vmatpush1.bf16.msra.mxu0 %v1996
      %2806 = vmatprep.mubr.bf16.mxu0 %v577
      %2807 = vmatmul.mubr.bf16.gmra.mrb[0].mxu0 %v576
      %v2808 = vpop.f32.mrb[0].mxu0
      %v2809 = vadd.f32 %v2768, %v2808
      %v2810 = vpop.f32.mrb[0].mxu0
      %v2811 = vadd.f32 %v2770, %v2810
      %v2812 = vpop.f32.mrb[0].mxu0
      %v2813 = vpop.f32.mrb[0].mxu0
      %2814 = vdwg.mxu0
      %2815 = vmatprep.subr.bf16.mxu0 %v1999
      %2816 = vmatpush1.bf16.msra.mxu0 %v1998
      %2817 = vmatprep.subr.bf16.mxu0 %v2001
      %2818 = vmatpush1.bf16.msra.mxu0 %v2000
      %2819 = vmatprep.subr.bf16.mxu0 %v2003
      %2820 = vmatpush1.bf16.msra.mxu0 %v2002
      %2821 = vmatprep.subr.bf16.mxu0 %v2005
      %2822 = vmatpush1.bf16.msra.mxu0 %v2004
      %2823 = vmatprep.subr.bf16.mxu0 %v2007
      %2824 = vmatpush1.bf16.msra.mxu0 %v2006
      %2825 = vmatprep.subr.bf16.mxu0 %v2009
      %2826 = vmatpush1.bf16.msra.mxu0 %v2008
      %2827 = vmatprep.subr.bf16.mxu0 %v2011
      %2828 = vmatpush1.bf16.msra.mxu0 %v2010
      %2829 = vmatprep.subr.bf16.mxu0 %v2013
      %2830 = vmatpush1.bf16.msra.mxu0 %v2012
      %2831 = vmatprep.subr.bf16.mxu0 %v2015
      %2832 = vmatpush1.bf16.msra.mxu0 %v2014
      %2833 = vmatprep.subr.bf16.mxu0 %v2017
      %2834 = vmatpush1.bf16.msra.mxu0 %v2016
      %2835 = vmatprep.subr.bf16.mxu0 %v2019
      %2836 = vmatpush1.bf16.msra.mxu0 %v2018
      %2837 = vmatprep.subr.bf16.mxu0 %v2021
      %2838 = vmatpush1.bf16.msra.mxu0 %v2020
      %2839 = vmatprep.subr.bf16.mxu0 %v2023
      %2840 = vmatpush1.bf16.msra.mxu0 %v2022
      %2841 = vmatprep.subr.bf16.mxu0 %v2025
      %2842 = vmatpush1.bf16.msra.mxu0 %v2024
      %2843 = vmatprep.subr.bf16.mxu0 %v2027
      %2844 = vmatpush1.bf16.msra.mxu0 %v2026
      %2845 = vmatprep.subr.bf16.mxu0 %v2029
      %2846 = vmatpush1.bf16.msra.mxu0 %v2028
      %2847 = vmatprep.mubr.bf16.mxu0 %v579
      %2848 = vmatmul.mubr.bf16.gmra.mrb[0].mxu0 %v578
      %v2849 = vpop.f32.mrb[0].mxu0
      %v2850 = vadd.f32 %v2809, %v2849
      %v2851 = vpop.f32.mrb[0].mxu0
      %v2852 = vadd.f32 %v2811, %v2851
      %v2853 = vpop.f32.mrb[0].mxu0
      %v2854 = vpop.f32.mrb[0].mxu0
      %2855 = vdwg.mxu0
      %2856 = vmatprep.subr.bf16.mxu0 %v2031
      %2857 = vmatpush1.bf16.msra.mxu0 %v2030
      %2858 = vmatprep.subr.bf16.mxu0 %v2033
      %2859 = vmatpush1.bf16.msra.mxu0 %v2032
      %2860 = vmatprep.subr.bf16.mxu0 %v2035
      %2861 = vmatpush1.bf16.msra.mxu0 %v2034
      %2862 = vmatprep.subr.bf16.mxu0 %v2037
      %2863 = vmatpush1.bf16.msra.mxu0 %v2036
      %2864 = vmatprep.subr.bf16.mxu0 %v2039
      %2865 = vmatpush1.bf16.msra.mxu0 %v2038
      %2866 = vmatprep.subr.bf16.mxu0 %v2041
      %2867 = vmatpush1.bf16.msra.mxu0 %v2040
      %2868 = vmatprep.subr.bf16.mxu0 %v2043
      %2869 = vmatpush1.bf16.msra.mxu0 %v2042
      %2870 = vmatprep.subr.bf16.mxu0 %v2045
      %2871 = vmatpush1.bf16.msra.mxu0 %v2044
      %2872 = vmatprep.subr.bf16.mxu0 %v2047
      %2873 = vmatpush1.bf16.msra.mxu0 %v2046
      %2874 = vmatprep.subr.bf16.mxu0 %v2049
      %2875 = vmatpush1.bf16.msra.mxu0 %v2048
      %2876 = vmatprep.subr.bf16.mxu0 %v2051
      %2877 = vmatpush1.bf16.msra.mxu0 %v2050
      %2878 = vmatprep.subr.bf16.mxu0 %v2053
      %2879 = vmatpush1.bf16.msra.mxu0 %v2052
      %2880 = vmatprep.subr.bf16.mxu0 %v2055
      %2881 = vmatpush1.bf16.msra.mxu0 %v2054
      %2882 = vmatprep.subr.bf16.mxu0 %v2057
      %2883 = vmatpush1.bf16.msra.mxu0 %v2056
      %2884 = vmatprep.subr.bf16.mxu0 %v2059
      %2885 = vmatpush1.bf16.msra.mxu0 %v2058
      %2886 = vmatprep.subr.bf16.mxu0 %v2061
      %2887 = vmatpush1.bf16.msra.mxu0 %v2060
      %2888 = vmatprep.mubr.bf16.mxu0 %v581
      %2889 = vmatmul.mubr.bf16.gmra.mrb[0].mxu0 %v580
      %v2890 = vpop.f32.mrb[0].mxu0
      %v2891 = vadd.f32 %v2850, %v2890
      %v2892 = vpop.f32.mrb[0].mxu0
      %v2893 = vadd.f32 %v2852, %v2892
      %v2894 = vpop.f32.mrb[0].mxu0
      %v2895 = vpop.f32.mrb[0].mxu0
      %2896 = vdwg.mxu0
      %2897 = vmatprep.subr.bf16.mxu0 %v2063
      %2898 = vmatpush1.bf16.msra.mxu0 %v2062
      %2899 = vmatprep.subr.bf16.mxu0 %v2065
      %2900 = vmatpush1.bf16.msra.mxu0 %v2064
      %2901 = vmatprep.subr.bf16.mxu0 %v2067
      %2902 = vmatpush1.bf16.msra.mxu0 %v2066
      %2903 = vmatprep.subr.bf16.mxu0 %v2069
      %2904 = vmatpush1.bf16.msra.mxu0 %v2068
      %2905 = vmatprep.subr.bf16.mxu0 %v2071
      %2906 = vmatpush1.bf16.msra.mxu0 %v2070
      %2907 = vmatprep.subr.bf16.mxu0 %v2073
      %2908 = vmatpush1.bf16.msra.mxu0 %v2072
      %2909 = vmatprep.subr.bf16.mxu0 %v2075
      %2910 = vmatpush1.bf16.msra.mxu0 %v2074
      %2911 = vmatprep.subr.bf16.mxu0 %v2077
      %2912 = vmatpush1.bf16.msra.mxu0 %v2076
      %2913 = vmatprep.subr.bf16.mxu0 0
      %2914 = vmatpush1.bf16.msra.mxu0 0
      %2915 = vmatprep.subr.bf16.mxu0 0
      %2916 = vmatpush1.bf16.msra.mxu0 0
      %2917 = vmatprep.subr.bf16.mxu0 0
      %2918 = vmatpush1.bf16.msra.mxu0 0
      %2919 = vmatprep.subr.bf16.mxu0 0
      %2920 = vmatpush1.bf16.msra.mxu0 0
      %2921 = vmatprep.subr.bf16.mxu0 0
      %2922 = vmatpush1.bf16.msra.mxu0 0
      %2923 = vmatprep.subr.bf16.mxu0 0
      %2924 = vmatpush1.bf16.msra.mxu0 0
      %2925 = vmatprep.subr.bf16.mxu0 0
      %2926 = vmatpush1.bf16.msra.mxu0 0
      %2927 = vmatprep.subr.bf16.mxu0 0
      %2928 = vmatpush1.bf16.msra.mxu0 0
      %2929 = vmatprep.mubr.bf16.mxu0 0
      %2930 = vmatmul.mubr.bf16.gmra.mrb[0].mxu0 %v582
      %v2931 = vpop.f32.mrb[0].mxu0
      %v2932 = vadd.f32 %v2891, %v2931
      %v2933 = vpop.f32.mrb[0].mxu0
      %v2934 = vadd.f32 %v2893, %v2933
      %v2935 = vpop.f32.mrb[0].mxu0
      %v2936 = vpop.f32.mrb[0].mxu0
      %2937 = vdwg.mxu0
      %2938 = vst [vmem:[%s143] sm:$0xff] %v2932
      %2939 = vst [vmem:[%s143 + $0x8] sm:$0xff] %v2934
      %p2940 = scmp.lt.s32.totalorder %s13, 1
      %s2941 = scalar_select %p2940, %s13, 1
      %s2942 = smul.addr %s2941, 2
      %s2943 = smul.addr %s2942, 8
      %s2944 = scalar_lea.vmem %s2, %s2943
      // Predicated region
      $region29: #{resnet_forward.5} parent=27 // pred_check
        %p2945 = pneg %p78
      $region30: #{resnet_forward.5} parent=27 // pred_check_branch
        %2947 = sbr.rel (%p2945) target = $region32
      $region31: #{resnet_forward.5} parent=27 // pred_region
        _
      $region32: #{resnet_forward.5} parent=27 // pred_fallthru
        _
    $region28: #{resnet_forward.5} parent=5 // pred_fallthru
      _
    %p2948 = scmp.le.s32.totalorder 2, %s8
    // Predicated region
    $region33: #{resnet_forward.5} parent=5 // pred_check
      %p2949 = pneg %p2948
    $region34: #{resnet_forward.5} parent=5 // pred_check_branch
      %2951 = sbr.rel (%p2949) target = $region36
    $region35: #{resnet_forward.5} parent=5 // pred_region
      %s2952 = ssub.s32 %s8, 2
      // Predicated region
      $region37: #{resnet_forward.5} parent=35 // pred_check
        %p2953 = pneg %p84
      $region38: #{resnet_forward.5} parent=35 // pred_check_branch
        %2955 = sbr.rel (%p2953) target = $region40
      $region39: #{resnet_forward.5} parent=35 // pred_region
        %p2956 = scmp.lt.s32.totalorder %s14, 1
        %s2957 = scalar_select %p2956, %s14, 1
        %s2958 = smul.addr %s2957, 2
        %s2959 = smul.addr %s2958, 8
        %s2960 = scalar_lea.vmem %s2, %s2959
      $region40: #{resnet_forward.5} parent=35 // pred_fallthru
        _
    $region36: #{resnet_forward.5} parent=5 // pred_fallthru
      _
  $region6: #{resnet_forward.5} parent=0 // loop_footer
    %s12 = sadd.s32 1, %s8
  $region7: #{resnet_forward.5} parent=0 // loop_footer_branch
    %7 = sbr.rel target = $region3
  $region8: #{resnet_forward.5} parent=0 // loop_exit
    _

// kernel: resnet_forward.6
$region0: #{resnet_forward.6}
  #allocation0 [shape = 'u32[]', space=smem, size = 0x4, offset = 0x4, fixed_abs, tag = 'smem constant byte address 0x4 - core index']
  #allocation1 [shape = 'u32[144,128]{1,0:T(1,128)}', space=vmem, size = 0x12000, scoped, tag = 'internal scratch']
  %s0 = inlined_call_operand.vmem [shape: f32[2,6,10,10,8], index: 0, kind: input, shape index: {}]
  %s1 = inlined_call_operand.vmem [shape: f32[6,10,10,1], index: 1, kind: input, shape index: {}]
  %s2 = inlined_call_operand.vmem [shape: f32[1,8], index: 2, kind: input, shape index: {}]
  %s3 = inlined_call_operand.vmem [shape: f32[1,8], index: 3, kind: input, shape index: {}]
  %s4 = inlined_call_operand.vmem [shape: f32[2,4,8,8,8], index: 4, kind: output, shape index: {}]
  %s5 = sld [smem:[#allocation0]]
  $region49: #{resnet_forward.6} parent=0
    _
  %s7 = ssub.s32 1, %s5
  %s8 = scalar_select 0, %s7, %s5
  loop: start=0, step=1, limit=4
  $region2: #{resnet_forward.6} parent=0 // loop_pre_header
    _
  $region3: #{resnet_forward.6} parent=0 // loop_header
    %s10 = sphi 0, %s14
    %p11 = scmp.ge.s32.totalorder %s10, 4
    %s20 = sphi 0, %s22
    %s23 = sphi 0, %s20
    %s24 = sphi 0, %s23
    %s40 = sphi 0, %s24
    %s44 = sphi 0, %s44
    %s46 = sphi 0, %s44
    %s47 = sphi 0, %s46
    %s61 = sphi 0, %s47
    %s65 = sphi 0, %s65
    %s67 = sphi 0, %s65
    %s68 = sphi 0, %s67
    %s82 = sphi 0, %s68
    %s86 = sphi 0, %s86
    %s88 = sphi 0, %s86
    %s89 = sphi 0, %s88
    %s103 = sphi 0, %s89
    %s109 = sphi 0, %s111
    %s112 = sphi 0, %s109
    %s113 = sphi 0, %s112
    %s129 = sphi 0, %s113
  $region4: #{resnet_forward.6} parent=0 // loop_header_branch
    %13 = sbr.rel (%p11) target = $region8
  $region5: #{resnet_forward.6} parent=0 // loop_body
    %s15 = ssub.s32 %s10, 1
    %s16 = ssub.s32 %s10, 2
    %s17 = sadd.s32 %s10, 1
    %s18 = ssub.s32 %s10, %s17
    %p19 = scmp.eq.s32.totalorder %s18, 0
    %s21 = sadd.s32 %s20, 1
    %s22 = scalar_select %p19, %s20, %s21
    %p25 = pneg %p19
    %p26 = scmp.eq.s32.totalorder %s10, 1
    %p27 = por %p25, %p26
    %p28 = scmp.ne.s32.totalorder %s20, %s23
    %p29 = scmp.eq.s32.totalorder %s10, 0
    %p30 = por %p28, %p29
    %p31 = scmp.ne.s32.totalorder %s20, %s23
    %p32 = scmp.eq.s32.totalorder %s15, 1
    %p33 = por %p31, %p32
    %p34 = scmp.ne.s32.totalorder %s23, %s24
    %p35 = scmp.eq.s32.totalorder %s15, 0
    %p36 = por %p34, %p35
    %p37 = scmp.ne.s32.totalorder %s23, %s24
    %p38 = scmp.eq.s32.totalorder %s16, 1
    %p39 = por %p37, %p38
    %p41 = scmp.ne.s32.totalorder %s24, %s40
    %p42 = scmp.eq.s32.totalorder %s16, 0
    %p43 = por %p41, %p42
    %s45 = sadd.s32 %s44, 1
    %p48 = scmp.eq.s32.totalorder %s10, 1
    %p49 = scmp.ne.s32.totalorder %s44, %s46
    %p50 = scmp.eq.s32.totalorder %s10, 0
    %p51 = por %p49, %p50
    %p52 = scmp.ne.s32.totalorder %s44, %s46
    %p53 = scmp.eq.s32.totalorder %s15, 1
    %p54 = por %p52, %p53
    %p55 = scmp.ne.s32.totalorder %s46, %s47
    %p56 = scmp.eq.s32.totalorder %s15, 0
    %p57 = por %p55, %p56
    %p58 = scmp.ne.s32.totalorder %s46, %s47
    %p59 = scmp.eq.s32.totalorder %s16, 1
    %p60 = por %p58, %p59
    %p62 = scmp.ne.s32.totalorder %s47, %s61
    %p63 = scmp.eq.s32.totalorder %s16, 0
    %p64 = por %p62, %p63
    %s66 = sadd.s32 %s65, 1
    %p69 = scmp.eq.s32.totalorder %s10, 1
    %p70 = scmp.ne.s32.totalorder %s65, %s67
    %p71 = scmp.eq.s32.totalorder %s10, 0
    %p72 = por %p70, %p71
    %p73 = scmp.ne.s32.totalorder %s65, %s67
    %p74 = scmp.eq.s32.totalorder %s15, 1
    %p75 = por %p73, %p74
    %p76 = scmp.ne.s32.totalorder %s67, %s68
    %p77 = scmp.eq.s32.totalorder %s15, 0
    %p78 = por %p76, %p77
    %p79 = scmp.ne.s32.totalorder %s67, %s68
    %p80 = scmp.eq.s32.totalorder %s16, 1
    %p81 = por %p79, %p80
    %p83 = scmp.ne.s32.totalorder %s68, %s82
    %p84 = scmp.eq.s32.totalorder %s16, 0
    %p85 = por %p83, %p84
    %s87 = sadd.s32 %s86, 1
    %p90 = scmp.eq.s32.totalorder %s10, 1
    %p91 = scmp.ne.s32.totalorder %s86, %s88
    %p92 = scmp.eq.s32.totalorder %s10, 0
    %p93 = por %p91, %p92
    %p94 = scmp.ne.s32.totalorder %s86, %s88
    %p95 = scmp.eq.s32.totalorder %s15, 1
    %p96 = por %p94, %p95
    %p97 = scmp.ne.s32.totalorder %s88, %s89
    %p98 = scmp.eq.s32.totalorder %s15, 0
    %p99 = por %p97, %p98
    %p100 = scmp.ne.s32.totalorder %s88, %s89
    %p101 = scmp.eq.s32.totalorder %s16, 1
    %p102 = por %p100, %p101
    %p104 = scmp.ne.s32.totalorder %s89, %s103
    %p105 = scmp.eq.s32.totalorder %s16, 0
    %p106 = por %p104, %p105
    %s107 = ssub.s32 %s10, %s17
    %p108 = scmp.eq.s32.totalorder %s107, 0
    %s110 = sadd.s32 %s109, 1
    %s111 = scalar_select %p108, %s109, %s110
    %p114 = pneg %p108
    %p115 = scmp.eq.s32.totalorder %s10, 1
    %p116 = por %p114, %p115
    %p117 = scmp.ne.s32.totalorder %s109, %s112
    %p118 = scmp.eq.s32.totalorder %s10, 0
    %p119 = por %p117, %p118
    %p120 = scmp.ne.s32.totalorder %s109, %s112
    %p121 = scmp.eq.s32.totalorder %s15, 1
    %p122 = por %p120, %p121
    %p123 = scmp.ne.s32.totalorder %s112, %s113
    %p124 = scmp.eq.s32.totalorder %s15, 0
    %p125 = por %p123, %p124
    %p126 = scmp.ne.s32.totalorder %s112, %s113
    %p127 = scmp.eq.s32.totalorder %s16, 1
    %p128 = por %p126, %p127
    %p130 = scmp.ne.s32.totalorder %s113, %s129
    %p131 = scmp.eq.s32.totalorder %s16, 0
    %p132 = por %p130, %p131
    %p133 = scmp.le.s32.totalorder 1, %s10
    %p134 = scmp.lt.s32.totalorder %s10, 3
    %p135 = pnand %p133, %p134
    %p136 = pneg %p135
    // Predicated region
    $region9: #{resnet_forward.6} parent=5 // pred_check
      _
    $region10: #{resnet_forward.6} parent=5 // pred_check_branch
      %138 = sbr.rel (%p135) target = $region12
    $region11: #{resnet_forward.6} parent=5 // pred_region
      %s139 = ssub.s32 %s10, 1
      // Predicated region
      $region13: #{resnet_forward.6} parent=11 // pred_check
        %p140 = pneg %p57
      $region14: #{resnet_forward.6} parent=11 // pred_check_branch
        %142 = sbr.rel (%p140) target = $region16
      $region15: #{resnet_forward.6} parent=11 // pred_region
        _
      $region16: #{resnet_forward.6} parent=11 // pred_fallthru
        _
      // Predicated region
      $region17: #{resnet_forward.6} parent=11 // pred_check
        %p143 = pneg %p78
      $region18: #{resnet_forward.6} parent=11 // pred_check_branch
        %145 = sbr.rel (%p143) target = $region20
      $region19: #{resnet_forward.6} parent=11 // pred_region
        _
      $region20: #{resnet_forward.6} parent=11 // pred_fallthru
        _
      // Predicated region
      $region21: #{resnet_forward.6} parent=11 // pred_check
        %p146 = pneg %p99
      $region22: #{resnet_forward.6} parent=11 // pred_check_branch
        %148 = sbr.rel (%p146) target = $region24
      $region23: #{resnet_forward.6} parent=11 // pred_region
        _
      $region24: #{resnet_forward.6} parent=11 // pred_fallthru
        _
    $region12: #{resnet_forward.6} parent=5 // pred_fallthru
      _
    %p149 = scmp.lt.s32.totalorder %s10, 2
    // Predicated region
    $region25: #{resnet_forward.6} parent=5 // pred_check
      %p150 = pneg %p149
    $region26: #{resnet_forward.6} parent=5 // pred_check_branch
      %152 = sbr.rel (%p150) target = $region28
    $region27: #{resnet_forward.6} parent=5 // pred_region
      // Predicated region
      $region29: #{resnet_forward.6} parent=27 // pred_check
        %p153 = pneg %p30
      $region30: #{resnet_forward.6} parent=27 // pred_check_branch
        %155 = sbr.rel (%p153) target = $region32
      $region31: #{resnet_forward.6} parent=27 // pred_region
        %p156 = scmp.lt.s32.totalorder %s10, 1
        %s157 = scalar_select %p156, %s10, 1
        %s158 = smul.addr %s157, 120
        %s159 = smul.addr %s158, 8
        %s160 = scalar_lea.vmem %s0, %s159
      $region32: #{resnet_forward.6} parent=27 // pred_fallthru
        _
    $region28: #{resnet_forward.6} parent=5 // pred_fallthru
      _
    %p161 = scmp.le.s32.totalorder 1, %s10
    %p162 = scmp.lt.s32.totalorder %s10, 3
    %p163 = pnand %p161, %p162
    %p164 = pneg %p163
    // Predicated region
    $region33: #{resnet_forward.6} parent=5 // pred_check
      _
    $region34: #{resnet_forward.6} parent=5 // pred_check_branch
      %166 = sbr.rel (%p163) target = $region36
    $region35: #{resnet_forward.6} parent=5 // pred_region
      %s167 = ssub.s32 %s10, 1
      %p168 = scmp.lt.s32.totalorder %s15, 1
      %s169 = scalar_select %p168, %s15, 1
      %s170 = smul.addr %s169, 120
      %s171 = smul.addr %s170, 8
      %s172 = scalar_lea.vmem %s0, %s171
      %p173 = pneg %p36
      %p174 = pneg %p33
      %p175 = pneg %p57
      %p176 = pneg %p54
      %p177 = pneg %p78
      %p178 = pneg %p75
      %p179 = pneg %p99
      %p180 = pneg %p96
      %p181 = pneg %p125
      %p182 = pneg %p122
      %p183 = scmp.lt.s32.totalorder %s15, 1
      %s184 = scalar_select %p183, %s15, 1
      %s185 = smul.addr %s184, 32
      %s186 = smul.addr %s185, 8
      %s187 = scalar_lea.vmem %s4, %s186
      %p188 = scmp.lt.s32.totalorder %s15, 1
      %s189 = scalar_select %p188, %s15, 1
      %s190 = smul.addr %s189, 120
      %s191 = smul.addr %s190, 8
      %s192 = scalar_lea.vmem %s0, %s191
      %p193 = scmp.lt.s32.totalorder %s15, 1
      %s194 = scalar_select %p193, %s15, 1
      %s195 = smul.addr %s194, 32
      %s196 = smul.addr %s195, 8
      %s197 = scalar_lea.vmem %s4, %s196
      %v198 = vld [vmem:[%s2] sm:$0x1]
      %v199 = vld [vmem:[%s3] sm:$0x1]
      %v200 = vld [vmem:[%s192] sm:$0xff]
      %v201 = vld [vmem:[%s192 + $0x8] sm:$0x3]
      %v202 = vld [vmem:[%s192 + $0x10] sm:$0xff]
      %v203 = vld [vmem:[%s192 + $0x18] sm:$0x3]
      %v204 = vld [vmem:[%s192 + $0x20] sm:$0xff]
      %v205 = vld [vmem:[%s192 + $0x28] sm:$0x3]
      %v206 = vld [vmem:[%s192 + $0x30] sm:$0xff]
      %v207 = vld [vmem:[%s192 + $0x38] sm:$0x3]
      %v208 = vld [vmem:[%s192 + $0x40] sm:$0xff]
      %v209 = vld [vmem:[%s192 + $0x48] sm:$0x3]
      %v210 = vld [vmem:[%s192 + $0x50] sm:$0xff]
      %v211 = vld [vmem:[%s192 + $0x58] sm:$0x3]
      %v212 = vld [vmem:[%s192 + $0x60] sm:$0xff]
      %v213 = vld [vmem:[%s192 + $0x68] sm:$0x3]
      %v214 = vld [vmem:[%s192 + $0x70] sm:$0xff]
      %v215 = vld [vmem:[%s192 + $0x78] sm:$0x3]
      %v216 = vld [vmem:[%s192 + $0x80] sm:$0xff]
      %v217 = vld [vmem:[%s192 + $0x88] sm:$0x3]
      %v218 = vld [vmem:[%s192 + $0x90] sm:$0xff]
      %v219 = vld [vmem:[%s192 + $0x98] sm:$0x3]
      %v220 = vld [vmem:[%s192 + $0xa0] sm:$0xff]
      %v221 = vld [vmem:[%s192 + $0xa8] sm:$0x3]
      %v222 = vld [vmem:[%s192 + $0xb0] sm:$0xff]
      %v223 = vld [vmem:[%s192 + $0xb8] sm:$0x3]
      %v224 = vld [vmem:[%s192 + $0xc0] sm:$0xff]
      %v225 = vld [vmem:[%s192 + $0xc8] sm:$0x3]
      %v226 = vld [vmem:[%s192 + $0xd0] sm:$0xff]
      %v227 = vld [vmem:[%s192 + $0xd8] sm:$0x3]
      %v228 = vld [vmem:[%s192 + $0xe0] sm:$0xff]
      %v229 = vld [vmem:[%s192 + $0xe8] sm:$0x3]
      %v230 = vld [vmem:[%s192 + $0xf0] sm:$0xff]
      %v231 = vld [vmem:[%s192 + $0xf8] sm:$0x3]
      %v232 = vld [vmem:[%s192 + $0x100] sm:$0xff]
      %v233 = vld [vmem:[%s192 + $0x108] sm:$0x3]
      %v234 = vld [vmem:[%s192 + $0x110] sm:$0xff]
      %v235 = vld [vmem:[%s192 + $0x118] sm:$0x3]
      %v236 = vld [vmem:[%s192 + $0x120] sm:$0xff]
      %v237 = vld [vmem:[%s192 + $0x128] sm:$0x3]
      %v238 = vld [vmem:[%s192 + $0x130] sm:$0xff]
      %v239 = vld [vmem:[%s192 + $0x138] sm:$0x3]
      %v240 = vld [vmem:[%s192 + $0x140] sm:$0xff]
      %v241 = vld [vmem:[%s192 + $0x148] sm:$0x3]
      %v242 = vld [vmem:[%s192 + $0x150] sm:$0xff]
      %v243 = vld [vmem:[%s192 + $0x158] sm:$0x3]
      %v244 = vld [vmem:[%s192 + $0x160] sm:$0xff]
      %v245 = vld [vmem:[%s192 + $0x168] sm:$0x3]
      %v246 = vld [vmem:[%s192 + $0x170] sm:$0xff]
      %v247 = vld [vmem:[%s192 + $0x178] sm:$0x3]
      %v248 = vld [vmem:[%s192 + $0x180] sm:$0xff]
      %v249 = vld [vmem:[%s192 + $0x188] sm:$0x3]
      %v250 = vld [vmem:[%s192 + $0x190] sm:$0xff]
      %v251 = vld [vmem:[%s192 + $0x198] sm:$0x3]
      %v252 = vld [vmem:[%s192 + $0x1a0] sm:$0xff]
      %v253 = vld [vmem:[%s192 + $0x1a8] sm:$0x3]
      %v254 = vld [vmem:[%s192 + $0x1b0] sm:$0xff]
      %v255 = vld [vmem:[%s192 + $0x1b8] sm:$0x3]
      %v256 = vld [vmem:[%s192 + $0x1c0] sm:$0xff]
      %v257 = vld [vmem:[%s192 + $0x1c8] sm:$0x3]
      %v258 = vld [vmem:[%s192 + $0x1d0] sm:$0xff]
      %v259 = vld [vmem:[%s192 + $0x1d8] sm:$0x3]
      %v260 = vld [vmem:[%s192 + $0x1e0] sm:$0xff]
      %v261 = vld [vmem:[%s192 + $0x1e8] sm:$0x3]
      %v262 = vld [vmem:[%s192 + $0x1f0] sm:$0xff]
      %v263 = vld [vmem:[%s192 + $0x1f8] sm:$0x3]
      %v264 = vld [vmem:[%s192 + $0x200] sm:$0xff]
      %v265 = vld [vmem:[%s192 + $0x208] sm:$0x3]
      %v266 = vld [vmem:[%s192 + $0x210] sm:$0xff]
      %v267 = vld [vmem:[%s192 + $0x218] sm:$0x3]
      %v268 = vld [vmem:[%s192 + $0x220] sm:$0xff]
      %v269 = vld [vmem:[%s192 + $0x228] sm:$0x3]
      %v270 = vld [vmem:[%s192 + $0x230] sm:$0xff]
      %v271 = vld [vmem:[%s192 + $0x238] sm:$0x3]
      %v272 = vld [vmem:[%s192 + $0x240] sm:$0xff]
      %v273 = vld [vmem:[%s192 + $0x248] sm:$0x3]
      %v274 = vld [vmem:[%s192 + $0x250] sm:$0xff]
      %v275 = vld [vmem:[%s192 + $0x258] sm:$0x3]
      %v276 = vld [vmem:[%s192 + $0x260] sm:$0xff]
      %v277 = vld [vmem:[%s192 + $0x268] sm:$0x3]
      %v278 = vld [vmem:[%s192 + $0x270] sm:$0xff]
      %v279 = vld [vmem:[%s192 + $0x278] sm:$0x3]
      %v280 = vld [vmem:[%s192 + $0x280] sm:$0xff]
      %v281 = vld [vmem:[%s192 + $0x288] sm:$0x3]
      %v282 = vld [vmem:[%s192 + $0x290] sm:$0xff]
      %v283 = vld [vmem:[%s192 + $0x298] sm:$0x3]
      %v284 = vld [vmem:[%s192 + $0x2a0] sm:$0xff]
      %v285 = vld [vmem:[%s192 + $0x2a8] sm:$0x3]
      %v286 = vld [vmem:[%s192 + $0x2b0] sm:$0xff]
      %v287 = vld [vmem:[%s192 + $0x2b8] sm:$0x3]
      %v288 = vld [vmem:[%s192 + $0x2c0] sm:$0xff]
      %v289 = vld [vmem:[%s192 + $0x2c8] sm:$0x3]
      %v290 = vld [vmem:[%s192 + $0x2d0] sm:$0xff]
      %v291 = vld [vmem:[%s192 + $0x2d8] sm:$0x3]
      %v292 = vld [vmem:[%s192 + $0x2e0] sm:$0xff]
      %v293 = vld [vmem:[%s192 + $0x2e8] sm:$0x3]
      %v294 = vld [vmem:[%s192 + $0x2f0] sm:$0xff]
      %v295 = vld [vmem:[%s192 + $0x2f8] sm:$0x3]
      %v296 = vld [vmem:[%s192 + $0x300] sm:$0xff]
      %v297 = vld [vmem:[%s192 + $0x308] sm:$0x3]
      %v298 = vld [vmem:[%s192 + $0x310] sm:$0xff]
      %v299 = vld [vmem:[%s192 + $0x318] sm:$0x3]
      %v300 = vld [vmem:[%s192 + $0x320] sm:$0xff]
      %v301 = vld [vmem:[%s192 + $0x328] sm:$0x3]
      %v302 = vld [vmem:[%s192 + $0x330] sm:$0xff]
      %v303 = vld [vmem:[%s192 + $0x338] sm:$0x3]
      %v304 = vld [vmem:[%s192 + $0x340] sm:$0xff]
      %v305 = vld [vmem:[%s192 + $0x348] sm:$0x3]
      %v306 = vld [vmem:[%s192 + $0x350] sm:$0xff]
      %v307 = vld [vmem:[%s192 + $0x358] sm:$0x3]
      %v308 = vld [vmem:[%s192 + $0x360] sm:$0xff]
      %v309 = vld [vmem:[%s192 + $0x368] sm:$0x3]
      %v310 = vld [vmem:[%s192 + $0x370] sm:$0xff]
      %v311 = vld [vmem:[%s192 + $0x378] sm:$0x3]
      %v312 = vld [vmem:[%s192 + $0x380] sm:$0xff]
      %v313 = vld [vmem:[%s192 + $0x388] sm:$0x3]
      %v314 = vld [vmem:[%s192 + $0x390] sm:$0xff]
      %v315 = vld [vmem:[%s192 + $0x398] sm:$0x3]
      %v316 = vld [vmem:[%s192 + $0x3a0] sm:$0xff]
      %v317 = vld [vmem:[%s192 + $0x3a8] sm:$0x3]
      %v318 = vld [vmem:[%s192 + $0x3b0] sm:$0xff]
      %v319 = vld [vmem:[%s192 + $0x3b8] sm:$0x3]
      %v321 = vlaneseq
      %v322 = vshrl.u32 %v321, 7
      %v323 = vsub.s32 0, %v322
      %v324 = vrot.slane %v198, %v323
      %v326 = vmul.f32 %v200, %v324
      %v327 = vmul.f32 %v201, %v324
      %v328 = vmul.f32 %v202, %v324
      %v329 = vmul.f32 %v203, %v324
      %v330 = vmul.f32 %v204, %v324
      %v331 = vmul.f32 %v205, %v324
      %v332 = vmul.f32 %v206, %v324
      %v333 = vmul.f32 %v207, %v324
      %v334 = vmul.f32 %v208, %v324
      %v335 = vmul.f32 %v209, %v324
      %v336 = vmul.f32 %v210, %v324
      %v337 = vmul.f32 %v211, %v324
      %v338 = vmul.f32 %v212, %v324
      %v339 = vmul.f32 %v213, %v324
      %v340 = vmul.f32 %v214, %v324
      %v341 = vmul.f32 %v215, %v324
      %v342 = vmul.f32 %v216, %v324
      %v343 = vmul.f32 %v217, %v324
      %v344 = vmul.f32 %v218, %v324
      %v345 = vmul.f32 %v219, %v324
      %v346 = vmul.f32 %v220, %v324
      %v347 = vmul.f32 %v221, %v324
      %v348 = vmul.f32 %v222, %v324
      %v349 = vmul.f32 %v223, %v324
      %v350 = vmul.f32 %v224, %v324
      %v351 = vmul.f32 %v225, %v324
      %v352 = vmul.f32 %v226, %v324
      %v353 = vmul.f32 %v227, %v324
      %v354 = vmul.f32 %v228, %v324
      %v355 = vmul.f32 %v229, %v324
      %v356 = vmul.f32 %v230, %v324
      %v357 = vmul.f32 %v231, %v324
      %v358 = vmul.f32 %v232, %v324
      %v359 = vmul.f32 %v233, %v324
      %v360 = vmul.f32 %v234, %v324
      %v361 = vmul.f32 %v235, %v324
      %v362 = vmul.f32 %v236, %v324
      %v363 = vmul.f32 %v237, %v324
      %v364 = vmul.f32 %v238, %v324
      %v365 = vmul.f32 %v239, %v324
      %v366 = vmul.f32 %v240, %v324
      %v367 = vmul.f32 %v241, %v324
      %v368 = vmul.f32 %v242, %v324
      %v369 = vmul.f32 %v243, %v324
      %v370 = vmul.f32 %v244, %v324
      %v371 = vmul.f32 %v245, %v324
      %v372 = vmul.f32 %v246, %v324
      %v373 = vmul.f32 %v247, %v324
      %v374 = vmul.f32 %v248, %v324
      %v375 = vmul.f32 %v249, %v324
      %v376 = vmul.f32 %v250, %v324
      %v377 = vmul.f32 %v251, %v324
      %v378 = vmul.f32 %v252, %v324
      %v379 = vmul.f32 %v253, %v324
      %v380 = vmul.f32 %v254, %v324
      %v381 = vmul.f32 %v255, %v324
      %v382 = vmul.f32 %v256, %v324
      %v383 = vmul.f32 %v257, %v324
      %v384 = vmul.f32 %v258, %v324
      %v385 = vmul.f32 %v259, %v324
      %v386 = vmul.f32 %v260, %v324
      %v387 = vmul.f32 %v261, %v324
      %v388 = vmul.f32 %v262, %v324
      %v389 = vmul.f32 %v263, %v324
      %v390 = vmul.f32 %v264, %v324
      %v391 = vmul.f32 %v265, %v324
      %v392 = vmul.f32 %v266, %v324
      %v393 = vmul.f32 %v267, %v324
      %v394 = vmul.f32 %v268, %v324
      %v395 = vmul.f32 %v269, %v324
      %v396 = vmul.f32 %v270, %v324
      %v397 = vmul.f32 %v271, %v324
      %v398 = vmul.f32 %v272, %v324
      %v399 = vmul.f32 %v273, %v324
      %v400 = vmul.f32 %v274, %v324
      %v401 = vmul.f32 %v275, %v324
      %v402 = vmul.f32 %v276, %v324
      %v403 = vmul.f32 %v277, %v324
      %v404 = vmul.f32 %v278, %v324
      %v405 = vmul.f32 %v279, %v324
      %v406 = vmul.f32 %v280, %v324
      %v407 = vmul.f32 %v281, %v324
      %v408 = vmul.f32 %v282, %v324
      %v409 = vmul.f32 %v283, %v324
      %v410 = vmul.f32 %v284, %v324
      %v411 = vmul.f32 %v285, %v324
      %v412 = vmul.f32 %v286, %v324
      %v413 = vmul.f32 %v287, %v324
      %v414 = vmul.f32 %v288, %v324
      %v415 = vmul.f32 %v289, %v324
      %v416 = vmul.f32 %v290, %v324
      %v417 = vmul.f32 %v291, %v324
      %v418 = vmul.f32 %v292, %v324
      %v419 = vmul.f32 %v293, %v324
      %v420 = vmul.f32 %v294, %v324
      %v421 = vmul.f32 %v295, %v324
      %v422 = vmul.f32 %v296, %v324
      %v423 = vmul.f32 %v297, %v324
      %v424 = vmul.f32 %v298, %v324
      %v425 = vmul.f32 %v299, %v324
      %v426 = vmul.f32 %v300, %v324
      %v427 = vmul.f32 %v301, %v324
      %v428 = vmul.f32 %v302, %v324
      %v429 = vmul.f32 %v303, %v324
      %v430 = vmul.f32 %v304, %v324
      %v431 = vmul.f32 %v305, %v324
      %v432 = vmul.f32 %v306, %v324
      %v433 = vmul.f32 %v307, %v324
      %v434 = vmul.f32 %v308, %v324
      %v435 = vmul.f32 %v309, %v324
      %v436 = vmul.f32 %v310, %v324
      %v437 = vmul.f32 %v311, %v324
      %v438 = vmul.f32 %v312, %v324
      %v439 = vmul.f32 %v313, %v324
      %v440 = vmul.f32 %v314, %v324
      %v441 = vmul.f32 %v315, %v324
      %v442 = vmul.f32 %v316, %v324
      %v443 = vmul.f32 %v317, %v324
      %v444 = vmul.f32 %v318, %v324
      %v445 = vmul.f32 %v319, %v324
      %v447 = vlaneseq
      %v448 = vshrl.u32 %v447, 7
      %v449 = vsub.s32 0, %v448
      %v450 = vrot.slane %v199, %v449
      %v452 = vadd.f32 %v326, %v450
      %v453 = vadd.f32 %v327, %v450
      %v454 = vadd.f32 %v328, %v450
      %v455 = vadd.f32 %v329, %v450
      %v456 = vadd.f32 %v330, %v450
      %v457 = vadd.f32 %v331, %v450
      %v458 = vadd.f32 %v332, %v450
      %v459 = vadd.f32 %v333, %v450
      %v460 = vadd.f32 %v334, %v450
      %v461 = vadd.f32 %v335, %v450
      %v462 = vadd.f32 %v336, %v450
      %v463 = vadd.f32 %v337, %v450
      %v464 = vadd.f32 %v338, %v450
      %v465 = vadd.f32 %v339, %v450
      %v466 = vadd.f32 %v340, %v450
      %v467 = vadd.f32 %v341, %v450
      %v468 = vadd.f32 %v342, %v450
      %v469 = vadd.f32 %v343, %v450
      %v470 = vadd.f32 %v344, %v450
      %v471 = vadd.f32 %v345, %v450
      %v472 = vadd.f32 %v346, %v450
      %v473 = vadd.f32 %v347, %v450
      %v474 = vadd.f32 %v348, %v450
      %v475 = vadd.f32 %v349, %v450
      %v476 = vadd.f32 %v350, %v450
      %v477 = vadd.f32 %v351, %v450
      %v478 = vadd.f32 %v352, %v450
      %v479 = vadd.f32 %v353, %v450
      %v480 = vadd.f32 %v354, %v450
      %v481 = vadd.f32 %v355, %v450
      %v482 = vadd.f32 %v356, %v450
      %v483 = vadd.f32 %v357, %v450
      %v484 = vadd.f32 %v358, %v450
      %v485 = vadd.f32 %v359, %v450
      %v486 = vadd.f32 %v360, %v450
      %v487 = vadd.f32 %v361, %v450
      %v488 = vadd.f32 %v362, %v450
      %v489 = vadd.f32 %v363, %v450
      %v490 = vadd.f32 %v364, %v450
      %v491 = vadd.f32 %v365, %v450
      %v492 = vadd.f32 %v366, %v450
      %v493 = vadd.f32 %v367, %v450
      %v494 = vadd.f32 %v368, %v450
      %v495 = vadd.f32 %v369, %v450
      %v496 = vadd.f32 %v370, %v450
      %v497 = vadd.f32 %v371, %v450
      %v498 = vadd.f32 %v372, %v450
      %v499 = vadd.f32 %v373, %v450
      %v500 = vadd.f32 %v374, %v450
      %v501 = vadd.f32 %v375, %v450
      %v502 = vadd.f32 %v376, %v450
      %v503 = vadd.f32 %v377, %v450
      %v504 = vadd.f32 %v378, %v450
      %v505 = vadd.f32 %v379, %v450
      %v506 = vadd.f32 %v380, %v450
      %v507 = vadd.f32 %v381, %v450
      %v508 = vadd.f32 %v382, %v450
      %v509 = vadd.f32 %v383, %v450
      %v510 = vadd.f32 %v384, %v450
      %v511 = vadd.f32 %v385, %v450
      %v512 = vadd.f32 %v386, %v450
      %v513 = vadd.f32 %v387, %v450
      %v514 = vadd.f32 %v388, %v450
      %v515 = vadd.f32 %v389, %v450
      %v516 = vadd.f32 %v390, %v450
      %v517 = vadd.f32 %v391, %v450
      %v518 = vadd.f32 %v392, %v450
      %v519 = vadd.f32 %v393, %v450
      %v520 = vadd.f32 %v394, %v450
      %v521 = vadd.f32 %v395, %v450
      %v522 = vadd.f32 %v396, %v450
      %v523 = vadd.f32 %v397, %v450
      %v524 = vadd.f32 %v398, %v450
      %v525 = vadd.f32 %v399, %v450
      %v526 = vadd.f32 %v400, %v450
      %v527 = vadd.f32 %v401, %v450
      %v528 = vadd.f32 %v402, %v450
      %v529 = vadd.f32 %v403, %v450
      %v530 = vadd.f32 %v404, %v450
      %v531 = vadd.f32 %v405, %v450
      %v532 = vadd.f32 %v406, %v450
      %v533 = vadd.f32 %v407, %v450
      %v534 = vadd.f32 %v408, %v450
      %v535 = vadd.f32 %v409, %v450
      %v536 = vadd.f32 %v410, %v450
      %v537 = vadd.f32 %v411, %v450
      %v538 = vadd.f32 %v412, %v450
      %v539 = vadd.f32 %v413, %v450
      %v540 = vadd.f32 %v414, %v450
      %v541 = vadd.f32 %v415, %v450
      %v542 = vadd.f32 %v416, %v450
      %v543 = vadd.f32 %v417, %v450
      %v544 = vadd.f32 %v418, %v450
      %v545 = vadd.f32 %v419, %v450
      %v546 = vadd.f32 %v420, %v450
      %v547 = vadd.f32 %v421, %v450
      %v548 = vadd.f32 %v422, %v450
      %v549 = vadd.f32 %v423, %v450
      %v550 = vadd.f32 %v424, %v450
      %v551 = vadd.f32 %v425, %v450
      %v552 = vadd.f32 %v426, %v450
      %v553 = vadd.f32 %v427, %v450
      %v554 = vadd.f32 %v428, %v450
      %v555 = vadd.f32 %v429, %v450
      %v556 = vadd.f32 %v430, %v450
      %v557 = vadd.f32 %v431, %v450
      %v558 = vadd.f32 %v432, %v450
      %v559 = vadd.f32 %v433, %v450
      %v560 = vadd.f32 %v434, %v450
      %v561 = vadd.f32 %v435, %v450
      %v562 = vadd.f32 %v436, %v450
      %v563 = vadd.f32 %v437, %v450
      %v564 = vadd.f32 %v438, %v450
      %v565 = vadd.f32 %v439, %v450
      %v566 = vadd.f32 %v440, %v450
      %v567 = vadd.f32 %v441, %v450
      %v568 = vadd.f32 %v442, %v450
      %v569 = vadd.f32 %v443, %v450
      %v570 = vadd.f32 %v444, %v450
      %v571 = vadd.f32 %v445, %v450
      %v572 = vmax.f32 %v452, 0.0
      %v573 = vmax.f32 %v453, 0.0
      %v574 = vmax.f32 %v454, 0.0
      %v575 = vmax.f32 %v455, 0.0
      %v576 = vmax.f32 %v456, 0.0
      %v577 = vmax.f32 %v457, 0.0
      %v578 = vmax.f32 %v458, 0.0
      %v579 = vmax.f32 %v459, 0.0
      %v580 = vmax.f32 %v460, 0.0
      %v581 = vmax.f32 %v461, 0.0
      %v582 = vmax.f32 %v462, 0.0
      %v583 = vmax.f32 %v463, 0.0
      %v584 = vmax.f32 %v464, 0.0
      %v585 = vmax.f32 %v465, 0.0
      %v586 = vmax.f32 %v466, 0.0
      %v587 = vmax.f32 %v467, 0.0
      %v588 = vmax.f32 %v468, 0.0
      %v589 = vmax.f32 %v469, 0.0
      %v590 = vmax.f32 %v470, 0.0
      %v591 = vmax.f32 %v471, 0.0
      %v592 = vmax.f32 %v472, 0.0
      %v593 = vmax.f32 %v473, 0.0
      %v594 = vmax.f32 %v474, 0.0
      %v595 = vmax.f32 %v475, 0.0
      %v596 = vmax.f32 %v476, 0.0
      %v597 = vmax.f32 %v477, 0.0
      %v598 = vmax.f32 %v478, 0.0
      %v599 = vmax.f32 %v479, 0.0
      %v600 = vmax.f32 %v480, 0.0
      %v601 = vmax.f32 %v481, 0.0
      %v602 = vmax.f32 %v482, 0.0
      %v603 = vmax.f32 %v483, 0.0
      %v604 = vmax.f32 %v484, 0.0
      %v605 = vmax.f32 %v485, 0.0
      %v606 = vmax.f32 %v486, 0.0
      %v607 = vmax.f32 %v487, 0.0
      %v608 = vmax.f32 %v488, 0.0
      %v609 = vmax.f32 %v489, 0.0
      %v610 = vmax.f32 %v490, 0.0
      %v611 = vmax.f32 %v491, 0.0
      %v612 = vmax.f32 %v492, 0.0
      %v613 = vmax.f32 %v493, 0.0
      %v614 = vmax.f32 %v494, 0.0
      %v615 = vmax.f32 %v495, 0.0
      %v616 = vmax.f32 %v496, 0.0
      %v617 = vmax.f32 %v497, 0.0
      %v618 = vmax.f32 %v498, 0.0
      %v619 = vmax.f32 %v499, 0.0
      %v620 = vmax.f32 %v500, 0.0
      %v621 = vmax.f32 %v501, 0.0
      %v622 = vmax.f32 %v502, 0.0
      %v623 = vmax.f32 %v503, 0.0
      %v624 = vmax.f32 %v504, 0.0
      %v625 = vmax.f32 %v505, 0.0
      %v626 = vmax.f32 %v506, 0.0
      %v627 = vmax.f32 %v507, 0.0
      %v628 = vmax.f32 %v508, 0.0
      %v629 = vmax.f32 %v509, 0.0
      %v630 = vmax.f32 %v510, 0.0
      %v631 = vmax.f32 %v511, 0.0
      %v632 = vmax.f32 %v512, 0.0
      %v633 = vmax.f32 %v513, 0.0
      %v634 = vmax.f32 %v514, 0.0
      %v635 = vmax.f32 %v515, 0.0
      %v636 = vmax.f32 %v516, 0.0
      %v637 = vmax.f32 %v517, 0.0
      %v638 = vmax.f32 %v518, 0.0
      %v639 = vmax.f32 %v519, 0.0
      %v640 = vmax.f32 %v520, 0.0
      %v641 = vmax.f32 %v521, 0.0
      %v642 = vmax.f32 %v522, 0.0
      %v643 = vmax.f32 %v523, 0.0
      %v644 = vmax.f32 %v524, 0.0
      %v645 = vmax.f32 %v525, 0.0
      %v646 = vmax.f32 %v526, 0.0
      %v647 = vmax.f32 %v527, 0.0
      %v648 = vmax.f32 %v528, 0.0
      %v649 = vmax.f32 %v529, 0.0
      %v650 = vmax.f32 %v530, 0.0
      %v651 = vmax.f32 %v531, 0.0
      %v652 = vmax.f32 %v532, 0.0
      %v653 = vmax.f32 %v533, 0.0
      %v654 = vmax.f32 %v534, 0.0
      %v655 = vmax.f32 %v535, 0.0
      %v656 = vmax.f32 %v536, 0.0
      %v657 = vmax.f32 %v537, 0.0
      %v658 = vmax.f32 %v538, 0.0
      %v659 = vmax.f32 %v539, 0.0
      %v660 = vmax.f32 %v540, 0.0
      %v661 = vmax.f32 %v541, 0.0
      %v662 = vmax.f32 %v542, 0.0
      %v663 = vmax.f32 %v543, 0.0
      %v664 = vmax.f32 %v544, 0.0
      %v665 = vmax.f32 %v545, 0.0
      %v666 = vmax.f32 %v546, 0.0
      %v667 = vmax.f32 %v547, 0.0
      %v668 = vmax.f32 %v548, 0.0
      %v669 = vmax.f32 %v549, 0.0
      %v670 = vmax.f32 %v550, 0.0
      %v671 = vmax.f32 %v551, 0.0
      %v672 = vmax.f32 %v552, 0.0
      %v673 = vmax.f32 %v553, 0.0
      %v674 = vmax.f32 %v554, 0.0
      %v675 = vmax.f32 %v555, 0.0
      %v676 = vmax.f32 %v556, 0.0
      %v677 = vmax.f32 %v557, 0.0
      %v678 = vmax.f32 %v558, 0.0
      %v679 = vmax.f32 %v559, 0.0
      %v680 = vmax.f32 %v560, 0.0
      %v681 = vmax.f32 %v561, 0.0
      %v682 = vmax.f32 %v562, 0.0
      %v683 = vmax.f32 %v563, 0.0
      %v684 = vmax.f32 %v564, 0.0
      %v685 = vmax.f32 %v565, 0.0
      %v686 = vmax.f32 %v566, 0.0
      %v687 = vmax.f32 %v567, 0.0
      %v688 = vmax.f32 %v568, 0.0
      %v689 = vmax.f32 %v569, 0.0
      %v690 = vmax.f32 %v570, 0.0
      %v691 = vmax.f32 %v571, 0.0
      %v692 = vld [vmem:[%s1] sm:$0xff]
      %v693 = vld [vmem:[%s1 + $0x8] sm:$0x3]
      %v694 = vld [vmem:[%s1 + $0x10] sm:$0xff]
      %v695 = vld [vmem:[%s1 + $0x18] sm:$0x3]
      %v696 = vld [vmem:[%s1 + $0x20] sm:$0xff]
      %v697 = vld [vmem:[%s1 + $0x28] sm:$0x3]
      %v698 = vld [vmem:[%s1 + $0x30] sm:$0xff]
      %v699 = vld [vmem:[%s1 + $0x38] sm:$0x3]
      %v700 = vld [vmem:[%s1 + $0x40] sm:$0xff]
      %v701 = vld [vmem:[%s1 + $0x48] sm:$0x3]
      %v702 = vld [vmem:[%s1 + $0x50] sm:$0xff]
      %v703 = vld [vmem:[%s1 + $0x58] sm:$0x3]
      %v704 = vld [vmem:[%s1 + $0x60] sm:$0xff]
      %v705 = vld [vmem:[%s1 + $0x68] sm:$0x3]
      %v706 = vld [vmem:[%s1 + $0x70] sm:$0xff]
      %v707 = vld [vmem:[%s1 + $0x78] sm:$0x3]
      %v708 = vld [vmem:[%s1 + $0x80] sm:$0xff]
      %v709 = vld [vmem:[%s1 + $0x88] sm:$0x3]
      %v710 = vld [vmem:[%s1 + $0x90] sm:$0xff]
      %v711 = vld [vmem:[%s1 + $0x98] sm:$0x3]
      %v712 = vld [vmem:[%s1 + $0xa0] sm:$0xff]
      %v713 = vld [vmem:[%s1 + $0xa8] sm:$0x3]
      %v714 = vld [vmem:[%s1 + $0xb0] sm:$0xff]
      %v715 = vld [vmem:[%s1 + $0xb8] sm:$0x3]
      %v716 = vld [vmem:[%s1 + $0xc0] sm:$0xff]
      %v717 = vld [vmem:[%s1 + $0xc8] sm:$0x3]
      %v718 = vld [vmem:[%s1 + $0xd0] sm:$0xff]
      %v719 = vld [vmem:[%s1 + $0xd8] sm:$0x3]
      %v720 = vld [vmem:[%s1 + $0xe0] sm:$0xff]
      %v721 = vld [vmem:[%s1 + $0xe8] sm:$0x3]
      %v722 = vld [vmem:[%s1 + $0xf0] sm:$0xff]
      %v723 = vld [vmem:[%s1 + $0xf8] sm:$0x3]
      %v724 = vld [vmem:[%s1 + $0x100] sm:$0xff]
      %v725 = vld [vmem:[%s1 + $0x108] sm:$0x3]
      %v726 = vld [vmem:[%s1 + $0x110] sm:$0xff]
      %v727 = vld [vmem:[%s1 + $0x118] sm:$0x3]
      %v728 = vld [vmem:[%s1 + $0x120] sm:$0xff]
      %v729 = vld [vmem:[%s1 + $0x128] sm:$0x3]
      %v730 = vld [vmem:[%s1 + $0x130] sm:$0xff]
      %v731 = vld [vmem:[%s1 + $0x138] sm:$0x3]
      %v732 = vld [vmem:[%s1 + $0x140] sm:$0xff]
      %v733 = vld [vmem:[%s1 + $0x148] sm:$0x3]
      %v734 = vld [vmem:[%s1 + $0x150] sm:$0xff]
      %v735 = vld [vmem:[%s1 + $0x158] sm:$0x3]
      %v736 = vld [vmem:[%s1 + $0x160] sm:$0xff]
      %v737 = vld [vmem:[%s1 + $0x168] sm:$0x3]
      %v738 = vld [vmem:[%s1 + $0x170] sm:$0xff]
      %v739 = vld [vmem:[%s1 + $0x178] sm:$0x3]
      %v740 = vld [vmem:[%s1 + $0x180] sm:$0xff]
      %v741 = vld [vmem:[%s1 + $0x188] sm:$0x3]
      %v742 = vld [vmem:[%s1 + $0x190] sm:$0xff]
      %v743 = vld [vmem:[%s1 + $0x198] sm:$0x3]
      %v744 = vld [vmem:[%s1 + $0x1a0] sm:$0xff]
      %v745 = vld [vmem:[%s1 + $0x1a8] sm:$0x3]
      %v746 = vld [vmem:[%s1 + $0x1b0] sm:$0xff]
      %v747 = vld [vmem:[%s1 + $0x1b8] sm:$0x3]
      %v748 = vld [vmem:[%s1 + $0x1c0] sm:$0xff]
      %v749 = vld [vmem:[%s1 + $0x1c8] sm:$0x3]
      %v750 = vld [vmem:[%s1 + $0x1d0] sm:$0xff]
      %v751 = vld [vmem:[%s1 + $0x1d8] sm:$0x3]
      %v752 = vld [vmem:[%s1 + $0x1e0] sm:$0xff]
      %v753 = vld [vmem:[%s1 + $0x1e8] sm:$0x3]
      %v754 = vld [vmem:[%s1 + $0x1f0] sm:$0xff]
      %v755 = vld [vmem:[%s1 + $0x1f8] sm:$0x3]
      %v756 = vld [vmem:[%s1 + $0x200] sm:$0xff]
      %v757 = vld [vmem:[%s1 + $0x208] sm:$0x3]
      %v758 = vld [vmem:[%s1 + $0x210] sm:$0xff]
      %v759 = vld [vmem:[%s1 + $0x218] sm:$0x3]
      %v760 = vld [vmem:[%s1 + $0x220] sm:$0xff]
      %v761 = vld [vmem:[%s1 + $0x228] sm:$0x3]
      %v762 = vld [vmem:[%s1 + $0x230] sm:$0xff]
      %v763 = vld [vmem:[%s1 + $0x238] sm:$0x3]
      %v764 = vld [vmem:[%s1 + $0x240] sm:$0xff]
      %v765 = vld [vmem:[%s1 + $0x248] sm:$0x3]
      %v766 = vld [vmem:[%s1 + $0x250] sm:$0xff]
      %v767 = vld [vmem:[%s1 + $0x258] sm:$0x3]
      %v768 = vld [vmem:[%s1 + $0x260] sm:$0xff]
      %v769 = vld [vmem:[%s1 + $0x268] sm:$0x3]
      %v770 = vld [vmem:[%s1 + $0x270] sm:$0xff]
      %v771 = vld [vmem:[%s1 + $0x278] sm:$0x3]
      %v772 = vld [vmem:[%s1 + $0x280] sm:$0xff]
      %v773 = vld [vmem:[%s1 + $0x288] sm:$0x3]
      %v774 = vld [vmem:[%s1 + $0x290] sm:$0xff]
      %v775 = vld [vmem:[%s1 + $0x298] sm:$0x3]
      %v776 = vld [vmem:[%s1 + $0x2a0] sm:$0xff]
      %v777 = vld [vmem:[%s1 + $0x2a8] sm:$0x3]
      %v778 = vld [vmem:[%s1 + $0x2b0] sm:$0xff]
      %v779 = vld [vmem:[%s1 + $0x2b8] sm:$0x3]
      %v780 = vld [vmem:[%s1 + $0x2c0] sm:$0xff]
      %v781 = vld [vmem:[%s1 + $0x2c8] sm:$0x3]
      %v782 = vld [vmem:[%s1 + $0x2d0] sm:$0xff]
      %v783 = vld [vmem:[%s1 + $0x2d8] sm:$0x3]
      %v784 = vld [vmem:[%s1 + $0x2e0] sm:$0xff]
      %v785 = vld [vmem:[%s1 + $0x2e8] sm:$0x3]
      %v786 = vld [vmem:[%s1 + $0x2f0] sm:$0xff]
      %v787 = vld [vmem:[%s1 + $0x2f8] sm:$0x3]
      %v788 = vld [vmem:[%s1 + $0x300] sm:$0xff]
      %v789 = vld [vmem:[%s1 + $0x308] sm:$0x3]
      %v790 = vld [vmem:[%s1 + $0x310] sm:$0xff]
      %v791 = vld [vmem:[%s1 + $0x318] sm:$0x3]
      %v792 = vld [vmem:[%s1 + $0x320] sm:$0xff]
      %v793 = vld [vmem:[%s1 + $0x328] sm:$0x3]
      %v794 = vld [vmem:[%s1 + $0x330] sm:$0xff]
      %v795 = vld [vmem:[%s1 + $0x338] sm:$0x3]
      %v796 = vld [vmem:[%s1 + $0x340] sm:$0xff]
      %v797 = vld [vmem:[%s1 + $0x348] sm:$0x3]
      %v798 = vld [vmem:[%s1 + $0x350] sm:$0xff]
      %v799 = vld [vmem:[%s1 + $0x358] sm:$0x3]
      %v800 = vld [vmem:[%s1 + $0x360] sm:$0xff]
      %v801 = vld [vmem:[%s1 + $0x368] sm:$0x3]
      %v802 = vld [vmem:[%s1 + $0x370] sm:$0xff]
      %v803 = vld [vmem:[%s1 + $0x378] sm:$0x3]
      %v804 = vld [vmem:[%s1 + $0x380] sm:$0xff]
      %v805 = vld [vmem:[%s1 + $0x388] sm:$0x3]
      %v806 = vld [vmem:[%s1 + $0x390] sm:$0xff]
      %v807 = vld [vmem:[%s1 + $0x398] sm:$0x3]
      %v808 = vld [vmem:[%s1 + $0x3a0] sm:$0xff]
      %v809 = vld [vmem:[%s1 + $0x3a8] sm:$0x3]
      %v810 = vld [vmem:[%s1 + $0x3b0] sm:$0xff]
      %v811 = vld [vmem:[%s1 + $0x3b8] sm:$0x3]
      %813 = vset.pattern.permute.xlu0 0
      %814 = vperm.xlu0 %813, %v692
      %v815 = vpop.permute.xlu0 %814
      %818 = vset.pattern.permute.xlu0 0
      %819 = vperm.xlu0 %818, %v693
      %v820 = vpop.permute.xlu0 %819
      %823 = vset.pattern.permute.xlu0 0
      %824 = vperm.xlu0 %823, %v694
      %v825 = vpop.permute.xlu0 %824
      %828 = vset.pattern.permute.xlu0 0
      %829 = vperm.xlu0 %828, %v695
      %v830 = vpop.permute.xlu0 %829
      %833 = vset.pattern.permute.xlu0 0
      %834 = vperm.xlu0 %833, %v696
      %v835 = vpop.permute.xlu0 %834
      %838 = vset.pattern.permute.xlu0 0
      %839 = vperm.xlu0 %838, %v697
      %v840 = vpop.permute.xlu0 %839
      %843 = vset.pattern.permute.xlu0 0
      %844 = vperm.xlu0 %843, %v698
      %v845 = vpop.permute.xlu0 %844
      %848 = vset.pattern.permute.xlu0 0
      %849 = vperm.xlu0 %848, %v699
      %v850 = vpop.permute.xlu0 %849
      %853 = vset.pattern.permute.xlu0 0
      %854 = vperm.xlu0 %853, %v700
      %v855 = vpop.permute.xlu0 %854
      %858 = vset.pattern.permute.xlu0 0
      %859 = vperm.xlu0 %858, %v701
      %v860 = vpop.permute.xlu0 %859
      %863 = vset.pattern.permute.xlu0 0
      %864 = vperm.xlu0 %863, %v702
      %v865 = vpop.permute.xlu0 %864
      %868 = vset.pattern.permute.xlu0 0
      %869 = vperm.xlu0 %868, %v703
      %v870 = vpop.permute.xlu0 %869
      %873 = vset.pattern.permute.xlu0 0
      %874 = vperm.xlu0 %873, %v704
      %v875 = vpop.permute.xlu0 %874
      %878 = vset.pattern.permute.xlu0 0
      %879 = vperm.xlu0 %878, %v705
      %v880 = vpop.permute.xlu0 %879
      %883 = vset.pattern.permute.xlu0 0
      %884 = vperm.xlu0 %883, %v706
      %v885 = vpop.permute.xlu0 %884
      %888 = vset.pattern.permute.xlu0 0
      %889 = vperm.xlu0 %888, %v707
      %v890 = vpop.permute.xlu0 %889
      %893 = vset.pattern.permute.xlu0 0
      %894 = vperm.xlu0 %893, %v708
      %v895 = vpop.permute.xlu0 %894
      %898 = vset.pattern.permute.xlu0 0
      %899 = vperm.xlu0 %898, %v709
      %v900 = vpop.permute.xlu0 %899
      %903 = vset.pattern.permute.xlu0 0
      %904 = vperm.xlu0 %903, %v710
      %v905 = vpop.permute.xlu0 %904
      %908 = vset.pattern.permute.xlu0 0
      %909 = vperm.xlu0 %908, %v711
      %v910 = vpop.permute.xlu0 %909
      %913 = vset.pattern.permute.xlu0 0
      %914 = vperm.xlu0 %913, %v712
      %v915 = vpop.permute.xlu0 %914
      %918 = vset.pattern.permute.xlu0 0
      %919 = vperm.xlu0 %918, %v713
      %v920 = vpop.permute.xlu0 %919
      %923 = vset.pattern.permute.xlu0 0
      %924 = vperm.xlu0 %923, %v714
      %v925 = vpop.permute.xlu0 %924
      %928 = vset.pattern.permute.xlu0 0
      %929 = vperm.xlu0 %928, %v715
      %v930 = vpop.permute.xlu0 %929
      %933 = vset.pattern.permute.xlu0 0
      %934 = vperm.xlu0 %933, %v716
      %v935 = vpop.permute.xlu0 %934
      %938 = vset.pattern.permute.xlu0 0
      %939 = vperm.xlu0 %938, %v717
      %v940 = vpop.permute.xlu0 %939
      %943 = vset.pattern.permute.xlu0 0
      %944 = vperm.xlu0 %943, %v718
      %v945 = vpop.permute.xlu0 %944
      %948 = vset.pattern.permute.xlu0 0
      %949 = vperm.xlu0 %948, %v719
      %v950 = vpop.permute.xlu0 %949
      %953 = vset.pattern.permute.xlu0 0
      %954 = vperm.xlu0 %953, %v720
      %v955 = vpop.permute.xlu0 %954
      %958 = vset.pattern.permute.xlu0 0
      %959 = vperm.xlu0 %958, %v721
      %v960 = vpop.permute.xlu0 %959
      %963 = vset.pattern.permute.xlu0 0
      %964 = vperm.xlu0 %963, %v722
      %v965 = vpop.permute.xlu0 %964
      %968 = vset.pattern.permute.xlu0 0
      %969 = vperm.xlu0 %968, %v723
      %v970 = vpop.permute.xlu0 %969
      %973 = vset.pattern.permute.xlu0 0
      %974 = vperm.xlu0 %973, %v724
      %v975 = vpop.permute.xlu0 %974
      %978 = vset.pattern.permute.xlu0 0
      %979 = vperm.xlu0 %978, %v725
      %v980 = vpop.permute.xlu0 %979
      %983 = vset.pattern.permute.xlu0 0
      %984 = vperm.xlu0 %983, %v726
      %v985 = vpop.permute.xlu0 %984
      %988 = vset.pattern.permute.xlu0 0
      %989 = vperm.xlu0 %988, %v727
      %v990 = vpop.permute.xlu0 %989
      %993 = vset.pattern.permute.xlu0 0
      %994 = vperm.xlu0 %993, %v728
      %v995 = vpop.permute.xlu0 %994
      %998 = vset.pattern.permute.xlu0 0
      %999 = vperm.xlu0 %998, %v729
      %v1000 = vpop.permute.xlu0 %999
      %1003 = vset.pattern.permute.xlu0 0
      %1004 = vperm.xlu0 %1003, %v730
      %v1005 = vpop.permute.xlu0 %1004
      %1008 = vset.pattern.permute.xlu0 0
      %1009 = vperm.xlu0 %1008, %v731
      %v1010 = vpop.permute.xlu0 %1009
      %1013 = vset.pattern.permute.xlu0 0
      %1014 = vperm.xlu0 %1013, %v732
      %v1015 = vpop.permute.xlu0 %1014
      %1018 = vset.pattern.permute.xlu0 0
      %1019 = vperm.xlu0 %1018, %v733
      %v1020 = vpop.permute.xlu0 %1019
      %1023 = vset.pattern.permute.xlu0 0
      %1024 = vperm.xlu0 %1023, %v734
      %v1025 = vpop.permute.xlu0 %1024
      %1028 = vset.pattern.permute.xlu0 0
      %1029 = vperm.xlu0 %1028, %v735
      %v1030 = vpop.permute.xlu0 %1029
      %1033 = vset.pattern.permute.xlu0 0
      %1034 = vperm.xlu0 %1033, %v736
      %v1035 = vpop.permute.xlu0 %1034
      %1038 = vset.pattern.permute.xlu0 0
      %1039 = vperm.xlu0 %1038, %v737
      %v1040 = vpop.permute.xlu0 %1039
      %1043 = vset.pattern.permute.xlu0 0
      %1044 = vperm.xlu0 %1043, %v738
      %v1045 = vpop.permute.xlu0 %1044
      %1048 = vset.pattern.permute.xlu0 0
      %1049 = vperm.xlu0 %1048, %v739
      %v1050 = vpop.permute.xlu0 %1049
      %1053 = vset.pattern.permute.xlu0 0
      %1054 = vperm.xlu0 %1053, %v740
      %v1055 = vpop.permute.xlu0 %1054
      %1058 = vset.pattern.permute.xlu0 0
      %1059 = vperm.xlu0 %1058, %v741
      %v1060 = vpop.permute.xlu0 %1059
      %1063 = vset.pattern.permute.xlu0 0
      %1064 = vperm.xlu0 %1063, %v742
      %v1065 = vpop.permute.xlu0 %1064
      %1068 = vset.pattern.permute.xlu0 0
      %1069 = vperm.xlu0 %1068, %v743
      %v1070 = vpop.permute.xlu0 %1069
      %1073 = vset.pattern.permute.xlu0 0
      %1074 = vperm.xlu0 %1073, %v744
      %v1075 = vpop.permute.xlu0 %1074
      %1078 = vset.pattern.permute.xlu0 0
      %1079 = vperm.xlu0 %1078, %v745
      %v1080 = vpop.permute.xlu0 %1079
      %1083 = vset.pattern.permute.xlu0 0
      %1084 = vperm.xlu0 %1083, %v746
      %v1085 = vpop.permute.xlu0 %1084
      %1088 = vset.pattern.permute.xlu0 0
      %1089 = vperm.xlu0 %1088, %v747
      %v1090 = vpop.permute.xlu0 %1089
      %1093 = vset.pattern.permute.xlu0 0
      %1094 = vperm.xlu0 %1093, %v748
      %v1095 = vpop.permute.xlu0 %1094
      %1098 = vset.pattern.permute.xlu0 0
      %1099 = vperm.xlu0 %1098, %v749
      %v1100 = vpop.permute.xlu0 %1099
      %1103 = vset.pattern.permute.xlu0 0
      %1104 = vperm.xlu0 %1103, %v750
      %v1105 = vpop.permute.xlu0 %1104
      %1108 = vset.pattern.permute.xlu0 0
      %1109 = vperm.xlu0 %1108, %v751
      %v1110 = vpop.permute.xlu0 %1109
      %1113 = vset.pattern.permute.xlu0 0
      %1114 = vperm.xlu0 %1113, %v752
      %v1115 = vpop.permute.xlu0 %1114
      %1118 = vset.pattern.permute.xlu0 0
      %1119 = vperm.xlu0 %1118, %v753
      %v1120 = vpop.permute.xlu0 %1119
      %1123 = vset.pattern.permute.xlu0 0
      %1124 = vperm.xlu0 %1123, %v754
      %v1125 = vpop.permute.xlu0 %1124
      %1128 = vset.pattern.permute.xlu0 0
      %1129 = vperm.xlu0 %1128, %v755
      %v1130 = vpop.permute.xlu0 %1129
      %1133 = vset.pattern.permute.xlu0 0
      %1134 = vperm.xlu0 %1133, %v756
      %v1135 = vpop.permute.xlu0 %1134
      %1138 = vset.pattern.permute.xlu0 0
      %1139 = vperm.xlu0 %1138, %v757
      %v1140 = vpop.permute.xlu0 %1139
      %1143 = vset.pattern.permute.xlu0 0
      %1144 = vperm.xlu0 %1143, %v758
      %v1145 = vpop.permute.xlu0 %1144
      %1148 = vset.pattern.permute.xlu0 0
      %1149 = vperm.xlu0 %1148, %v759
      %v1150 = vpop.permute.xlu0 %1149
      %1153 = vset.pattern.permute.xlu0 0
      %1154 = vperm.xlu0 %1153, %v760
      %v1155 = vpop.permute.xlu0 %1154
      %1158 = vset.pattern.permute.xlu0 0
      %1159 = vperm.xlu0 %1158, %v761
      %v1160 = vpop.permute.xlu0 %1159
      %1163 = vset.pattern.permute.xlu0 0
      %1164 = vperm.xlu0 %1163, %v762
      %v1165 = vpop.permute.xlu0 %1164
      %1168 = vset.pattern.permute.xlu0 0
      %1169 = vperm.xlu0 %1168, %v763
      %v1170 = vpop.permute.xlu0 %1169
      %1173 = vset.pattern.permute.xlu0 0
      %1174 = vperm.xlu0 %1173, %v764
      %v1175 = vpop.permute.xlu0 %1174
      %1178 = vset.pattern.permute.xlu0 0
      %1179 = vperm.xlu0 %1178, %v765
      %v1180 = vpop.permute.xlu0 %1179
      %1183 = vset.pattern.permute.xlu0 0
      %1184 = vperm.xlu0 %1183, %v766
      %v1185 = vpop.permute.xlu0 %1184
      %1188 = vset.pattern.permute.xlu0 0
      %1189 = vperm.xlu0 %1188, %v767
      %v1190 = vpop.permute.xlu0 %1189
      %1193 = vset.pattern.permute.xlu0 0
      %1194 = vperm.xlu0 %1193, %v768
      %v1195 = vpop.permute.xlu0 %1194
      %1198 = vset.pattern.permute.xlu0 0
      %1199 = vperm.xlu0 %1198, %v769
      %v1200 = vpop.permute.xlu0 %1199
      %1203 = vset.pattern.permute.xlu0 0
      %1204 = vperm.xlu0 %1203, %v770
      %v1205 = vpop.permute.xlu0 %1204
      %1208 = vset.pattern.permute.xlu0 0
      %1209 = vperm.xlu0 %1208, %v771
      %v1210 = vpop.permute.xlu0 %1209
      %1213 = vset.pattern.permute.xlu0 0
      %1214 = vperm.xlu0 %1213, %v772
      %v1215 = vpop.permute.xlu0 %1214
      %1218 = vset.pattern.permute.xlu0 0
      %1219 = vperm.xlu0 %1218, %v773
      %v1220 = vpop.permute.xlu0 %1219
      %1223 = vset.pattern.permute.xlu0 0
      %1224 = vperm.xlu0 %1223, %v774
      %v1225 = vpop.permute.xlu0 %1224
      %1228 = vset.pattern.permute.xlu0 0
      %1229 = vperm.xlu0 %1228, %v775
      %v1230 = vpop.permute.xlu0 %1229
      %1233 = vset.pattern.permute.xlu0 0
      %1234 = vperm.xlu0 %1233, %v776
      %v1235 = vpop.permute.xlu0 %1234
      %1238 = vset.pattern.permute.xlu0 0
      %1239 = vperm.xlu0 %1238, %v777
      %v1240 = vpop.permute.xlu0 %1239
      %1243 = vset.pattern.permute.xlu0 0
      %1244 = vperm.xlu0 %1243, %v778
      %v1245 = vpop.permute.xlu0 %1244
      %1248 = vset.pattern.permute.xlu0 0
      %1249 = vperm.xlu0 %1248, %v779
      %v1250 = vpop.permute.xlu0 %1249
      %1253 = vset.pattern.permute.xlu0 0
      %1254 = vperm.xlu0 %1253, %v780
      %v1255 = vpop.permute.xlu0 %1254
      %1258 = vset.pattern.permute.xlu0 0
      %1259 = vperm.xlu0 %1258, %v781
      %v1260 = vpop.permute.xlu0 %1259
      %1263 = vset.pattern.permute.xlu0 0
      %1264 = vperm.xlu0 %1263, %v782
      %v1265 = vpop.permute.xlu0 %1264
      %1268 = vset.pattern.permute.xlu0 0
      %1269 = vperm.xlu0 %1268, %v783
      %v1270 = vpop.permute.xlu0 %1269
      %1273 = vset.pattern.permute.xlu0 0
      %1274 = vperm.xlu0 %1273, %v784
      %v1275 = vpop.permute.xlu0 %1274
      %1278 = vset.pattern.permute.xlu0 0
      %1279 = vperm.xlu0 %1278, %v785
      %v1280 = vpop.permute.xlu0 %1279
      %1283 = vset.pattern.permute.xlu0 0
      %1284 = vperm.xlu0 %1283, %v786
      %v1285 = vpop.permute.xlu0 %1284
      %1288 = vset.pattern.permute.xlu0 0
      %1289 = vperm.xlu0 %1288, %v787
      %v1290 = vpop.permute.xlu0 %1289
      %1293 = vset.pattern.permute.xlu0 0
      %1294 = vperm.xlu0 %1293, %v788
      %v1295 = vpop.permute.xlu0 %1294
      %1298 = vset.pattern.permute.xlu0 0
      %1299 = vperm.xlu0 %1298, %v789
      %v1300 = vpop.permute.xlu0 %1299
      %1303 = vset.pattern.permute.xlu0 0
      %1304 = vperm.xlu0 %1303, %v790
      %v1305 = vpop.permute.xlu0 %1304
      %1308 = vset.pattern.permute.xlu0 0
      %1309 = vperm.xlu0 %1308, %v791
      %v1310 = vpop.permute.xlu0 %1309
      %1313 = vset.pattern.permute.xlu0 0
      %1314 = vperm.xlu0 %1313, %v792
      %v1315 = vpop.permute.xlu0 %1314
      %1318 = vset.pattern.permute.xlu0 0
      %1319 = vperm.xlu0 %1318, %v793
      %v1320 = vpop.permute.xlu0 %1319
      %1323 = vset.pattern.permute.xlu0 0
      %1324 = vperm.xlu0 %1323, %v794
      %v1325 = vpop.permute.xlu0 %1324
      %1328 = vset.pattern.permute.xlu0 0
      %1329 = vperm.xlu0 %1328, %v795
      %v1330 = vpop.permute.xlu0 %1329
      %1333 = vset.pattern.permute.xlu0 0
      %1334 = vperm.xlu0 %1333, %v796
      %v1335 = vpop.permute.xlu0 %1334
      %1338 = vset.pattern.permute.xlu0 0
      %1339 = vperm.xlu0 %1338, %v797
      %v1340 = vpop.permute.xlu0 %1339
      %1343 = vset.pattern.permute.xlu0 0
      %1344 = vperm.xlu0 %1343, %v798
      %v1345 = vpop.permute.xlu0 %1344
      %1348 = vset.pattern.permute.xlu0 0
      %1349 = vperm.xlu0 %1348, %v799
      %v1350 = vpop.permute.xlu0 %1349
      %1353 = vset.pattern.permute.xlu0 0
      %1354 = vperm.xlu0 %1353, %v800
      %v1355 = vpop.permute.xlu0 %1354
      %1358 = vset.pattern.permute.xlu0 0
      %1359 = vperm.xlu0 %1358, %v801
      %v1360 = vpop.permute.xlu0 %1359
      %1363 = vset.pattern.permute.xlu0 0
      %1364 = vperm.xlu0 %1363, %v802
      %v1365 = vpop.permute.xlu0 %1364
      %1368 = vset.pattern.permute.xlu0 0
      %1369 = vperm.xlu0 %1368, %v803
      %v1370 = vpop.permute.xlu0 %1369
      %1373 = vset.pattern.permute.xlu0 0
      %1374 = vperm.xlu0 %1373, %v804
      %v1375 = vpop.permute.xlu0 %1374
      %1378 = vset.pattern.permute.xlu0 0
      %1379 = vperm.xlu0 %1378, %v805
      %v1380 = vpop.permute.xlu0 %1379
      %1383 = vset.pattern.permute.xlu0 0
      %1384 = vperm.xlu0 %1383, %v806
      %v1385 = vpop.permute.xlu0 %1384
      %1388 = vset.pattern.permute.xlu0 0
      %1389 = vperm.xlu0 %1388, %v807
      %v1390 = vpop.permute.xlu0 %1389
      %1393 = vset.pattern.permute.xlu0 0
      %1394 = vperm.xlu0 %1393, %v808
      %v1395 = vpop.permute.xlu0 %1394
      %1398 = vset.pattern.permute.xlu0 0
      %1399 = vperm.xlu0 %1398, %v809
      %v1400 = vpop.permute.xlu0 %1399
      %1403 = vset.pattern.permute.xlu0 0
      %1404 = vperm.xlu0 %1403, %v810
      %v1405 = vpop.permute.xlu0 %1404
      %1408 = vset.pattern.permute.xlu0 0
      %1409 = vperm.xlu0 %1408, %v811
      %v1410 = vpop.permute.xlu0 %1409
      %v1412 = vmul.f32 %v572, %v815
      %v1413 = vmul.f32 %v573, %v820
      %v1414 = vmul.f32 %v574, %v825
      %v1415 = vmul.f32 %v575, %v830
      %v1416 = vmul.f32 %v576, %v835
      %v1417 = vmul.f32 %v577, %v840
      %v1418 = vmul.f32 %v578, %v845
      %v1419 = vmul.f32 %v579, %v850
      %v1420 = vmul.f32 %v580, %v855
      %v1421 = vmul.f32 %v581, %v860
      %v1422 = vmul.f32 %v582, %v865
      %v1423 = vmul.f32 %v583, %v870
      %v1424 = vmul.f32 %v584, %v875
      %v1425 = vmul.f32 %v585, %v880
      %v1426 = vmul.f32 %v586, %v885
      %v1427 = vmul.f32 %v587, %v890
      %v1428 = vmul.f32 %v588, %v895
      %v1429 = vmul.f32 %v589, %v900
      %v1430 = vmul.f32 %v590, %v905
      %v1431 = vmul.f32 %v591, %v910
      %v1432 = vmul.f32 %v592, %v915
      %v1433 = vmul.f32 %v593, %v920
      %v1434 = vmul.f32 %v594, %v925
      %v1435 = vmul.f32 %v595, %v930
      %v1436 = vmul.f32 %v596, %v935
      %v1437 = vmul.f32 %v597, %v940
      %v1438 = vmul.f32 %v598, %v945
      %v1439 = vmul.f32 %v599, %v950
      %v1440 = vmul.f32 %v600, %v955
      %v1441 = vmul.f32 %v601, %v960
      %v1442 = vmul.f32 %v602, %v965
      %v1443 = vmul.f32 %v603, %v970
      %v1444 = vmul.f32 %v604, %v975
      %v1445 = vmul.f32 %v605, %v980
      %v1446 = vmul.f32 %v606, %v985
      %v1447 = vmul.f32 %v607, %v990
      %v1448 = vmul.f32 %v608, %v995
      %v1449 = vmul.f32 %v609, %v1000
      %v1450 = vmul.f32 %v610, %v1005
      %v1451 = vmul.f32 %v611, %v1010
      %v1452 = vmul.f32 %v612, %v1015
      %v1453 = vmul.f32 %v613, %v1020
      %v1454 = vmul.f32 %v614, %v1025
      %v1455 = vmul.f32 %v615, %v1030
      %v1456 = vmul.f32 %v616, %v1035
      %v1457 = vmul.f32 %v617, %v1040
      %v1458 = vmul.f32 %v618, %v1045
      %v1459 = vmul.f32 %v619, %v1050
      %v1460 = vmul.f32 %v620, %v1055
      %v1461 = vmul.f32 %v621, %v1060
      %v1462 = vmul.f32 %v622, %v1065
      %v1463 = vmul.f32 %v623, %v1070
      %v1464 = vmul.f32 %v624, %v1075
      %v1465 = vmul.f32 %v625, %v1080
      %v1466 = vmul.f32 %v626, %v1085
      %v1467 = vmul.f32 %v627, %v1090
      %v1468 = vmul.f32 %v628, %v1095
      %v1469 = vmul.f32 %v629, %v1100
      %v1470 = vmul.f32 %v630, %v1105
      %v1471 = vmul.f32 %v631, %v1110
      %v1472 = vmul.f32 %v632, %v1115
      %v1473 = vmul.f32 %v633, %v1120
      %v1474 = vmul.f32 %v634, %v1125
      %v1475 = vmul.f32 %v635, %v1130
      %v1476 = vmul.f32 %v636, %v1135
      %v1477 = vmul.f32 %v637, %v1140
      %v1478 = vmul.f32 %v638, %v1145
      %v1479 = vmul.f32 %v639, %v1150
      %v1480 = vmul.f32 %v640, %v1155
      %v1481 = vmul.f32 %v641, %v1160
      %v1482 = vmul.f32 %v642, %v1165
      %v1483 = vmul.f32 %v643, %v1170
      %v1484 = vmul.f32 %v644, %v1175
      %v1485 = vmul.f32 %v645, %v1180
      %v1486 = vmul.f32 %v646, %v1185
      %v1487 = vmul.f32 %v647, %v1190
      %v1488 = vmul.f32 %v648, %v1195
      %v1489 = vmul.f32 %v649, %v1200
      %v1490 = vmul.f32 %v650, %v1205
      %v1491 = vmul.f32 %v651, %v1210
      %v1492 = vmul.f32 %v652, %v1215
      %v1493 = vmul.f32 %v653, %v1220
      %v1494 = vmul.f32 %v654, %v1225
      %v1495 = vmul.f32 %v655, %v1230
      %v1496 = vmul.f32 %v656, %v1235
      %v1497 = vmul.f32 %v657, %v1240
      %v1498 = vmul.f32 %v658, %v1245
      %v1499 = vmul.f32 %v659, %v1250
      %v1500 = vmul.f32 %v660, %v1255
      %v1501 = vmul.f32 %v661, %v1260
      %v1502 = vmul.f32 %v662, %v1265
      %v1503 = vmul.f32 %v663, %v1270
      %v1504 = vmul.f32 %v664, %v1275
      %v1505 = vmul.f32 %v665, %v1280
      %v1506 = vmul.f32 %v666, %v1285
      %v1507 = vmul.f32 %v667, %v1290
      %v1508 = vmul.f32 %v668, %v1295
      %v1509 = vmul.f32 %v669, %v1300
      %v1510 = vmul.f32 %v670, %v1305
      %v1511 = vmul.f32 %v671, %v1310
      %v1512 = vmul.f32 %v672, %v1315
      %v1513 = vmul.f32 %v673, %v1320
      %v1514 = vmul.f32 %v674, %v1325
      %v1515 = vmul.f32 %v675, %v1330
      %v1516 = vmul.f32 %v676, %v1335
      %v1517 = vmul.f32 %v677, %v1340
      %v1518 = vmul.f32 %v678, %v1345
      %v1519 = vmul.f32 %v679, %v1350
      %v1520 = vmul.f32 %v680, %v1355
      %v1521 = vmul.f32 %v681, %v1360
      %v1522 = vmul.f32 %v682, %v1365
      %v1523 = vmul.f32 %v683, %v1370
      %v1524 = vmul.f32 %v684, %v1375
      %v1525 = vmul.f32 %v685, %v1380
      %v1526 = vmul.f32 %v686, %v1385
      %v1527 = vmul.f32 %v687, %v1390
      %v1528 = vmul.f32 %v688, %v1395
      %v1529 = vmul.f32 %v689, %v1400
      %v1530 = vmul.f32 %v690, %v1405
      %v1531 = vmul.f32 %v691, %v1410
      %vm1652 = vcmask 1046528
      %v1653 = vrot.slane %v1412, 1
      %v1654 = vrot.slane %v1413, 1
      %v1655 = vsel %vm1652, %v1653, %v1654
      %v1656 = vrot.slane %v1414, 1
      %v1657 = vrot.slane %v1415, 1
      %v1658 = vsel %vm1652, %v1656, %v1657
      %v1659 = vrot.slane %v1416, 1
      %v1660 = vrot.slane %v1417, 1
      %v1661 = vsel %vm1652, %v1659, %v1660
      %v1662 = vrot.slane %v1418, 1
      %v1663 = vrot.slane %v1419, 1
      %v1664 = vsel %vm1652, %v1662, %v1663
      %v1665 = vrot.slane %v1420, 1
      %v1666 = vrot.slane %v1421, 1
      %v1667 = vsel %vm1652, %v1665, %v1666
      %v1668 = vrot.slane %v1422, 1
      %v1669 = vrot.slane %v1423, 1
      %v1670 = vsel %vm1652, %v1668, %v1669
      %v1671 = vrot.slane %v1424, 1
      %v1672 = vrot.slane %v1425, 1
      %v1673 = vsel %vm1652, %v1671, %v1672
      %v1674 = vrot.slane %v1426, 1
      %v1675 = vrot.slane %v1427, 1
      %v1676 = vsel %vm1652, %v1674, %v1675
      %v1677 = vrot.slane %v1428, 1
      %v1678 = vrot.slane %v1429, 1
      %v1679 = vsel %vm1652, %v1677, %v1678
      %v1680 = vrot.slane %v1430, 1
      %v1681 = vrot.slane %v1431, 1
      %v1682 = vsel %vm1652, %v1680, %v1681
      %v1683 = vrot.slane %v1432, 1
      %v1684 = vrot.slane %v1433, 1
      %v1685 = vsel %vm1652, %v1683, %v1684
      %v1686 = vrot.slane %v1434, 1
      %v1687 = vrot.slane %v1435, 1
      %v1688 = vsel %vm1652, %v1686, %v1687
      %v1689 = vrot.slane %v1436, 1
      %v1690 = vrot.slane %v1437, 1
      %v1691 = vsel %vm1652, %v1689, %v1690
      %v1692 = vrot.slane %v1438, 1
      %v1693 = vrot.slane %v1439, 1
      %v1694 = vsel %vm1652, %v1692, %v1693
      %v1695 = vrot.slane %v1440, 1
      %v1696 = vrot.slane %v1441, 1
      %v1697 = vsel %vm1652, %v1695, %v1696
      %v1698 = vrot.slane %v1442, 1
      %v1699 = vrot.slane %v1443, 1
      %v1700 = vsel %vm1652, %v1698, %v1699
      %v1701 = vrot.slane %v1444, 1
      %v1702 = vrot.slane %v1445, 1
      %v1703 = vsel %vm1652, %v1701, %v1702
      %v1704 = vrot.slane %v1446, 1
      %v1705 = vrot.slane %v1447, 1
      %v1706 = vsel %vm1652, %v1704, %v1705
      %v1707 = vrot.slane %v1448, 1
      %v1708 = vrot.slane %v1449, 1
      %v1709 = vsel %vm1652, %v1707, %v1708
      %v1710 = vrot.slane %v1450, 1
      %v1711 = vrot.slane %v1451, 1
      %v1712 = vsel %vm1652, %v1710, %v1711
      %v1713 = vrot.slane %v1452, 1
      %v1714 = vrot.slane %v1453, 1
      %v1715 = vsel %vm1652, %v1713, %v1714
      %v1716 = vrot.slane %v1454, 1
      %v1717 = vrot.slane %v1455, 1
      %v1718 = vsel %vm1652, %v1716, %v1717
      %v1719 = vrot.slane %v1456, 1
      %v1720 = vrot.slane %v1457, 1
      %v1721 = vsel %vm1652, %v1719, %v1720
      %v1722 = vrot.slane %v1458, 1
      %v1723 = vrot.slane %v1459, 1
      %v1724 = vsel %vm1652, %v1722, %v1723
      %v1725 = vrot.slane %v1460, 1
      %v1726 = vrot.slane %v1461, 1
      %v1727 = vsel %vm1652, %v1725, %v1726
      %v1728 = vrot.slane %v1462, 1
      %v1729 = vrot.slane %v1463, 1
      %v1730 = vsel %vm1652, %v1728, %v1729
      %v1731 = vrot.slane %v1464, 1
      %v1732 = vrot.slane %v1465, 1
      %v1733 = vsel %vm1652, %v1731, %v1732
      %v1734 = vrot.slane %v1466, 1
      %v1735 = vrot.slane %v1467, 1
      %v1736 = vsel %vm1652, %v1734, %v1735
      %v1737 = vrot.slane %v1468, 1
      %v1738 = vrot.slane %v1469, 1
      %v1739 = vsel %vm1652, %v1737, %v1738
      %v1740 = vrot.slane %v1470, 1
      %v1741 = vrot.slane %v1471, 1
      %v1742 = vsel %vm1652, %v1740, %v1741
      %v1743 = vrot.slane %v1472, 1
      %v1744 = vrot.slane %v1473, 1
      %v1745 = vsel %vm1652, %v1743, %v1744
      %v1746 = vrot.slane %v1474, 1
      %v1747 = vrot.slane %v1475, 1
      %v1748 = vsel %vm1652, %v1746, %v1747
      %v1749 = vrot.slane %v1476, 1
      %v1750 = vrot.slane %v1477, 1
      %v1751 = vsel %vm1652, %v1749, %v1750
      %v1752 = vrot.slane %v1478, 1
      %v1753 = vrot.slane %v1479, 1
      %v1754 = vsel %vm1652, %v1752, %v1753
      %v1755 = vrot.slane %v1480, 1
      %v1756 = vrot.slane %v1481, 1
      %v1757 = vsel %vm1652, %v1755, %v1756
      %v1758 = vrot.slane %v1482, 1
      %v1759 = vrot.slane %v1483, 1
      %v1760 = vsel %vm1652, %v1758, %v1759
      %v1761 = vrot.slane %v1484, 1
      %v1762 = vrot.slane %v1485, 1
      %v1763 = vsel %vm1652, %v1761, %v1762
      %v1764 = vrot.slane %v1486, 1
      %v1765 = vrot.slane %v1487, 1
      %v1766 = vsel %vm1652, %v1764, %v1765
      %v1767 = vrot.slane %v1488, 1
      %v1768 = vrot.slane %v1489, 1
      %v1769 = vsel %vm1652, %v1767, %v1768
      %v1770 = vrot.slane %v1490, 1
      %v1771 = vrot.slane %v1491, 1
      %v1772 = vsel %vm1652, %v1770, %v1771
      %v1773 = vrot.slane %v1492, 1
      %v1774 = vrot.slane %v1493, 1
      %v1775 = vsel %vm1652, %v1773, %v1774
      %v1776 = vrot.slane %v1494, 1
      %v1777 = vrot.slane %v1495, 1
      %v1778 = vsel %vm1652, %v1776, %v1777
      %v1779 = vrot.slane %v1496, 1
      %v1780 = vrot.slane %v1497, 1
      %v1781 = vsel %vm1652, %v1779, %v1780
      %v1782 = vrot.slane %v1498, 1
      %v1783 = vrot.slane %v1499, 1
      %v1784 = vsel %vm1652, %v1782, %v1783
      %v1785 = vrot.slane %v1500, 1
      %v1786 = vrot.slane %v1501, 1
      %v1787 = vsel %vm1652, %v1785, %v1786
      %v1788 = vrot.slane %v1502, 1
      %v1789 = vrot.slane %v1503, 1
      %v1790 = vsel %vm1652, %v1788, %v1789
      %v1791 = vrot.slane %v1504, 1
      %v1792 = vrot.slane %v1505, 1
      %v1793 = vsel %vm1652, %v1791, %v1792
      %v1794 = vrot.slane %v1506, 1
      %v1795 = vrot.slane %v1507, 1
      %v1796 = vsel %vm1652, %v1794, %v1795
      %v1797 = vrot.slane %v1508, 1
      %v1798 = vrot.slane %v1509, 1
      %v1799 = vsel %vm1652, %v1797, %v1798
      %v1800 = vrot.slane %v1510, 1
      %v1801 = vrot.slane %v1511, 1
      %v1802 = vsel %vm1652, %v1800, %v1801
      %v1803 = vrot.slane %v1512, 1
      %v1804 = vrot.slane %v1513, 1
      %v1805 = vsel %vm1652, %v1803, %v1804
      %v1806 = vrot.slane %v1514, 1
      %v1807 = vrot.slane %v1515, 1
      %v1808 = vsel %vm1652, %v1806, %v1807
      %v1809 = vrot.slane %v1516, 1
      %v1810 = vrot.slane %v1517, 1
      %v1811 = vsel %vm1652, %v1809, %v1810
      %v1812 = vrot.slane %v1518, 1
      %v1813 = vrot.slane %v1519, 1
      %v1814 = vsel %vm1652, %v1812, %v1813
      %v1815 = vrot.slane %v1520, 1
      %v1816 = vrot.slane %v1521, 1
      %v1817 = vsel %vm1652, %v1815, %v1816
      %v1818 = vrot.slane %v1522, 1
      %v1819 = vrot.slane %v1523, 1
      %v1820 = vsel %vm1652, %v1818, %v1819
      %v1821 = vrot.slane %v1524, 1
      %v1822 = vrot.slane %v1525, 1
      %v1823 = vsel %vm1652, %v1821, %v1822
      %v1824 = vrot.slane %v1526, 1
      %v1825 = vrot.slane %v1527, 1
      %v1826 = vsel %vm1652, %v1824, %v1825
      %v1827 = vrot.slane %v1528, 1
      %v1828 = vrot.slane %v1529, 1
      %v1829 = vsel %vm1652, %v1827, %v1828
      %v1830 = vrot.slane %v1530, 1
      %v1831 = vrot.slane %v1531, 1
      %v1832 = vsel %vm1652, %v1830, %v1831
      %v1893 = vmax.f32 %v1412, %v1655
      %v1894 = vmax.f32 %v1414, %v1658
      %v1895 = vmax.f32 %v1416, %v1661
      %v1896 = vmax.f32 %v1418, %v1664
      %v1897 = vmax.f32 %v1420, %v1667
      %v1898 = vmax.f32 %v1422, %v1670
      %v1899 = vmax.f32 %v1424, %v1673
      %v1900 = vmax.f32 %v1426, %v1676
      %v1901 = vmax.f32 %v1428, %v1679
      %v1902 = vmax.f32 %v1430, %v1682
      %v1903 = vmax.f32 %v1432, %v1685
      %v1904 = vmax.f32 %v1434, %v1688
      %v1905 = vmax.f32 %v1436, %v1691
      %v1906 = vmax.f32 %v1438, %v1694
      %v1907 = vmax.f32 %v1440, %v1697
      %v1908 = vmax.f32 %v1442, %v1700
      %v1909 = vmax.f32 %v1444, %v1703
      %v1910 = vmax.f32 %v1446, %v1706
      %v1911 = vmax.f32 %v1448, %v1709
      %v1912 = vmax.f32 %v1450, %v1712
      %v1913 = vmax.f32 %v1452, %v1715
      %v1914 = vmax.f32 %v1454, %v1718
      %v1915 = vmax.f32 %v1456, %v1721
      %v1916 = vmax.f32 %v1458, %v1724
      %v1917 = vmax.f32 %v1460, %v1727
      %v1918 = vmax.f32 %v1462, %v1730
      %v1919 = vmax.f32 %v1464, %v1733
      %v1920 = vmax.f32 %v1466, %v1736
      %v1921 = vmax.f32 %v1468, %v1739
      %v1922 = vmax.f32 %v1470, %v1742
      %v1923 = vmax.f32 %v1472, %v1745
      %v1924 = vmax.f32 %v1474, %v1748
      %v1925 = vmax.f32 %v1476, %v1751
      %v1926 = vmax.f32 %v1478, %v1754
      %v1927 = vmax.f32 %v1480, %v1757
      %v1928 = vmax.f32 %v1482, %v1760
      %v1929 = vmax.f32 %v1484, %v1763
      %v1930 = vmax.f32 %v1486, %v1766
      %v1931 = vmax.f32 %v1488, %v1769
      %v1932 = vmax.f32 %v1490, %v1772
      %v1933 = vmax.f32 %v1492, %v1775
      %v1934 = vmax.f32 %v1494, %v1778
      %v1935 = vmax.f32 %v1496, %v1781
      %v1936 = vmax.f32 %v1498, %v1784
      %v1937 = vmax.f32 %v1500, %v1787
      %v1938 = vmax.f32 %v1502, %v1790
      %v1939 = vmax.f32 %v1504, %v1793
      %v1940 = vmax.f32 %v1506, %v1796
      %v1941 = vmax.f32 %v1508, %v1799
      %v1942 = vmax.f32 %v1510, %v1802
      %v1943 = vmax.f32 %v1512, %v1805
      %v1944 = vmax.f32 %v1514, %v1808
      %v1945 = vmax.f32 %v1516, %v1811
      %v1946 = vmax.f32 %v1518, %v1814
      %v1947 = vmax.f32 %v1520, %v1817
      %v1948 = vmax.f32 %v1522, %v1820
      %v1949 = vmax.f32 %v1524, %v1823
      %v1950 = vmax.f32 %v1526, %v1826
      %v1951 = vmax.f32 %v1528, %v1829
      %v1952 = vmax.f32 %v1530, %v1832
      %vm1953 = vcmask 1045504
      %v1954 = vrot.slane %v1412, 2
      %v1955 = vrot.slane %v1413, 2
      %v1956 = vsel %vm1953, %v1954, %v1955
      %v1957 = vrot.slane %v1414, 2
      %v1958 = vrot.slane %v1415, 2
      %v1959 = vsel %vm1953, %v1957, %v1958
      %v1960 = vrot.slane %v1416, 2
      %v1961 = vrot.slane %v1417, 2
      %v1962 = vsel %vm1953, %v1960, %v1961
      %v1963 = vrot.slane %v1418, 2
      %v1964 = vrot.slane %v1419, 2
      %v1965 = vsel %vm1953, %v1963, %v1964
      %v1966 = vrot.slane %v1420, 2
      %v1967 = vrot.slane %v1421, 2
      %v1968 = vsel %vm1953, %v1966, %v1967
      %v1969 = vrot.slane %v1422, 2
      %v1970 = vrot.slane %v1423, 2
      %v1971 = vsel %vm1953, %v1969, %v1970
      %v1972 = vrot.slane %v1424, 2
      %v1973 = vrot.slane %v1425, 2
      %v1974 = vsel %vm1953, %v1972, %v1973
      %v1975 = vrot.slane %v1426, 2
      %v1976 = vrot.slane %v1427, 2
      %v1977 = vsel %vm1953, %v1975, %v1976
      %v1978 = vrot.slane %v1428, 2
      %v1979 = vrot.slane %v1429, 2
      %v1980 = vsel %vm1953, %v1978, %v1979
      %v1981 = vrot.slane %v1430, 2
      %v1982 = vrot.slane %v1431, 2
      %v1983 = vsel %vm1953, %v1981, %v1982
      %v1984 = vrot.slane %v1432, 2
      %v1985 = vrot.slane %v1433, 2
      %v1986 = vsel %vm1953, %v1984, %v1985
      %v1987 = vrot.slane %v1434, 2
      %v1988 = vrot.slane %v1435, 2
      %v1989 = vsel %vm1953, %v1987, %v1988
      %v1990 = vrot.slane %v1436, 2
      %v1991 = vrot.slane %v1437, 2
      %v1992 = vsel %vm1953, %v1990, %v1991
      %v1993 = vrot.slane %v1438, 2
      %v1994 = vrot.slane %v1439, 2
      %v1995 = vsel %vm1953, %v1993, %v1994
      %v1996 = vrot.slane %v1440, 2
      %v1997 = vrot.slane %v1441, 2
      %v1998 = vsel %vm1953, %v1996, %v1997
      %v1999 = vrot.slane %v1442, 2
      %v2000 = vrot.slane %v1443, 2
      %v2001 = vsel %vm1953, %v1999, %v2000
      %v2002 = vrot.slane %v1444, 2
      %v2003 = vrot.slane %v1445, 2
      %v2004 = vsel %vm1953, %v2002, %v2003
      %v2005 = vrot.slane %v1446, 2
      %v2006 = vrot.slane %v1447, 2
      %v2007 = vsel %vm1953, %v2005, %v2006
      %v2008 = vrot.slane %v1448, 2
      %v2009 = vrot.slane %v1449, 2
      %v2010 = vsel %vm1953, %v2008, %v2009
      %v2011 = vrot.slane %v1450, 2
      %v2012 = vrot.slane %v1451, 2
      %v2013 = vsel %vm1953, %v2011, %v2012
      %v2014 = vrot.slane %v1452, 2
      %v2015 = vrot.slane %v1453, 2
      %v2016 = vsel %vm1953, %v2014, %v2015
      %v2017 = vrot.slane %v1454, 2
      %v2018 = vrot.slane %v1455, 2
      %v2019 = vsel %vm1953, %v2017, %v2018
      %v2020 = vrot.slane %v1456, 2
      %v2021 = vrot.slane %v1457, 2
      %v2022 = vsel %vm1953, %v2020, %v2021
      %v2023 = vrot.slane %v1458, 2
      %v2024 = vrot.slane %v1459, 2
      %v2025 = vsel %vm1953, %v2023, %v2024
      %v2026 = vrot.slane %v1460, 2
      %v2027 = vrot.slane %v1461, 2
      %v2028 = vsel %vm1953, %v2026, %v2027
      %v2029 = vrot.slane %v1462, 2
      %v2030 = vrot.slane %v1463, 2
      %v2031 = vsel %vm1953, %v2029, %v2030
      %v2032 = vrot.slane %v1464, 2
      %v2033 = vrot.slane %v1465, 2
      %v2034 = vsel %vm1953, %v2032, %v2033
      %v2035 = vrot.slane %v1466, 2
      %v2036 = vrot.slane %v1467, 2
      %v2037 = vsel %vm1953, %v2035, %v2036
      %v2038 = vrot.slane %v1468, 2
      %v2039 = vrot.slane %v1469, 2
      %v2040 = vsel %vm1953, %v2038, %v2039
      %v2041 = vrot.slane %v1470, 2
      %v2042 = vrot.slane %v1471, 2
      %v2043 = vsel %vm1953, %v2041, %v2042
      %v2044 = vrot.slane %v1472, 2
      %v2045 = vrot.slane %v1473, 2
      %v2046 = vsel %vm1953, %v2044, %v2045
      %v2047 = vrot.slane %v1474, 2
      %v2048 = vrot.slane %v1475, 2
      %v2049 = vsel %vm1953, %v2047, %v2048
      %v2050 = vrot.slane %v1476, 2
      %v2051 = vrot.slane %v1477, 2
      %v2052 = vsel %vm1953, %v2050, %v2051
      %v2053 = vrot.slane %v1478, 2
      %v2054 = vrot.slane %v1479, 2
      %v2055 = vsel %vm1953, %v2053, %v2054
      %v2056 = vrot.slane %v1480, 2
      %v2057 = vrot.slane %v1481, 2
      %v2058 = vsel %vm1953, %v2056, %v2057
      %v2059 = vrot.slane %v1482, 2
      %v2060 = vrot.slane %v1483, 2
      %v2061 = vsel %vm1953, %v2059, %v2060
      %v2062 = vrot.slane %v1484, 2
      %v2063 = vrot.slane %v1485, 2
      %v2064 = vsel %vm1953, %v2062, %v2063
      %v2065 = vrot.slane %v1486, 2
      %v2066 = vrot.slane %v1487, 2
      %v2067 = vsel %vm1953, %v2065, %v2066
      %v2068 = vrot.slane %v1488, 2
      %v2069 = vrot.slane %v1489, 2
      %v2070 = vsel %vm1953, %v2068, %v2069
      %v2071 = vrot.slane %v1490, 2
      %v2072 = vrot.slane %v1491, 2
      %v2073 = vsel %vm1953, %v2071, %v2072
      %v2074 = vrot.slane %v1492, 2
      %v2075 = vrot.slane %v1493, 2
      %v2076 = vsel %vm1953, %v2074, %v2075
      %v2077 = vrot.slane %v1494, 2
      %v2078 = vrot.slane %v1495, 2
      %v2079 = vsel %vm1953, %v2077, %v2078
      %v2080 = vrot.slane %v1496, 2
      %v2081 = vrot.slane %v1497, 2
      %v2082 = vsel %vm1953, %v2080, %v2081
      %v2083 = vrot.slane %v1498, 2
      %v2084 = vrot.slane %v1499, 2
      %v2085 = vsel %vm1953, %v2083, %v2084
      %v2086 = vrot.slane %v1500, 2
      %v2087 = vrot.slane %v1501, 2
      %v2088 = vsel %vm1953, %v2086, %v2087
      %v2089 = vrot.slane %v1502, 2
      %v2090 = vrot.slane %v1503, 2
      %v2091 = vsel %vm1953, %v2089, %v2090
      %v2092 = vrot.slane %v1504, 2
      %v2093 = vrot.slane %v1505, 2
      %v2094 = vsel %vm1953, %v2092, %v2093
      %v2095 = vrot.slane %v1506, 2
      %v2096 = vrot.slane %v1507, 2
      %v2097 = vsel %vm1953, %v2095, %v2096
      %v2098 = vrot.slane %v1508, 2
      %v2099 = vrot.slane %v1509, 2
      %v2100 = vsel %vm1953, %v2098, %v2099
      %v2101 = vrot.slane %v1510, 2
      %v2102 = vrot.slane %v1511, 2
      %v2103 = vsel %vm1953, %v2101, %v2102
      %v2104 = vrot.slane %v1512, 2
      %v2105 = vrot.slane %v1513, 2
      %v2106 = vsel %vm1953, %v2104, %v2105
      %v2107 = vrot.slane %v1514, 2
      %v2108 = vrot.slane %v1515, 2
      %v2109 = vsel %vm1953, %v2107, %v2108
      %v2110 = vrot.slane %v1516, 2
      %v2111 = vrot.slane %v1517, 2
      %v2112 = vsel %vm1953, %v2110, %v2111
      %v2113 = vrot.slane %v1518, 2
      %v2114 = vrot.slane %v1519, 2
      %v2115 = vsel %vm1953, %v2113, %v2114
      %v2116 = vrot.slane %v1520, 2
      %v2117 = vrot.slane %v1521, 2
      %v2118 = vsel %vm1953, %v2116, %v2117
      %v2119 = vrot.slane %v1522, 2
      %v2120 = vrot.slane %v1523, 2
      %v2121 = vsel %vm1953, %v2119, %v2120
      %v2122 = vrot.slane %v1524, 2
      %v2123 = vrot.slane %v1525, 2
      %v2124 = vsel %vm1953, %v2122, %v2123
      %v2125 = vrot.slane %v1526, 2
      %v2126 = vrot.slane %v1527, 2
      %v2127 = vsel %vm1953, %v2125, %v2126
      %v2128 = vrot.slane %v1528, 2
      %v2129 = vrot.slane %v1529, 2
      %v2130 = vsel %vm1953, %v2128, %v2129
      %v2131 = vrot.slane %v1530, 2
      %v2132 = vrot.slane %v1531, 2
      %v2133 = vsel %vm1953, %v2131, %v2132
      %v2194 = vmax.f32 %v1893, %v1956
      %v2195 = vmax.f32 %v1894, %v1959
      %v2196 = vmax.f32 %v1895, %v1962
      %v2197 = vmax.f32 %v1896, %v1965
      %v2198 = vmax.f32 %v1897, %v1968
      %v2199 = vmax.f32 %v1898, %v1971
      %v2200 = vmax.f32 %v1899, %v1974
      %v2201 = vmax.f32 %v1900, %v1977
      %v2202 = vmax.f32 %v1901, %v1980
      %v2203 = vmax.f32 %v1902, %v1983
      %v2204 = vmax.f32 %v1903, %v1986
      %v2205 = vmax.f32 %v1904, %v1989
      %v2206 = vmax.f32 %v1905, %v1992
      %v2207 = vmax.f32 %v1906, %v1995
      %v2208 = vmax.f32 %v1907, %v1998
      %v2209 = vmax.f32 %v1908, %v2001
      %v2210 = vmax.f32 %v1909, %v2004
      %v2211 = vmax.f32 %v1910, %v2007
      %v2212 = vmax.f32 %v1911, %v2010
      %v2213 = vmax.f32 %v1912, %v2013
      %v2214 = vmax.f32 %v1913, %v2016
      %v2215 = vmax.f32 %v1914, %v2019
      %v2216 = vmax.f32 %v1915, %v2022
      %v2217 = vmax.f32 %v1916, %v2025
      %v2218 = vmax.f32 %v1917, %v2028
      %v2219 = vmax.f32 %v1918, %v2031
      %v2220 = vmax.f32 %v1919, %v2034
      %v2221 = vmax.f32 %v1920, %v2037
      %v2222 = vmax.f32 %v1921, %v2040
      %v2223 = vmax.f32 %v1922, %v2043
      %v2224 = vmax.f32 %v1923, %v2046
      %v2225 = vmax.f32 %v1924, %v2049
      %v2226 = vmax.f32 %v1925, %v2052
      %v2227 = vmax.f32 %v1926, %v2055
      %v2228 = vmax.f32 %v1927, %v2058
      %v2229 = vmax.f32 %v1928, %v2061
      %v2230 = vmax.f32 %v1929, %v2064
      %v2231 = vmax.f32 %v1930, %v2067
      %v2232 = vmax.f32 %v1931, %v2070
      %v2233 = vmax.f32 %v1932, %v2073
      %v2234 = vmax.f32 %v1933, %v2076
      %v2235 = vmax.f32 %v1934, %v2079
      %v2236 = vmax.f32 %v1935, %v2082
      %v2237 = vmax.f32 %v1936, %v2085
      %v2238 = vmax.f32 %v1937, %v2088
      %v2239 = vmax.f32 %v1938, %v2091
      %v2240 = vmax.f32 %v1939, %v2094
      %v2241 = vmax.f32 %v1940, %v2097
      %v2242 = vmax.f32 %v1941, %v2100
      %v2243 = vmax.f32 %v1942, %v2103
      %v2244 = vmax.f32 %v1943, %v2106
      %v2245 = vmax.f32 %v1944, %v2109
      %v2246 = vmax.f32 %v1945, %v2112
      %v2247 = vmax.f32 %v1946, %v2115
      %v2248 = vmax.f32 %v1947, %v2118
      %v2249 = vmax.f32 %v1948, %v2121
      %v2250 = vmax.f32 %v1949, %v2124
      %v2251 = vmax.f32 %v1950, %v2127
      %v2252 = vmax.f32 %v1951, %v2130
      %v2253 = vmax.f32 %v1952, %v2133
      %v2254 = vmax.f32 %v2194, %v2195
      %v2255 = vmax.f32 %v2195, %v2196
      %v2256 = vmax.f32 %v2196, %v2197
      %v2257 = vmax.f32 %v2197, %v2198
      %v2258 = vmax.f32 %v2198, %v2199
      %v2259 = vmax.f32 %v2199, %v2200
      %v2260 = vmax.f32 %v2200, %v2201
      %v2261 = vmax.f32 %v2201, %v2202
      %v2262 = vmax.f32 %v2204, %v2205
      %v2263 = vmax.f32 %v2205, %v2206
      %v2264 = vmax.f32 %v2206, %v2207
      %v2265 = vmax.f32 %v2207, %v2208
      %v2266 = vmax.f32 %v2208, %v2209
      %v2267 = vmax.f32 %v2209, %v2210
      %v2268 = vmax.f32 %v2210, %v2211
      %v2269 = vmax.f32 %v2211, %v2212
      %v2270 = vmax.f32 %v2214, %v2215
      %v2271 = vmax.f32 %v2215, %v2216
      %v2272 = vmax.f32 %v2216, %v2217
      %v2273 = vmax.f32 %v2217, %v2218
      %v2274 = vmax.f32 %v2218, %v2219
      %v2275 = vmax.f32 %v2219, %v2220
      %v2276 = vmax.f32 %v2220, %v2221
      %v2277 = vmax.f32 %v2221, %v2222
      %v2278 = vmax.f32 %v2224, %v2225
      %v2279 = vmax.f32 %v2225, %v2226
      %v2280 = vmax.f32 %v2226, %v2227
      %v2281 = vmax.f32 %v2227, %v2228
      %v2282 = vmax.f32 %v2228, %v2229
      %v2283 = vmax.f32 %v2229, %v2230
      %v2284 = vmax.f32 %v2230, %v2231
      %v2285 = vmax.f32 %v2231, %v2232
      %v2286 = vmax.f32 %v2234, %v2235
      %v2287 = vmax.f32 %v2235, %v2236
      %v2288 = vmax.f32 %v2236, %v2237
      %v2289 = vmax.f32 %v2237, %v2238
      %v2290 = vmax.f32 %v2238, %v2239
      %v2291 = vmax.f32 %v2239, %v2240
      %v2292 = vmax.f32 %v2240, %v2241
      %v2293 = vmax.f32 %v2241, %v2242
      %v2294 = vmax.f32 %v2244, %v2245
      %v2295 = vmax.f32 %v2245, %v2246
      %v2296 = vmax.f32 %v2246, %v2247
      %v2297 = vmax.f32 %v2247, %v2248
      %v2298 = vmax.f32 %v2248, %v2249
      %v2299 = vmax.f32 %v2249, %v2250
      %v2300 = vmax.f32 %v2250, %v2251
      %v2301 = vmax.f32 %v2251, %v2252
      %v2302 = vmax.f32 %v2254, %v2196
      %v2303 = vmax.f32 %v2255, %v2197
      %v2304 = vmax.f32 %v2256, %v2198
      %v2305 = vmax.f32 %v2257, %v2199
      %v2306 = vmax.f32 %v2258, %v2200
      %v2307 = vmax.f32 %v2259, %v2201
      %v2308 = vmax.f32 %v2260, %v2202
      %v2309 = vmax.f32 %v2261, %v2203
      %v2310 = vmax.f32 %v2262, %v2206
      %v2311 = vmax.f32 %v2263, %v2207
      %v2312 = vmax.f32 %v2264, %v2208
      %v2313 = vmax.f32 %v2265, %v2209
      %v2314 = vmax.f32 %v2266, %v2210
      %v2315 = vmax.f32 %v2267, %v2211
      %v2316 = vmax.f32 %v2268, %v2212
      %v2317 = vmax.f32 %v2269, %v2213
      %v2318 = vmax.f32 %v2270, %v2216
      %v2319 = vmax.f32 %v2271, %v2217
      %v2320 = vmax.f32 %v2272, %v2218
      %v2321 = vmax.f32 %v2273, %v2219
      %v2322 = vmax.f32 %v2274, %v2220
      %v2323 = vmax.f32 %v2275, %v2221
      %v2324 = vmax.f32 %v2276, %v2222
      %v2325 = vmax.f32 %v2277, %v2223
      %v2326 = vmax.f32 %v2278, %v2226
      %v2327 = vmax.f32 %v2279, %v2227
      %v2328 = vmax.f32 %v2280, %v2228
      %v2329 = vmax.f32 %v2281, %v2229
      %v2330 = vmax.f32 %v2282, %v2230
      %v2331 = vmax.f32 %v2283, %v2231
      %v2332 = vmax.f32 %v2284, %v2232
      %v2333 = vmax.f32 %v2285, %v2233
      %v2334 = vmax.f32 %v2286, %v2236
      %v2335 = vmax.f32 %v2287, %v2237
      %v2336 = vmax.f32 %v2288, %v2238
      %v2337 = vmax.f32 %v2289, %v2239
      %v2338 = vmax.f32 %v2290, %v2240
      %v2339 = vmax.f32 %v2291, %v2241
      %v2340 = vmax.f32 %v2292, %v2242
      %v2341 = vmax.f32 %v2293, %v2243
      %v2342 = vmax.f32 %v2294, %v2246
      %v2343 = vmax.f32 %v2295, %v2247
      %v2344 = vmax.f32 %v2296, %v2248
      %v2345 = vmax.f32 %v2297, %v2249
      %v2346 = vmax.f32 %v2298, %v2250
      %v2347 = vmax.f32 %v2299, %v2251
      %v2348 = vmax.f32 %v2300, %v2252
      %v2349 = vmax.f32 %v2301, %v2253
      %v2350 = vmax.f32 %v2302, %v2310
      %v2351 = vmax.f32 %v2303, %v2311
      %v2352 = vmax.f32 %v2304, %v2312
      %v2353 = vmax.f32 %v2305, %v2313
      %v2354 = vmax.f32 %v2306, %v2314
      %v2355 = vmax.f32 %v2307, %v2315
      %v2356 = vmax.f32 %v2308, %v2316
      %v2357 = vmax.f32 %v2309, %v2317
      %v2358 = vmax.f32 %v2310, %v2318
      %v2359 = vmax.f32 %v2311, %v2319
      %v2360 = vmax.f32 %v2312, %v2320
      %v2361 = vmax.f32 %v2313, %v2321
      %v2362 = vmax.f32 %v2314, %v2322
      %v2363 = vmax.f32 %v2315, %v2323
      %v2364 = vmax.f32 %v2316, %v2324
      %v2365 = vmax.f32 %v2317, %v2325
      %v2366 = vmax.f32 %v2318, %v2326
      %v2367 = vmax.f32 %v2319, %v2327
      %v2368 = vmax.f32 %v2320, %v2328
      %v2369 = vmax.f32 %v2321, %v2329
      %v2370 = vmax.f32 %v2322, %v2330
      %v2371 = vmax.f32 %v2323, %v2331
      %v2372 = vmax.f32 %v2324, %v2332
      %v2373 = vmax.f32 %v2325, %v2333
      %v2374 = vmax.f32 %v2326, %v2334
      %v2375 = vmax.f32 %v2327, %v2335
      %v2376 = vmax.f32 %v2328, %v2336
      %v2377 = vmax.f32 %v2329, %v2337
      %v2378 = vmax.f32 %v2330, %v2338
      %v2379 = vmax.f32 %v2331, %v2339
      %v2380 = vmax.f32 %v2332, %v2340
      %v2381 = vmax.f32 %v2333, %v2341
      %v2382 = vmax.f32 %v2350, %v2318
      %v2383 = vmax.f32 %v2351, %v2319
      %v2384 = vmax.f32 %v2352, %v2320
      %v2385 = vmax.f32 %v2353, %v2321
      %v2386 = vmax.f32 %v2354, %v2322
      %v2387 = vmax.f32 %v2355, %v2323
      %v2388 = vmax.f32 %v2356, %v2324
      %v2389 = vmax.f32 %v2357, %v2325
      %v2390 = vmax.f32 %v2358, %v2326
      %v2391 = vmax.f32 %v2359, %v2327
      %v2392 = vmax.f32 %v2360, %v2328
      %v2393 = vmax.f32 %v2361, %v2329
      %v2394 = vmax.f32 %v2362, %v2330
      %v2395 = vmax.f32 %v2363, %v2331
      %v2396 = vmax.f32 %v2364, %v2332
      %v2397 = vmax.f32 %v2365, %v2333
      %v2398 = vmax.f32 %v2366, %v2334
      %v2399 = vmax.f32 %v2367, %v2335
      %v2400 = vmax.f32 %v2368, %v2336
      %v2401 = vmax.f32 %v2369, %v2337
      %v2402 = vmax.f32 %v2370, %v2338
      %v2403 = vmax.f32 %v2371, %v2339
      %v2404 = vmax.f32 %v2372, %v2340
      %v2405 = vmax.f32 %v2373, %v2341
      %v2406 = vmax.f32 %v2374, %v2342
      %v2407 = vmax.f32 %v2375, %v2343
      %v2408 = vmax.f32 %v2376, %v2344
      %v2409 = vmax.f32 %v2377, %v2345
      %v2410 = vmax.f32 %v2378, %v2346
      %v2411 = vmax.f32 %v2379, %v2347
      %v2412 = vmax.f32 %v2380, %v2348
      %v2413 = vmax.f32 %v2381, %v2349
      %vm2414 = vcmask 64512
      %2415 = vst.msk [vmem:[%s197] sm:$0xff] %vm2414, %v2382
      %2416 = vst.msk [vmem:[%s197 + $0x8] sm:$0xff] %vm2414, %v2383
      %2417 = vst.msk [vmem:[%s197 + $0x10] sm:$0xff] %vm2414, %v2384
      %2418 = vst.msk [vmem:[%s197 + $0x18] sm:$0xff] %vm2414, %v2385
      %2419 = vst.msk [vmem:[%s197 + $0x20] sm:$0xff] %vm2414, %v2386
      %2420 = vst.msk [vmem:[%s197 + $0x28] sm:$0xff] %vm2414, %v2387
      %2421 = vst.msk [vmem:[%s197 + $0x30] sm:$0xff] %vm2414, %v2388
      %2422 = vst.msk [vmem:[%s197 + $0x38] sm:$0xff] %vm2414, %v2389
      %2423 = vst.msk [vmem:[%s197 + $0x40] sm:$0xff] %vm2414, %v2390
      %2424 = vst.msk [vmem:[%s197 + $0x48] sm:$0xff] %vm2414, %v2391
      %2425 = vst.msk [vmem:[%s197 + $0x50] sm:$0xff] %vm2414, %v2392
      %2426 = vst.msk [vmem:[%s197 + $0x58] sm:$0xff] %vm2414, %v2393
      %2427 = vst.msk [vmem:[%s197 + $0x60] sm:$0xff] %vm2414, %v2394
      %2428 = vst.msk [vmem:[%s197 + $0x68] sm:$0xff] %vm2414, %v2395
      %2429 = vst.msk [vmem:[%s197 + $0x70] sm:$0xff] %vm2414, %v2396
      %2430 = vst.msk [vmem:[%s197 + $0x78] sm:$0xff] %vm2414, %v2397
      %2431 = vst.msk [vmem:[%s197 + $0x80] sm:$0xff] %vm2414, %v2398
      %2432 = vst.msk [vmem:[%s197 + $0x88] sm:$0xff] %vm2414, %v2399
      %2433 = vst.msk [vmem:[%s197 + $0x90] sm:$0xff] %vm2414, %v2400
      %2434 = vst.msk [vmem:[%s197 + $0x98] sm:$0xff] %vm2414, %v2401
      %2435 = vst.msk [vmem:[%s197 + $0xa0] sm:$0xff] %vm2414, %v2402
      %2436 = vst.msk [vmem:[%s197 + $0xa8] sm:$0xff] %vm2414, %v2403
      %2437 = vst.msk [vmem:[%s197 + $0xb0] sm:$0xff] %vm2414, %v2404
      %2438 = vst.msk [vmem:[%s197 + $0xb8] sm:$0xff] %vm2414, %v2405
      %2439 = vst.msk [vmem:[%s197 + $0xc0] sm:$0xff] %vm2414, %v2406
      %2440 = vst.msk [vmem:[%s197 + $0xc8] sm:$0xff] %vm2414, %v2407
      %2441 = vst.msk [vmem:[%s197 + $0xd0] sm:$0xff] %vm2414, %v2408
      %2442 = vst.msk [vmem:[%s197 + $0xd8] sm:$0xff] %vm2414, %v2409
      %2443 = vst.msk [vmem:[%s197 + $0xe0] sm:$0xff] %vm2414, %v2410
      %2444 = vst.msk [vmem:[%s197 + $0xe8] sm:$0xff] %vm2414, %v2411
      %2445 = vst.msk [vmem:[%s197 + $0xf0] sm:$0xff] %vm2414, %v2412
      %2446 = vst.msk [vmem:[%s197 + $0xf8] sm:$0xff] %vm2414, %v2413
      %p2447 = scmp.lt.s32.totalorder %s15, 1
      %s2448 = scalar_select %p2447, %s15, 1
      %s2449 = smul.addr %s2448, 32
      %s2450 = smul.addr %s2449, 8
      %s2451 = scalar_lea.vmem %s4, %s2450
      // Predicated region
      $region37: #{resnet_forward.6} parent=35 // pred_check
        %p2452 = pneg %p122
      $region38: #{resnet_forward.6} parent=35 // pred_check_branch
        %2454 = sbr.rel (%p2452) target = $region40
      $region39: #{resnet_forward.6} parent=35 // pred_region
        _
      $region40: #{resnet_forward.6} parent=35 // pred_fallthru
        _
    $region36: #{resnet_forward.6} parent=5 // pred_fallthru
      _
    %p2455 = scmp.le.s32.totalorder 2, %s10
    // Predicated region
    $region41: #{resnet_forward.6} parent=5 // pred_check
      %p2456 = pneg %p2455
    $region42: #{resnet_forward.6} parent=5 // pred_check_branch
      %2458 = sbr.rel (%p2456) target = $region44
    $region43: #{resnet_forward.6} parent=5 // pred_region
      %s2459 = ssub.s32 %s10, 2
      // Predicated region
      $region45: #{resnet_forward.6} parent=43 // pred_check
        %p2460 = pneg %p128
      $region46: #{resnet_forward.6} parent=43 // pred_check_branch
        %2462 = sbr.rel (%p2460) target = $region48
      $region47: #{resnet_forward.6} parent=43 // pred_region
        %p2463 = scmp.lt.s32.totalorder %s16, 1
        %s2464 = scalar_select %p2463, %s16, 1
        %s2465 = smul.addr %s2464, 32
        %s2466 = smul.addr %s2465, 8
        %s2467 = scalar_lea.vmem %s4, %s2466
      $region48: #{resnet_forward.6} parent=43 // pred_fallthru
        _
    $region44: #{resnet_forward.6} parent=5 // pred_fallthru
      _
  $region6: #{resnet_forward.6} parent=0 // loop_footer
    %s14 = sadd.s32 1, %s10
  $region7: #{resnet_forward.6} parent=0 // loop_footer_branch
    %9 = sbr.rel target = $region3
  $region8: #{resnet_forward.6} parent=0 // loop_exit
    _

// kernel: resnet_forward.7
$region0: #{resnet_forward.7}
  #allocation0 [shape = 'u32[]', space=smem, size = 0x4, offset = 0x4, fixed_abs, tag = 'smem constant byte address 0x4 - core index']
  #allocation1 [shape = 'u32[144,128]{1,0:T(1,128)}', space=vmem, size = 0x12000, scoped, tag = 'internal scratch']
  %s0 = inlined_call_operand.vmem [shape: bf16[2,256,256], index: 0, kind: input, shape index: {}]
  %s1 = inlined_call_operand.vmem [shape: bf16[8,256], index: 1, kind: input, shape index: {}]
  %s2 = inlined_call_operand.vmem [shape: f32[2,8,256], index: 2, kind: output, shape index: {}]
  %s3 = sld [smem:[#allocation0]]
  $region41: #{resnet_forward.7} parent=0
    _
  %s5 = ssub.s32 1, %s3
  %s6 = scalar_select 0, %s5, %s3
  loop: start=0, step=1, limit=4
  $region2: #{resnet_forward.7} parent=0 // loop_pre_header
    _
  $region3: #{resnet_forward.7} parent=0 // loop_header
    %s8 = sphi 0, %s12
    %p9 = scmp.ge.s32.totalorder %s8, 4
    %s18 = sphi 0, %s20
    %s21 = sphi 0, %s18
    %s22 = sphi 0, %s21
    %s38 = sphi 0, %s22
    %s42 = sphi 0, %s42
    %s44 = sphi 0, %s42
    %s45 = sphi 0, %s44
    %s59 = sphi 0, %s45
    %s65 = sphi 0, %s67
    %s68 = sphi 0, %s65
    %s69 = sphi 0, %s68
    %s85 = sphi 0, %s69
  $region4: #{resnet_forward.7} parent=0 // loop_header_branch
    %11 = sbr.rel (%p9) target = $region8
  $region5: #{resnet_forward.7} parent=0 // loop_body
    %s13 = ssub.s32 %s8, 1
    %s14 = ssub.s32 %s8, 2
    %s15 = sadd.s32 %s8, 1
    %s16 = ssub.s32 %s8, %s15
    %p17 = scmp.eq.s32.totalorder %s16, 0
    %s19 = sadd.s32 %s18, 1
    %s20 = scalar_select %p17, %s18, %s19
    %p23 = pneg %p17
    %p24 = scmp.eq.s32.totalorder %s8, 1
    %p25 = por %p23, %p24
    %p26 = scmp.ne.s32.totalorder %s18, %s21
    %p27 = scmp.eq.s32.totalorder %s8, 0
    %p28 = por %p26, %p27
    %p29 = scmp.ne.s32.totalorder %s18, %s21
    %p30 = scmp.eq.s32.totalorder %s13, 1
    %p31 = por %p29, %p30
    %p32 = scmp.ne.s32.totalorder %s21, %s22
    %p33 = scmp.eq.s32.totalorder %s13, 0
    %p34 = por %p32, %p33
    %p35 = scmp.ne.s32.totalorder %s21, %s22
    %p36 = scmp.eq.s32.totalorder %s14, 1
    %p37 = por %p35, %p36
    %p39 = scmp.ne.s32.totalorder %s22, %s38
    %p40 = scmp.eq.s32.totalorder %s14, 0
    %p41 = por %p39, %p40
    %s43 = sadd.s32 %s42, 1
    %p46 = scmp.eq.s32.totalorder %s8, 1
    %p47 = scmp.ne.s32.totalorder %s42, %s44
    %p48 = scmp.eq.s32.totalorder %s8, 0
    %p49 = por %p47, %p48
    %p50 = scmp.ne.s32.totalorder %s42, %s44
    %p51 = scmp.eq.s32.totalorder %s13, 1
    %p52 = por %p50, %p51
    %p53 = scmp.ne.s32.totalorder %s44, %s45
    %p54 = scmp.eq.s32.totalorder %s13, 0
    %p55 = por %p53, %p54
    %p56 = scmp.ne.s32.totalorder %s44, %s45
    %p57 = scmp.eq.s32.totalorder %s14, 1
    %p58 = por %p56, %p57
    %p60 = scmp.ne.s32.totalorder %s45, %s59
    %p61 = scmp.eq.s32.totalorder %s14, 0
    %p62 = por %p60, %p61
    %s63 = ssub.s32 %s8, %s15
    %p64 = scmp.eq.s32.totalorder %s63, 0
    %s66 = sadd.s32 %s65, 1
    %s67 = scalar_select %p64, %s65, %s66
    %p70 = pneg %p64
    %p71 = scmp.eq.s32.totalorder %s8, 1
    %p72 = por %p70, %p71
    %p73 = scmp.ne.s32.totalorder %s65, %s68
    %p74 = scmp.eq.s32.totalorder %s8, 0
    %p75 = por %p73, %p74
    %p76 = scmp.ne.s32.totalorder %s65, %s68
    %p77 = scmp.eq.s32.totalorder %s13, 1
    %p78 = por %p76, %p77
    %p79 = scmp.ne.s32.totalorder %s68, %s69
    %p80 = scmp.eq.s32.totalorder %s13, 0
    %p81 = por %p79, %p80
    %p82 = scmp.ne.s32.totalorder %s68, %s69
    %p83 = scmp.eq.s32.totalorder %s14, 1
    %p84 = por %p82, %p83
    %p86 = scmp.ne.s32.totalorder %s69, %s85
    %p87 = scmp.eq.s32.totalorder %s14, 0
    %p88 = por %p86, %p87
    %p89 = scmp.le.s32.totalorder 1, %s8
    %p90 = scmp.lt.s32.totalorder %s8, 3
    %p91 = pnand %p89, %p90
    %p92 = pneg %p91
    // Predicated region
    $region9: #{resnet_forward.7} parent=5 // pred_check
      _
    $region10: #{resnet_forward.7} parent=5 // pred_check_branch
      %94 = sbr.rel (%p91) target = $region12
    $region11: #{resnet_forward.7} parent=5 // pred_region
      %s95 = ssub.s32 %s8, 1
      // Predicated region
      $region13: #{resnet_forward.7} parent=11 // pred_check
        %p96 = pneg %p55
      $region14: #{resnet_forward.7} parent=11 // pred_check_branch
        %98 = sbr.rel (%p96) target = $region16
      $region15: #{resnet_forward.7} parent=11 // pred_region
        _
      $region16: #{resnet_forward.7} parent=11 // pred_fallthru
        _
    $region12: #{resnet_forward.7} parent=5 // pred_fallthru
      _
    %p99 = scmp.lt.s32.totalorder %s8, 2
    // Predicated region
    $region17: #{resnet_forward.7} parent=5 // pred_check
      %p100 = pneg %p99
    $region18: #{resnet_forward.7} parent=5 // pred_check_branch
      %102 = sbr.rel (%p100) target = $region20
    $region19: #{resnet_forward.7} parent=5 // pred_region
      // Predicated region
      $region21: #{resnet_forward.7} parent=19 // pred_check
        %p103 = pneg %p28
      $region22: #{resnet_forward.7} parent=19 // pred_check_branch
        %105 = sbr.rel (%p103) target = $region24
      $region23: #{resnet_forward.7} parent=19 // pred_region
        %p106 = scmp.lt.s32.totalorder %s8, 1
        %s107 = scalar_select %p106, %s8, 1
        %s108 = smul.addr %s107, 64
        %s109 = smul.addr %s108, 4
        %s110 = scalar_lea.vmem %s0, %s109
      $region24: #{resnet_forward.7} parent=19 // pred_fallthru
        _
    $region20: #{resnet_forward.7} parent=5 // pred_fallthru
      _
    %p111 = scmp.le.s32.totalorder 1, %s8
    %p112 = scmp.lt.s32.totalorder %s8, 3
    %p113 = pnand %p111, %p112
    %p114 = pneg %p113
    // Predicated region
    $region25: #{resnet_forward.7} parent=5 // pred_check
      _
    $region26: #{resnet_forward.7} parent=5 // pred_check_branch
      %116 = sbr.rel (%p113) target = $region28
    $region27: #{resnet_forward.7} parent=5 // pred_region
      %s117 = ssub.s32 %s8, 1
      %p118 = scmp.lt.s32.totalorder %s13, 1
      %s119 = scalar_select %p118, %s13, 1
      %s120 = smul.addr %s119, 64
      %s121 = smul.addr %s120, 4
      %s122 = scalar_lea.vmem %s0, %s121
      %p123 = pneg %p34
      %p124 = pneg %p31
      %p125 = pneg %p55
      %p126 = pneg %p52
      %p127 = pneg %p81
      %p128 = pneg %p78
      %p129 = scmp.lt.s32.totalorder %s13, 1
      %s130 = scalar_select %p129, %s13, 1
      %s131 = smul.addr %s130, 2
      %s132 = smul.addr %s131, 8
      %s133 = scalar_lea.vmem %s2, %s132
      %p134 = scmp.lt.s32.totalorder %s13, 1
      %s135 = scalar_select %p134, %s13, 1
      %s136 = smul.addr %s135, 64
      %s137 = smul.addr %s136, 4
      %s138 = scalar_lea.vmem %s0, %s137
      %p139 = scmp.lt.s32.totalorder %s13, 1
      %s140 = scalar_select %p139, %s13, 1
      %s141 = smul.addr %s140, 2
      %s142 = smul.addr %s141, 8
      %s143 = scalar_lea.vmem %s2, %s142
      %v144 = vld [vmem:[%s1] sm:$0xff]
      %v145 = vld [vmem:[%s138] sm:$0xff]
      %v146 = vld [vmem:[%s138 + $0x8] sm:$0xff]
      %v147 = vld [vmem:[%s138 + $0x10] sm:$0xff]
      %v148 = vld [vmem:[%s138 + $0x18] sm:$0xff]
      %v149 = vld [vmem:[%s138 + $0x20] sm:$0xff]
      %v150 = vld [vmem:[%s138 + $0x28] sm:$0xff]
      %v151 = vld [vmem:[%s138 + $0x30] sm:$0xff]
      %v152 = vld [vmem:[%s138 + $0x38] sm:$0xff]
      %v153 = vld [vmem:[%s138 + $0x40] sm:$0xff]
      %v154 = vld [vmem:[%s138 + $0x48] sm:$0xff]
      %v155 = vld [vmem:[%s138 + $0x50] sm:$0xff]
      %v156 = vld [vmem:[%s138 + $0x58] sm:$0xff]
      %v157 = vld [vmem:[%s138 + $0x60] sm:$0xff]
      %v158 = vld [vmem:[%s138 + $0x68] sm:$0xff]
      %v159 = vld [vmem:[%s138 + $0x70] sm:$0xff]
      %v160 = vld [vmem:[%s138 + $0x78] sm:$0xff]
      %v161 = vld [vmem:[%s138 + $0x80] sm:$0xff]
      %v162 = vld [vmem:[%s138 + $0x88] sm:$0xff]
      %v163 = vld [vmem:[%s138 + $0x90] sm:$0xff]
      %v164 = vld [vmem:[%s138 + $0x98] sm:$0xff]
      %v165 = vld [vmem:[%s138 + $0xa0] sm:$0xff]
      %v166 = vld [vmem:[%s138 + $0xa8] sm:$0xff]
      %v167 = vld [vmem:[%s138 + $0xb0] sm:$0xff]
      %v168 = vld [vmem:[%s138 + $0xb8] sm:$0xff]
      %v169 = vld [vmem:[%s138 + $0xc0] sm:$0xff]
      %v170 = vld [vmem:[%s138 + $0xc8] sm:$0xff]
      %v171 = vld [vmem:[%s138 + $0xd0] sm:$0xff]
      %v172 = vld [vmem:[%s138 + $0xd8] sm:$0xff]
      %v173 = vld [vmem:[%s138 + $0xe0] sm:$0xff]
      %v174 = vld [vmem:[%s138 + $0xe8] sm:$0xff]
      %v175 = vld [vmem:[%s138 + $0xf0] sm:$0xff]
      %v176 = vld [vmem:[%s138 + $0xf8] sm:$0xff]
      %v178 = vunpack.c.l.b16 %v144
      %v179 = vunpack.c.h.b16 %v144
      %v180 = vpack.c.b16 %v178, %v178
      %v181 = vpack.c.b16 %v179, %v179
      %v216 = vunpack.c.l.b16 %v145
      %v217 = vunpack.c.h.b16 %v145
      %v218 = vunpack.c.l.b16 %v146
      %v219 = vunpack.c.h.b16 %v146
      %v220 = vunpack.c.l.b16 %v147
      %v221 = vunpack.c.h.b16 %v147
      %v222 = vunpack.c.l.b16 %v148
      %v223 = vunpack.c.h.b16 %v148
      %v224 = vunpack.c.l.b16 %v149
      %v225 = vunpack.c.h.b16 %v149
      %v226 = vunpack.c.l.b16 %v150
      %v227 = vunpack.c.h.b16 %v150
      %v228 = vunpack.c.l.b16 %v151
      %v229 = vunpack.c.h.b16 %v151
      %v230 = vunpack.c.l.b16 %v152
      %v231 = vunpack.c.h.b16 %v152
      %v232 = vunpack.c.l.b16 %v153
      %v233 = vunpack.c.h.b16 %v153
      %v234 = vunpack.c.l.b16 %v154
      %v235 = vunpack.c.h.b16 %v154
      %v236 = vunpack.c.l.b16 %v155
      %v237 = vunpack.c.h.b16 %v155
      %v238 = vunpack.c.l.b16 %v156
      %v239 = vunpack.c.h.b16 %v156
      %v240 = vunpack.c.l.b16 %v157
      %v241 = vunpack.c.h.b16 %v157
      %v242 = vunpack.c.l.b16 %v158
      %v243 = vunpack.c.h.b16 %v158
      %v244 = vunpack.c.l.b16 %v159
      %v245 = vunpack.c.h.b16 %v159
      %v246 = vunpack.c.l.b16 %v160
      %v247 = vunpack.c.h.b16 %v160
      %v248 = vunpack.c.l.b16 %v161
      %v249 = vunpack.c.h.b16 %v161
      %v250 = vunpack.c.l.b16 %v162
      %v251 = vunpack.c.h.b16 %v162
      %v252 = vunpack.c.l.b16 %v163
      %v253 = vunpack.c.h.b16 %v163
      %v254 = vunpack.c.l.b16 %v164
      %v255 = vunpack.c.h.b16 %v164
      %v256 = vunpack.c.l.b16 %v165
      %v257 = vunpack.c.h.b16 %v165
      %v258 = vunpack.c.l.b16 %v166
      %v259 = vunpack.c.h.b16 %v166
      %v260 = vunpack.c.l.b16 %v167
      %v261 = vunpack.c.h.b16 %v167
      %v262 = vunpack.c.l.b16 %v168
      %v263 = vunpack.c.h.b16 %v168
      %v264 = vunpack.c.l.b16 %v169
      %v265 = vunpack.c.h.b16 %v169
      %v266 = vunpack.c.l.b16 %v170
      %v267 = vunpack.c.h.b16 %v170
      %v268 = vunpack.c.l.b16 %v171
      %v269 = vunpack.c.h.b16 %v171
      %v270 = vunpack.c.l.b16 %v172
      %v271 = vunpack.c.h.b16 %v172
      %v272 = vunpack.c.l.b16 %v173
      %v273 = vunpack.c.h.b16 %v173
      %v274 = vunpack.c.l.b16 %v174
      %v275 = vunpack.c.h.b16 %v174
      %v276 = vunpack.c.l.b16 %v175
      %v277 = vunpack.c.h.b16 %v175
      %v278 = vunpack.c.l.b16 %v176
      %v279 = vunpack.c.h.b16 %v176
      %v280 = vpack.c.b16 %v218, %v216
      %v281 = vpack.c.b16 %v219, %v217
      %v282 = vpack.c.b16 %v222, %v220
      %v283 = vpack.c.b16 %v223, %v221
      %v284 = vpack.c.b16 %v226, %v224
      %v285 = vpack.c.b16 %v227, %v225
      %v286 = vpack.c.b16 %v230, %v228
      %v287 = vpack.c.b16 %v231, %v229
      %v288 = vpack.c.b16 %v234, %v232
      %v289 = vpack.c.b16 %v235, %v233
      %v290 = vpack.c.b16 %v238, %v236
      %v291 = vpack.c.b16 %v239, %v237
      %v292 = vpack.c.b16 %v242, %v240
      %v293 = vpack.c.b16 %v243, %v241
      %v294 = vpack.c.b16 %v246, %v244
      %v295 = vpack.c.b16 %v247, %v245
      %v296 = vpack.c.b16 %v250, %v248
      %v297 = vpack.c.b16 %v251, %v249
      %v298 = vpack.c.b16 %v254, %v252
      %v299 = vpack.c.b16 %v255, %v253
      %v300 = vpack.c.b16 %v258, %v256
      %v301 = vpack.c.b16 %v259, %v257
      %v302 = vpack.c.b16 %v262, %v260
      %v303 = vpack.c.b16 %v263, %v261
      %v304 = vpack.c.b16 %v266, %v264
      %v305 = vpack.c.b16 %v267, %v265
      %v306 = vpack.c.b16 %v270, %v268
      %v307 = vpack.c.b16 %v271, %v269
      %v308 = vpack.c.b16 %v274, %v272
      %v309 = vpack.c.b16 %v275, %v273
      %v310 = vpack.c.b16 %v278, %v276
      %v311 = vpack.c.b16 %v279, %v277
      %344 = vmatprep.subr.bf16.mxu0 %v281
      %345 = vmatpush1.bf16.msra.mxu0 %v280
      %346 = vmatprep.subr.bf16.mxu0 %v283
      %347 = vmatpush1.bf16.msra.mxu0 %v282
      %348 = vmatprep.subr.bf16.mxu0 %v285
      %349 = vmatpush1.bf16.msra.mxu0 %v284
      %350 = vmatprep.subr.bf16.mxu0 %v287
      %351 = vmatpush1.bf16.msra.mxu0 %v286
      %352 = vmatprep.subr.bf16.mxu0 %v289
      %353 = vmatpush1.bf16.msra.mxu0 %v288
      %354 = vmatprep.subr.bf16.mxu0 %v291
      %355 = vmatpush1.bf16.msra.mxu0 %v290
      %356 = vmatprep.subr.bf16.mxu0 %v293
      %357 = vmatpush1.bf16.msra.mxu0 %v292
      %358 = vmatprep.subr.bf16.mxu0 %v295
      %359 = vmatpush1.bf16.msra.mxu0 %v294
      %360 = vmatprep.subr.bf16.mxu0 %v297
      %361 = vmatpush1.bf16.msra.mxu0 %v296
      %362 = vmatprep.subr.bf16.mxu0 %v299
      %363 = vmatpush1.bf16.msra.mxu0 %v298
      %364 = vmatprep.subr.bf16.mxu0 %v301
      %365 = vmatpush1.bf16.msra.mxu0 %v300
      %366 = vmatprep.subr.bf16.mxu0 %v303
      %367 = vmatpush1.bf16.msra.mxu0 %v302
      %368 = vmatprep.subr.bf16.mxu0 %v305
      %369 = vmatpush1.bf16.msra.mxu0 %v304
      %370 = vmatprep.subr.bf16.mxu0 %v307
      %371 = vmatpush1.bf16.msra.mxu0 %v306
      %372 = vmatprep.subr.bf16.mxu0 %v309
      %373 = vmatpush1.bf16.msra.mxu0 %v308
      %374 = vmatprep.subr.bf16.mxu0 %v311
      %375 = vmatpush1.bf16.msra.mxu0 %v310
      %376 = vmatprep.mubr.bf16.mxu0 %v181
      %377 = vmatmul.mubr.bf16.gmra.mrb[0].mxu0 %v180
      %v378 = vpop.f32.mrb[0].mxu0
      %v379 = vadd.f32 0.0, %v378
      %v380 = vpop.f32.mrb[0].mxu0
      %v381 = vadd.f32 0.0, %v380
      %v382 = vpop.f32.mrb[0].mxu0
      %v383 = vpop.f32.mrb[0].mxu0
      %384 = vdwg.mxu0
      %385 = vst [vmem:[%s143] sm:$0xff] %v379
      %386 = vst [vmem:[%s143 + $0x8] sm:$0xff] %v381
      %p387 = scmp.lt.s32.totalorder %s13, 1
      %s388 = scalar_select %p387, %s13, 1
      %s389 = smul.addr %s388, 2
      %s390 = smul.addr %s389, 8
      %s391 = scalar_lea.vmem %s2, %s390
      // Predicated region
      $region29: #{resnet_forward.7} parent=27 // pred_check
        %p392 = pneg %p78
      $region30: #{resnet_forward.7} parent=27 // pred_check_branch
        %394 = sbr.rel (%p392) target = $region32
      $region31: #{resnet_forward.7} parent=27 // pred_region
        _
      $region32: #{resnet_forward.7} parent=27 // pred_fallthru
        _
    $region28: #{resnet_forward.7} parent=5 // pred_fallthru
      _
    %p395 = scmp.le.s32.totalorder 2, %s8
    // Predicated region
    $region33: #{resnet_forward.7} parent=5 // pred_check
      %p396 = pneg %p395
    $region34: #{resnet_forward.7} parent=5 // pred_check_branch
      %398 = sbr.rel (%p396) target = $region36
    $region35: #{resnet_forward.7} parent=5 // pred_region
      %s399 = ssub.s32 %s8, 2
      // Predicated region
      $region37: #{resnet_forward.7} parent=35 // pred_check
        %p400 = pneg %p84
      $region38: #{resnet_forward.7} parent=35 // pred_check_branch
        %402 = sbr.rel (%p400) target = $region40
      $region39: #{resnet_forward.7} parent=35 // pred_region
        %p403 = scmp.lt.s32.totalorder %s14, 1
        %s404 = scalar_select %p403, %s14, 1
        %s405 = smul.addr %s404, 2
        %s406 = smul.addr %s405, 8
        %s407 = scalar_lea.vmem %s2, %s406
      $region40: #{resnet_forward.7} parent=35 // pred_fallthru
        _
    $region36: #{resnet_forward.7} parent=5 // pred_fallthru
      _
  $region6: #{resnet_forward.7} parent=0 // loop_footer
    %s12 = sadd.s32 1, %s8
  $region7: #{resnet_forward.7} parent=0 // loop_footer_branch
    %7 = sbr.rel target = $region3
  $region8: #{resnet_forward.7} parent=0 // loop_exit
    _

// kernel: resnet_forward.9
$region0: #{resnet_forward.9}
  #allocation0 [shape = 'u32[]', space=smem, size = 0x4, offset = 0x4, fixed_abs, tag = 'smem constant byte address 0x4 - core index']
  #allocation1 [shape = 'u32[144,128]{1,0:T(1,128)}', space=vmem, size = 0x12000, scoped, tag = 'internal scratch']
  %s0 = inlined_call_operand.vmem [shape: f32[2,8,256], index: 0, kind: input, shape index: {}]
  %s1 = inlined_call_operand.vmem [shape: f32[2,8,256], index: 1, kind: input, shape index: {}]
  %s2 = inlined_call_operand.vmem [shape: f32[8,1], index: 2, kind: input, shape index: {}]
  %s3 = inlined_call_operand.vmem [shape: f32[8,1], index: 3, kind: input, shape index: {}]
  %s4 = inlined_call_operand.vmem [shape: bf16[256,1024], index: 4, kind: input, shape index: {}]
  %s5 = inlined_call_operand.vmem [shape: bf16[20,8], index: 5, kind: input, shape index: {}]
  %s6 = inlined_call_operand.vmem [shape: f32[20,1], index: 6, kind: input, shape index: {}]
  %s7 = inlined_call_operand.vmem [shape: f32[2,20,1024], index: 7, kind: output, shape index: {}]
  %s8 = sld [smem:[#allocation0]]
  $region61: #{resnet_forward.9} parent=0
    _
  %s10 = ssub.s32 1, %s8
  %s11 = scalar_select 0, %s10, %s8
  loop: start=0, step=1, limit=4
  $region2: #{resnet_forward.9} parent=0 // loop_pre_header
    _
  $region3: #{resnet_forward.9} parent=0 // loop_header
    %s13 = sphi 0, %s17
    %p14 = scmp.ge.s32.totalorder %s13, 4
    %s23 = sphi 0, %s25
    %s26 = sphi 0, %s23
    %s27 = sphi 0, %s26
    %s43 = sphi 0, %s27
    %s49 = sphi 0, %s51
    %s52 = sphi 0, %s49
    %s53 = sphi 0, %s52
    %s69 = sphi 0, %s53
    %s73 = sphi 0, %s73
    %s75 = sphi 0, %s73
    %s76 = sphi 0, %s75
    %s90 = sphi 0, %s76
    %s94 = sphi 0, %s94
    %s96 = sphi 0, %s94
    %s97 = sphi 0, %s96
    %s111 = sphi 0, %s97
    %s115 = sphi 0, %s115
    %s117 = sphi 0, %s115
    %s118 = sphi 0, %s117
    %s132 = sphi 0, %s118
    %s136 = sphi 0, %s136
    %s138 = sphi 0, %s136
    %s139 = sphi 0, %s138
    %s153 = sphi 0, %s139
    %s157 = sphi 0, %s157
    %s159 = sphi 0, %s157
    %s160 = sphi 0, %s159
    %s174 = sphi 0, %s160
    %s180 = sphi 0, %s182
    %s183 = sphi 0, %s180
    %s184 = sphi 0, %s183
    %s200 = sphi 0, %s184
  $region4: #{resnet_forward.9} parent=0 // loop_header_branch
    %16 = sbr.rel (%p14) target = $region8
  $region5: #{resnet_forward.9} parent=0 // loop_body
    %s18 = ssub.s32 %s13, 1
    %s19 = ssub.s32 %s13, 2
    %s20 = sadd.s32 %s13, 1
    %s21 = ssub.s32 %s13, %s20
    %p22 = scmp.eq.s32.totalorder %s21, 0
    %s24 = sadd.s32 %s23, 1
    %s25 = scalar_select %p22, %s23, %s24
    %p28 = pneg %p22
    %p29 = scmp.eq.s32.totalorder %s13, 1
    %p30 = por %p28, %p29
    %p31 = scmp.ne.s32.totalorder %s23, %s26
    %p32 = scmp.eq.s32.totalorder %s13, 0
    %p33 = por %p31, %p32
    %p34 = scmp.ne.s32.totalorder %s23, %s26
    %p35 = scmp.eq.s32.totalorder %s18, 1
    %p36 = por %p34, %p35
    %p37 = scmp.ne.s32.totalorder %s26, %s27
    %p38 = scmp.eq.s32.totalorder %s18, 0
    %p39 = por %p37, %p38
    %p40 = scmp.ne.s32.totalorder %s26, %s27
    %p41 = scmp.eq.s32.totalorder %s19, 1
    %p42 = por %p40, %p41
    %p44 = scmp.ne.s32.totalorder %s27, %s43
    %p45 = scmp.eq.s32.totalorder %s19, 0
    %p46 = por %p44, %p45
    %s47 = ssub.s32 %s13, %s20
    %p48 = scmp.eq.s32.totalorder %s47, 0
    %s50 = sadd.s32 %s49, 1
    %s51 = scalar_select %p48, %s49, %s50
    %p54 = pneg %p48
    %p55 = scmp.eq.s32.totalorder %s13, 1
    %p56 = por %p54, %p55
    %p57 = scmp.ne.s32.totalorder %s49, %s52
    %p58 = scmp.eq.s32.totalorder %s13, 0
    %p59 = por %p57, %p58
    %p60 = scmp.ne.s32.totalorder %s49, %s52
    %p61 = scmp.eq.s32.totalorder %s18, 1
    %p62 = por %p60, %p61
    %p63 = scmp.ne.s32.totalorder %s52, %s53
    %p64 = scmp.eq.s32.totalorder %s18, 0
    %p65 = por %p63, %p64
    %p66 = scmp.ne.s32.totalorder %s52, %s53
    %p67 = scmp.eq.s32.totalorder %s19, 1
    %p68 = por %p66, %p67
    %p70 = scmp.ne.s32.totalorder %s53, %s69
    %p71 = scmp.eq.s32.totalorder %s19, 0
    %p72 = por %p70, %p71
    %s74 = sadd.s32 %s73, 1
    %p77 = scmp.eq.s32.totalorder %s13, 1
    %p78 = scmp.ne.s32.totalorder %s73, %s75
    %p79 = scmp.eq.s32.totalorder %s13, 0
    %p80 = por %p78, %p79
    %p81 = scmp.ne.s32.totalorder %s73, %s75
    %p82 = scmp.eq.s32.totalorder %s18, 1
    %p83 = por %p81, %p82
    %p84 = scmp.ne.s32.totalorder %s75, %s76
    %p85 = scmp.eq.s32.totalorder %s18, 0
    %p86 = por %p84, %p85
    %p87 = scmp.ne.s32.totalorder %s75, %s76
    %p88 = scmp.eq.s32.totalorder %s19, 1
    %p89 = por %p87, %p88
    %p91 = scmp.ne.s32.totalorder %s76, %s90
    %p92 = scmp.eq.s32.totalorder %s19, 0
    %p93 = por %p91, %p92
    %s95 = sadd.s32 %s94, 1
    %p98 = scmp.eq.s32.totalorder %s13, 1
    %p99 = scmp.ne.s32.totalorder %s94, %s96
    %p100 = scmp.eq.s32.totalorder %s13, 0
    %p101 = por %p99, %p100
    %p102 = scmp.ne.s32.totalorder %s94, %s96
    %p103 = scmp.eq.s32.totalorder %s18, 1
    %p104 = por %p102, %p103
    %p105 = scmp.ne.s32.totalorder %s96, %s97
    %p106 = scmp.eq.s32.totalorder %s18, 0
    %p107 = por %p105, %p106
    %p108 = scmp.ne.s32.totalorder %s96, %s97
    %p109 = scmp.eq.s32.totalorder %s19, 1
    %p110 = por %p108, %p109
    %p112 = scmp.ne.s32.totalorder %s97, %s111
    %p113 = scmp.eq.s32.totalorder %s19, 0
    %p114 = por %p112, %p113
    %s116 = sadd.s32 %s115, 1
    %p119 = scmp.eq.s32.totalorder %s13, 1
    %p120 = scmp.ne.s32.totalorder %s115, %s117
    %p121 = scmp.eq.s32.totalorder %s13, 0
    %p122 = por %p120, %p121
    %p123 = scmp.ne.s32.totalorder %s115, %s117
    %p124 = scmp.eq.s32.totalorder %s18, 1
    %p125 = por %p123, %p124
    %p126 = scmp.ne.s32.totalorder %s117, %s118
    %p127 = scmp.eq.s32.totalorder %s18, 0
    %p128 = por %p126, %p127
    %p129 = scmp.ne.s32.totalorder %s117, %s118
    %p130 = scmp.eq.s32.totalorder %s19, 1
    %p131 = por %p129, %p130
    %p133 = scmp.ne.s32.totalorder %s118, %s132
    %p134 = scmp.eq.s32.totalorder %s19, 0
    %p135 = por %p133, %p134
    %s137 = sadd.s32 %s136, 1
    %p140 = scmp.eq.s32.totalorder %s13, 1
    %p141 = scmp.ne.s32.totalorder %s136, %s138
    %p142 = scmp.eq.s32.totalorder %s13, 0
    %p143 = por %p141, %p142
    %p144 = scmp.ne.s32.totalorder %s136, %s138
    %p145 = scmp.eq.s32.totalorder %s18, 1
    %p146 = por %p144, %p145
    %p147 = scmp.ne.s32.totalorder %s138, %s139
    %p148 = scmp.eq.s32.totalorder %s18, 0
    %p149 = por %p147, %p148
    %p150 = scmp.ne.s32.totalorder %s138, %s139
    %p151 = scmp.eq.s32.totalorder %s19, 1
    %p152 = por %p150, %p151
    %p154 = scmp.ne.s32.totalorder %s139, %s153
    %p155 = scmp.eq.s32.totalorder %s19, 0
    %p156 = por %p154, %p155
    %s158 = sadd.s32 %s157, 1
    %p161 = scmp.eq.s32.totalorder %s13, 1
    %p162 = scmp.ne.s32.totalorder %s157, %s159
    %p163 = scmp.eq.s32.totalorder %s13, 0
    %p164 = por %p162, %p163
    %p165 = scmp.ne.s32.totalorder %s157, %s159
    %p166 = scmp.eq.s32.totalorder %s18, 1
    %p167 = por %p165, %p166
    %p168 = scmp.ne.s32.totalorder %s159, %s160
    %p169 = scmp.eq.s32.totalorder %s18, 0
    %p170 = por %p168, %p169
    %p171 = scmp.ne.s32.totalorder %s159, %s160
    %p172 = scmp.eq.s32.totalorder %s19, 1
    %p173 = por %p171, %p172
    %p175 = scmp.ne.s32.totalorder %s160, %s174
    %p176 = scmp.eq.s32.totalorder %s19, 0
    %p177 = por %p175, %p176
    %s178 = ssub.s32 %s13, %s20
    %p179 = scmp.eq.s32.totalorder %s178, 0
    %s181 = sadd.s32 %s180, 1
    %s182 = scalar_select %p179, %s180, %s181
    %p185 = pneg %p179
    %p186 = scmp.eq.s32.totalorder %s13, 1
    %p187 = por %p185, %p186
    %p188 = scmp.ne.s32.totalorder %s180, %s183
    %p189 = scmp.eq.s32.totalorder %s13, 0
    %p190 = por %p188, %p189
    %p191 = scmp.ne.s32.totalorder %s180, %s183
    %p192 = scmp.eq.s32.totalorder %s18, 1
    %p193 = por %p191, %p192
    %p194 = scmp.ne.s32.totalorder %s183, %s184
    %p195 = scmp.eq.s32.totalorder %s18, 0
    %p196 = por %p194, %p195
    %p197 = scmp.ne.s32.totalorder %s183, %s184
    %p198 = scmp.eq.s32.totalorder %s19, 1
    %p199 = por %p197, %p198
    %p201 = scmp.ne.s32.totalorder %s184, %s200
    %p202 = scmp.eq.s32.totalorder %s19, 0
    %p203 = por %p201, %p202
    %p204 = scmp.le.s32.totalorder 1, %s13
    %p205 = scmp.lt.s32.totalorder %s13, 3
    %p206 = pnand %p204, %p205
    %p207 = pneg %p206
    // Predicated region
    $region9: #{resnet_forward.9} parent=5 // pred_check
      _
    $region10: #{resnet_forward.9} parent=5 // pred_check_branch
      %209 = sbr.rel (%p206) target = $region12
    $region11: #{resnet_forward.9} parent=5 // pred_region
      %s210 = ssub.s32 %s13, 1
      // Predicated region
      $region13: #{resnet_forward.9} parent=11 // pred_check
        %p211 = pneg %p86
      $region14: #{resnet_forward.9} parent=11 // pred_check_branch
        %213 = sbr.rel (%p211) target = $region16
      $region15: #{resnet_forward.9} parent=11 // pred_region
        _
      $region16: #{resnet_forward.9} parent=11 // pred_fallthru
        _
      // Predicated region
      $region17: #{resnet_forward.9} parent=11 // pred_check
        %p214 = pneg %p107
      $region18: #{resnet_forward.9} parent=11 // pred_check_branch
        %216 = sbr.rel (%p214) target = $region20
      $region19: #{resnet_forward.9} parent=11 // pred_region
        _
      $region20: #{resnet_forward.9} parent=11 // pred_fallthru
        _
      // Predicated region
      $region21: #{resnet_forward.9} parent=11 // pred_check
        %p217 = pneg %p128
      $region22: #{resnet_forward.9} parent=11 // pred_check_branch
        %219 = sbr.rel (%p217) target = $region24
      $region23: #{resnet_forward.9} parent=11 // pred_region
        _
      $region24: #{resnet_forward.9} parent=11 // pred_fallthru
        _
      // Predicated region
      $region25: #{resnet_forward.9} parent=11 // pred_check
        %p220 = pneg %p149
      $region26: #{resnet_forward.9} parent=11 // pred_check_branch
        %222 = sbr.rel (%p220) target = $region28
      $region27: #{resnet_forward.9} parent=11 // pred_region
        _
      $region28: #{resnet_forward.9} parent=11 // pred_fallthru
        _
      // Predicated region
      $region29: #{resnet_forward.9} parent=11 // pred_check
        %p223 = pneg %p170
      $region30: #{resnet_forward.9} parent=11 // pred_check_branch
        %225 = sbr.rel (%p223) target = $region32
      $region31: #{resnet_forward.9} parent=11 // pred_region
        _
      $region32: #{resnet_forward.9} parent=11 // pred_fallthru
        _
    $region12: #{resnet_forward.9} parent=5 // pred_fallthru
      _
    %p226 = scmp.lt.s32.totalorder %s13, 2
    // Predicated region
    $region33: #{resnet_forward.9} parent=5 // pred_check
      %p227 = pneg %p226
    $region34: #{resnet_forward.9} parent=5 // pred_check_branch
      %229 = sbr.rel (%p227) target = $region36
    $region35: #{resnet_forward.9} parent=5 // pred_region
      // Predicated region
      $region37: #{resnet_forward.9} parent=35 // pred_check
        %p230 = pneg %p33
      $region38: #{resnet_forward.9} parent=35 // pred_check_branch
        %232 = sbr.rel (%p230) target = $region40
      $region39: #{resnet_forward.9} parent=35 // pred_region
        %p233 = scmp.lt.s32.totalorder %s13, 1
        %s234 = scalar_select %p233, %s13, 1
        %s235 = smul.addr %s234, 2
        %s236 = smul.addr %s235, 8
        %s237 = scalar_lea.vmem %s0, %s236
      $region40: #{resnet_forward.9} parent=35 // pred_fallthru
        _
      // Predicated region
      $region41: #{resnet_forward.9} parent=35 // pred_check
        %p238 = pneg %p59
      $region42: #{resnet_forward.9} parent=35 // pred_check_branch
        %240 = sbr.rel (%p238) target = $region44
      $region43: #{resnet_forward.9} parent=35 // pred_region
        %p241 = scmp.lt.s32.totalorder %s13, 1
        %s242 = scalar_select %p241, %s13, 1
        %s243 = smul.addr %s242, 2
        %s244 = smul.addr %s243, 8
        %s245 = scalar_lea.vmem %s1, %s244
      $region44: #{resnet_forward.9} parent=35 // pred_fallthru
        _
    $region36: #{resnet_forward.9} parent=5 // pred_fallthru
      _
    %p246 = scmp.le.s32.totalorder 1, %s13
    %p247 = scmp.lt.s32.totalorder %s13, 3
    %p248 = pnand %p246, %p247
    %p249 = pneg %p248
    // Predicated region
    $region45: #{resnet_forward.9} parent=5 // pred_check
      _
    $region46: #{resnet_forward.9} parent=5 // pred_check_branch
      %251 = sbr.rel (%p248) target = $region48
    $region47: #{resnet_forward.9} parent=5 // pred_region
      %s252 = ssub.s32 %s13, 1
      %p253 = scmp.lt.s32.totalorder %s18, 1
      %s254 = scalar_select %p253, %s18, 1
      %s255 = smul.addr %s254, 2
      %s256 = smul.addr %s255, 8
      %s257 = scalar_lea.vmem %s0, %s256
      %p258 = pneg %p39
      %p259 = pneg %p36
      %p260 = scmp.lt.s32.totalorder %s18, 1
      %s261 = scalar_select %p260, %s18, 1
      %s262 = smul.addr %s261, 2
      %s263 = smul.addr %s262, 8
      %s264 = scalar_lea.vmem %s1, %s263
      %p265 = pneg %p65
      %p266 = pneg %p62
      %p267 = pneg %p86
      %p268 = pneg %p83
      %p269 = pneg %p107
      %p270 = pneg %p104
      %p271 = pneg %p128
      %p272 = pneg %p125
      %p273 = pneg %p149
      %p274 = pneg %p146
      %p275 = pneg %p170
      %p276 = pneg %p167
      %p277 = pneg %p196
      %p278 = pneg %p193
      %p279 = scmp.lt.s32.totalorder %s18, 1
      %s280 = scalar_select %p279, %s18, 1
      %s281 = smul.addr %s280, 24
      %s282 = smul.addr %s281, 8
      %s283 = scalar_lea.vmem %s7, %s282
      %p284 = scmp.lt.s32.totalorder %s18, 1
      %s285 = scalar_select %p284, %s18, 1
      %s286 = smul.addr %s285, 2
      %s287 = smul.addr %s286, 8
      %s288 = scalar_lea.vmem %s0, %s287
      %p289 = scmp.lt.s32.totalorder %s18, 1
      %s290 = scalar_select %p289, %s18, 1
      %s291 = smul.addr %s290, 2
      %s292 = smul.addr %s291, 8
      %s293 = scalar_lea.vmem %s1, %s292
      %p294 = scmp.lt.s32.totalorder %s18, 1
      %s295 = scalar_select %p294, %s18, 1
      %s296 = smul.addr %s295, 24
      %s297 = smul.addr %s296, 8
      %s298 = scalar_lea.vmem %s7, %s297
      %v299 = vld [vmem:[%s288] sm:$0xff]
      %v300 = vld [vmem:[%s288 + $0x8] sm:$0xff]
      %v301 = vld [vmem:[%s2] sm:$0xff]
      %303 = vset.pattern.permute.xlu0 0
      %304 = vperm.xlu0 %303, %v301
      %v305 = vpop.permute.xlu0 %304
      %v307 = vmul.f32 %v299, %v305
      %v308 = vmul.f32 %v300, %v305
      %v309 = vld [vmem:[%s3] sm:$0xff]
      %311 = vset.pattern.permute.xlu0 0
      %312 = vperm.xlu0 %311, %v309
      %v313 = vpop.permute.xlu0 %312
      %v315 = vadd.f32 %v307, %v313
      %v316 = vadd.f32 %v308, %v313
      %v317 = vld [vmem:[%s293] sm:$0xff]
      %v318 = vld [vmem:[%s293 + $0x8] sm:$0xff]
      %v319 = vadd.f32 %v315, %v317
      %v320 = vadd.f32 %v316, %v318
      %v321 = vmax.f32 %v319, 0.0
      %v322 = vmax.f32 %v320, 0.0
      %v323 = vpack.c.bf16 %v321, %v321
      %v324 = vpack.c.bf16 %v322, %v322
      %v325 = vld [vmem:[%s4] sm:$0xff]
      %v326 = vld [vmem:[%s4 + $0x8] sm:$0xff]
      %v327 = vld [vmem:[%s4 + $0x10] sm:$0xff]
      %v328 = vld [vmem:[%s4 + $0x18] sm:$0xff]
      %v329 = vld [vmem:[%s4 + $0x20] sm:$0xff]
      %v330 = vld [vmem:[%s4 + $0x28] sm:$0xff]
      %v331 = vld [vmem:[%s4 + $0x30] sm:$0xff]
      %v332 = vld [vmem:[%s4 + $0x38] sm:$0xff]
      %v333 = vld [vmem:[%s4 + $0x40] sm:$0xff]
      %v334 = vld [vmem:[%s4 + $0x48] sm:$0xff]
      %v335 = vld [vmem:[%s4 + $0x50] sm:$0xff]
      %v336 = vld [vmem:[%s4 + $0x58] sm:$0xff]
      %v337 = vld [vmem:[%s4 + $0x60] sm:$0xff]
      %v338 = vld [vmem:[%s4 + $0x68] sm:$0xff]
      %v339 = vld [vmem:[%s4 + $0x70] sm:$0xff]
      %v340 = vld [vmem:[%s4 + $0x78] sm:$0xff]
      %v341 = vld [vmem:[%s4 + $0x80] sm:$0xff]
      %v342 = vld [vmem:[%s4 + $0x88] sm:$0xff]
      %v343 = vld [vmem:[%s4 + $0x90] sm:$0xff]
      %v344 = vld [vmem:[%s4 + $0x98] sm:$0xff]
      %v345 = vld [vmem:[%s4 + $0xa0] sm:$0xff]
      %v346 = vld [vmem:[%s4 + $0xa8] sm:$0xff]
      %v347 = vld [vmem:[%s4 + $0xb0] sm:$0xff]
      %v348 = vld [vmem:[%s4 + $0xb8] sm:$0xff]
      %v349 = vld [vmem:[%s4 + $0xc0] sm:$0xff]
      %v350 = vld [vmem:[%s4 + $0xc8] sm:$0xff]
      %v351 = vld [vmem:[%s4 + $0xd0] sm:$0xff]
      %v352 = vld [vmem:[%s4 + $0xd8] sm:$0xff]
      %v353 = vld [vmem:[%s4 + $0xe0] sm:$0xff]
      %v354 = vld [vmem:[%s4 + $0xe8] sm:$0xff]
      %v355 = vld [vmem:[%s4 + $0xf0] sm:$0xff]
      %v356 = vld [vmem:[%s4 + $0xf8] sm:$0xff]
      %v357 = vld [vmem:[%s4 + $0x100] sm:$0xff]
      %v358 = vld [vmem:[%s4 + $0x108] sm:$0xff]
      %v359 = vld [vmem:[%s4 + $0x110] sm:$0xff]
      %v360 = vld [vmem:[%s4 + $0x118] sm:$0xff]
      %v361 = vld [vmem:[%s4 + $0x120] sm:$0xff]
      %v362 = vld [vmem:[%s4 + $0x128] sm:$0xff]
      %v363 = vld [vmem:[%s4 + $0x130] sm:$0xff]
      %v364 = vld [vmem:[%s4 + $0x138] sm:$0xff]
      %v365 = vld [vmem:[%s4 + $0x140] sm:$0xff]
      %v366 = vld [vmem:[%s4 + $0x148] sm:$0xff]
      %v367 = vld [vmem:[%s4 + $0x150] sm:$0xff]
      %v368 = vld [vmem:[%s4 + $0x158] sm:$0xff]
      %v369 = vld [vmem:[%s4 + $0x160] sm:$0xff]
      %v370 = vld [vmem:[%s4 + $0x168] sm:$0xff]
      %v371 = vld [vmem:[%s4 + $0x170] sm:$0xff]
      %v372 = vld [vmem:[%s4 + $0x178] sm:$0xff]
      %v373 = vld [vmem:[%s4 + $0x180] sm:$0xff]
      %v374 = vld [vmem:[%s4 + $0x188] sm:$0xff]
      %v375 = vld [vmem:[%s4 + $0x190] sm:$0xff]
      %v376 = vld [vmem:[%s4 + $0x198] sm:$0xff]
      %v377 = vld [vmem:[%s4 + $0x1a0] sm:$0xff]
      %v378 = vld [vmem:[%s4 + $0x1a8] sm:$0xff]
      %v379 = vld [vmem:[%s4 + $0x1b0] sm:$0xff]
      %v380 = vld [vmem:[%s4 + $0x1b8] sm:$0xff]
      %v381 = vld [vmem:[%s4 + $0x1c0] sm:$0xff]
      %v382 = vld [vmem:[%s4 + $0x1c8] sm:$0xff]
      %v383 = vld [vmem:[%s4 + $0x1d0] sm:$0xff]
      %v384 = vld [vmem:[%s4 + $0x1d8] sm:$0xff]
      %v385 = vld [vmem:[%s4 + $0x1e0] sm:$0xff]
      %v386 = vld [vmem:[%s4 + $0x1e8] sm:$0xff]
      %v387 = vld [vmem:[%s4 + $0x1f0] sm:$0xff]
      %v388 = vld [vmem:[%s4 + $0x1f8] sm:$0xff]
      %v389 = vld [vmem:[%s4 + $0x200] sm:$0xff]
      %v390 = vld [vmem:[%s4 + $0x208] sm:$0xff]
      %v391 = vld [vmem:[%s4 + $0x210] sm:$0xff]
      %v392 = vld [vmem:[%s4 + $0x218] sm:$0xff]
      %v393 = vld [vmem:[%s4 + $0x220] sm:$0xff]
      %v394 = vld [vmem:[%s4 + $0x228] sm:$0xff]
      %v395 = vld [vmem:[%s4 + $0x230] sm:$0xff]
      %v396 = vld [vmem:[%s4 + $0x238] sm:$0xff]
      %v397 = vld [vmem:[%s4 + $0x240] sm:$0xff]
      %v398 = vld [vmem:[%s4 + $0x248] sm:$0xff]
      %v399 = vld [vmem:[%s4 + $0x250] sm:$0xff]
      %v400 = vld [vmem:[%s4 + $0x258] sm:$0xff]
      %v401 = vld [vmem:[%s4 + $0x260] sm:$0xff]
      %v402 = vld [vmem:[%s4 + $0x268] sm:$0xff]
      %v403 = vld [vmem:[%s4 + $0x270] sm:$0xff]
      %v404 = vld [vmem:[%s4 + $0x278] sm:$0xff]
      %v405 = vld [vmem:[%s4 + $0x280] sm:$0xff]
      %v406 = vld [vmem:[%s4 + $0x288] sm:$0xff]
      %v407 = vld [vmem:[%s4 + $0x290] sm:$0xff]
      %v408 = vld [vmem:[%s4 + $0x298] sm:$0xff]
      %v409 = vld [vmem:[%s4 + $0x2a0] sm:$0xff]
      %v410 = vld [vmem:[%s4 + $0x2a8] sm:$0xff]
      %v411 = vld [vmem:[%s4 + $0x2b0] sm:$0xff]
      %v412 = vld [vmem:[%s4 + $0x2b8] sm:$0xff]
      %v413 = vld [vmem:[%s4 + $0x2c0] sm:$0xff]
      %v414 = vld [vmem:[%s4 + $0x2c8] sm:$0xff]
      %v415 = vld [vmem:[%s4 + $0x2d0] sm:$0xff]
      %v416 = vld [vmem:[%s4 + $0x2d8] sm:$0xff]
      %v417 = vld [vmem:[%s4 + $0x2e0] sm:$0xff]
      %v418 = vld [vmem:[%s4 + $0x2e8] sm:$0xff]
      %v419 = vld [vmem:[%s4 + $0x2f0] sm:$0xff]
      %v420 = vld [vmem:[%s4 + $0x2f8] sm:$0xff]
      %v421 = vld [vmem:[%s4 + $0x300] sm:$0xff]
      %v422 = vld [vmem:[%s4 + $0x308] sm:$0xff]
      %v423 = vld [vmem:[%s4 + $0x310] sm:$0xff]
      %v424 = vld [vmem:[%s4 + $0x318] sm:$0xff]
      %v425 = vld [vmem:[%s4 + $0x320] sm:$0xff]
      %v426 = vld [vmem:[%s4 + $0x328] sm:$0xff]
      %v427 = vld [vmem:[%s4 + $0x330] sm:$0xff]
      %v428 = vld [vmem:[%s4 + $0x338] sm:$0xff]
      %v429 = vld [vmem:[%s4 + $0x340] sm:$0xff]
      %v430 = vld [vmem:[%s4 + $0x348] sm:$0xff]
      %v431 = vld [vmem:[%s4 + $0x350] sm:$0xff]
      %v432 = vld [vmem:[%s4 + $0x358] sm:$0xff]
      %v433 = vld [vmem:[%s4 + $0x360] sm:$0xff]
      %v434 = vld [vmem:[%s4 + $0x368] sm:$0xff]
      %v435 = vld [vmem:[%s4 + $0x370] sm:$0xff]
      %v436 = vld [vmem:[%s4 + $0x378] sm:$0xff]
      %v437 = vld [vmem:[%s4 + $0x380] sm:$0xff]
      %v438 = vld [vmem:[%s4 + $0x388] sm:$0xff]
      %v439 = vld [vmem:[%s4 + $0x390] sm:$0xff]
      %v440 = vld [vmem:[%s4 + $0x398] sm:$0xff]
      %v441 = vld [vmem:[%s4 + $0x3a0] sm:$0xff]
      %v442 = vld [vmem:[%s4 + $0x3a8] sm:$0xff]
      %v443 = vld [vmem:[%s4 + $0x3b0] sm:$0xff]
      %v444 = vld [vmem:[%s4 + $0x3b8] sm:$0xff]
      %v445 = vld [vmem:[%s4 + $0x3c0] sm:$0xff]
      %v446 = vld [vmem:[%s4 + $0x3c8] sm:$0xff]
      %v447 = vld [vmem:[%s4 + $0x3d0] sm:$0xff]
      %v448 = vld [vmem:[%s4 + $0x3d8] sm:$0xff]
      %v449 = vld [vmem:[%s4 + $0x3e0] sm:$0xff]
      %v450 = vld [vmem:[%s4 + $0x3e8] sm:$0xff]
      %v451 = vld [vmem:[%s4 + $0x3f0] sm:$0xff]
      %v452 = vld [vmem:[%s4 + $0x3f8] sm:$0xff]
      %v581 = vunpack.c.l.b16 %v325
      %v582 = vunpack.c.h.b16 %v325
      %v583 = vunpack.c.l.b16 %v326
      %v584 = vunpack.c.h.b16 %v326
      %v585 = vunpack.c.l.b16 %v327
      %v586 = vunpack.c.h.b16 %v327
      %v587 = vunpack.c.l.b16 %v328
      %v588 = vunpack.c.h.b16 %v328
      %v589 = vunpack.c.l.b16 %v329
      %v590 = vunpack.c.h.b16 %v329
      %v591 = vunpack.c.l.b16 %v330
      %v592 = vunpack.c.h.b16 %v330
      %v593 = vunpack.c.l.b16 %v331
      %v594 = vunpack.c.h.b16 %v331
      %v595 = vunpack.c.l.b16 %v332
      %v596 = vunpack.c.h.b16 %v332
      %v597 = vunpack.c.l.b16 %v333
      %v598 = vunpack.c.h.b16 %v333
      %v599 = vunpack.c.l.b16 %v334
      %v600 = vunpack.c.h.b16 %v334
      %v601 = vunpack.c.l.b16 %v335
      %v602 = vunpack.c.h.b16 %v335
      %v603 = vunpack.c.l.b16 %v336
      %v604 = vunpack.c.h.b16 %v336
      %v605 = vunpack.c.l.b16 %v337
      %v606 = vunpack.c.h.b16 %v337
      %v607 = vunpack.c.l.b16 %v338
      %v608 = vunpack.c.h.b16 %v338
      %v609 = vunpack.c.l.b16 %v339
      %v610 = vunpack.c.h.b16 %v339
      %v611 = vunpack.c.l.b16 %v340
      %v612 = vunpack.c.h.b16 %v340
      %v613 = vunpack.c.l.b16 %v341
      %v614 = vunpack.c.h.b16 %v341
      %v615 = vunpack.c.l.b16 %v342
      %v616 = vunpack.c.h.b16 %v342
      %v617 = vunpack.c.l.b16 %v343
      %v618 = vunpack.c.h.b16 %v343
      %v619 = vunpack.c.l.b16 %v344
      %v620 = vunpack.c.h.b16 %v344
      %v621 = vunpack.c.l.b16 %v345
      %v622 = vunpack.c.h.b16 %v345
      %v623 = vunpack.c.l.b16 %v346
      %v624 = vunpack.c.h.b16 %v346
      %v625 = vunpack.c.l.b16 %v347
      %v626 = vunpack.c.h.b16 %v347
      %v627 = vunpack.c.l.b16 %v348
      %v628 = vunpack.c.h.b16 %v348
      %v629 = vunpack.c.l.b16 %v349
      %v630 = vunpack.c.h.b16 %v349
      %v631 = vunpack.c.l.b16 %v350
      %v632 = vunpack.c.h.b16 %v350
      %v633 = vunpack.c.l.b16 %v351
      %v634 = vunpack.c.h.b16 %v351
      %v635 = vunpack.c.l.b16 %v352
      %v636 = vunpack.c.h.b16 %v352
      %v637 = vunpack.c.l.b16 %v353
      %v638 = vunpack.c.h.b16 %v353
      %v639 = vunpack.c.l.b16 %v354
      %v640 = vunpack.c.h.b16 %v354
      %v641 = vunpack.c.l.b16 %v355
      %v642 = vunpack.c.h.b16 %v355
      %v643 = vunpack.c.l.b16 %v356
      %v644 = vunpack.c.h.b16 %v356
      %v645 = vunpack.c.l.b16 %v357
      %v646 = vunpack.c.h.b16 %v357
      %v647 = vunpack.c.l.b16 %v358
      %v648 = vunpack.c.h.b16 %v358
      %v649 = vunpack.c.l.b16 %v359
      %v650 = vunpack.c.h.b16 %v359
      %v651 = vunpack.c.l.b16 %v360
      %v652 = vunpack.c.h.b16 %v360
      %v653 = vunpack.c.l.b16 %v361
      %v654 = vunpack.c.h.b16 %v361
      %v655 = vunpack.c.l.b16 %v362
      %v656 = vunpack.c.h.b16 %v362
      %v657 = vunpack.c.l.b16 %v363
      %v658 = vunpack.c.h.b16 %v363
      %v659 = vunpack.c.l.b16 %v364
      %v660 = vunpack.c.h.b16 %v364
      %v661 = vunpack.c.l.b16 %v365
      %v662 = vunpack.c.h.b16 %v365
      %v663 = vunpack.c.l.b16 %v366
      %v664 = vunpack.c.h.b16 %v366
      %v665 = vunpack.c.l.b16 %v367
      %v666 = vunpack.c.h.b16 %v367
      %v667 = vunpack.c.l.b16 %v368
      %v668 = vunpack.c.h.b16 %v368
      %v669 = vunpack.c.l.b16 %v369
      %v670 = vunpack.c.h.b16 %v369
      %v671 = vunpack.c.l.b16 %v370
      %v672 = vunpack.c.h.b16 %v370
      %v673 = vunpack.c.l.b16 %v371
      %v674 = vunpack.c.h.b16 %v371
      %v675 = vunpack.c.l.b16 %v372
      %v676 = vunpack.c.h.b16 %v372
      %v677 = vunpack.c.l.b16 %v373
      %v678 = vunpack.c.h.b16 %v373
      %v679 = vunpack.c.l.b16 %v374
      %v680 = vunpack.c.h.b16 %v374
      %v681 = vunpack.c.l.b16 %v375
      %v682 = vunpack.c.h.b16 %v375
      %v683 = vunpack.c.l.b16 %v376
      %v684 = vunpack.c.h.b16 %v376
      %v685 = vunpack.c.l.b16 %v377
      %v686 = vunpack.c.h.b16 %v377
      %v687 = vunpack.c.l.b16 %v378
      %v688 = vunpack.c.h.b16 %v378
      %v689 = vunpack.c.l.b16 %v379
      %v690 = vunpack.c.h.b16 %v379
      %v691 = vunpack.c.l.b16 %v380
      %v692 = vunpack.c.h.b16 %v380
      %v693 = vunpack.c.l.b16 %v381
      %v694 = vunpack.c.h.b16 %v381
      %v695 = vunpack.c.l.b16 %v382
      %v696 = vunpack.c.h.b16 %v382
      %v697 = vunpack.c.l.b16 %v383
      %v698 = vunpack.c.h.b16 %v383
      %v699 = vunpack.c.l.b16 %v384
      %v700 = vunpack.c.h.b16 %v384
      %v701 = vunpack.c.l.b16 %v385
      %v702 = vunpack.c.h.b16 %v385
      %v703 = vunpack.c.l.b16 %v386
      %v704 = vunpack.c.h.b16 %v386
      %v705 = vunpack.c.l.b16 %v387
      %v706 = vunpack.c.h.b16 %v387
      %v707 = vunpack.c.l.b16 %v388
      %v708 = vunpack.c.h.b16 %v388
      %v709 = vunpack.c.l.b16 %v389
      %v710 = vunpack.c.h.b16 %v389
      %v711 = vunpack.c.l.b16 %v390
      %v712 = vunpack.c.h.b16 %v390
      %v713 = vunpack.c.l.b16 %v391
      %v714 = vunpack.c.h.b16 %v391
      %v715 = vunpack.c.l.b16 %v392
      %v716 = vunpack.c.h.b16 %v392
      %v717 = vunpack.c.l.b16 %v393
      %v718 = vunpack.c.h.b16 %v393
      %v719 = vunpack.c.l.b16 %v394
      %v720 = vunpack.c.h.b16 %v394
      %v721 = vunpack.c.l.b16 %v395
      %v722 = vunpack.c.h.b16 %v395
      %v723 = vunpack.c.l.b16 %v396
      %v724 = vunpack.c.h.b16 %v396
      %v725 = vunpack.c.l.b16 %v397
      %v726 = vunpack.c.h.b16 %v397
      %v727 = vunpack.c.l.b16 %v398
      %v728 = vunpack.c.h.b16 %v398
      %v729 = vunpack.c.l.b16 %v399
      %v730 = vunpack.c.h.b16 %v399
      %v731 = vunpack.c.l.b16 %v400
      %v732 = vunpack.c.h.b16 %v400
      %v733 = vunpack.c.l.b16 %v401
      %v734 = vunpack.c.h.b16 %v401
      %v735 = vunpack.c.l.b16 %v402
      %v736 = vunpack.c.h.b16 %v402
      %v737 = vunpack.c.l.b16 %v403
      %v738 = vunpack.c.h.b16 %v403
      %v739 = vunpack.c.l.b16 %v404
      %v740 = vunpack.c.h.b16 %v404
      %v741 = vunpack.c.l.b16 %v405
      %v742 = vunpack.c.h.b16 %v405
      %v743 = vunpack.c.l.b16 %v406
      %v744 = vunpack.c.h.b16 %v406
      %v745 = vunpack.c.l.b16 %v407
      %v746 = vunpack.c.h.b16 %v407
      %v747 = vunpack.c.l.b16 %v408
      %v748 = vunpack.c.h.b16 %v408
      %v749 = vunpack.c.l.b16 %v409
      %v750 = vunpack.c.h.b16 %v409
      %v751 = vunpack.c.l.b16 %v410
      %v752 = vunpack.c.h.b16 %v410
      %v753 = vunpack.c.l.b16 %v411
      %v754 = vunpack.c.h.b16 %v411
      %v755 = vunpack.c.l.b16 %v412
      %v756 = vunpack.c.h.b16 %v412
      %v757 = vunpack.c.l.b16 %v413
      %v758 = vunpack.c.h.b16 %v413
      %v759 = vunpack.c.l.b16 %v414
      %v760 = vunpack.c.h.b16 %v414
      %v761 = vunpack.c.l.b16 %v415
      %v762 = vunpack.c.h.b16 %v415
      %v763 = vunpack.c.l.b16 %v416
      %v764 = vunpack.c.h.b16 %v416
      %v765 = vunpack.c.l.b16 %v417
      %v766 = vunpack.c.h.b16 %v417
      %v767 = vunpack.c.l.b16 %v418
      %v768 = vunpack.c.h.b16 %v418
      %v769 = vunpack.c.l.b16 %v419
      %v770 = vunpack.c.h.b16 %v419
      %v771 = vunpack.c.l.b16 %v420
      %v772 = vunpack.c.h.b16 %v420
      %v773 = vunpack.c.l.b16 %v421
      %v774 = vunpack.c.h.b16 %v421
      %v775 = vunpack.c.l.b16 %v422
      %v776 = vunpack.c.h.b16 %v422
      %v777 = vunpack.c.l.b16 %v423
      %v778 = vunpack.c.h.b16 %v423
      %v779 = vunpack.c.l.b16 %v424
      %v780 = vunpack.c.h.b16 %v424
      %v781 = vunpack.c.l.b16 %v425
      %v782 = vunpack.c.h.b16 %v425
      %v783 = vunpack.c.l.b16 %v426
      %v784 = vunpack.c.h.b16 %v426
      %v785 = vunpack.c.l.b16 %v427
      %v786 = vunpack.c.h.b16 %v427
      %v787 = vunpack.c.l.b16 %v428
      %v788 = vunpack.c.h.b16 %v428
      %v789 = vunpack.c.l.b16 %v429
      %v790 = vunpack.c.h.b16 %v429
      %v791 = vunpack.c.l.b16 %v430
      %v792 = vunpack.c.h.b16 %v430
      %v793 = vunpack.c.l.b16 %v431
      %v794 = vunpack.c.h.b16 %v431
      %v795 = vunpack.c.l.b16 %v432
      %v796 = vunpack.c.h.b16 %v432
      %v797 = vunpack.c.l.b16 %v433
      %v798 = vunpack.c.h.b16 %v433
      %v799 = vunpack.c.l.b16 %v434
      %v800 = vunpack.c.h.b16 %v434
      %v801 = vunpack.c.l.b16 %v435
      %v802 = vunpack.c.h.b16 %v435
      %v803 = vunpack.c.l.b16 %v436
      %v804 = vunpack.c.h.b16 %v436
      %v805 = vunpack.c.l.b16 %v437
      %v806 = vunpack.c.h.b16 %v437
      %v807 = vunpack.c.l.b16 %v438
      %v808 = vunpack.c.h.b16 %v438
      %v809 = vunpack.c.l.b16 %v439
      %v810 = vunpack.c.h.b16 %v439
      %v811 = vunpack.c.l.b16 %v440
      %v812 = vunpack.c.h.b16 %v440
      %v813 = vunpack.c.l.b16 %v441
      %v814 = vunpack.c.h.b16 %v441
      %v815 = vunpack.c.l.b16 %v442
      %v816 = vunpack.c.h.b16 %v442
      %v817 = vunpack.c.l.b16 %v443
      %v818 = vunpack.c.h.b16 %v443
      %v819 = vunpack.c.l.b16 %v444
      %v820 = vunpack.c.h.b16 %v444
      %v821 = vunpack.c.l.b16 %v445
      %v822 = vunpack.c.h.b16 %v445
      %v823 = vunpack.c.l.b16 %v446
      %v824 = vunpack.c.h.b16 %v446
      %v825 = vunpack.c.l.b16 %v447
      %v826 = vunpack.c.h.b16 %v447
      %v827 = vunpack.c.l.b16 %v448
      %v828 = vunpack.c.h.b16 %v448
      %v829 = vunpack.c.l.b16 %v449
      %v830 = vunpack.c.h.b16 %v449
      %v831 = vunpack.c.l.b16 %v450
      %v832 = vunpack.c.h.b16 %v450
      %v833 = vunpack.c.l.b16 %v451
      %v834 = vunpack.c.h.b16 %v451
      %v835 = vunpack.c.l.b16 %v452
      %v836 = vunpack.c.h.b16 %v452
      %v837 = vpack.c.b16 %v589, %v581
      %v838 = vpack.c.b16 %v590, %v582
      %v839 = vpack.c.b16 %v591, %v583
      %v840 = vpack.c.b16 %v592, %v584
      %v841 = vpack.c.b16 %v593, %v585
      %v842 = vpack.c.b16 %v594, %v586
      %v843 = vpack.c.b16 %v595, %v587
      %v844 = vpack.c.b16 %v596, %v588
      %v845 = vpack.c.b16 %v605, %v597
      %v846 = vpack.c.b16 %v606, %v598
      %v847 = vpack.c.b16 %v607, %v599
      %v848 = vpack.c.b16 %v608, %v600
      %v849 = vpack.c.b16 %v609, %v601
      %v850 = vpack.c.b16 %v610, %v602
      %v851 = vpack.c.b16 %v611, %v603
      %v852 = vpack.c.b16 %v612, %v604
      %v853 = vpack.c.b16 %v621, %v613
      %v854 = vpack.c.b16 %v622, %v614
      %v855 = vpack.c.b16 %v623, %v615
      %v856 = vpack.c.b16 %v624, %v616
      %v857 = vpack.c.b16 %v625, %v617
      %v858 = vpack.c.b16 %v626, %v618
      %v859 = vpack.c.b16 %v627, %v619
      %v860 = vpack.c.b16 %v628, %v620
      %v861 = vpack.c.b16 %v637, %v629
      %v862 = vpack.c.b16 %v638, %v630
      %v863 = vpack.c.b16 %v639, %v631
      %v864 = vpack.c.b16 %v640, %v632
      %v865 = vpack.c.b16 %v641, %v633
      %v866 = vpack.c.b16 %v642, %v634
      %v867 = vpack.c.b16 %v643, %v635
      %v868 = vpack.c.b16 %v644, %v636
      %v869 = vpack.c.b16 %v653, %v645
      %v870 = vpack.c.b16 %v654, %v646
      %v871 = vpack.c.b16 %v655, %v647
      %v872 = vpack.c.b16 %v656, %v648
      %v873 = vpack.c.b16 %v657, %v649
      %v874 = vpack.c.b16 %v658, %v650
      %v875 = vpack.c.b16 %v659, %v651
      %v876 = vpack.c.b16 %v660, %v652
      %v877 = vpack.c.b16 %v669, %v661
      %v878 = vpack.c.b16 %v670, %v662
      %v879 = vpack.c.b16 %v671, %v663
      %v880 = vpack.c.b16 %v672, %v664
      %v881 = vpack.c.b16 %v673, %v665
      %v882 = vpack.c.b16 %v674, %v666
      %v883 = vpack.c.b16 %v675, %v667
      %v884 = vpack.c.b16 %v676, %v668
      %v885 = vpack.c.b16 %v685, %v677
      %v886 = vpack.c.b16 %v686, %v678
      %v887 = vpack.c.b16 %v687, %v679
      %v888 = vpack.c.b16 %v688, %v680
      %v889 = vpack.c.b16 %v689, %v681
      %v890 = vpack.c.b16 %v690, %v682
      %v891 = vpack.c.b16 %v691, %v683
      %v892 = vpack.c.b16 %v692, %v684
      %v893 = vpack.c.b16 %v701, %v693
      %v894 = vpack.c.b16 %v702, %v694
      %v895 = vpack.c.b16 %v703, %v695
      %v896 = vpack.c.b16 %v704, %v696
      %v897 = vpack.c.b16 %v705, %v697
      %v898 = vpack.c.b16 %v706, %v698
      %v899 = vpack.c.b16 %v707, %v699
      %v900 = vpack.c.b16 %v708, %v700
      %v901 = vpack.c.b16 %v717, %v709
      %v902 = vpack.c.b16 %v718, %v710
      %v903 = vpack.c.b16 %v719, %v711
      %v904 = vpack.c.b16 %v720, %v712
      %v905 = vpack.c.b16 %v721, %v713
      %v906 = vpack.c.b16 %v722, %v714
      %v907 = vpack.c.b16 %v723, %v715
      %v908 = vpack.c.b16 %v724, %v716
      %v909 = vpack.c.b16 %v733, %v725
      %v910 = vpack.c.b16 %v734, %v726
      %v911 = vpack.c.b16 %v735, %v727
      %v912 = vpack.c.b16 %v736, %v728
      %v913 = vpack.c.b16 %v737, %v729
      %v914 = vpack.c.b16 %v738, %v730
      %v915 = vpack.c.b16 %v739, %v731
      %v916 = vpack.c.b16 %v740, %v732
      %v917 = vpack.c.b16 %v749, %v741
      %v918 = vpack.c.b16 %v750, %v742
      %v919 = vpack.c.b16 %v751, %v743
      %v920 = vpack.c.b16 %v752, %v744
      %v921 = vpack.c.b16 %v753, %v745
      %v922 = vpack.c.b16 %v754, %v746
      %v923 = vpack.c.b16 %v755, %v747
      %v924 = vpack.c.b16 %v756, %v748
      %v925 = vpack.c.b16 %v765, %v757
      %v926 = vpack.c.b16 %v766, %v758
      %v927 = vpack.c.b16 %v767, %v759
      %v928 = vpack.c.b16 %v768, %v760
      %v929 = vpack.c.b16 %v769, %v761
      %v930 = vpack.c.b16 %v770, %v762
      %v931 = vpack.c.b16 %v771, %v763
      %v932 = vpack.c.b16 %v772, %v764
      %v933 = vpack.c.b16 %v781, %v773
      %v934 = vpack.c.b16 %v782, %v774
      %v935 = vpack.c.b16 %v783, %v775
      %v936 = vpack.c.b16 %v784, %v776
      %v937 = vpack.c.b16 %v785, %v777
      %v938 = vpack.c.b16 %v786, %v778
      %v939 = vpack.c.b16 %v787, %v779
      %v940 = vpack.c.b16 %v788, %v780
      %v941 = vpack.c.b16 %v797, %v789
      %v942 = vpack.c.b16 %v798, %v790
      %v943 = vpack.c.b16 %v799, %v791
      %v944 = vpack.c.b16 %v800, %v792
      %v945 = vpack.c.b16 %v801, %v793
      %v946 = vpack.c.b16 %v802, %v794
      %v947 = vpack.c.b16 %v803, %v795
      %v948 = vpack.c.b16 %v804, %v796
      %v949 = vpack.c.b16 %v813, %v805
      %v950 = vpack.c.b16 %v814, %v806
      %v951 = vpack.c.b16 %v815, %v807
      %v952 = vpack.c.b16 %v816, %v808
      %v953 = vpack.c.b16 %v817, %v809
      %v954 = vpack.c.b16 %v818, %v810
      %v955 = vpack.c.b16 %v819, %v811
      %v956 = vpack.c.b16 %v820, %v812
      %v957 = vpack.c.b16 %v829, %v821
      %v958 = vpack.c.b16 %v830, %v822
      %v959 = vpack.c.b16 %v831, %v823
      %v960 = vpack.c.b16 %v832, %v824
      %v961 = vpack.c.b16 %v833, %v825
      %v962 = vpack.c.b16 %v834, %v826
      %v963 = vpack.c.b16 %v835, %v827
      %v964 = vpack.c.b16 %v836, %v828
      %1093 = vmatprep.subr.bf16.mxu0 %v838
      %1094 = vmatpush1.bf16.msra.mxu0 %v837
      %1095 = vmatprep.subr.bf16.mxu0 %v846
      %1096 = vmatpush1.bf16.msra.mxu0 %v845
      %1097 = vmatprep.subr.bf16.mxu0 %v854
      %1098 = vmatpush1.bf16.msra.mxu0 %v853
      %1099 = vmatprep.subr.bf16.mxu0 %v862
      %1100 = vmatpush1.bf16.msra.mxu0 %v861
      %1101 = vmatprep.subr.bf16.mxu0 %v870
      %1102 = vmatpush1.bf16.msra.mxu0 %v869
      %1103 = vmatprep.subr.bf16.mxu0 %v878
      %1104 = vmatpush1.bf16.msra.mxu0 %v877
      %1105 = vmatprep.subr.bf16.mxu0 %v886
      %1106 = vmatpush1.bf16.msra.mxu0 %v885
      %1107 = vmatprep.subr.bf16.mxu0 %v894
      %1108 = vmatpush1.bf16.msra.mxu0 %v893
      %1109 = vmatprep.subr.bf16.mxu0 %v902
      %1110 = vmatpush1.bf16.msra.mxu0 %v901
      %1111 = vmatprep.subr.bf16.mxu0 %v910
      %1112 = vmatpush1.bf16.msra.mxu0 %v909
      %1113 = vmatprep.subr.bf16.mxu0 %v918
      %1114 = vmatpush1.bf16.msra.mxu0 %v917
      %1115 = vmatprep.subr.bf16.mxu0 %v926
      %1116 = vmatpush1.bf16.msra.mxu0 %v925
      %1117 = vmatprep.subr.bf16.mxu0 %v934
      %1118 = vmatpush1.bf16.msra.mxu0 %v933
      %1119 = vmatprep.subr.bf16.mxu0 %v942
      %1120 = vmatpush1.bf16.msra.mxu0 %v941
      %1121 = vmatprep.subr.bf16.mxu0 %v950
      %1122 = vmatpush1.bf16.msra.mxu0 %v949
      %1123 = vmatprep.subr.bf16.mxu0 %v958
      %1124 = vmatpush1.bf16.msra.mxu0 %v957
      %1125 = vmatprep.mubr.bf16.mxu0 %v324
      %1126 = vmatmul.mubr.bf16.gmra.mrb[0].mxu0 %v323
      %v1127 = vpop.f32.mrb[0].mxu0
      %v1128 = vadd.f32 0.0, %v1127
      %v1129 = vpop.f32.mrb[0].mxu0
      %v1130 = vadd.f32 0.0, %v1129
      %v1131 = vpop.f32.mrb[0].mxu0
      %v1132 = vpop.f32.mrb[0].mxu0
      %1133 = vdwg.mxu0
      %1134 = vmatprep.subr.bf16.mxu0 %v840
      %1135 = vmatpush1.bf16.msra.mxu0 %v839
      %1136 = vmatprep.subr.bf16.mxu0 %v848
      %1137 = vmatpush1.bf16.msra.mxu0 %v847
      %1138 = vmatprep.subr.bf16.mxu0 %v856
      %1139 = vmatpush1.bf16.msra.mxu0 %v855
      %1140 = vmatprep.subr.bf16.mxu0 %v864
      %1141 = vmatpush1.bf16.msra.mxu0 %v863
      %1142 = vmatprep.subr.bf16.mxu0 %v872
      %1143 = vmatpush1.bf16.msra.mxu0 %v871
      %1144 = vmatprep.subr.bf16.mxu0 %v880
      %1145 = vmatpush1.bf16.msra.mxu0 %v879
      %1146 = vmatprep.subr.bf16.mxu0 %v888
      %1147 = vmatpush1.bf16.msra.mxu0 %v887
      %1148 = vmatprep.subr.bf16.mxu0 %v896
      %1149 = vmatpush1.bf16.msra.mxu0 %v895
      %1150 = vmatprep.subr.bf16.mxu0 %v904
      %1151 = vmatpush1.bf16.msra.mxu0 %v903
      %1152 = vmatprep.subr.bf16.mxu0 %v912
      %1153 = vmatpush1.bf16.msra.mxu0 %v911
      %1154 = vmatprep.subr.bf16.mxu0 %v920
      %1155 = vmatpush1.bf16.msra.mxu0 %v919
      %1156 = vmatprep.subr.bf16.mxu0 %v928
      %1157 = vmatpush1.bf16.msra.mxu0 %v927
      %1158 = vmatprep.subr.bf16.mxu0 %v936
      %1159 = vmatpush1.bf16.msra.mxu0 %v935
      %1160 = vmatprep.subr.bf16.mxu0 %v944
      %1161 = vmatpush1.bf16.msra.mxu0 %v943
      %1162 = vmatprep.subr.bf16.mxu0 %v952
      %1163 = vmatpush1.bf16.msra.mxu0 %v951
      %1164 = vmatprep.subr.bf16.mxu0 %v960
      %1165 = vmatpush1.bf16.msra.mxu0 %v959
      %1166 = vmatprep.mubr.bf16.mxu0 %v324
      %1167 = vmatmul.mubr.bf16.gmra.mrb[0].mxu0 %v323
      %v1168 = vpop.f32.mrb[0].mxu0
      %v1169 = vadd.f32 0.0, %v1168
      %v1170 = vpop.f32.mrb[0].mxu0
      %v1171 = vadd.f32 0.0, %v1170
      %v1172 = vpop.f32.mrb[0].mxu0
      %v1173 = vpop.f32.mrb[0].mxu0
      %1174 = vdwg.mxu0
      %1175 = vmatprep.subr.bf16.mxu0 %v842
      %1176 = vmatpush1.bf16.msra.mxu0 %v841
      %1177 = vmatprep.subr.bf16.mxu0 %v850
      %1178 = vmatpush1.bf16.msra.mxu0 %v849
      %1179 = vmatprep.subr.bf16.mxu0 %v858
      %1180 = vmatpush1.bf16.msra.mxu0 %v857
      %1181 = vmatprep.subr.bf16.mxu0 %v866
      %1182 = vmatpush1.bf16.msra.mxu0 %v865
      %1183 = vmatprep.subr.bf16.mxu0 %v874
      %1184 = vmatpush1.bf16.msra.mxu0 %v873
      %1185 = vmatprep.subr.bf16.mxu0 %v882
      %1186 = vmatpush1.bf16.msra.mxu0 %v881
      %1187 = vmatprep.subr.bf16.mxu0 %v890
      %1188 = vmatpush1.bf16.msra.mxu0 %v889
      %1189 = vmatprep.subr.bf16.mxu0 %v898
      %1190 = vmatpush1.bf16.msra.mxu0 %v897
      %1191 = vmatprep.subr.bf16.mxu0 %v906
      %1192 = vmatpush1.bf16.msra.mxu0 %v905
      %1193 = vmatprep.subr.bf16.mxu0 %v914
      %1194 = vmatpush1.bf16.msra.mxu0 %v913
      %1195 = vmatprep.subr.bf16.mxu0 %v922
      %1196 = vmatpush1.bf16.msra.mxu0 %v921
      %1197 = vmatprep.subr.bf16.mxu0 %v930
      %1198 = vmatpush1.bf16.msra.mxu0 %v929
      %1199 = vmatprep.subr.bf16.mxu0 %v938
      %1200 = vmatpush1.bf16.msra.mxu0 %v937
      %1201 = vmatprep.subr.bf16.mxu0 %v946
      %1202 = vmatpush1.bf16.msra.mxu0 %v945
      %1203 = vmatprep.subr.bf16.mxu0 %v954
      %1204 = vmatpush1.bf16.msra.mxu0 %v953
      %1205 = vmatprep.subr.bf16.mxu0 %v962
      %1206 = vmatpush1.bf16.msra.mxu0 %v961
      %1207 = vmatprep.mubr.bf16.mxu0 %v324
      %1208 = vmatmul.mubr.bf16.gmra.mrb[0].mxu0 %v323
      %v1209 = vpop.f32.mrb[0].mxu0
      %v1210 = vadd.f32 0.0, %v1209
      %v1211 = vpop.f32.mrb[0].mxu0
      %v1212 = vadd.f32 0.0, %v1211
      %v1213 = vpop.f32.mrb[0].mxu0
      %v1214 = vpop.f32.mrb[0].mxu0
      %1215 = vdwg.mxu0
      %1216 = vmatprep.subr.bf16.mxu0 %v844
      %1217 = vmatpush1.bf16.msra.mxu0 %v843
      %1218 = vmatprep.subr.bf16.mxu0 %v852
      %1219 = vmatpush1.bf16.msra.mxu0 %v851
      %1220 = vmatprep.subr.bf16.mxu0 %v860
      %1221 = vmatpush1.bf16.msra.mxu0 %v859
      %1222 = vmatprep.subr.bf16.mxu0 %v868
      %1223 = vmatpush1.bf16.msra.mxu0 %v867
      %1224 = vmatprep.subr.bf16.mxu0 %v876
      %1225 = vmatpush1.bf16.msra.mxu0 %v875
      %1226 = vmatprep.subr.bf16.mxu0 %v884
      %1227 = vmatpush1.bf16.msra.mxu0 %v883
      %1228 = vmatprep.subr.bf16.mxu0 %v892
      %1229 = vmatpush1.bf16.msra.mxu0 %v891
      %1230 = vmatprep.subr.bf16.mxu0 %v900
      %1231 = vmatpush1.bf16.msra.mxu0 %v899
      %1232 = vmatprep.subr.bf16.mxu0 %v908
      %1233 = vmatpush1.bf16.msra.mxu0 %v907
      %1234 = vmatprep.subr.bf16.mxu0 %v916
      %1235 = vmatpush1.bf16.msra.mxu0 %v915
      %1236 = vmatprep.subr.bf16.mxu0 %v924
      %1237 = vmatpush1.bf16.msra.mxu0 %v923
      %1238 = vmatprep.subr.bf16.mxu0 %v932
      %1239 = vmatpush1.bf16.msra.mxu0 %v931
      %1240 = vmatprep.subr.bf16.mxu0 %v940
      %1241 = vmatpush1.bf16.msra.mxu0 %v939
      %1242 = vmatprep.subr.bf16.mxu0 %v948
      %1243 = vmatpush1.bf16.msra.mxu0 %v947
      %1244 = vmatprep.subr.bf16.mxu0 %v956
      %1245 = vmatpush1.bf16.msra.mxu0 %v955
      %1246 = vmatprep.subr.bf16.mxu0 %v964
      %1247 = vmatpush1.bf16.msra.mxu0 %v963
      %1248 = vmatprep.mubr.bf16.mxu0 %v324
      %1249 = vmatmul.mubr.bf16.gmra.mrb[0].mxu0 %v323
      %v1250 = vpop.f32.mrb[0].mxu0
      %v1251 = vadd.f32 0.0, %v1250
      %v1252 = vpop.f32.mrb[0].mxu0
      %v1253 = vadd.f32 0.0, %v1252
      %v1254 = vpop.f32.mrb[0].mxu0
      %v1255 = vpop.f32.mrb[0].mxu0
      %1256 = vdwg.mxu0
      %v1257 = vld [vmem:[%s5] sm:$0xf]
      %v1258 = vld [vmem:[%s5 + $0x4] sm:$0xf]
      %v1259 = vld [vmem:[%s5 + $0x8] sm:$0x3]
      %v1260 = vunpack.c.l.bf16 %v1257
      %v1261 = vunpack.c.l.bf16 %v1258
      %v1262 = vunpack.c.l.bf16 %v1259
      %v1263 = vld [vmem:[%s6] sm:$0xff]
      %v1264 = vld [vmem:[%s6 + $0x8] sm:$0xff]
      %v1265 = vld [vmem:[%s6 + $0x10] sm:$0xf]
      %1267 = vset.pattern.permute.xlu0 0
      %1268 = vperm.xlu0 %1267, %v1263
      %v1269 = vpop.permute.xlu0 %1268
      %1272 = vset.pattern.permute.xlu0 0
      %1273 = vperm.xlu0 %1272, %v1264
      %v1274 = vpop.permute.xlu0 %1273
      %1277 = vset.pattern.permute.xlu0 0
      %1278 = vperm.xlu0 %1277, %v1265
      %v1279 = vpop.permute.xlu0 %1278
      %vm1281 = vcmask 64512
      %v1283 = vsel %vm1281, %v1260, 0
      %v1286 = vsel %vm1281, %v1261, 0
      %v1289 = vsel %vm1281, %v1262, 0
      %1291 = vmatprep.subr.mxu0 %v1130
      %1292 = vmatpush1.msra.mxu0 %v1128
      %1293 = vmatprep.subr.mxu0 0.0
      %1294 = vmatpush1.msra.mxu0 0.0
      %1295 = vmatprep.subr.mxu0 0.0
      %1296 = vmatpush1.msra.mxu0 0.0
      %1297 = vmatprep.subr.mxu0 0.0
      %1298 = vmatpush1.msra.mxu0 0.0
      %1299 = vmatprep.subr.mxu0 0.0
      %1300 = vmatpush1.msra.mxu0 0.0
      %1301 = vmatprep.subr.mxu0 0.0
      %1302 = vmatpush1.msra.mxu0 0.0
      %1303 = vmatprep.subr.mxu0 0.0
      %1304 = vmatpush1.msra.mxu0 0.0
      %1305 = vmatprep.subr.mxu0 0.0
      %1306 = vmatpush1.msra.mxu0 0.0
      %1307 = vmatprep.subr.mxu0 0.0
      %1308 = vmatpush1.msra.mxu0 0.0
      %1309 = vmatprep.subr.mxu0 0.0
      %1310 = vmatpush1.msra.mxu0 0.0
      %1311 = vmatprep.subr.mxu0 0.0
      %1312 = vmatpush1.msra.mxu0 0.0
      %1313 = vmatprep.subr.mxu0 0.0
      %1314 = vmatpush1.msra.mxu0 0.0
      %1315 = vmatprep.subr.mxu0 0.0
      %1316 = vmatpush1.msra.mxu0 0.0
      %1317 = vmatprep.subr.mxu0 0.0
      %1318 = vmatpush1.msra.mxu0 0.0
      %1319 = vmatprep.subr.mxu0 0.0
      %1320 = vmatpush1.msra.mxu0 0.0
      %1321 = vmatprep.subr.mxu0 0.0
      %1322 = vmatpush1.msra.mxu0 0.0
      %1323 = vmatprep.subr.mxu0 0.0
      %1324 = vmatpush1.msra.mxu0 0.0
      %1325 = vmatprep.subr.mxu0 0.0
      %1326 = vmatpush1.msra.mxu0 0.0
      %1327 = vmatprep.subr.mxu0 0.0
      %1328 = vmatpush1.msra.mxu0 0.0
      %1329 = vmatprep.subr.mxu0 0.0
      %1330 = vmatpush1.msra.mxu0 0.0
      %1331 = vmatprep.subr.mxu0 0.0
      %1332 = vmatpush1.msra.mxu0 0.0
      %1333 = vmatprep.subr.mxu0 0.0
      %1334 = vmatpush1.msra.mxu0 0.0
      %1335 = vmatprep.subr.mxu0 0.0
      %1336 = vmatpush1.msra.mxu0 0.0
      %1337 = vmatprep.subr.mxu0 0.0
      %1338 = vmatpush1.msra.mxu0 0.0
      %1339 = vmatprep.subr.mxu0 0.0
      %1340 = vmatpush1.msra.mxu0 0.0
      %1341 = vmatprep.subr.mxu0 0.0
      %1342 = vmatpush1.msra.mxu0 0.0
      %1343 = vmatprep.subr.mxu0 0.0
      %1344 = vmatpush1.msra.mxu0 0.0
      %1345 = vmatprep.subr.mxu0 0.0
      %1346 = vmatpush1.msra.mxu0 0.0
      %1347 = vmatprep.subr.mxu0 0.0
      %1348 = vmatpush1.msra.mxu0 0.0
      %1349 = vmatprep.subr.mxu0 0.0
      %1350 = vmatpush1.msra.mxu0 0.0
      %1351 = vmatprep.subr.mxu0 0.0
      %1352 = vmatpush1.msra.mxu0 0.0
      %1353 = vmatprep.subr.mxu0 0.0
      %1354 = vmatpush1.msra.mxu0 0.0
      %1355 = vmatprep.mubr.f32.mxu0 0.0
      %1356 = vmatmul.mubr.f32.gmra.mrb[0].mxu0 %v1283
      %v1357 = vpop.f32.mrb[0].mxu0
      %v1358 = vadd.f32 %v1269, %v1357
      %v1359 = vpop.f32.mrb[0].mxu0
      %v1360 = vadd.f32 %v1269, %v1359
      %1361 = vmatprep.mubr.f32.mxu0 0.0
      %1362 = vmatmul.mubr.f32.gmra.mrb[0].mxu0 %v1286
      %v1363 = vpop.f32.mrb[0].mxu0
      %v1364 = vadd.f32 %v1274, %v1363
      %v1365 = vpop.f32.mrb[0].mxu0
      %v1366 = vadd.f32 %v1274, %v1365
      %1367 = vmatprep.mubr.f32.mxu0 0.0
      %1368 = vmatmul.mubr.f32.gmra.mrb[0].mxu0 %v1289
      %v1369 = vpop.f32.mrb[0].mxu0
      %v1370 = vadd.f32 %v1279, %v1369
      %v1371 = vpop.f32.mrb[0].mxu0
      %v1372 = vadd.f32 %v1279, %v1371
      %1373 = vdwg.mxu0
      %1374 = vmatprep.subr.mxu0 %v1171
      %1375 = vmatpush1.msra.mxu0 %v1169
      %1376 = vmatprep.subr.mxu0 0.0
      %1377 = vmatpush1.msra.mxu0 0.0
      %1378 = vmatprep.subr.mxu0 0.0
      %1379 = vmatpush1.msra.mxu0 0.0
      %1380 = vmatprep.subr.mxu0 0.0
      %1381 = vmatpush1.msra.mxu0 0.0
      %1382 = vmatprep.subr.mxu0 0.0
      %1383 = vmatpush1.msra.mxu0 0.0
      %1384 = vmatprep.subr.mxu0 0.0
      %1385 = vmatpush1.msra.mxu0 0.0
      %1386 = vmatprep.subr.mxu0 0.0
      %1387 = vmatpush1.msra.mxu0 0.0
      %1388 = vmatprep.subr.mxu0 0.0
      %1389 = vmatpush1.msra.mxu0 0.0
      %1390 = vmatprep.subr.mxu0 0.0
      %1391 = vmatpush1.msra.mxu0 0.0
      %1392 = vmatprep.subr.mxu0 0.0
      %1393 = vmatpush1.msra.mxu0 0.0
      %1394 = vmatprep.subr.mxu0 0.0
      %1395 = vmatpush1.msra.mxu0 0.0
      %1396 = vmatprep.subr.mxu0 0.0
      %1397 = vmatpush1.msra.mxu0 0.0
      %1398 = vmatprep.subr.mxu0 0.0
      %1399 = vmatpush1.msra.mxu0 0.0
      %1400 = vmatprep.subr.mxu0 0.0
      %1401 = vmatpush1.msra.mxu0 0.0
      %1402 = vmatprep.subr.mxu0 0.0
      %1403 = vmatpush1.msra.mxu0 0.0
      %1404 = vmatprep.subr.mxu0 0.0
      %1405 = vmatpush1.msra.mxu0 0.0
      %1406 = vmatprep.subr.mxu0 0.0
      %1407 = vmatpush1.msra.mxu0 0.0
      %1408 = vmatprep.subr.mxu0 0.0
      %1409 = vmatpush1.msra.mxu0 0.0
      %1410 = vmatprep.subr.mxu0 0.0
      %1411 = vmatpush1.msra.mxu0 0.0
      %1412 = vmatprep.subr.mxu0 0.0
      %1413 = vmatpush1.msra.mxu0 0.0
      %1414 = vmatprep.subr.mxu0 0.0
      %1415 = vmatpush1.msra.mxu0 0.0
      %1416 = vmatprep.subr.mxu0 0.0
      %1417 = vmatpush1.msra.mxu0 0.0
      %1418 = vmatprep.subr.mxu0 0.0
      %1419 = vmatpush1.msra.mxu0 0.0
      %1420 = vmatprep.subr.mxu0 0.0
      %1421 = vmatpush1.msra.mxu0 0.0
      %1422 = vmatprep.subr.mxu0 0.0
      %1423 = vmatpush1.msra.mxu0 0.0
      %1424 = vmatprep.subr.mxu0 0.0
      %1425 = vmatpush1.msra.mxu0 0.0
      %1426 = vmatprep.subr.mxu0 0.0
      %1427 = vmatpush1.msra.mxu0 0.0
      %1428 = vmatprep.subr.mxu0 0.0
      %1429 = vmatpush1.msra.mxu0 0.0
      %1430 = vmatprep.subr.mxu0 0.0
      %1431 = vmatpush1.msra.mxu0 0.0
      %1432 = vmatprep.subr.mxu0 0.0
      %1433 = vmatpush1.msra.mxu0 0.0
      %1434 = vmatprep.subr.mxu0 0.0
      %1435 = vmatpush1.msra.mxu0 0.0
      %1436 = vmatprep.subr.mxu0 0.0
      %1437 = vmatpush1.msra.mxu0 0.0
      %1438 = vmatprep.mubr.f32.mxu0 0.0
      %1439 = vmatmul.mubr.f32.gmra.mrb[0].mxu0 %v1283
      %v1440 = vpop.f32.mrb[0].mxu0
      %v1441 = vadd.f32 %v1269, %v1440
      %v1442 = vpop.f32.mrb[0].mxu0
      %v1443 = vadd.f32 %v1269, %v1442
      %1444 = vmatprep.mubr.f32.mxu0 0.0
      %1445 = vmatmul.mubr.f32.gmra.mrb[0].mxu0 %v1286
      %v1446 = vpop.f32.mrb[0].mxu0
      %v1447 = vadd.f32 %v1274, %v1446
      %v1448 = vpop.f32.mrb[0].mxu0
      %v1449 = vadd.f32 %v1274, %v1448
      %1450 = vmatprep.mubr.f32.mxu0 0.0
      %1451 = vmatmul.mubr.f32.gmra.mrb[0].mxu0 %v1289
      %v1452 = vpop.f32.mrb[0].mxu0
      %v1453 = vadd.f32 %v1279, %v1452
      %v1454 = vpop.f32.mrb[0].mxu0
      %v1455 = vadd.f32 %v1279, %v1454
      %1456 = vdwg.mxu0
      %1457 = vmatprep.subr.mxu0 %v1212
      %1458 = vmatpush1.msra.mxu0 %v1210
      %1459 = vmatprep.subr.mxu0 0.0
      %1460 = vmatpush1.msra.mxu0 0.0
      %1461 = vmatprep.subr.mxu0 0.0
      %1462 = vmatpush1.msra.mxu0 0.0
      %1463 = vmatprep.subr.mxu0 0.0
      %1464 = vmatpush1.msra.mxu0 0.0
      %1465 = vmatprep.subr.mxu0 0.0
      %1466 = vmatpush1.msra.mxu0 0.0
      %1467 = vmatprep.subr.mxu0 0.0
      %1468 = vmatpush1.msra.mxu0 0.0
      %1469 = vmatprep.subr.mxu0 0.0
      %1470 = vmatpush1.msra.mxu0 0.0
      %1471 = vmatprep.subr.mxu0 0.0
      %1472 = vmatpush1.msra.mxu0 0.0
      %1473 = vmatprep.subr.mxu0 0.0
      %1474 = vmatpush1.msra.mxu0 0.0
      %1475 = vmatprep.subr.mxu0 0.0
      %1476 = vmatpush1.msra.mxu0 0.0
      %1477 = vmatprep.subr.mxu0 0.0
      %1478 = vmatpush1.msra.mxu0 0.0
      %1479 = vmatprep.subr.mxu0 0.0
      %1480 = vmatpush1.msra.mxu0 0.0
      %1481 = vmatprep.subr.mxu0 0.0
      %1482 = vmatpush1.msra.mxu0 0.0
      %1483 = vmatprep.subr.mxu0 0.0
      %1484 = vmatpush1.msra.mxu0 0.0
      %1485 = vmatprep.subr.mxu0 0.0
      %1486 = vmatpush1.msra.mxu0 0.0
      %1487 = vmatprep.subr.mxu0 0.0
      %1488 = vmatpush1.msra.mxu0 0.0
      %1489 = vmatprep.subr.mxu0 0.0
      %1490 = vmatpush1.msra.mxu0 0.0
      %1491 = vmatprep.subr.mxu0 0.0
      %1492 = vmatpush1.msra.mxu0 0.0
      %1493 = vmatprep.subr.mxu0 0.0
      %1494 = vmatpush1.msra.mxu0 0.0
      %1495 = vmatprep.subr.mxu0 0.0
      %1496 = vmatpush1.msra.mxu0 0.0
      %1497 = vmatprep.subr.mxu0 0.0
      %1498 = vmatpush1.msra.mxu0 0.0
      %1499 = vmatprep.subr.mxu0 0.0
      %1500 = vmatpush1.msra.mxu0 0.0
      %1501 = vmatprep.subr.mxu0 0.0
      %1502 = vmatpush1.msra.mxu0 0.0
      %1503 = vmatprep.subr.mxu0 0.0
      %1504 = vmatpush1.msra.mxu0 0.0
      %1505 = vmatprep.subr.mxu0 0.0
      %1506 = vmatpush1.msra.mxu0 0.0
      %1507 = vmatprep.subr.mxu0 0.0
      %1508 = vmatpush1.msra.mxu0 0.0
      %1509 = vmatprep.subr.mxu0 0.0
      %1510 = vmatpush1.msra.mxu0 0.0
      %1511 = vmatprep.subr.mxu0 0.0
      %1512 = vmatpush1.msra.mxu0 0.0
      %1513 = vmatprep.subr.mxu0 0.0
      %1514 = vmatpush1.msra.mxu0 0.0
      %1515 = vmatprep.subr.mxu0 0.0
      %1516 = vmatpush1.msra.mxu0 0.0
      %1517 = vmatprep.subr.mxu0 0.0
      %1518 = vmatpush1.msra.mxu0 0.0
      %1519 = vmatprep.subr.mxu0 0.0
      %1520 = vmatpush1.msra.mxu0 0.0
      %1521 = vmatprep.mubr.f32.mxu0 0.0
      %1522 = vmatmul.mubr.f32.gmra.mrb[0].mxu0 %v1283
      %v1523 = vpop.f32.mrb[0].mxu0
      %v1524 = vadd.f32 %v1269, %v1523
      %v1525 = vpop.f32.mrb[0].mxu0
      %v1526 = vadd.f32 %v1269, %v1525
      %1527 = vmatprep.mubr.f32.mxu0 0.0
      %1528 = vmatmul.mubr.f32.gmra.mrb[0].mxu0 %v1286
      %v1529 = vpop.f32.mrb[0].mxu0
      %v1530 = vadd.f32 %v1274, %v1529
      %v1531 = vpop.f32.mrb[0].mxu0
      %v1532 = vadd.f32 %v1274, %v1531
      %1533 = vmatprep.mubr.f32.mxu0 0.0
      %1534 = vmatmul.mubr.f32.gmra.mrb[0].mxu0 %v1289
      %v1535 = vpop.f32.mrb[0].mxu0
      %v1536 = vadd.f32 %v1279, %v1535
      %v1537 = vpop.f32.mrb[0].mxu0
      %v1538 = vadd.f32 %v1279, %v1537
      %1539 = vdwg.mxu0
      %1540 = vmatprep.subr.mxu0 %v1253
      %1541 = vmatpush1.msra.mxu0 %v1251
      %1542 = vmatprep.subr.mxu0 0.0
      %1543 = vmatpush1.msra.mxu0 0.0
      %1544 = vmatprep.subr.mxu0 0.0
      %1545 = vmatpush1.msra.mxu0 0.0
      %1546 = vmatprep.subr.mxu0 0.0
      %1547 = vmatpush1.msra.mxu0 0.0
      %1548 = vmatprep.subr.mxu0 0.0
      %1549 = vmatpush1.msra.mxu0 0.0
      %1550 = vmatprep.subr.mxu0 0.0
      %1551 = vmatpush1.msra.mxu0 0.0
      %1552 = vmatprep.subr.mxu0 0.0
      %1553 = vmatpush1.msra.mxu0 0.0
      %1554 = vmatprep.subr.mxu0 0.0
      %1555 = vmatpush1.msra.mxu0 0.0
      %1556 = vmatprep.subr.mxu0 0.0
      %1557 = vmatpush1.msra.mxu0 0.0
      %1558 = vmatprep.subr.mxu0 0.0
      %1559 = vmatpush1.msra.mxu0 0.0
      %1560 = vmatprep.subr.mxu0 0.0
      %1561 = vmatpush1.msra.mxu0 0.0
      %1562 = vmatprep.subr.mxu0 0.0
      %1563 = vmatpush1.msra.mxu0 0.0
      %1564 = vmatprep.subr.mxu0 0.0
      %1565 = vmatpush1.msra.mxu0 0.0
      %1566 = vmatprep.subr.mxu0 0.0
      %1567 = vmatpush1.msra.mxu0 0.0
      %1568 = vmatprep.subr.mxu0 0.0
      %1569 = vmatpush1.msra.mxu0 0.0
      %1570 = vmatprep.subr.mxu0 0.0
      %1571 = vmatpush1.msra.mxu0 0.0
      %1572 = vmatprep.subr.mxu0 0.0
      %1573 = vmatpush1.msra.mxu0 0.0
      %1574 = vmatprep.subr.mxu0 0.0
      %1575 = vmatpush1.msra.mxu0 0.0
      %1576 = vmatprep.subr.mxu0 0.0
      %1577 = vmatpush1.msra.mxu0 0.0
      %1578 = vmatprep.subr.mxu0 0.0
      %1579 = vmatpush1.msra.mxu0 0.0
      %1580 = vmatprep.subr.mxu0 0.0
      %1581 = vmatpush1.msra.mxu0 0.0
      %1582 = vmatprep.subr.mxu0 0.0
      %1583 = vmatpush1.msra.mxu0 0.0
      %1584 = vmatprep.subr.mxu0 0.0
      %1585 = vmatpush1.msra.mxu0 0.0
      %1586 = vmatprep.subr.mxu0 0.0
      %1587 = vmatpush1.msra.mxu0 0.0
      %1588 = vmatprep.subr.mxu0 0.0
      %1589 = vmatpush1.msra.mxu0 0.0
      %1590 = vmatprep.subr.mxu0 0.0
      %1591 = vmatpush1.msra.mxu0 0.0
      %1592 = vmatprep.subr.mxu0 0.0
      %1593 = vmatpush1.msra.mxu0 0.0
      %1594 = vmatprep.subr.mxu0 0.0
      %1595 = vmatpush1.msra.mxu0 0.0
      %1596 = vmatprep.subr.mxu0 0.0
      %1597 = vmatpush1.msra.mxu0 0.0
      %1598 = vmatprep.subr.mxu0 0.0
      %1599 = vmatpush1.msra.mxu0 0.0
      %1600 = vmatprep.subr.mxu0 0.0
      %1601 = vmatpush1.msra.mxu0 0.0
      %1602 = vmatprep.subr.mxu0 0.0
      %1603 = vmatpush1.msra.mxu0 0.0
      %1604 = vmatprep.mubr.f32.mxu0 0.0
      %1605 = vmatmul.mubr.f32.gmra.mrb[0].mxu0 %v1283
      %v1606 = vpop.f32.mrb[0].mxu0
      %v1607 = vadd.f32 %v1269, %v1606
      %v1608 = vpop.f32.mrb[0].mxu0
      %v1609 = vadd.f32 %v1269, %v1608
      %1610 = vmatprep.mubr.f32.mxu0 0.0
      %1611 = vmatmul.mubr.f32.gmra.mrb[0].mxu0 %v1286
      %v1612 = vpop.f32.mrb[0].mxu0
      %v1613 = vadd.f32 %v1274, %v1612
      %v1614 = vpop.f32.mrb[0].mxu0
      %v1615 = vadd.f32 %v1274, %v1614
      %1616 = vmatprep.mubr.f32.mxu0 0.0
      %1617 = vmatmul.mubr.f32.gmra.mrb[0].mxu0 %v1289
      %v1618 = vpop.f32.mrb[0].mxu0
      %v1619 = vadd.f32 %v1279, %v1618
      %v1620 = vpop.f32.mrb[0].mxu0
      %v1621 = vadd.f32 %v1279, %v1620
      %1622 = vdwg.mxu0
      %v1623 = vxor.u32 %v1358, 2147483648
      %v1624 = vxor.u32 %v1360, 2147483648
      %v1625 = vxor.u32 %v1441, 2147483648
      %v1626 = vxor.u32 %v1443, 2147483648
      %v1627 = vxor.u32 %v1524, 2147483648
      %v1628 = vxor.u32 %v1526, 2147483648
      %v1629 = vxor.u32 %v1607, 2147483648
      %v1630 = vxor.u32 %v1609, 2147483648
      %v1631 = vxor.u32 %v1364, 2147483648
      %v1632 = vxor.u32 %v1366, 2147483648
      %v1633 = vxor.u32 %v1447, 2147483648
      %v1634 = vxor.u32 %v1449, 2147483648
      %v1635 = vxor.u32 %v1530, 2147483648
      %v1636 = vxor.u32 %v1532, 2147483648
      %v1637 = vxor.u32 %v1613, 2147483648
      %v1638 = vxor.u32 %v1615, 2147483648
      %v1639 = vxor.u32 %v1370, 2147483648
      %v1640 = vxor.u32 %v1372, 2147483648
      %v1641 = vxor.u32 %v1453, 2147483648
      %v1642 = vxor.u32 %v1455, 2147483648
      %v1643 = vxor.u32 %v1536, 2147483648
      %v1644 = vxor.u32 %v1538, 2147483648
      %v1645 = vxor.u32 %v1619, 2147483648
      %v1646 = vxor.u32 %v1621, 2147483648
      %v1647 = vmul.f32 %v1623, 1.442695
      %v1648 = vpow.pop %v1647
      %v1649 = vmul.f32 %v1624, 1.442695
      %v1650 = vpow.pop %v1649
      %v1651 = vmul.f32 %v1625, 1.442695
      %v1652 = vpow.pop %v1651
      %v1653 = vmul.f32 %v1626, 1.442695
      %v1654 = vpow.pop %v1653
      %v1655 = vmul.f32 %v1627, 1.442695
      %v1656 = vpow.pop %v1655
      %v1657 = vmul.f32 %v1628, 1.442695
      %v1658 = vpow.pop %v1657
      %v1659 = vmul.f32 %v1629, 1.442695
      %v1660 = vpow.pop %v1659
      %v1661 = vmul.f32 %v1630, 1.442695
      %v1662 = vpow.pop %v1661
      %v1663 = vmul.f32 %v1631, 1.442695
      %v1664 = vpow.pop %v1663
      %v1665 = vmul.f32 %v1632, 1.442695
      %v1666 = vpow.pop %v1665
      %v1667 = vmul.f32 %v1633, 1.442695
      %v1668 = vpow.pop %v1667
      %v1669 = vmul.f32 %v1634, 1.442695
      %v1670 = vpow.pop %v1669
      %v1671 = vmul.f32 %v1635, 1.442695
      %v1672 = vpow.pop %v1671
      %v1673 = vmul.f32 %v1636, 1.442695
      %v1674 = vpow.pop %v1673
      %v1675 = vmul.f32 %v1637, 1.442695
      %v1676 = vpow.pop %v1675
      %v1677 = vmul.f32 %v1638, 1.442695
      %v1678 = vpow.pop %v1677
      %v1679 = vmul.f32 %v1639, 1.442695
      %v1680 = vpow.pop %v1679
      %v1681 = vmul.f32 %v1640, 1.442695
      %v1682 = vpow.pop %v1681
      %v1683 = vmul.f32 %v1641, 1.442695
      %v1684 = vpow.pop %v1683
      %v1685 = vmul.f32 %v1642, 1.442695
      %v1686 = vpow.pop %v1685
      %v1687 = vmul.f32 %v1643, 1.442695
      %v1688 = vpow.pop %v1687
      %v1689 = vmul.f32 %v1644, 1.442695
      %v1690 = vpow.pop %v1689
      %v1691 = vmul.f32 %v1645, 1.442695
      %v1692 = vpow.pop %v1691
      %v1693 = vmul.f32 %v1646, 1.442695
      %v1694 = vpow.pop %v1693
      %v1695 = vadd.f32 %v1648, 1.0
      %v1696 = vadd.f32 %v1650, 1.0
      %v1697 = vadd.f32 %v1652, 1.0
      %v1698 = vadd.f32 %v1654, 1.0
      %v1699 = vadd.f32 %v1656, 1.0
      %v1700 = vadd.f32 %v1658, 1.0
      %v1701 = vadd.f32 %v1660, 1.0
      %v1702 = vadd.f32 %v1662, 1.0
      %v1703 = vadd.f32 %v1664, 1.0
      %v1704 = vadd.f32 %v1666, 1.0
      %v1705 = vadd.f32 %v1668, 1.0
      %v1706 = vadd.f32 %v1670, 1.0
      %v1707 = vadd.f32 %v1672, 1.0
      %v1708 = vadd.f32 %v1674, 1.0
      %v1709 = vadd.f32 %v1676, 1.0
      %v1710 = vadd.f32 %v1678, 1.0
      %v1711 = vadd.f32 %v1680, 1.0
      %v1712 = vadd.f32 %v1682, 1.0
      %v1713 = vadd.f32 %v1684, 1.0
      %v1714 = vadd.f32 %v1686, 1.0
      %v1715 = vadd.f32 %v1688, 1.0
      %v1716 = vadd.f32 %v1690, 1.0
      %v1717 = vadd.f32 %v1692, 1.0
      %v1718 = vadd.f32 %v1694, 1.0
      %v1719 = vrcp.pop %v1695
      %v1720 = vmul.f32 1.0, %v1719
      %v1721 = vrcp.pop %v1696
      %v1722 = vmul.f32 1.0, %v1721
      %v1723 = vrcp.pop %v1697
      %v1724 = vmul.f32 1.0, %v1723
      %v1725 = vrcp.pop %v1698
      %v1726 = vmul.f32 1.0, %v1725
      %v1727 = vrcp.pop %v1699
      %v1728 = vmul.f32 1.0, %v1727
      %v1729 = vrcp.pop %v1700
      %v1730 = vmul.f32 1.0, %v1729
      %v1731 = vrcp.pop %v1701
      %v1732 = vmul.f32 1.0, %v1731
      %v1733 = vrcp.pop %v1702
      %v1734 = vmul.f32 1.0, %v1733
      %v1735 = vrcp.pop %v1703
      %v1736 = vmul.f32 1.0, %v1735
      %v1737 = vrcp.pop %v1704
      %v1738 = vmul.f32 1.0, %v1737
      %v1739 = vrcp.pop %v1705
      %v1740 = vmul.f32 1.0, %v1739
      %v1741 = vrcp.pop %v1706
      %v1742 = vmul.f32 1.0, %v1741
      %v1743 = vrcp.pop %v1707
      %v1744 = vmul.f32 1.0, %v1743
      %v1745 = vrcp.pop %v1708
      %v1746 = vmul.f32 1.0, %v1745
      %v1747 = vrcp.pop %v1709
      %v1748 = vmul.f32 1.0, %v1747
      %v1749 = vrcp.pop %v1710
      %v1750 = vmul.f32 1.0, %v1749
      %v1751 = vrcp.pop %v1711
      %v1752 = vmul.f32 1.0, %v1751
      %v1753 = vrcp.pop %v1712
      %v1754 = vmul.f32 1.0, %v1753
      %v1755 = vrcp.pop %v1713
      %v1756 = vmul.f32 1.0, %v1755
      %v1757 = vrcp.pop %v1714
      %v1758 = vmul.f32 1.0, %v1757
      %v1759 = vrcp.pop %v1715
      %v1760 = vmul.f32 1.0, %v1759
      %v1761 = vrcp.pop %v1716
      %v1762 = vmul.f32 1.0, %v1761
      %v1763 = vrcp.pop %v1717
      %v1764 = vmul.f32 1.0, %v1763
      %v1765 = vrcp.pop %v1718
      %v1766 = vmul.f32 1.0, %v1765
      %1767 = vst [vmem:[%s298] sm:$0xff] %v1720
      %1768 = vst [vmem:[%s298 + $0x8] sm:$0xff] %v1722
      %1769 = vst [vmem:[%s298 + $0x10] sm:$0xff] %v1724
      %1770 = vst [vmem:[%s298 + $0x18] sm:$0xff] %v1726
      %1771 = vst [vmem:[%s298 + $0x20] sm:$0xff] %v1728
      %1772 = vst [vmem:[%s298 + $0x28] sm:$0xff] %v1730
      %1773 = vst [vmem:[%s298 + $0x30] sm:$0xff] %v1732
      %1774 = vst [vmem:[%s298 + $0x38] sm:$0xff] %v1734
      %1775 = vst [vmem:[%s298 + $0x40] sm:$0xff] %v1736
      %1776 = vst [vmem:[%s298 + $0x48] sm:$0xff] %v1738
      %1777 = vst [vmem:[%s298 + $0x50] sm:$0xff] %v1740
      %1778 = vst [vmem:[%s298 + $0x58] sm:$0xff] %v1742
      %1779 = vst [vmem:[%s298 + $0x60] sm:$0xff] %v1744
      %1780 = vst [vmem:[%s298 + $0x68] sm:$0xff] %v1746
      %1781 = vst [vmem:[%s298 + $0x70] sm:$0xff] %v1748
      %1782 = vst [vmem:[%s298 + $0x78] sm:$0xff] %v1750
      %1783 = vst [vmem:[%s298 + $0x80] sm:$0xf] %v1752
      %1784 = vst [vmem:[%s298 + $0x88] sm:$0xf] %v1754
      %1785 = vst [vmem:[%s298 + $0x90] sm:$0xf] %v1756
      %1786 = vst [vmem:[%s298 + $0x98] sm:$0xf] %v1758
      %1787 = vst [vmem:[%s298 + $0xa0] sm:$0xf] %v1760
      %1788 = vst [vmem:[%s298 + $0xa8] sm:$0xf] %v1762
      %1789 = vst [vmem:[%s298 + $0xb0] sm:$0xf] %v1764
      %1790 = vst [vmem:[%s298 + $0xb8] sm:$0xf] %v1766
      %p1791 = scmp.lt.s32.totalorder %s18, 1
      %s1792 = scalar_select %p1791, %s18, 1
      %s1793 = smul.addr %s1792, 24
      %s1794 = smul.addr %s1793, 8
      %s1795 = scalar_lea.vmem %s7, %s1794
      // Predicated region
      $region49: #{resnet_forward.9} parent=47 // pred_check
        %p1796 = pneg %p193
      $region50: #{resnet_forward.9} parent=47 // pred_check_branch
        %1798 = sbr.rel (%p1796) target = $region52
      $region51: #{resnet_forward.9} parent=47 // pred_region
        _
      $region52: #{resnet_forward.9} parent=47 // pred_fallthru
        _
    $region48: #{resnet_forward.9} parent=5 // pred_fallthru
      _
    %p1799 = scmp.le.s32.totalorder 2, %s13
    // Predicated region
    $region53: #{resnet_forward.9} parent=5 // pred_check
      %p1800 = pneg %p1799
    $region54: #{resnet_forward.9} parent=5 // pred_check_branch
      %1802 = sbr.rel (%p1800) target = $region56
    $region55: #{resnet_forward.9} parent=5 // pred_region
      %s1803 = ssub.s32 %s13, 2
      // Predicated region
      $region57: #{resnet_forward.9} parent=55 // pred_check
        %p1804 = pneg %p199
      $region58: #{resnet_forward.9} parent=55 // pred_check_branch
        %1806 = sbr.rel (%p1804) target = $region60
      $region59: #{resnet_forward.9} parent=55 // pred_region
        %p1807 = scmp.lt.s32.totalorder %s19, 1
        %s1808 = scalar_select %p1807, %s19, 1
        %s1809 = smul.addr %s1808, 24
        %s1810 = smul.addr %s1809, 8
        %s1811 = scalar_lea.vmem %s7, %s1810
      $region60: #{resnet_forward.9} parent=55 // pred_fallthru
        _
    $region56: #{resnet_forward.9} parent=5 // pred_fallthru
      _
  $region6: #{resnet_forward.9} parent=0 // loop_footer
    %s17 = sadd.s32 1, %s13
  $region7: #{resnet_forward.9} parent=0 // loop_footer_branch
    %12 = sbr.rel target = $region3
  $region8: #{resnet_forward.9} parent=0 // loop_exit
    _

</llo_original>
